<compile_context>
chip_gen: v7x
topology: tpu7x:2x2x1
jax: 0.10.0
libtpu: 0.0.40
codegen_flags: <defaults>
</compile_context>

<pallas_src>
import functools

import jax
import jax.numpy as jnp
from jax.experimental import pallas as pl
from jax.experimental.pallas import tpu as pltpu
from jax.scipy.special import erf as _erf_exact  # reference check only (outside the kernel)


def _round_up(v, m):
    return (v + m - 1) // m * m


def _default_gelu_dtype():
    # bf16 elementwise epilogue only on chips with a bf16 VPU (v6e/v7x); f32 on v5e and older.
    try:
        kind = jax.devices()[0].device_kind.lower()
    except Exception:
        return jnp.float32
    for old in ("v2", "v3", "v4", "v5"):
        if old in kind:
            return jnp.float32
    return jnp.bfloat16


def _erf_approx(x):
    # Abramowitz & Stegun 7.1.26 rational approximation (max abs err ~1.5e-7 in f32), built
    # only from ops with guaranteed Mosaic lowerings (mul/add/abs/where/exp/reciprocal).
    a1, a2, a3, a4, a5 = 0.254829592, -0.284496736, 1.421413741, -1.453152027, 1.061405429
    p = 0.3275911
    one = jnp.asarray(1.0, x.dtype)
    sign = jnp.where(x >= 0, one, -one)
    ax = jnp.abs(x)
    denom = 1.0 + p * ax
    if x.dtype == jnp.float32:
        t = pl.reciprocal(denom, approx=True)   # EUP slot; erf itself is already approximate
    else:
        t = 1.0 / denom                         # bf16 path (v6e/v7x VPU)
    poly = t * (a1 + t * (a2 + t * (a3 + t * (a4 + t * a5))))
    return sign * (1.0 - poly * jnp.exp(-ax * ax))


def _gelu(x):
    # F.gelu default (approximate='none'): 0.5 * x * (1 + erf(x / sqrt(2)))
    return 0.5 * x * (1.0 + _erf_approx(x * 0.7071067811865476))


def _convnext1d_kernel(Tt, K, pad, eps, gelu_dtype,
                       x_ref,     # (Tt, C)   main time tile (padded-signal rows t*Tt..)
                       halo_ref,  # (HALO, C) next rows [ (t+1)*Tt, (t+1)*Tt + HALO )
                       dw_w_ref,  # (K, C)    depthwise kernel
                       dw_b_ref,  # (1, C)
                       g_ref,     # (1, C)    ChannelNorm scale
                       beta_ref,  # (1, C)    ChannelNorm shift
                       w1_ref,    # (C, H)    bf16
                       b1_ref,    # (1, H)
                       w2_ref,    # (H, C)    bf16
                       b2_ref,    # (1, C)
                       s_ref,     # (1, C)    final per-channel scale
                       out_ref):  # (Tt, C)   f32
    # Window rows [0, Tt + HALO): aligned main tile followed by the right halo.
    xw = jnp.concatenate([x_ref[...], halo_ref[...]], axis=0)      # (Tt+HALO, C) f32
    n_rows = xw.shape[0]
    C = xw.shape[1]

    # ---- depthwise conv (groups == channels): per-tap sublane roll (XLU) instead of
    #      sublane-misaligned slices.  rolled[i] = xw[i + k] for i < Tt (no wraparound
    #      because k <= K-1 <= HALO).  Residual row = tap k == pad.
    acc = jnp.zeros((Tt, C), jnp.float32)
    res = None
    for k in range(K):
        rows = xw if k == 0 else pltpu.roll(xw, n_rows - k, axis=0)
        rows = rows[:Tt, :]                                        # aligned (offset 0)
        acc = acc + rows * dw_w_ref[k:k + 1, :]
        if k == pad:
            res = rows
    y = acc + dw_b_ref[...]

    # ---- ChannelNorm over the channel (lane) axis.  torch x.std(dim=1) is unbiased
    #      (ddof=1) and eps is added to the std (not the variance) -- match exactly.
    mu = jnp.mean(y, axis=-1, keepdims=True)
    diff = y - mu
    var = jnp.sum(diff * diff, axis=-1, keepdims=True) * (1.0 / (C - 1))
    sigma = jnp.sqrt(var) + eps
    inv = pl.reciprocal(sigma, approx=False)
    yn = diff * (inv * g_ref[...]) + beta_ref[...]

    # ---- pointwise conv1 (C -> H), GELU, pointwise conv2 (H -> C) ----
    # bf16 MXU operands, f32 accumulation; GELU epilogue in gelu_dtype (bf16 on v6e/v7x).
    h = jnp.dot(yn.astype(jnp.bfloat16), w1_ref[...], preferred_element_type=jnp.float32)
    h = (h + b1_ref[...]).astype(gelu_dtype)
    h = _gelu(h)
    o = jnp.dot(h.astype(jnp.bfloat16), w2_ref[...], preferred_element_type=jnp.float32)
    o = o + b2_ref[...]

    out_ref[...] = o * s_ref[...] + res


def convnext1d_ntc(x_btc, params, *, kernel_size=7, eps=1e-4, time_tile=512,
                   gelu_dtype=None, single_buffer_weights=False):
    """Native (B, T, C) entry point -- use this between stacked blocks (no transposes)."""
    B, T, C = x_btc.shape
    K = int(kernel_size)
    assert K % 2 == 1, "kernel_size must be odd (padding = K//2 'same' conv)"
    pad = K // 2
    H = params["w1"].shape[1]
    if gelu_dtype is None:
        gelu_dtype = _default_gelu_dtype()

    halo = max(8, _round_up(K - 1, 8))                 # right-halo rows (8-sublane multiple)
    Tt = max(halo, _round_up(min(int(time_tile), T), halo))
    nT = -(-T // Tt)
    T_pad = nT * Tt

    # Reflect-pad time (padding_mode='reflect'); zero-extend so main tiles cover [0, T_pad)
    # and the last tile's right halo [T_pad, T_pad + halo) exists.  Zero rows only feed
    # discarded output rows (>= T).
    xp = jnp.pad(x_btc, ((0, 0), (pad, pad), (0, 0)), mode="reflect")
    extra = (T_pad + halo) - (T + 2 * pad)
    if extra > 0:
        xp = jnp.pad(xp, ((0, 0), (0, extra), (0, 0)))

    # bf16 weights: halves weight DMA/VMEM and feeds the MXU bf16 path (f32 accumulation).
    w1 = params["w1"].astype(jnp.bfloat16)
    w2 = params["w2"].astype(jnp.bfloat16)
    # TODO(synk): fp8 w1/w2 with per-channel scales on v7x once the accuracy budget allows.

    kernel = functools.partial(_convnext1d_kernel, Tt, K, pad, float(eps), gelu_dtype)

    # Grid-invariant operands stay block-resident; on v7x flip single_buffer_weights=True to
    # drop the unused second pipeline buffer (pl.Buffered(1)).
    const_kw = {"pipeline_mode": pl.Buffered(1)} if single_buffer_weights else {}

    def const(shape):
        return pl.BlockSpec(shape, lambda b, t: (0,) * len(shape), **const_kw)

    halo_blocks_per_tile = Tt // halo                  # halo divides Tt by construction

    # Rough per-step VMEM footprint (double-buffered in/out, weights, live intermediates),
    # with 2x headroom, clamped so it also fits v7x's 64 MiB physical VMEM.
    est = (4 * Tt * C * 4                              # main in + out, double-buffered
           + 4 * halo * C * 4                          # halo blocks
           + 4 * (C * H + H * C) * 2                   # bf16 weights, double-buffered
           + (Tt + halo) * C * 4 * (K + 3)             # window + per-tap rolls + y/res
           + Tt * H * 4 * 3)                           # pw1 activation / GELU temporaries
    vmem_limit = int(min(64 * 2 ** 20, max(32 * 2 ** 20, 2 * est)))

    out = pl.pallas_call(
        kernel,
        out_shape=jax.ShapeDtypeStruct((B, T_pad, C), jnp.float32),
        grid_spec=pltpu.PrefetchScalarGridSpec(
            num_scalar_prefetch=0,
            grid=(B, nT),
            in_specs=[
                # main tile: aligned (Tt, C) block of the padded activation
                pl.BlockSpec((None, Tt, C), lambda b, t: (b, t, 0)),
                # right halo: (halo, C) block of the SAME array at element offset (t+1)*Tt
                pl.BlockSpec((None, halo, C),
                             lambda b, t: (b, (t + 1) * halo_blocks_per_tile, 0)),
                const((K, C)),     # dw weight
                const((1, C)),     # dw bias
                const((1, C)),     # norm scale
                const((1, C)),     # norm shift
                const((C, H)),     # pw1 weight (bf16)
                const((1, H)),     # pw1 bias
                const((H, C)),     # pw2 weight (bf16)
                const((1, C)),     # pw2 bias
                const((1, C)),     # final scale
            ],
            out_specs=pl.BlockSpec((None, Tt, C), lambda b, t: (b, t, 0)),
        ),
        compiler_params=pltpu.CompilerParams(
            dimension_semantics=("parallel", "parallel"),
            vmem_limit_bytes=vmem_limit,
        ),
    )(xp, xp, params["dw_w"], params["dw_b"], params["g"], params["beta"],
      w1, params["b1"], w2, params["b2"], params["s"])

    return out if T_pad == T else out[:, :T, :]


def convnext1d(x_nct, params, **kw):
    """Thin NCT adapter matching the PyTorch module interface (B, C, T) -> (B, C, T).
    For stacked ConvNeXt1d blocks call convnext1d_ntc directly and keep activations in
    (B, T, C) to avoid the per-block HBM transpose round trip."""
    y = convnext1d_ntc(jnp.transpose(x_nct, (0, 2, 1)), params, **kw)
    return jnp.transpose(y, (0, 2, 1))


def init_params(key, channels, hidden_channels, kernel_size, scale=1.0):
    ks = jax.random.split(key, 4)
    # torch shapes: dw (C,1,K), pw1 (H,C,1), pw2 (C,H,1) -> kernel-friendly layouts
    # (dw_w[k,c] = torch_dw[c,0,k]; w1[c,h] = torch_pw1[h,c,0]; w2[h,c] = torch_pw2[c,h,0]).
    dw_w = 0.1 * jax.random.normal(ks[0], (kernel_size, channels), jnp.float32)
    w1 = 0.05 * jax.random.normal(ks[1], (channels, hidden_channels), jnp.float32)
    w2 = 0.05 * jax.random.normal(ks[2], (hidden_channels, channels), jnp.float32)
    return {
        "dw_w": dw_w,
        "dw_b": 0.01 * jax.random.normal(ks[3], (1, channels), jnp.float32),
        "g": jnp.ones((1, channels), jnp.float32),
        "beta": jnp.zeros((1, channels), jnp.float32),
        "w1": w1,
        "b1": jnp.zeros((1, hidden_channels), jnp.float32),
        "w2": w2,
        "b2": jnp.zeros((1, channels), jnp.float32),
        "s": jnp.full((1, channels), scale, jnp.float32),
    }


def _reference_nct(x_nct, params, kernel_size, eps):
    # Pure-JAX f32 reference of the PyTorch forward (exact erf GELU), NCT in / NCT out.
    K = kernel_size
    pad = K // 2
    x = jnp.transpose(x_nct, (0, 2, 1)).astype(jnp.float32)       # (B, T, C)
    T = x.shape[1]
    xp = jnp.pad(x, ((0, 0), (pad, pad), (0, 0)), mode="reflect")
    y = sum(xp[:, k:k + T, :] * params["dw_w"][k] for k in range(K)) + params["dw_b"][0]
    mu = jnp.mean(y, axis=-1, keepdims=True)
    sigma = jnp.std(y, axis=-1, ddof=1, keepdims=True) + eps
    yn = (y - mu) / sigma * params["g"][0] + params["beta"][0]
    h = yn @ params["w1"] + params["b1"][0]
    h = 0.5 * h * (1.0 + _erf_exact(h * 0.7071067811865476))
    o = h @ params["w2"] + params["b2"][0]
    o = o * params["s"][0] + x
    return jnp.transpose(o, (0, 2, 1))


if __name__ == "__main__":
    # Small but representative: C multiple of 128 (lane-dense), T spans two 512-row time
    # tiles so the (B, nT) = (2, 2) grid and the roll/halo path are actually exercised.
    B, C, T = 2, 128, 1024
    H, K = 384, 7                # hidden = 3x channels (same ratio as 512 -> 1536)

    key = jax.random.PRNGKey(0)
    kx, kp = jax.random.split(key)
    x = jax.random.normal(kx, (B, C, T), jnp.float32)             # NCT, like PyTorch
    params = init_params(kp, C, H, K, scale=1.0)

    fwd = jax.jit(functools.partial(convnext1d, kernel_size=K, eps=1e-4, time_tile=512))
    y = jax.block_until_ready(fwd(x, params))
    assert y.shape == (B, C, T)
    assert bool(jnp.all(jnp.isfinite(y)))

    # Loose parity check vs. an f32 exact-GELU reference (kernel uses bf16 matmul operands,
    # optional bf16 GELU epilogue, and a polynomial erf): catches layout/shift/halo bugs.
    y_ref = _reference_nct(x, params, K, 1e-4)
    max_err = float(jnp.max(jnp.abs(y - y_ref)))
    assert max_err < 0.2, f"max abs err vs f32 reference too large: {max_err}"

    print("KERNEL_OK")
</pallas_src>

<mosaic_0001>
module attributes {stable_mosaic.version = 11 : i64} {
  func.func @_convnext1d_kernel(%arg0: i32, %arg1: i32, %arg2: memref<1x512x128xf32, #tpu.memory_space<vmem>>, %arg3: memref<1x8x128xf32, #tpu.memory_space<vmem>>, %arg4: memref<7x128xf32, #tpu.memory_space<vmem>>, %arg5: memref<1x128xf32, #tpu.memory_space<vmem>>, %arg6: memref<1x128xf32, #tpu.memory_space<vmem>>, %arg7: memref<1x128xf32, #tpu.memory_space<vmem>>, %arg8: memref<128x384xbf16, #tpu.memory_space<vmem>>, %arg9: memref<1x384xf32, #tpu.memory_space<vmem>>, %arg10: memref<384x128xbf16, #tpu.memory_space<vmem>>, %arg11: memref<1x128xf32, #tpu.memory_space<vmem>>, %arg12: memref<1x128xf32, #tpu.memory_space<vmem>>, %arg13: memref<1x512x128xf32, #tpu.memory_space<vmem>>) attributes {dimension_semantics = [#tpu.dimension_semantics<parallel>, #tpu.dimension_semantics<parallel>], iteration_bounds = array<i64: 2, 2>, scalar_prefetch = 0 : i64, scratch_operands = 0 : i64, tpu.core_type = #tpu.core_type<tc>, window_params = [{transform_indices = @transform_0, window_bounds = array<i64: 1, 512, 128>}, {transform_indices = @transform_1, window_bounds = array<i64: 1, 8, 128>}, {pipeline_mode = #tpu.pipeline_mode<synchronous>, transform_indices = @transform_2, window_bounds = array<i64: 7, 128>}, {pipeline_mode = #tpu.pipeline_mode<synchronous>, transform_indices = @transform_3, window_bounds = array<i64: 1, 128>}, {pipeline_mode = #tpu.pipeline_mode<synchronous>, transform_indices = @transform_4, window_bounds = array<i64: 1, 128>}, {pipeline_mode = #tpu.pipeline_mode<synchronous>, transform_indices = @transform_5, window_bounds = array<i64: 1, 128>}, {pipeline_mode = #tpu.pipeline_mode<synchronous>, transform_indices = @transform_6, window_bounds = array<i64: 128, 384>}, {pipeline_mode = #tpu.pipeline_mode<synchronous>, transform_indices = @transform_7, window_bounds = array<i64: 1, 384>}, {pipeline_mode = #tpu.pipeline_mode<synchronous>, transform_indices = @transform_8, window_bounds = array<i64: 384, 128>}, {pipeline_mode = #tpu.pipeline_mode<synchronous>, transform_indices = @transform_9, window_bounds = array<i64: 1, 128>}, {pipeline_mode = #tpu.pipeline_mode<synchronous>, transform_indices = @transform_10, window_bounds = array<i64: 1, 128>}, {transform_indices = @transform_11, window_bounds = array<i64: 1, 512, 128>}]} {
    %c0 = arith.constant 0 : index
    %c0_0 = arith.constant 0 : index
    %c0_1 = arith.constant 0 : index
    %0 = vector.load %arg2[%c0, %c0_0, %c0_1] : memref<1x512x128xf32, #tpu.memory_space<vmem>>, vector<1x512x128xf32>
    %1 = vector.shape_cast %0 : vector<1x512x128xf32> to vector<512x128xf32>
    %c0_2 = arith.constant 0 : index
    %c0_3 = arith.constant 0 : index
    %c0_4 = arith.constant 0 : index
    %2 = vector.load %arg3[%c0_2, %c0_3, %c0_4] : memref<1x8x128xf32, #tpu.memory_space<vmem>>, vector<1x8x128xf32>
    %3 = vector.shape_cast %2 : vector<1x8x128xf32> to vector<8x128xf32>
    %4 = tpu.concatenate %1, %3 in 0 : vector<512x128xf32>, vector<8x128xf32> -> vector<520x128xf32>
    %cst = arith.constant 0.000000e+00 : f32
    %5 = vector.broadcast %cst : f32 to vector<512x128xf32>
    %6 = vector.extract_strided_slice %4 {offsets = [0, 0], sizes = [512, 128], strides = [1, 1]} : vector<520x128xf32> to vector<512x128xf32>
    %c0_5 = arith.constant 0 : index
    %c0_6 = arith.constant 0 : index
    %7 = vector.load %arg4[%c0_5, %c0_6] : memref<7x128xf32, #tpu.memory_space<vmem>>, vector<1x128xf32>
    %8 = vector.broadcast %7 : vector<1x128xf32> to vector<512x128xf32>
    %9 = arith.mulf %6, %8 : vector<512x128xf32>
    %10 = arith.addf %5, %9 : vector<512x128xf32>
    %c519_i32 = arith.constant 519 : i32
    %11 = tpu.dynamic_rotate %4 by %c519_i32 dim 0 : vector<520x128xf32>, i32 -> vector<520x128xf32>
    %12 = vector.extract_strided_slice %11 {offsets = [0, 0], sizes = [512, 128], strides = [1, 1]} : vector<520x128xf32> to vector<512x128xf32>
    %c1 = arith.constant 1 : index
    %c0_7 = arith.constant 0 : index
    %13 = vector.load %arg4[%c1, %c0_7] : memref<7x128xf32, #tpu.memory_space<vmem>>, vector<1x128xf32>
    %14 = vector.broadcast %13 : vector<1x128xf32> to vector<512x128xf32>
    %15 = arith.mulf %12, %14 : vector<512x128xf32>
    %16 = arith.addf %10, %15 : vector<512x128xf32>
    %c518_i32 = arith.constant 518 : i32
    %17 = tpu.dynamic_rotate %4 by %c518_i32 dim 0 : vector<520x128xf32>, i32 -> vector<520x128xf32>
    %18 = vector.extract_strided_slice %17 {offsets = [0, 0], sizes = [512, 128], strides = [1, 1]} : vector<520x128xf32> to vector<512x128xf32>
    %c2 = arith.constant 2 : index
    %c0_8 = arith.constant 0 : index
    %19 = vector.load %arg4[%c2, %c0_8] : memref<7x128xf32, #tpu.memory_space<vmem>>, vector<1x128xf32>
    %20 = vector.broadcast %19 : vector<1x128xf32> to vector<512x128xf32>
    %21 = arith.mulf %18, %20 : vector<512x128xf32>
    %22 = arith.addf %16, %21 : vector<512x128xf32>
    %c517_i32 = arith.constant 517 : i32
    %23 = tpu.dynamic_rotate %4 by %c517_i32 dim 0 : vector<520x128xf32>, i32 -> vector<520x128xf32>
    %24 = vector.extract_strided_slice %23 {offsets = [0, 0], sizes = [512, 128], strides = [1, 1]} : vector<520x128xf32> to vector<512x128xf32>
    %c3 = arith.constant 3 : index
    %c0_9 = arith.constant 0 : index
    %25 = vector.load %arg4[%c3, %c0_9] : memref<7x128xf32, #tpu.memory_space<vmem>>, vector<1x128xf32>
    %26 = vector.broadcast %25 : vector<1x128xf32> to vector<512x128xf32>
    %27 = arith.mulf %24, %26 : vector<512x128xf32>
    %28 = arith.addf %22, %27 : vector<512x128xf32>
    %c516_i32 = arith.constant 516 : i32
    %29 = tpu.dynamic_rotate %4 by %c516_i32 dim 0 : vector<520x128xf32>, i32 -> vector<520x128xf32>
    %30 = vector.extract_strided_slice %29 {offsets = [0, 0], sizes = [512, 128], strides = [1, 1]} : vector<520x128xf32> to vector<512x128xf32>
    %c4 = arith.constant 4 : index
    %c0_10 = arith.constant 0 : index
    %31 = vector.load %arg4[%c4, %c0_10] : memref<7x128xf32, #tpu.memory_space<vmem>>, vector<1x128xf32>
    %32 = vector.broadcast %31 : vector<1x128xf32> to vector<512x128xf32>
    %33 = arith.mulf %30, %32 : vector<512x128xf32>
    %34 = arith.addf %28, %33 : vector<512x128xf32>
    %c515_i32 = arith.constant 515 : i32
    %35 = tpu.dynamic_rotate %4 by %c515_i32 dim 0 : vector<520x128xf32>, i32 -> vector<520x128xf32>
    %36 = vector.extract_strided_slice %35 {offsets = [0, 0], sizes = [512, 128], strides = [1, 1]} : vector<520x128xf32> to vector<512x128xf32>
    %c5 = arith.constant 5 : index
    %c0_11 = arith.constant 0 : index
    %37 = vector.load %arg4[%c5, %c0_11] : memref<7x128xf32, #tpu.memory_space<vmem>>, vector<1x128xf32>
    %38 = vector.broadcast %37 : vector<1x128xf32> to vector<512x128xf32>
    %39 = arith.mulf %36, %38 : vector<512x128xf32>
    %40 = arith.addf %34, %39 : vector<512x128xf32>
    %c514_i32 = arith.constant 514 : i32
    %41 = tpu.dynamic_rotate %4 by %c514_i32 dim 0 : vector<520x128xf32>, i32 -> vector<520x128xf32>
    %42 = vector.extract_strided_slice %41 {offsets = [0, 0], sizes = [512, 128], strides = [1, 1]} : vector<520x128xf32> to vector<512x128xf32>
    %c6 = arith.constant 6 : index
    %c0_12 = arith.constant 0 : index
    %43 = vector.load %arg4[%c6, %c0_12] : memref<7x128xf32, #tpu.memory_space<vmem>>, vector<1x128xf32>
    %44 = vector.broadcast %43 : vector<1x128xf32> to vector<512x128xf32>
    %45 = arith.mulf %42, %44 : vector<512x128xf32>
    %46 = arith.addf %40, %45 : vector<512x128xf32>
    %c0_13 = arith.constant 0 : index
    %c0_14 = arith.constant 0 : index
    %47 = vector.load %arg5[%c0_13, %c0_14] : memref<1x128xf32, #tpu.memory_space<vmem>>, vector<1x128xf32>
    %48 = vector.broadcast %47 : vector<1x128xf32> to vector<512x128xf32>
    %49 = arith.addf %46, %48 : vector<512x128xf32>
    %cst_15 = arith.constant dense<0.000000e+00> : vector<512xf32>
    %50 = vector.multi_reduction <add>, %49, %cst_15 [1] : vector<512x128xf32> to vector<512xf32>
    %51 = vector.shape_cast %50 : vector<512xf32> to vector<512x1xf32>
    %cst_16 = arith.constant 1.280000e+02 : f32
    %52 = vector.broadcast %cst_16 : f32 to vector<512x1xf32>
    %53 = arith.divf %51, %52 : vector<512x1xf32>
    %54 = vector.broadcast %53 : vector<512x1xf32> to vector<512x128xf32>
    %55 = arith.subf %49, %54 : vector<512x128xf32>
    %56 = arith.mulf %55, %55 : vector<512x128xf32>
    %cst_17 = arith.constant dense<0.000000e+00> : vector<512xf32>
    %57 = vector.multi_reduction <add>, %56, %cst_17 [1] : vector<512x128xf32> to vector<512xf32>
    %58 = vector.shape_cast %57 : vector<512xf32> to vector<512x1xf32>
    %cst_18 = arith.constant 0.00787401571 : f32
    %59 = vector.broadcast %cst_18 : f32 to vector<512x1xf32>
    %60 = arith.mulf %58, %59 : vector<512x1xf32>
    %61 = math.sqrt %60 : vector<512x1xf32>
    %cst_19 = arith.constant 9.99999974E-5 : f32
    %62 = vector.broadcast %cst_19 : f32 to vector<512x1xf32>
    %63 = arith.addf %61, %62 : vector<512x1xf32>
    %64 = tpu.reciprocal %63 : vector<512x1xf32> -> vector<512x1xf32>
    %c0_20 = arith.constant 0 : index
    %c0_21 = arith.constant 0 : index
    %65 = vector.load %arg6[%c0_20, %c0_21] : memref<1x128xf32, #tpu.memory_space<vmem>>, vector<1x128xf32>
    %66 = vector.broadcast %64 : vector<512x1xf32> to vector<512x128xf32>
    %67 = vector.broadcast %65 : vector<1x128xf32> to vector<512x128xf32>
    %68 = arith.mulf %66, %67 : vector<512x128xf32>
    %69 = arith.mulf %55, %68 : vector<512x128xf32>
    %c0_22 = arith.constant 0 : index
    %c0_23 = arith.constant 0 : index
    %70 = vector.load %arg7[%c0_22, %c0_23] : memref<1x128xf32, #tpu.memory_space<vmem>>, vector<1x128xf32>
    %71 = vector.broadcast %70 : vector<1x128xf32> to vector<512x128xf32>
    %72 = arith.addf %69, %71 : vector<512x128xf32>
    %73 = arith.truncf %72 : vector<512x128xf32> to vector<512x128xbf16>
    %c0_24 = arith.constant 0 : index
    %c0_25 = arith.constant 0 : index
    %74 = vector.load %arg8[%c0_24, %c0_25] : memref<128x384xbf16, #tpu.memory_space<vmem>>, vector<128x384xbf16>
    %cst_26 = arith.constant dense<0.000000e+00> : vector<512x384xf32>
    %75 = tpu.matmul %73, %74, %cst_26 {dimension_numbers = #tpu.dot_dimension_numbers<[1], [0], [0], [1], [0, 0, 1, 1], [], []>} : vector<512x128xbf16>, vector<128x384xbf16>, vector<512x384xf32> -> vector<512x384xf32>
    %c0_27 = arith.constant 0 : index
    %c0_28 = arith.constant 0 : index
    %76 = vector.load %arg9[%c0_27, %c0_28] : memref<1x384xf32, #tpu.memory_space<vmem>>, vector<1x384xf32>
    %77 = vector.broadcast %76 : vector<1x384xf32> to vector<512x384xf32>
    %78 = arith.addf %75, %77 : vector<512x384xf32>
    %79 = arith.truncf %78 : vector<512x384xf32> to vector<512x384xbf16>
    %cst_29 = arith.constant 5.000000e-01 : bf16
    %80 = vector.broadcast %cst_29 : bf16 to vector<512x384xbf16>
    %81 = arith.mulf %80, %79 : vector<512x384xbf16>
    %cst_30 = arith.constant 7.070310e-01 : bf16
    %82 = vector.broadcast %cst_30 : bf16 to vector<512x384xbf16>
    %83 = arith.mulf %79, %82 : vector<512x384xbf16>
    %cst_31 = arith.constant 0.000000e+00 : bf16
    %84 = vector.broadcast %cst_31 : bf16 to vector<512x384xbf16>
    %85 = arith.cmpf oge, %83, %84 : vector<512x384xbf16>
    %cst_32 = arith.constant 0.000000e+00 : bf16
    %cst_33 = arith.constant 1.000000e+00 : bf16
    %86 = arith.subf %cst_32, %cst_33 : bf16
    %cst_34 = arith.constant 1.000000e+00 : bf16
    %87 = vector.broadcast %cst_34 : bf16 to vector<512x384xbf16>
    %88 = vector.broadcast %86 : bf16 to vector<512x384xbf16>
    %89 = arith.select %85, %87, %88 : vector<512x384xi1>, vector<512x384xbf16>
    %90 = math.absf %83 : vector<512x384xbf16>
    %cst_35 = arith.constant 3.281250e-01 : bf16
    %91 = vector.broadcast %cst_35 : bf16 to vector<512x384xbf16>
    %92 = arith.mulf %91, %90 : vector<512x384xbf16>
    %cst_36 = arith.constant 1.000000e+00 : bf16
    %93 = vector.broadcast %cst_36 : bf16 to vector<512x384xbf16>
    %94 = arith.addf %93, %92 : vector<512x384xbf16>
    %cst_37 = arith.constant 1.000000e+00 : bf16
    %95 = vector.broadcast %cst_37 : bf16 to vector<512x384xbf16>
    %96 = arith.divf %95, %94 : vector<512x384xbf16>
    %cst_38 = arith.constant 1.062500e+00 : bf16
    %97 = vector.broadcast %cst_38 : bf16 to vector<512x384xbf16>
    %98 = arith.mulf %96, %97 : vector<512x384xbf16>
    %cst_39 = arith.constant -1.453130e+00 : bf16
    %99 = vector.broadcast %cst_39 : bf16 to vector<512x384xbf16>
    %100 = arith.addf %99, %98 : vector<512x384xbf16>
    %101 = arith.mulf %96, %100 : vector<512x384xbf16>
    %cst_40 = arith.constant 1.421880e+00 : bf16
    %102 = vector.broadcast %cst_40 : bf16 to vector<512x384xbf16>
    %103 = arith.addf %102, %101 : vector<512x384xbf16>
    %104 = arith.mulf %96, %103 : vector<512x384xbf16>
    %cst_41 = arith.constant -2.851560e-01 : bf16
    %105 = vector.broadcast %cst_41 : bf16 to vector<512x384xbf16>
    %106 = arith.addf %105, %104 : vector<512x384xbf16>
    %107 = arith.mulf %96, %106 : vector<512x384xbf16>
    %cst_42 = arith.constant 2.539060e-01 : bf16
    %108 = vector.broadcast %cst_42 : bf16 to vector<512x384xbf16>
    %109 = arith.addf %108, %107 : vector<512x384xbf16>
    %110 = arith.mulf %96, %109 : vector<512x384xbf16>
    %cst_43 = arith.constant 0.000000e+00 : bf16
    %111 = vector.broadcast %cst_43 : bf16 to vector<512x384xbf16>
    %112 = arith.subf %111, %90 : vector<512x384xbf16>
    %113 = arith.mulf %112, %90 : vector<512x384xbf16>
    %114 = math.exp %113 : vector<512x384xbf16>
    %115 = arith.mulf %110, %114 : vector<512x384xbf16>
    %cst_44 = arith.constant 1.000000e+00 : bf16
    %116 = vector.broadcast %cst_44 : bf16 to vector<512x384xbf16>
    %117 = arith.subf %116, %115 : vector<512x384xbf16>
    %118 = arith.mulf %89, %117 : vector<512x384xbf16>
    %cst_45 = arith.constant 1.000000e+00 : bf16
    %119 = vector.broadcast %cst_45 : bf16 to vector<512x384xbf16>
    %120 = arith.addf %119, %118 : vector<512x384xbf16>
    %121 = arith.mulf %81, %120 : vector<512x384xbf16>
    %c0_46 = arith.constant 0 : index
    %c0_47 = arith.constant 0 : index
    %122 = vector.load %arg10[%c0_46, %c0_47] : memref<384x128xbf16, #tpu.memory_space<vmem>>, vector<384x128xbf16>
    %cst_48 = arith.constant dense<0.000000e+00> : vector<512x128xf32>
    %123 = tpu.matmul %121, %122, %cst_48 {dimension_numbers = #tpu.dot_dimension_numbers<[1], [0], [0], [1], [0, 0, 1, 1], [], []>} : vector<512x384xbf16>, vector<384x128xbf16>, vector<512x128xf32> -> vector<512x128xf32>
    %c0_49 = arith.constant 0 : index
    %c0_50 = arith.constant 0 : index
    %124 = vector.load %arg11[%c0_49, %c0_50] : memref<1x128xf32, #tpu.memory_space<vmem>>, vector<1x128xf32>
    %125 = vector.broadcast %124 : vector<1x128xf32> to vector<512x128xf32>
    %126 = arith.addf %123, %125 : vector<512x128xf32>
    %c0_51 = arith.constant 0 : index
    %c0_52 = arith.constant 0 : index
    %127 = vector.load %arg12[%c0_51, %c0_52] : memref<1x128xf32, #tpu.memory_space<vmem>>, vector<1x128xf32>
    %128 = vector.broadcast %127 : vector<1x128xf32> to vector<512x128xf32>
    %129 = arith.mulf %126, %128 : vector<512x128xf32>
    %130 = arith.addf %129, %24 : vector<512x128xf32>
    %c0_53 = arith.constant 0 : index
    %c0_54 = arith.constant 0 : index
    %c0_55 = arith.constant 0 : index
    %131 = vector.load %arg13[%c0_53, %c0_54, %c0_55] : memref<1x512x128xf32, #tpu.memory_space<vmem>>, vector<1x512x128xf32>
    %132 = vector.shape_cast %131 : vector<1x512x128xf32> to vector<512x128xf32>
    %133 = vector.shape_cast %130 : vector<512x128xf32> to vector<1x512x128xf32>
    tpu.vector_store %arg13[%c0_53, %c0_54, %c0_55], %133 {strides = array<i32>} : memref<1x512x128xf32, #tpu.memory_space<vmem>>, vector<1x512x128xf32>,
    return
  }
  func.func @transform_0(%arg0: i32, %arg1: i32) -> (i32, i32, i32) {
    %c0_i32 = arith.constant 0 : i32
    %c0_i32_0 = arith.constant 0 : i32
    return %arg0, %arg1, %c0_i32 : i32, i32, i32
  }
  func.func @transform_1(%arg0: i32, %arg1: i32) -> (i32, i32, i32) {
    %c1_i32 = arith.constant 1 : i32
    %0 = arith.addi %arg1, %c1_i32 : i32
    %c64_i32 = arith.constant 64 : i32
    %1 = arith.muli %0, %c64_i32 : i32
    %c0_i32 = arith.constant 0 : i32
    %c0_i32_0 = arith.constant 0 : i32
    return %arg0, %1, %c0_i32 : i32, i32, i32
  }
  func.func @transform_2(%arg0: i32, %arg1: i32) -> (i32, i32) {
    %c0_i32 = arith.constant 0 : i32
    %c0_i32_0 = arith.constant 0 : i32
    %c0_i32_1 = arith.constant 0 : i32
    return %c0_i32, %c0_i32_0 : i32, i32
  }
  func.func @transform_3(%arg0: i32, %arg1: i32) -> (i32, i32) {
    %c0_i32 = arith.constant 0 : i32
    %c0_i32_0 = arith.constant 0 : i32
    %c0_i32_1 = arith.constant 0 : i32
    return %c0_i32, %c0_i32_0 : i32, i32
  }
  func.func @transform_4(%arg0: i32, %arg1: i32) -> (i32, i32) {
    %c0_i32 = arith.constant 0 : i32
    %c0_i32_0 = arith.constant 0 : i32
    %c0_i32_1 = arith.constant 0 : i32
    return %c0_i32, %c0_i32_0 : i32, i32
  }
  func.func @transform_5(%arg0: i32, %arg1: i32) -> (i32, i32) {
    %c0_i32 = arith.constant 0 : i32
    %c0_i32_0 = arith.constant 0 : i32
    %c0_i32_1 = arith.constant 0 : i32
    return %c0_i32, %c0_i32_0 : i32, i32
  }
  func.func @transform_6(%arg0: i32, %arg1: i32) -> (i32, i32) {
    %c0_i32 = arith.constant 0 : i32
    %c0_i32_0 = arith.constant 0 : i32
    %c0_i32_1 = arith.constant 0 : i32
    return %c0_i32, %c0_i32_0 : i32, i32
  }
  func.func @transform_7(%arg0: i32, %arg1: i32) -> (i32, i32) {
    %c0_i32 = arith.constant 0 : i32
    %c0_i32_0 = arith.constant 0 : i32
    %c0_i32_1 = arith.constant 0 : i32
    return %c0_i32, %c0_i32_0 : i32, i32
  }
  func.func @transform_8(%arg0: i32, %arg1: i32) -> (i32, i32) {
    %c0_i32 = arith.constant 0 : i32
    %c0_i32_0 = arith.constant 0 : i32
    %c0_i32_1 = arith.constant 0 : i32
    return %c0_i32, %c0_i32_0 : i32, i32
  }
  func.func @transform_9(%arg0: i32, %arg1: i32) -> (i32, i32) {
    %c0_i32 = arith.constant 0 : i32
    %c0_i32_0 = arith.constant 0 : i32
    %c0_i32_1 = arith.constant 0 : i32
    return %c0_i32, %c0_i32_0 : i32, i32
  }
  func.func @transform_10(%arg0: i32, %arg1: i32) -> (i32, i32) {
    %c0_i32 = arith.constant 0 : i32
    %c0_i32_0 = arith.constant 0 : i32
    %c0_i32_1 = arith.constant 0 : i32
    return %c0_i32, %c0_i32_0 : i32, i32
  }
  func.func @transform_11(%arg0: i32, %arg1: i32) -> (i32, i32, i32) {
    %c0_i32 = arith.constant 0 : i32
    %c0_i32_0 = arith.constant 0 : i32
    return %arg0, %arg1, %c0_i32 : i32, i32, i32
  }
}

</mosaic_0001>

<llo_original>
// kernel: convnext1d.1
$region0: #{convnext1d.1}
  #allocation0 [shape = 'u32[]', space=smem, size = 0x4, offset = 0x4, fixed_abs, tag = 'smem constant byte address 0x4 - core index']
  #allocation1 [shape = 'u32[144,128]{1,0:T(1,128)}', space=vmem, size = 0x12000, scoped, tag = 'internal scratch']
  %s0 = inlined_call_operand.vmem [shape: f32[2,1032,128], index: 0, kind: input, shape index: {}, may-alias: {0,1}]
  %s1 = inlined_call_operand.vmem [shape: f32[2,1032,128], index: 1, kind: input, shape index: {}, may-alias: {0,1}]
  %s2 = inlined_call_operand.vmem [shape: f32[7,128], index: 2, kind: input, shape index: {}]
  %s3 = inlined_call_operand.vmem [shape: f32[1,128], index: 3, kind: input, shape index: {}]
  %s4 = inlined_call_operand.vmem [shape: f32[1,128], index: 4, kind: input, shape index: {}]
  %s5 = inlined_call_operand.vmem [shape: f32[1,128], index: 5, kind: input, shape index: {}]
  %s6 = inlined_call_operand.vmem [shape: bf16[128,384], index: 6, kind: input, shape index: {}]
  %s7 = inlined_call_operand.vmem [shape: f32[1,384], index: 7, kind: input, shape index: {}]
  %s8 = inlined_call_operand.vmem [shape: bf16[384,128], index: 8, kind: input, shape index: {}]
  %s9 = inlined_call_operand.vmem [shape: f32[1,128], index: 9, kind: input, shape index: {}]
  %s10 = inlined_call_operand.vmem [shape: f32[1,128], index: 10, kind: input, shape index: {}]
  %s11 = inlined_call_operand.vmem [shape: f32[2,1024,128], index: 11, kind: output, shape index: {}]
  %s12 = sld [smem:[#allocation0]]
  $region77: #{convnext1d.1} parent=0
    _
  %s14 = ssub.s32 1, %s12
  %s15 = scalar_select 0, %s14, %s12
  loop: start=0, step=1, limit=6
  $region2: #{convnext1d.1} parent=0 // loop_pre_header
    _
  $region3: #{convnext1d.1} parent=0 // loop_header
    %s17 = sphi 0, %s21
    %p18 = scmp.ge.s32.totalorder %s17, 6
    %s24 = sphi 0, %s36
    %s25 = sphi 0, %s32
    %s26 = sphi 0, %s24
    %s27 = sphi 0, %s25
    %s28 = sphi 0, %s26
    %s29 = sphi 0, %s27
    %s41 = sphi 0, %s43
    %s44 = sphi 0, %s41
    %s45 = sphi 0, %s44
    %s61 = sphi 0, %s45
    %s73 = sphi 0, %s75
    %s76 = sphi 0, %s73
    %s77 = sphi 0, %s76
    %s93 = sphi 0, %s77
    %s97 = sphi 0, %s97
    %s99 = sphi 0, %s97
    %s100 = sphi 0, %s99
    %s114 = sphi 0, %s100
    %s118 = sphi 0, %s118
    %s120 = sphi 0, %s118
    %s121 = sphi 0, %s120
    %s135 = sphi 0, %s121
    %s139 = sphi 0, %s139
    %s141 = sphi 0, %s139
    %s142 = sphi 0, %s141
    %s156 = sphi 0, %s142
    %s160 = sphi 0, %s160
    %s162 = sphi 0, %s160
    %s163 = sphi 0, %s162
    %s177 = sphi 0, %s163
    %s181 = sphi 0, %s181
    %s183 = sphi 0, %s181
    %s184 = sphi 0, %s183
    %s198 = sphi 0, %s184
    %s202 = sphi 0, %s202
    %s204 = sphi 0, %s202
    %s205 = sphi 0, %s204
    %s219 = sphi 0, %s205
    %s223 = sphi 0, %s223
    %s225 = sphi 0, %s223
    %s226 = sphi 0, %s225
    %s240 = sphi 0, %s226
    %s244 = sphi 0, %s244
    %s246 = sphi 0, %s244
    %s247 = sphi 0, %s246
    %s261 = sphi 0, %s247
    %s265 = sphi 0, %s265
    %s267 = sphi 0, %s265
    %s268 = sphi 0, %s267
    %s282 = sphi 0, %s268
    %s290 = sphi 0, %s292
    %s293 = sphi 0, %s290
    %s294 = sphi 0, %s293
    %s310 = sphi 0, %s294
  $region4: #{convnext1d.1} parent=0 // loop_header_branch
    %20 = sbr.rel (%p18) target = $region8
  $region5: #{convnext1d.1} parent=0 // loop_body
    %s22 = ssub.s32 %s17, 1
    %s23 = ssub.s32 %s17, 2
    %s30 = sadd.s32 1, %s25
    %p31 = scmp.ge.s32.totalorder %s30, 2
    %s32 = scalar_select %p31, 0, %s30
    %s33 = sadd.s32 1, %s24
    %s34 = scalar_select %p31, %s33, %s24
    %p35 = scmp.ge.s32.totalorder %s34, 2
    %s36 = scalar_select %p35, 0, %s34
    %s37 = ssub.s32 %s24, %s36
    %s38 = ssub.s32 %s25, %s32
    %s39 = sor.u32 %s37, %s38
    %p40 = scmp.eq.s32.totalorder %s39, 0
    %s42 = sadd.s32 %s41, 1
    %s43 = scalar_select %p40, %s41, %s42
    %p46 = pneg %p40
    %p47 = scmp.eq.s32.totalorder %s17, 3
    %p48 = por %p46, %p47
    %p49 = scmp.ne.s32.totalorder %s41, %s44
    %p50 = scmp.eq.s32.totalorder %s17, 0
    %p51 = por %p49, %p50
    %p52 = scmp.ne.s32.totalorder %s41, %s44
    %p53 = scmp.eq.s32.totalorder %s22, 3
    %p54 = por %p52, %p53
    %p55 = scmp.ne.s32.totalorder %s44, %s45
    %p56 = scmp.eq.s32.totalorder %s22, 0
    %p57 = por %p55, %p56
    %p58 = scmp.ne.s32.totalorder %s44, %s45
    %p59 = scmp.eq.s32.totalorder %s23, 3
    %p60 = por %p58, %p59
    %p62 = scmp.ne.s32.totalorder %s45, %s61
    %p63 = scmp.eq.s32.totalorder %s23, 0
    %p64 = por %p62, %p63
    %s65 = sadd.s32 %s25, 1
    %s66 = smul.u32 %s65, 64
    %s67 = sadd.s32 %s32, 1
    %s68 = smul.u32 %s67, 64
    %s69 = ssub.s32 %s24, %s36
    %s70 = ssub.s32 %s66, %s68
    %s71 = sor.u32 %s69, %s70
    %p72 = scmp.eq.s32.totalorder %s71, 0
    %s74 = sadd.s32 %s73, 1
    %s75 = scalar_select %p72, %s73, %s74
    %p78 = pneg %p72
    %p79 = scmp.eq.s32.totalorder %s17, 3
    %p80 = por %p78, %p79
    %p81 = scmp.ne.s32.totalorder %s73, %s76
    %p82 = scmp.eq.s32.totalorder %s17, 0
    %p83 = por %p81, %p82
    %p84 = scmp.ne.s32.totalorder %s73, %s76
    %p85 = scmp.eq.s32.totalorder %s22, 3
    %p86 = por %p84, %p85
    %p87 = scmp.ne.s32.totalorder %s76, %s77
    %p88 = scmp.eq.s32.totalorder %s22, 0
    %p89 = por %p87, %p88
    %p90 = scmp.ne.s32.totalorder %s76, %s77
    %p91 = scmp.eq.s32.totalorder %s23, 3
    %p92 = por %p90, %p91
    %p94 = scmp.ne.s32.totalorder %s77, %s93
    %p95 = scmp.eq.s32.totalorder %s23, 0
    %p96 = por %p94, %p95
    %s98 = sadd.s32 %s97, 1
    %p101 = scmp.eq.s32.totalorder %s17, 3
    %p102 = scmp.ne.s32.totalorder %s97, %s99
    %p103 = scmp.eq.s32.totalorder %s17, 0
    %p104 = por %p102, %p103
    %p105 = scmp.ne.s32.totalorder %s97, %s99
    %p106 = scmp.eq.s32.totalorder %s22, 3
    %p107 = por %p105, %p106
    %p108 = scmp.ne.s32.totalorder %s99, %s100
    %p109 = scmp.eq.s32.totalorder %s22, 0
    %p110 = por %p108, %p109
    %p111 = scmp.ne.s32.totalorder %s99, %s100
    %p112 = scmp.eq.s32.totalorder %s23, 3
    %p113 = por %p111, %p112
    %p115 = scmp.ne.s32.totalorder %s100, %s114
    %p116 = scmp.eq.s32.totalorder %s23, 0
    %p117 = por %p115, %p116
    %s119 = sadd.s32 %s118, 1
    %p122 = scmp.eq.s32.totalorder %s17, 3
    %p123 = scmp.ne.s32.totalorder %s118, %s120
    %p124 = scmp.eq.s32.totalorder %s17, 0
    %p125 = por %p123, %p124
    %p126 = scmp.ne.s32.totalorder %s118, %s120
    %p127 = scmp.eq.s32.totalorder %s22, 3
    %p128 = por %p126, %p127
    %p129 = scmp.ne.s32.totalorder %s120, %s121
    %p130 = scmp.eq.s32.totalorder %s22, 0
    %p131 = por %p129, %p130
    %p132 = scmp.ne.s32.totalorder %s120, %s121
    %p133 = scmp.eq.s32.totalorder %s23, 3
    %p134 = por %p132, %p133
    %p136 = scmp.ne.s32.totalorder %s121, %s135
    %p137 = scmp.eq.s32.totalorder %s23, 0
    %p138 = por %p136, %p137
    %s140 = sadd.s32 %s139, 1
    %p143 = scmp.eq.s32.totalorder %s17, 3
    %p144 = scmp.ne.s32.totalorder %s139, %s141
    %p145 = scmp.eq.s32.totalorder %s17, 0
    %p146 = por %p144, %p145
    %p147 = scmp.ne.s32.totalorder %s139, %s141
    %p148 = scmp.eq.s32.totalorder %s22, 3
    %p149 = por %p147, %p148
    %p150 = scmp.ne.s32.totalorder %s141, %s142
    %p151 = scmp.eq.s32.totalorder %s22, 0
    %p152 = por %p150, %p151
    %p153 = scmp.ne.s32.totalorder %s141, %s142
    %p154 = scmp.eq.s32.totalorder %s23, 3
    %p155 = por %p153, %p154
    %p157 = scmp.ne.s32.totalorder %s142, %s156
    %p158 = scmp.eq.s32.totalorder %s23, 0
    %p159 = por %p157, %p158
    %s161 = sadd.s32 %s160, 1
    %p164 = scmp.eq.s32.totalorder %s17, 3
    %p165 = scmp.ne.s32.totalorder %s160, %s162
    %p166 = scmp.eq.s32.totalorder %s17, 0
    %p167 = por %p165, %p166
    %p168 = scmp.ne.s32.totalorder %s160, %s162
    %p169 = scmp.eq.s32.totalorder %s22, 3
    %p170 = por %p168, %p169
    %p171 = scmp.ne.s32.totalorder %s162, %s163
    %p172 = scmp.eq.s32.totalorder %s22, 0
    %p173 = por %p171, %p172
    %p174 = scmp.ne.s32.totalorder %s162, %s163
    %p175 = scmp.eq.s32.totalorder %s23, 3
    %p176 = por %p174, %p175
    %p178 = scmp.ne.s32.totalorder %s163, %s177
    %p179 = scmp.eq.s32.totalorder %s23, 0
    %p180 = por %p178, %p179
    %s182 = sadd.s32 %s181, 1
    %p185 = scmp.eq.s32.totalorder %s17, 3
    %p186 = scmp.ne.s32.totalorder %s181, %s183
    %p187 = scmp.eq.s32.totalorder %s17, 0
    %p188 = por %p186, %p187
    %p189 = scmp.ne.s32.totalorder %s181, %s183
    %p190 = scmp.eq.s32.totalorder %s22, 3
    %p191 = por %p189, %p190
    %p192 = scmp.ne.s32.totalorder %s183, %s184
    %p193 = scmp.eq.s32.totalorder %s22, 0
    %p194 = por %p192, %p193
    %p195 = scmp.ne.s32.totalorder %s183, %s184
    %p196 = scmp.eq.s32.totalorder %s23, 3
    %p197 = por %p195, %p196
    %p199 = scmp.ne.s32.totalorder %s184, %s198
    %p200 = scmp.eq.s32.totalorder %s23, 0
    %p201 = por %p199, %p200
    %s203 = sadd.s32 %s202, 1
    %p206 = scmp.eq.s32.totalorder %s17, 3
    %p207 = scmp.ne.s32.totalorder %s202, %s204
    %p208 = scmp.eq.s32.totalorder %s17, 0
    %p209 = por %p207, %p208
    %p210 = scmp.ne.s32.totalorder %s202, %s204
    %p211 = scmp.eq.s32.totalorder %s22, 3
    %p212 = por %p210, %p211
    %p213 = scmp.ne.s32.totalorder %s204, %s205
    %p214 = scmp.eq.s32.totalorder %s22, 0
    %p215 = por %p213, %p214
    %p216 = scmp.ne.s32.totalorder %s204, %s205
    %p217 = scmp.eq.s32.totalorder %s23, 3
    %p218 = por %p216, %p217
    %p220 = scmp.ne.s32.totalorder %s205, %s219
    %p221 = scmp.eq.s32.totalorder %s23, 0
    %p222 = por %p220, %p221
    %s224 = sadd.s32 %s223, 1
    %p227 = scmp.eq.s32.totalorder %s17, 3
    %p228 = scmp.ne.s32.totalorder %s223, %s225
    %p229 = scmp.eq.s32.totalorder %s17, 0
    %p230 = por %p228, %p229
    %p231 = scmp.ne.s32.totalorder %s223, %s225
    %p232 = scmp.eq.s32.totalorder %s22, 3
    %p233 = por %p231, %p232
    %p234 = scmp.ne.s32.totalorder %s225, %s226
    %p235 = scmp.eq.s32.totalorder %s22, 0
    %p236 = por %p234, %p235
    %p237 = scmp.ne.s32.totalorder %s225, %s226
    %p238 = scmp.eq.s32.totalorder %s23, 3
    %p239 = por %p237, %p238
    %p241 = scmp.ne.s32.totalorder %s226, %s240
    %p242 = scmp.eq.s32.totalorder %s23, 0
    %p243 = por %p241, %p242
    %s245 = sadd.s32 %s244, 1
    %p248 = scmp.eq.s32.totalorder %s17, 3
    %p249 = scmp.ne.s32.totalorder %s244, %s246
    %p250 = scmp.eq.s32.totalorder %s17, 0
    %p251 = por %p249, %p250
    %p252 = scmp.ne.s32.totalorder %s244, %s246
    %p253 = scmp.eq.s32.totalorder %s22, 3
    %p254 = por %p252, %p253
    %p255 = scmp.ne.s32.totalorder %s246, %s247
    %p256 = scmp.eq.s32.totalorder %s22, 0
    %p257 = por %p255, %p256
    %p258 = scmp.ne.s32.totalorder %s246, %s247
    %p259 = scmp.eq.s32.totalorder %s23, 3
    %p260 = por %p258, %p259
    %p262 = scmp.ne.s32.totalorder %s247, %s261
    %p263 = scmp.eq.s32.totalorder %s23, 0
    %p264 = por %p262, %p263
    %s266 = sadd.s32 %s265, 1
    %p269 = scmp.eq.s32.totalorder %s17, 3
    %p270 = scmp.ne.s32.totalorder %s265, %s267
    %p271 = scmp.eq.s32.totalorder %s17, 0
    %p272 = por %p270, %p271
    %p273 = scmp.ne.s32.totalorder %s265, %s267
    %p274 = scmp.eq.s32.totalorder %s22, 3
    %p275 = por %p273, %p274
    %p276 = scmp.ne.s32.totalorder %s267, %s268
    %p277 = scmp.eq.s32.totalorder %s22, 0
    %p278 = por %p276, %p277
    %p279 = scmp.ne.s32.totalorder %s267, %s268
    %p280 = scmp.eq.s32.totalorder %s23, 3
    %p281 = por %p279, %p280
    %p283 = scmp.ne.s32.totalorder %s268, %s282
    %p284 = scmp.eq.s32.totalorder %s23, 0
    %p285 = por %p283, %p284
    %s286 = ssub.s32 %s24, %s36
    %s287 = ssub.s32 %s25, %s32
    %s288 = sor.u32 %s286, %s287
    %p289 = scmp.eq.s32.totalorder %s288, 0
    %s291 = sadd.s32 %s290, 1
    %s292 = scalar_select %p289, %s290, %s291
    %p295 = pneg %p289
    %p296 = scmp.eq.s32.totalorder %s17, 3
    %p297 = por %p295, %p296
    %p298 = scmp.ne.s32.totalorder %s290, %s293
    %p299 = scmp.eq.s32.totalorder %s17, 0
    %p300 = por %p298, %p299
    %p301 = scmp.ne.s32.totalorder %s290, %s293
    %p302 = scmp.eq.s32.totalorder %s22, 3
    %p303 = por %p301, %p302
    %p304 = scmp.ne.s32.totalorder %s293, %s294
    %p305 = scmp.eq.s32.totalorder %s22, 0
    %p306 = por %p304, %p305
    %p307 = scmp.ne.s32.totalorder %s293, %s294
    %p308 = scmp.eq.s32.totalorder %s23, 3
    %p309 = por %p307, %p308
    %p311 = scmp.ne.s32.totalorder %s294, %s310
    %p312 = scmp.eq.s32.totalorder %s23, 0
    %p313 = por %p311, %p312
    %p314 = scmp.le.s32.totalorder 1, %s17
    %p315 = scmp.lt.s32.totalorder %s17, 5
    %p316 = pnand %p314, %p315
    %p317 = pneg %p316
    // Predicated region
    $region9: #{convnext1d.1} parent=5 // pred_check
      _
    $region10: #{convnext1d.1} parent=5 // pred_check_branch
      %319 = sbr.rel (%p316) target = $region12
    $region11: #{convnext1d.1} parent=5 // pred_region
      %s320 = ssub.s32 %s17, 1
      // Predicated region
      $region13: #{convnext1d.1} parent=11 // pred_check
        %p321 = pneg %p110
      $region14: #{convnext1d.1} parent=11 // pred_check_branch
        %323 = sbr.rel (%p321) target = $region16
      $region15: #{convnext1d.1} parent=11 // pred_region
        _
      $region16: #{convnext1d.1} parent=11 // pred_fallthru
        _
      // Predicated region
      $region17: #{convnext1d.1} parent=11 // pred_check
        %p324 = pneg %p131
      $region18: #{convnext1d.1} parent=11 // pred_check_branch
        %326 = sbr.rel (%p324) target = $region20
      $region19: #{convnext1d.1} parent=11 // pred_region
        _
      $region20: #{convnext1d.1} parent=11 // pred_fallthru
        _
      // Predicated region
      $region21: #{convnext1d.1} parent=11 // pred_check
        %p327 = pneg %p152
      $region22: #{convnext1d.1} parent=11 // pred_check_branch
        %329 = sbr.rel (%p327) target = $region24
      $region23: #{convnext1d.1} parent=11 // pred_region
        _
      $region24: #{convnext1d.1} parent=11 // pred_fallthru
        _
      // Predicated region
      $region25: #{convnext1d.1} parent=11 // pred_check
        %p330 = pneg %p173
      $region26: #{convnext1d.1} parent=11 // pred_check_branch
        %332 = sbr.rel (%p330) target = $region28
      $region27: #{convnext1d.1} parent=11 // pred_region
        _
      $region28: #{convnext1d.1} parent=11 // pred_fallthru
        _
      // Predicated region
      $region29: #{convnext1d.1} parent=11 // pred_check
        %p333 = pneg %p194
      $region30: #{convnext1d.1} parent=11 // pred_check_branch
        %335 = sbr.rel (%p333) target = $region32
      $region31: #{convnext1d.1} parent=11 // pred_region
        _
      $region32: #{convnext1d.1} parent=11 // pred_fallthru
        _
      // Predicated region
      $region33: #{convnext1d.1} parent=11 // pred_check
        %p336 = pneg %p215
      $region34: #{convnext1d.1} parent=11 // pred_check_branch
        %338 = sbr.rel (%p336) target = $region36
      $region35: #{convnext1d.1} parent=11 // pred_region
        _
      $region36: #{convnext1d.1} parent=11 // pred_fallthru
        _
      // Predicated region
      $region37: #{convnext1d.1} parent=11 // pred_check
        %p339 = pneg %p236
      $region38: #{convnext1d.1} parent=11 // pred_check_branch
        %341 = sbr.rel (%p339) target = $region40
      $region39: #{convnext1d.1} parent=11 // pred_region
        _
      $region40: #{convnext1d.1} parent=11 // pred_fallthru
        _
      // Predicated region
      $region41: #{convnext1d.1} parent=11 // pred_check
        %p342 = pneg %p257
      $region42: #{convnext1d.1} parent=11 // pred_check_branch
        %344 = sbr.rel (%p342) target = $region44
      $region43: #{convnext1d.1} parent=11 // pred_region
        _
      $region44: #{convnext1d.1} parent=11 // pred_fallthru
        _
      // Predicated region
      $region45: #{convnext1d.1} parent=11 // pred_check
        %p345 = pneg %p278
      $region46: #{convnext1d.1} parent=11 // pred_check_branch
        %347 = sbr.rel (%p345) target = $region48
      $region47: #{convnext1d.1} parent=11 // pred_region
        _
      $region48: #{convnext1d.1} parent=11 // pred_fallthru
        _
    $region12: #{convnext1d.1} parent=5 // pred_fallthru
      _
    %p348 = scmp.lt.s32.totalorder %s17, 4
    // Predicated region
    $region49: #{convnext1d.1} parent=5 // pred_check
      %p349 = pneg %p348
    $region50: #{convnext1d.1} parent=5 // pred_check_branch
      %351 = sbr.rel (%p349) target = $region52
    $region51: #{convnext1d.1} parent=5 // pred_region
      // Predicated region
      $region53: #{convnext1d.1} parent=51 // pred_check
        %p352 = pneg %p51
      $region54: #{convnext1d.1} parent=51 // pred_check_branch
        %354 = sbr.rel (%p352) target = $region56
      $region55: #{convnext1d.1} parent=51 // pred_region
        %s355 = smul.u32 64, %s25
        %s356 = ssub.s32 129, %s355
        %p357 = scmp.lt.s32.totalorder %s356, 64
        %s358 = scalar_select %p357, %s356, 64
        %s359 = smul.u32 128, %s358
        %p360 = scmp.lt.s32.totalorder %s24, 1
        %s361 = scalar_select %p360, %s24, 1
        %p362 = scmp.lt.s32.totalorder %s355, 128
        %s363 = scalar_select %p362, %s355, 128
        %s364 = smul.addr %s361, 129
        %s365 = sadd.s32 %s363, %s364
        %s366 = smul.addr %s365, 8
        %s367 = scalar_lea.vmem %s0, %s366
        %s368 = smul.u32 64, %s25
        %s369 = ssub.s32 129, %s368
        %p370 = scmp.lt.s32.totalorder %s369, 64
        %s371 = scalar_select %p370, %s369, 64
        %s372 = smul.u32 128, %s371
      $region56: #{convnext1d.1} parent=51 // pred_fallthru
        _
      // Predicated region
      $region57: #{convnext1d.1} parent=51 // pred_check
        %p373 = pneg %p83
      $region58: #{convnext1d.1} parent=51 // pred_check_branch
        %375 = sbr.rel (%p373) target = $region60
      $region59: #{convnext1d.1} parent=51 // pred_region
        %s376 = sadd.s32 %s25, 1
        %s377 = smul.u32 %s376, 64
        %p378 = scmp.lt.s32.totalorder %s24, 1
        %s379 = scalar_select %p378, %s24, 1
        %p380 = scmp.lt.s32.totalorder %s377, 128
        %s381 = scalar_select %p380, %s377, 128
        %s382 = smul.addr %s379, 129
        %s383 = sadd.s32 %s381, %s382
        %s384 = smul.addr %s383, 8
        %s385 = scalar_lea.vmem %s1, %s384
        %s386 = sadd.s32 %s25, 1
        %s387 = smul.u32 %s386, 64
      $region60: #{convnext1d.1} parent=51 // pred_fallthru
        _
    $region52: #{convnext1d.1} parent=5 // pred_fallthru
      _
    %p388 = scmp.le.s32.totalorder 1, %s17
    %p389 = scmp.lt.s32.totalorder %s17, 5
    %p390 = pnand %p388, %p389
    %p391 = pneg %p390
    // Predicated region
    $region61: #{convnext1d.1} parent=5 // pred_check
      _
    $region62: #{convnext1d.1} parent=5 // pred_check_branch
      %393 = sbr.rel (%p390) target = $region64
    $region63: #{convnext1d.1} parent=5 // pred_region
      %s394 = ssub.s32 %s17, 1
      %s395 = smul.u32 64, %s27
      %s396 = ssub.s32 129, %s395
      %p397 = scmp.lt.s32.totalorder %s396, 64
      %s398 = scalar_select %p397, %s396, 64
      %s399 = smul.u32 128, %s398
      %p400 = scmp.lt.s32.totalorder %s26, 1
      %s401 = scalar_select %p400, %s26, 1
      %p402 = scmp.lt.s32.totalorder %s395, 128
      %s403 = scalar_select %p402, %s395, 128
      %s404 = smul.addr %s401, 129
      %s405 = sadd.s32 %s403, %s404
      %s406 = smul.addr %s405, 8
      %s407 = scalar_lea.vmem %s0, %s406
      %p408 = pneg %p57
      %p409 = pneg %p54
      %s410 = sadd.s32 %s27, 1
      %s411 = smul.u32 %s410, 64
      %p412 = scmp.lt.s32.totalorder %s26, 1
      %s413 = scalar_select %p412, %s26, 1
      %p414 = scmp.lt.s32.totalorder %s411, 128
      %s415 = scalar_select %p414, %s411, 128
      %s416 = smul.addr %s413, 129
      %s417 = sadd.s32 %s415, %s416
      %s418 = smul.addr %s417, 8
      %s419 = scalar_lea.vmem %s1, %s418
      %p420 = pneg %p89
      %p421 = pneg %p86
      %p422 = pneg %p110
      %p423 = pneg %p107
      %p424 = pneg %p131
      %p425 = pneg %p128
      %p426 = pneg %p152
      %p427 = pneg %p149
      %p428 = pneg %p173
      %p429 = pneg %p170
      %p430 = pneg %p194
      %p431 = pneg %p191
      %p432 = pneg %p215
      %p433 = pneg %p212
      %p434 = pneg %p236
      %p435 = pneg %p233
      %p436 = pneg %p257
      %p437 = pneg %p254
      %p438 = pneg %p278
      %p439 = pneg %p275
      %p440 = pneg %p306
      %p441 = pneg %p303
      %s442 = smul.u32 64, %s27
      %p443 = scmp.lt.s32.totalorder %s26, 1
      %s444 = scalar_select %p443, %s26, 1
      %p445 = scmp.lt.s32.totalorder %s442, 127
      %s446 = scalar_select %p445, %s442, 127
      %s447 = smul.addr %s444, 128
      %s448 = sadd.s32 %s446, %s447
      %s449 = smul.addr %s448, 8
      %s450 = scalar_lea.vmem %s11, %s449
      %s451 = smul.u32 64, %s27
      %s452 = ssub.s32 129, %s451
      %p453 = scmp.lt.s32.totalorder %s452, 64
      %s454 = scalar_select %p453, %s452, 64
      %s455 = smul.u32 128, %s454
      %p456 = scmp.lt.s32.totalorder %s26, 1
      %s457 = scalar_select %p456, %s26, 1
      %p458 = scmp.lt.s32.totalorder %s451, 128
      %s459 = scalar_select %p458, %s451, 128
      %s460 = smul.addr %s457, 129
      %s461 = sadd.s32 %s459, %s460
      %s462 = smul.addr %s461, 8
      %s463 = scalar_lea.vmem %s0, %s462
      %s464 = smul.u32 64, %s27
      %s465 = ssub.s32 129, %s464
      %p466 = scmp.lt.s32.totalorder %s465, 64
      %s467 = scalar_select %p466, %s465, 64
      %s468 = smul.u32 128, %s467
      %s469 = sadd.s32 %s27, 1
      %s470 = smul.u32 %s469, 64
      %p471 = scmp.lt.s32.totalorder %s26, 1
      %s472 = scalar_select %p471, %s26, 1
      %p473 = scmp.lt.s32.totalorder %s470, 128
      %s474 = scalar_select %p473, %s470, 128
      %s475 = smul.addr %s472, 129
      %s476 = sadd.s32 %s474, %s475
      %s477 = smul.addr %s476, 8
      %s478 = scalar_lea.vmem %s1, %s477
      %s479 = sadd.s32 %s27, 1
      %s480 = smul.u32 %s479, 64
      %s481 = smul.u32 64, %s27
      %p482 = scmp.lt.s32.totalorder %s26, 1
      %s483 = scalar_select %p482, %s26, 1
      %p484 = scmp.lt.s32.totalorder %s481, 127
      %s485 = scalar_select %p484, %s481, 127
      %s486 = smul.addr %s483, 128
      %s487 = sadd.s32 %s485, %s486
      %s488 = smul.addr %s487, 8
      %s489 = scalar_lea.vmem %s11, %s488
      %s490 = smul.u32 64, %s27
      %v502 = vld [vmem:[%s463] sm:$0xff]
      %v503 = vld [vmem:[%s463 + $0x8] sm:$0xff]
      %v504 = vld [vmem:[%s463 + $0x10] sm:$0xff]
      %v505 = vld [vmem:[%s463 + $0x18] sm:$0xff]
      %v506 = vld [vmem:[%s463 + $0x20] sm:$0xff]
      %v507 = vld [vmem:[%s463 + $0x28] sm:$0xff]
      %v508 = vld [vmem:[%s463 + $0x30] sm:$0xff]
      %v509 = vld [vmem:[%s463 + $0x38] sm:$0xff]
      %v510 = vld [vmem:[%s463 + $0x40] sm:$0xff]
      %v511 = vld [vmem:[%s463 + $0x48] sm:$0xff]
      %v512 = vld [vmem:[%s463 + $0x50] sm:$0xff]
      %v513 = vld [vmem:[%s463 + $0x58] sm:$0xff]
      %v514 = vld [vmem:[%s463 + $0x60] sm:$0xff]
      %v515 = vld [vmem:[%s463 + $0x68] sm:$0xff]
      %v516 = vld [vmem:[%s463 + $0x70] sm:$0xff]
      %v517 = vld [vmem:[%s463 + $0x78] sm:$0xff]
      %v518 = vld [vmem:[%s463 + $0x80] sm:$0xff]
      %v519 = vld [vmem:[%s463 + $0x88] sm:$0xff]
      %v520 = vld [vmem:[%s463 + $0x90] sm:$0xff]
      %v521 = vld [vmem:[%s463 + $0x98] sm:$0xff]
      %v522 = vld [vmem:[%s463 + $0xa0] sm:$0xff]
      %v523 = vld [vmem:[%s463 + $0xa8] sm:$0xff]
      %v524 = vld [vmem:[%s463 + $0xb0] sm:$0xff]
      %v525 = vld [vmem:[%s463 + $0xb8] sm:$0xff]
      %v526 = vld [vmem:[%s463 + $0xc0] sm:$0xff]
      %v527 = vld [vmem:[%s463 + $0xc8] sm:$0xff]
      %v528 = vld [vmem:[%s463 + $0xd0] sm:$0xff]
      %v529 = vld [vmem:[%s463 + $0xd8] sm:$0xff]
      %v530 = vld [vmem:[%s463 + $0xe0] sm:$0xff]
      %v531 = vld [vmem:[%s463 + $0xe8] sm:$0xff]
      %v532 = vld [vmem:[%s463 + $0xf0] sm:$0xff]
      %v533 = vld [vmem:[%s463 + $0xf8] sm:$0xff]
      %v534 = vld [vmem:[%s463 + $0x100] sm:$0xff]
      %v535 = vld [vmem:[%s463 + $0x108] sm:$0xff]
      %v536 = vld [vmem:[%s463 + $0x110] sm:$0xff]
      %v537 = vld [vmem:[%s463 + $0x118] sm:$0xff]
      %v538 = vld [vmem:[%s463 + $0x120] sm:$0xff]
      %v539 = vld [vmem:[%s463 + $0x128] sm:$0xff]
      %v540 = vld [vmem:[%s463 + $0x130] sm:$0xff]
      %v541 = vld [vmem:[%s463 + $0x138] sm:$0xff]
      %v542 = vld [vmem:[%s463 + $0x140] sm:$0xff]
      %v543 = vld [vmem:[%s463 + $0x148] sm:$0xff]
      %v544 = vld [vmem:[%s463 + $0x150] sm:$0xff]
      %v545 = vld [vmem:[%s463 + $0x158] sm:$0xff]
      %v546 = vld [vmem:[%s463 + $0x160] sm:$0xff]
      %v547 = vld [vmem:[%s463 + $0x168] sm:$0xff]
      %v548 = vld [vmem:[%s463 + $0x170] sm:$0xff]
      %v549 = vld [vmem:[%s463 + $0x178] sm:$0xff]
      %v550 = vld [vmem:[%s463 + $0x180] sm:$0xff]
      %v551 = vld [vmem:[%s463 + $0x188] sm:$0xff]
      %v552 = vld [vmem:[%s463 + $0x190] sm:$0xff]
      %v553 = vld [vmem:[%s463 + $0x198] sm:$0xff]
      %v554 = vld [vmem:[%s463 + $0x1a0] sm:$0xff]
      %v555 = vld [vmem:[%s463 + $0x1a8] sm:$0xff]
      %v556 = vld [vmem:[%s463 + $0x1b0] sm:$0xff]
      %v557 = vld [vmem:[%s463 + $0x1b8] sm:$0xff]
      %v558 = vld [vmem:[%s463 + $0x1c0] sm:$0xff]
      %v559 = vld [vmem:[%s463 + $0x1c8] sm:$0xff]
      %v560 = vld [vmem:[%s463 + $0x1d0] sm:$0xff]
      %v561 = vld [vmem:[%s463 + $0x1d8] sm:$0xff]
      %v562 = vld [vmem:[%s463 + $0x1e0] sm:$0xff]
      %v563 = vld [vmem:[%s463 + $0x1e8] sm:$0xff]
      %v564 = vld [vmem:[%s463 + $0x1f0] sm:$0xff]
      %v565 = vld [vmem:[%s463 + $0x1f8] sm:$0xff]
      %v566 = vld [vmem:[%s478] sm:$0xff]
      %v567 = vld [vmem:[%s2] sm:$0x1]
      %v568 = vlaneseq
      %v569 = vshrl.u32 %v568, 7
      %v570 = vsub.s32 0, %v569
      %v571 = vrot.slane %v567, %v570
      %v572 = vmul.f32 %v502, %v571
      %v573 = vmul.f32 %v503, %v571
      %v574 = vmul.f32 %v504, %v571
      %v575 = vmul.f32 %v505, %v571
      %v576 = vmul.f32 %v506, %v571
      %v577 = vmul.f32 %v507, %v571
      %v578 = vmul.f32 %v508, %v571
      %v579 = vmul.f32 %v509, %v571
      %v580 = vmul.f32 %v510, %v571
      %v581 = vmul.f32 %v511, %v571
      %v582 = vmul.f32 %v512, %v571
      %v583 = vmul.f32 %v513, %v571
      %v584 = vmul.f32 %v514, %v571
      %v585 = vmul.f32 %v515, %v571
      %v586 = vmul.f32 %v516, %v571
      %v587 = vmul.f32 %v517, %v571
      %v588 = vmul.f32 %v518, %v571
      %v589 = vmul.f32 %v519, %v571
      %v590 = vmul.f32 %v520, %v571
      %v591 = vmul.f32 %v521, %v571
      %v592 = vmul.f32 %v522, %v571
      %v593 = vmul.f32 %v523, %v571
      %v594 = vmul.f32 %v524, %v571
      %v595 = vmul.f32 %v525, %v571
      %v596 = vmul.f32 %v526, %v571
      %v597 = vmul.f32 %v527, %v571
      %v598 = vmul.f32 %v528, %v571
      %v599 = vmul.f32 %v529, %v571
      %v600 = vmul.f32 %v530, %v571
      %v601 = vmul.f32 %v531, %v571
      %v602 = vmul.f32 %v532, %v571
      %v603 = vmul.f32 %v533, %v571
      %v604 = vmul.f32 %v534, %v571
      %v605 = vmul.f32 %v535, %v571
      %v606 = vmul.f32 %v536, %v571
      %v607 = vmul.f32 %v537, %v571
      %v608 = vmul.f32 %v538, %v571
      %v609 = vmul.f32 %v539, %v571
      %v610 = vmul.f32 %v540, %v571
      %v611 = vmul.f32 %v541, %v571
      %v612 = vmul.f32 %v542, %v571
      %v613 = vmul.f32 %v543, %v571
      %v614 = vmul.f32 %v544, %v571
      %v615 = vmul.f32 %v545, %v571
      %v616 = vmul.f32 %v546, %v571
      %v617 = vmul.f32 %v547, %v571
      %v618 = vmul.f32 %v548, %v571
      %v619 = vmul.f32 %v549, %v571
      %v620 = vmul.f32 %v550, %v571
      %v621 = vmul.f32 %v551, %v571
      %v622 = vmul.f32 %v552, %v571
      %v623 = vmul.f32 %v553, %v571
      %v624 = vmul.f32 %v554, %v571
      %v625 = vmul.f32 %v555, %v571
      %v626 = vmul.f32 %v556, %v571
      %v627 = vmul.f32 %v557, %v571
      %v628 = vmul.f32 %v558, %v571
      %v629 = vmul.f32 %v559, %v571
      %v630 = vmul.f32 %v560, %v571
      %v631 = vmul.f32 %v561, %v571
      %v632 = vmul.f32 %v562, %v571
      %v633 = vmul.f32 %v563, %v571
      %v634 = vmul.f32 %v564, %v571
      %v635 = vmul.f32 %v565, %v571
      %v636 = vadd.f32 %v572, 0.0
      %v637 = vadd.f32 %v573, 0.0
      %v638 = vadd.f32 %v574, 0.0
      %v639 = vadd.f32 %v575, 0.0
      %v640 = vadd.f32 %v576, 0.0
      %v641 = vadd.f32 %v577, 0.0
      %v642 = vadd.f32 %v578, 0.0
      %v643 = vadd.f32 %v579, 0.0
      %v644 = vadd.f32 %v580, 0.0
      %v645 = vadd.f32 %v581, 0.0
      %v646 = vadd.f32 %v582, 0.0
      %v647 = vadd.f32 %v583, 0.0
      %v648 = vadd.f32 %v584, 0.0
      %v649 = vadd.f32 %v585, 0.0
      %v650 = vadd.f32 %v586, 0.0
      %v651 = vadd.f32 %v587, 0.0
      %v652 = vadd.f32 %v588, 0.0
      %v653 = vadd.f32 %v589, 0.0
      %v654 = vadd.f32 %v590, 0.0
      %v655 = vadd.f32 %v591, 0.0
      %v656 = vadd.f32 %v592, 0.0
      %v657 = vadd.f32 %v593, 0.0
      %v658 = vadd.f32 %v594, 0.0
      %v659 = vadd.f32 %v595, 0.0
      %v660 = vadd.f32 %v596, 0.0
      %v661 = vadd.f32 %v597, 0.0
      %v662 = vadd.f32 %v598, 0.0
      %v663 = vadd.f32 %v599, 0.0
      %v664 = vadd.f32 %v600, 0.0
      %v665 = vadd.f32 %v601, 0.0
      %v666 = vadd.f32 %v602, 0.0
      %v667 = vadd.f32 %v603, 0.0
      %v668 = vadd.f32 %v604, 0.0
      %v669 = vadd.f32 %v605, 0.0
      %v670 = vadd.f32 %v606, 0.0
      %v671 = vadd.f32 %v607, 0.0
      %v672 = vadd.f32 %v608, 0.0
      %v673 = vadd.f32 %v609, 0.0
      %v674 = vadd.f32 %v610, 0.0
      %v675 = vadd.f32 %v611, 0.0
      %v676 = vadd.f32 %v612, 0.0
      %v677 = vadd.f32 %v613, 0.0
      %v678 = vadd.f32 %v614, 0.0
      %v679 = vadd.f32 %v615, 0.0
      %v680 = vadd.f32 %v616, 0.0
      %v681 = vadd.f32 %v617, 0.0
      %v682 = vadd.f32 %v618, 0.0
      %v683 = vadd.f32 %v619, 0.0
      %v684 = vadd.f32 %v620, 0.0
      %v685 = vadd.f32 %v621, 0.0
      %v686 = vadd.f32 %v622, 0.0
      %v687 = vadd.f32 %v623, 0.0
      %v688 = vadd.f32 %v624, 0.0
      %v689 = vadd.f32 %v625, 0.0
      %v690 = vadd.f32 %v626, 0.0
      %v691 = vadd.f32 %v627, 0.0
      %v692 = vadd.f32 %v628, 0.0
      %v693 = vadd.f32 %v629, 0.0
      %v694 = vadd.f32 %v630, 0.0
      %v695 = vadd.f32 %v631, 0.0
      %v696 = vadd.f32 %v632, 0.0
      %v697 = vadd.f32 %v633, 0.0
      %v698 = vadd.f32 %v634, 0.0
      %v699 = vadd.f32 %v635, 0.0
      %v700 = vrot.slane %v502, 1
      %v701 = vrot.slane %v503, 1
      %v702 = vrot.slane %v504, 1
      %v703 = vrot.slane %v505, 1
      %v704 = vrot.slane %v506, 1
      %v705 = vrot.slane %v507, 1
      %v706 = vrot.slane %v508, 1
      %v707 = vrot.slane %v509, 1
      %v708 = vrot.slane %v510, 1
      %v709 = vrot.slane %v511, 1
      %v710 = vrot.slane %v512, 1
      %v711 = vrot.slane %v513, 1
      %v712 = vrot.slane %v514, 1
      %v713 = vrot.slane %v515, 1
      %v714 = vrot.slane %v516, 1
      %v715 = vrot.slane %v517, 1
      %v716 = vrot.slane %v518, 1
      %v717 = vrot.slane %v519, 1
      %v718 = vrot.slane %v520, 1
      %v719 = vrot.slane %v521, 1
      %v720 = vrot.slane %v522, 1
      %v721 = vrot.slane %v523, 1
      %v722 = vrot.slane %v524, 1
      %v723 = vrot.slane %v525, 1
      %v724 = vrot.slane %v526, 1
      %v725 = vrot.slane %v527, 1
      %v726 = vrot.slane %v528, 1
      %v727 = vrot.slane %v529, 1
      %v728 = vrot.slane %v530, 1
      %v729 = vrot.slane %v531, 1
      %v730 = vrot.slane %v532, 1
      %v731 = vrot.slane %v533, 1
      %v732 = vrot.slane %v534, 1
      %v733 = vrot.slane %v535, 1
      %v734 = vrot.slane %v536, 1
      %v735 = vrot.slane %v537, 1
      %v736 = vrot.slane %v538, 1
      %v737 = vrot.slane %v539, 1
      %v738 = vrot.slane %v540, 1
      %v739 = vrot.slane %v541, 1
      %v740 = vrot.slane %v542, 1
      %v741 = vrot.slane %v543, 1
      %v742 = vrot.slane %v544, 1
      %v743 = vrot.slane %v545, 1
      %v744 = vrot.slane %v546, 1
      %v745 = vrot.slane %v547, 1
      %v746 = vrot.slane %v548, 1
      %v747 = vrot.slane %v549, 1
      %v748 = vrot.slane %v550, 1
      %v749 = vrot.slane %v551, 1
      %v750 = vrot.slane %v552, 1
      %v751 = vrot.slane %v553, 1
      %v752 = vrot.slane %v554, 1
      %v753 = vrot.slane %v555, 1
      %v754 = vrot.slane %v556, 1
      %v755 = vrot.slane %v557, 1
      %v756 = vrot.slane %v558, 1
      %v757 = vrot.slane %v559, 1
      %v758 = vrot.slane %v560, 1
      %v759 = vrot.slane %v561, 1
      %v760 = vrot.slane %v562, 1
      %v761 = vrot.slane %v563, 1
      %v762 = vrot.slane %v564, 1
      %v763 = vrot.slane %v565, 1
      %v764 = vrot.slane %v566, 1
      %v765 = vlaneseq
      %v766 = vshrl.u32 %v765, 7
      %vm767 = vcmp.lt.s32.totalorder %v766, 7
      %v768 = vsel %vm767, %v763, %v764
      %v769 = vsel %vm767, %v762, %v763
      %v770 = vsel %vm767, %v761, %v762
      %v771 = vsel %vm767, %v760, %v761
      %v772 = vsel %vm767, %v759, %v760
      %v773 = vsel %vm767, %v758, %v759
      %v774 = vsel %vm767, %v757, %v758
      %v775 = vsel %vm767, %v756, %v757
      %v776 = vsel %vm767, %v755, %v756
      %v777 = vsel %vm767, %v754, %v755
      %v778 = vsel %vm767, %v753, %v754
      %v779 = vsel %vm767, %v752, %v753
      %v780 = vsel %vm767, %v751, %v752
      %v781 = vsel %vm767, %v750, %v751
      %v782 = vsel %vm767, %v749, %v750
      %v783 = vsel %vm767, %v748, %v749
      %v784 = vsel %vm767, %v747, %v748
      %v785 = vsel %vm767, %v746, %v747
      %v786 = vsel %vm767, %v745, %v746
      %v787 = vsel %vm767, %v744, %v745
      %v788 = vsel %vm767, %v743, %v744
      %v789 = vsel %vm767, %v742, %v743
      %v790 = vsel %vm767, %v741, %v742
      %v791 = vsel %vm767, %v740, %v741
      %v792 = vsel %vm767, %v739, %v740
      %v793 = vsel %vm767, %v738, %v739
      %v794 = vsel %vm767, %v737, %v738
      %v795 = vsel %vm767, %v736, %v737
      %v796 = vsel %vm767, %v735, %v736
      %v797 = vsel %vm767, %v734, %v735
      %v798 = vsel %vm767, %v733, %v734
      %v799 = vsel %vm767, %v732, %v733
      %v800 = vsel %vm767, %v731, %v732
      %v801 = vsel %vm767, %v730, %v731
      %v802 = vsel %vm767, %v729, %v730
      %v803 = vsel %vm767, %v728, %v729
      %v804 = vsel %vm767, %v727, %v728
      %v805 = vsel %vm767, %v726, %v727
      %v806 = vsel %vm767, %v725, %v726
      %v807 = vsel %vm767, %v724, %v725
      %v808 = vsel %vm767, %v723, %v724
      %v809 = vsel %vm767, %v722, %v723
      %v810 = vsel %vm767, %v721, %v722
      %v811 = vsel %vm767, %v720, %v721
      %v812 = vsel %vm767, %v719, %v720
      %v813 = vsel %vm767, %v718, %v719
      %v814 = vsel %vm767, %v717, %v718
      %v815 = vsel %vm767, %v716, %v717
      %v816 = vsel %vm767, %v715, %v716
      %v817 = vsel %vm767, %v714, %v715
      %v818 = vsel %vm767, %v713, %v714
      %v819 = vsel %vm767, %v712, %v713
      %v820 = vsel %vm767, %v711, %v712
      %v821 = vsel %vm767, %v710, %v711
      %v822 = vsel %vm767, %v709, %v710
      %v823 = vsel %vm767, %v708, %v709
      %v824 = vsel %vm767, %v707, %v708
      %v825 = vsel %vm767, %v706, %v707
      %v826 = vsel %vm767, %v705, %v706
      %v827 = vsel %vm767, %v704, %v705
      %v828 = vsel %vm767, %v703, %v704
      %v829 = vsel %vm767, %v702, %v703
      %v830 = vsel %vm767, %v701, %v702
      %v831 = vsel %vm767, %v700, %v701
      %v832 = vld [vmem:[%s2 + $0x1] sm:$0x1]
      %v833 = vlaneseq
      %v834 = vshrl.u32 %v833, 7
      %v835 = vsub.s32 0, %v834
      %v836 = vrot.slane %v832, %v835
      %v837 = vmul.f32 %v831, %v836
      %v838 = vmul.f32 %v830, %v836
      %v839 = vmul.f32 %v829, %v836
      %v840 = vmul.f32 %v828, %v836
      %v841 = vmul.f32 %v827, %v836
      %v842 = vmul.f32 %v826, %v836
      %v843 = vmul.f32 %v825, %v836
      %v844 = vmul.f32 %v824, %v836
      %v845 = vmul.f32 %v823, %v836
      %v846 = vmul.f32 %v822, %v836
      %v847 = vmul.f32 %v821, %v836
      %v848 = vmul.f32 %v820, %v836
      %v849 = vmul.f32 %v819, %v836
      %v850 = vmul.f32 %v818, %v836
      %v851 = vmul.f32 %v817, %v836
      %v852 = vmul.f32 %v816, %v836
      %v853 = vmul.f32 %v815, %v836
      %v854 = vmul.f32 %v814, %v836
      %v855 = vmul.f32 %v813, %v836
      %v856 = vmul.f32 %v812, %v836
      %v857 = vmul.f32 %v811, %v836
      %v858 = vmul.f32 %v810, %v836
      %v859 = vmul.f32 %v809, %v836
      %v860 = vmul.f32 %v808, %v836
      %v861 = vmul.f32 %v807, %v836
      %v862 = vmul.f32 %v806, %v836
      %v863 = vmul.f32 %v805, %v836
      %v864 = vmul.f32 %v804, %v836
      %v865 = vmul.f32 %v803, %v836
      %v866 = vmul.f32 %v802, %v836
      %v867 = vmul.f32 %v801, %v836
      %v868 = vmul.f32 %v800, %v836
      %v869 = vmul.f32 %v799, %v836
      %v870 = vmul.f32 %v798, %v836
      %v871 = vmul.f32 %v797, %v836
      %v872 = vmul.f32 %v796, %v836
      %v873 = vmul.f32 %v795, %v836
      %v874 = vmul.f32 %v794, %v836
      %v875 = vmul.f32 %v793, %v836
      %v876 = vmul.f32 %v792, %v836
      %v877 = vmul.f32 %v791, %v836
      %v878 = vmul.f32 %v790, %v836
      %v879 = vmul.f32 %v789, %v836
      %v880 = vmul.f32 %v788, %v836
      %v881 = vmul.f32 %v787, %v836
      %v882 = vmul.f32 %v786, %v836
      %v883 = vmul.f32 %v785, %v836
      %v884 = vmul.f32 %v784, %v836
      %v885 = vmul.f32 %v783, %v836
      %v886 = vmul.f32 %v782, %v836
      %v887 = vmul.f32 %v781, %v836
      %v888 = vmul.f32 %v780, %v836
      %v889 = vmul.f32 %v779, %v836
      %v890 = vmul.f32 %v778, %v836
      %v891 = vmul.f32 %v777, %v836
      %v892 = vmul.f32 %v776, %v836
      %v893 = vmul.f32 %v775, %v836
      %v894 = vmul.f32 %v774, %v836
      %v895 = vmul.f32 %v773, %v836
      %v896 = vmul.f32 %v772, %v836
      %v897 = vmul.f32 %v771, %v836
      %v898 = vmul.f32 %v770, %v836
      %v899 = vmul.f32 %v769, %v836
      %v900 = vmul.f32 %v768, %v836
      %v901 = vadd.f32 %v636, %v837
      %v902 = vadd.f32 %v637, %v838
      %v903 = vadd.f32 %v638, %v839
      %v904 = vadd.f32 %v639, %v840
      %v905 = vadd.f32 %v640, %v841
      %v906 = vadd.f32 %v641, %v842
      %v907 = vadd.f32 %v642, %v843
      %v908 = vadd.f32 %v643, %v844
      %v909 = vadd.f32 %v644, %v845
      %v910 = vadd.f32 %v645, %v846
      %v911 = vadd.f32 %v646, %v847
      %v912 = vadd.f32 %v647, %v848
      %v913 = vadd.f32 %v648, %v849
      %v914 = vadd.f32 %v649, %v850
      %v915 = vadd.f32 %v650, %v851
      %v916 = vadd.f32 %v651, %v852
      %v917 = vadd.f32 %v652, %v853
      %v918 = vadd.f32 %v653, %v854
      %v919 = vadd.f32 %v654, %v855
      %v920 = vadd.f32 %v655, %v856
      %v921 = vadd.f32 %v656, %v857
      %v922 = vadd.f32 %v657, %v858
      %v923 = vadd.f32 %v658, %v859
      %v924 = vadd.f32 %v659, %v860
      %v925 = vadd.f32 %v660, %v861
      %v926 = vadd.f32 %v661, %v862
      %v927 = vadd.f32 %v662, %v863
      %v928 = vadd.f32 %v663, %v864
      %v929 = vadd.f32 %v664, %v865
      %v930 = vadd.f32 %v665, %v866
      %v931 = vadd.f32 %v666, %v867
      %v932 = vadd.f32 %v667, %v868
      %v933 = vadd.f32 %v668, %v869
      %v934 = vadd.f32 %v669, %v870
      %v935 = vadd.f32 %v670, %v871
      %v936 = vadd.f32 %v671, %v872
      %v937 = vadd.f32 %v672, %v873
      %v938 = vadd.f32 %v673, %v874
      %v939 = vadd.f32 %v674, %v875
      %v940 = vadd.f32 %v675, %v876
      %v941 = vadd.f32 %v676, %v877
      %v942 = vadd.f32 %v677, %v878
      %v943 = vadd.f32 %v678, %v879
      %v944 = vadd.f32 %v679, %v880
      %v945 = vadd.f32 %v680, %v881
      %v946 = vadd.f32 %v681, %v882
      %v947 = vadd.f32 %v682, %v883
      %v948 = vadd.f32 %v683, %v884
      %v949 = vadd.f32 %v684, %v885
      %v950 = vadd.f32 %v685, %v886
      %v951 = vadd.f32 %v686, %v887
      %v952 = vadd.f32 %v687, %v888
      %v953 = vadd.f32 %v688, %v889
      %v954 = vadd.f32 %v689, %v890
      %v955 = vadd.f32 %v690, %v891
      %v956 = vadd.f32 %v691, %v892
      %v957 = vadd.f32 %v692, %v893
      %v958 = vadd.f32 %v693, %v894
      %v959 = vadd.f32 %v694, %v895
      %v960 = vadd.f32 %v695, %v896
      %v961 = vadd.f32 %v696, %v897
      %v962 = vadd.f32 %v697, %v898
      %v963 = vadd.f32 %v698, %v899
      %v964 = vadd.f32 %v699, %v900
      %v965 = vrot.slane %v502, 2
      %v966 = vrot.slane %v503, 2
      %v967 = vrot.slane %v504, 2
      %v968 = vrot.slane %v505, 2
      %v969 = vrot.slane %v506, 2
      %v970 = vrot.slane %v507, 2
      %v971 = vrot.slane %v508, 2
      %v972 = vrot.slane %v509, 2
      %v973 = vrot.slane %v510, 2
      %v974 = vrot.slane %v511, 2
      %v975 = vrot.slane %v512, 2
      %v976 = vrot.slane %v513, 2
      %v977 = vrot.slane %v514, 2
      %v978 = vrot.slane %v515, 2
      %v979 = vrot.slane %v516, 2
      %v980 = vrot.slane %v517, 2
      %v981 = vrot.slane %v518, 2
      %v982 = vrot.slane %v519, 2
      %v983 = vrot.slane %v520, 2
      %v984 = vrot.slane %v521, 2
      %v985 = vrot.slane %v522, 2
      %v986 = vrot.slane %v523, 2
      %v987 = vrot.slane %v524, 2
      %v988 = vrot.slane %v525, 2
      %v989 = vrot.slane %v526, 2
      %v990 = vrot.slane %v527, 2
      %v991 = vrot.slane %v528, 2
      %v992 = vrot.slane %v529, 2
      %v993 = vrot.slane %v530, 2
      %v994 = vrot.slane %v531, 2
      %v995 = vrot.slane %v532, 2
      %v996 = vrot.slane %v533, 2
      %v997 = vrot.slane %v534, 2
      %v998 = vrot.slane %v535, 2
      %v999 = vrot.slane %v536, 2
      %v1000 = vrot.slane %v537, 2
      %v1001 = vrot.slane %v538, 2
      %v1002 = vrot.slane %v539, 2
      %v1003 = vrot.slane %v540, 2
      %v1004 = vrot.slane %v541, 2
      %v1005 = vrot.slane %v542, 2
      %v1006 = vrot.slane %v543, 2
      %v1007 = vrot.slane %v544, 2
      %v1008 = vrot.slane %v545, 2
      %v1009 = vrot.slane %v546, 2
      %v1010 = vrot.slane %v547, 2
      %v1011 = vrot.slane %v548, 2
      %v1012 = vrot.slane %v549, 2
      %v1013 = vrot.slane %v550, 2
      %v1014 = vrot.slane %v551, 2
      %v1015 = vrot.slane %v552, 2
      %v1016 = vrot.slane %v553, 2
      %v1017 = vrot.slane %v554, 2
      %v1018 = vrot.slane %v555, 2
      %v1019 = vrot.slane %v556, 2
      %v1020 = vrot.slane %v557, 2
      %v1021 = vrot.slane %v558, 2
      %v1022 = vrot.slane %v559, 2
      %v1023 = vrot.slane %v560, 2
      %v1024 = vrot.slane %v561, 2
      %v1025 = vrot.slane %v562, 2
      %v1026 = vrot.slane %v563, 2
      %v1027 = vrot.slane %v564, 2
      %v1028 = vrot.slane %v565, 2
      %v1029 = vrot.slane %v566, 2
      %vm1030 = vcmp.lt.s32.totalorder %v766, 6
      %v1031 = vsel %vm1030, %v1028, %v1029
      %v1032 = vsel %vm1030, %v1027, %v1028
      %v1033 = vsel %vm1030, %v1026, %v1027
      %v1034 = vsel %vm1030, %v1025, %v1026
      %v1035 = vsel %vm1030, %v1024, %v1025
      %v1036 = vsel %vm1030, %v1023, %v1024
      %v1037 = vsel %vm1030, %v1022, %v1023
      %v1038 = vsel %vm1030, %v1021, %v1022
      %v1039 = vsel %vm1030, %v1020, %v1021
      %v1040 = vsel %vm1030, %v1019, %v1020
      %v1041 = vsel %vm1030, %v1018, %v1019
      %v1042 = vsel %vm1030, %v1017, %v1018
      %v1043 = vsel %vm1030, %v1016, %v1017
      %v1044 = vsel %vm1030, %v1015, %v1016
      %v1045 = vsel %vm1030, %v1014, %v1015
      %v1046 = vsel %vm1030, %v1013, %v1014
      %v1047 = vsel %vm1030, %v1012, %v1013
      %v1048 = vsel %vm1030, %v1011, %v1012
      %v1049 = vsel %vm1030, %v1010, %v1011
      %v1050 = vsel %vm1030, %v1009, %v1010
      %v1051 = vsel %vm1030, %v1008, %v1009
      %v1052 = vsel %vm1030, %v1007, %v1008
      %v1053 = vsel %vm1030, %v1006, %v1007
      %v1054 = vsel %vm1030, %v1005, %v1006
      %v1055 = vsel %vm1030, %v1004, %v1005
      %v1056 = vsel %vm1030, %v1003, %v1004
      %v1057 = vsel %vm1030, %v1002, %v1003
      %v1058 = vsel %vm1030, %v1001, %v1002
      %v1059 = vsel %vm1030, %v1000, %v1001
      %v1060 = vsel %vm1030, %v999, %v1000
      %v1061 = vsel %vm1030, %v998, %v999
      %v1062 = vsel %vm1030, %v997, %v998
      %v1063 = vsel %vm1030, %v996, %v997
      %v1064 = vsel %vm1030, %v995, %v996
      %v1065 = vsel %vm1030, %v994, %v995
      %v1066 = vsel %vm1030, %v993, %v994
      %v1067 = vsel %vm1030, %v992, %v993
      %v1068 = vsel %vm1030, %v991, %v992
      %v1069 = vsel %vm1030, %v990, %v991
      %v1070 = vsel %vm1030, %v989, %v990
      %v1071 = vsel %vm1030, %v988, %v989
      %v1072 = vsel %vm1030, %v987, %v988
      %v1073 = vsel %vm1030, %v986, %v987
      %v1074 = vsel %vm1030, %v985, %v986
      %v1075 = vsel %vm1030, %v984, %v985
      %v1076 = vsel %vm1030, %v983, %v984
      %v1077 = vsel %vm1030, %v982, %v983
      %v1078 = vsel %vm1030, %v981, %v982
      %v1079 = vsel %vm1030, %v980, %v981
      %v1080 = vsel %vm1030, %v979, %v980
      %v1081 = vsel %vm1030, %v978, %v979
      %v1082 = vsel %vm1030, %v977, %v978
      %v1083 = vsel %vm1030, %v976, %v977
      %v1084 = vsel %vm1030, %v975, %v976
      %v1085 = vsel %vm1030, %v974, %v975
      %v1086 = vsel %vm1030, %v973, %v974
      %v1087 = vsel %vm1030, %v972, %v973
      %v1088 = vsel %vm1030, %v971, %v972
      %v1089 = vsel %vm1030, %v970, %v971
      %v1090 = vsel %vm1030, %v969, %v970
      %v1091 = vsel %vm1030, %v968, %v969
      %v1092 = vsel %vm1030, %v967, %v968
      %v1093 = vsel %vm1030, %v966, %v967
      %v1094 = vsel %vm1030, %v965, %v966
      %v1095 = vld [vmem:[%s2 + $0x2] sm:$0x1]
      %v1096 = vlaneseq
      %v1097 = vshrl.u32 %v1096, 7
      %v1098 = vsub.s32 0, %v1097
      %v1099 = vrot.slane %v1095, %v1098
      %v1100 = vmul.f32 %v1094, %v1099
      %v1101 = vmul.f32 %v1093, %v1099
      %v1102 = vmul.f32 %v1092, %v1099
      %v1103 = vmul.f32 %v1091, %v1099
      %v1104 = vmul.f32 %v1090, %v1099
      %v1105 = vmul.f32 %v1089, %v1099
      %v1106 = vmul.f32 %v1088, %v1099
      %v1107 = vmul.f32 %v1087, %v1099
      %v1108 = vmul.f32 %v1086, %v1099
      %v1109 = vmul.f32 %v1085, %v1099
      %v1110 = vmul.f32 %v1084, %v1099
      %v1111 = vmul.f32 %v1083, %v1099
      %v1112 = vmul.f32 %v1082, %v1099
      %v1113 = vmul.f32 %v1081, %v1099
      %v1114 = vmul.f32 %v1080, %v1099
      %v1115 = vmul.f32 %v1079, %v1099
      %v1116 = vmul.f32 %v1078, %v1099
      %v1117 = vmul.f32 %v1077, %v1099
      %v1118 = vmul.f32 %v1076, %v1099
      %v1119 = vmul.f32 %v1075, %v1099
      %v1120 = vmul.f32 %v1074, %v1099
      %v1121 = vmul.f32 %v1073, %v1099
      %v1122 = vmul.f32 %v1072, %v1099
      %v1123 = vmul.f32 %v1071, %v1099
      %v1124 = vmul.f32 %v1070, %v1099
      %v1125 = vmul.f32 %v1069, %v1099
      %v1126 = vmul.f32 %v1068, %v1099
      %v1127 = vmul.f32 %v1067, %v1099
      %v1128 = vmul.f32 %v1066, %v1099
      %v1129 = vmul.f32 %v1065, %v1099
      %v1130 = vmul.f32 %v1064, %v1099
      %v1131 = vmul.f32 %v1063, %v1099
      %v1132 = vmul.f32 %v1062, %v1099
      %v1133 = vmul.f32 %v1061, %v1099
      %v1134 = vmul.f32 %v1060, %v1099
      %v1135 = vmul.f32 %v1059, %v1099
      %v1136 = vmul.f32 %v1058, %v1099
      %v1137 = vmul.f32 %v1057, %v1099
      %v1138 = vmul.f32 %v1056, %v1099
      %v1139 = vmul.f32 %v1055, %v1099
      %v1140 = vmul.f32 %v1054, %v1099
      %v1141 = vmul.f32 %v1053, %v1099
      %v1142 = vmul.f32 %v1052, %v1099
      %v1143 = vmul.f32 %v1051, %v1099
      %v1144 = vmul.f32 %v1050, %v1099
      %v1145 = vmul.f32 %v1049, %v1099
      %v1146 = vmul.f32 %v1048, %v1099
      %v1147 = vmul.f32 %v1047, %v1099
      %v1148 = vmul.f32 %v1046, %v1099
      %v1149 = vmul.f32 %v1045, %v1099
      %v1150 = vmul.f32 %v1044, %v1099
      %v1151 = vmul.f32 %v1043, %v1099
      %v1152 = vmul.f32 %v1042, %v1099
      %v1153 = vmul.f32 %v1041, %v1099
      %v1154 = vmul.f32 %v1040, %v1099
      %v1155 = vmul.f32 %v1039, %v1099
      %v1156 = vmul.f32 %v1038, %v1099
      %v1157 = vmul.f32 %v1037, %v1099
      %v1158 = vmul.f32 %v1036, %v1099
      %v1159 = vmul.f32 %v1035, %v1099
      %v1160 = vmul.f32 %v1034, %v1099
      %v1161 = vmul.f32 %v1033, %v1099
      %v1162 = vmul.f32 %v1032, %v1099
      %v1163 = vmul.f32 %v1031, %v1099
      %v1164 = vadd.f32 %v901, %v1100
      %v1165 = vadd.f32 %v902, %v1101
      %v1166 = vadd.f32 %v903, %v1102
      %v1167 = vadd.f32 %v904, %v1103
      %v1168 = vadd.f32 %v905, %v1104
      %v1169 = vadd.f32 %v906, %v1105
      %v1170 = vadd.f32 %v907, %v1106
      %v1171 = vadd.f32 %v908, %v1107
      %v1172 = vadd.f32 %v909, %v1108
      %v1173 = vadd.f32 %v910, %v1109
      %v1174 = vadd.f32 %v911, %v1110
      %v1175 = vadd.f32 %v912, %v1111
      %v1176 = vadd.f32 %v913, %v1112
      %v1177 = vadd.f32 %v914, %v1113
      %v1178 = vadd.f32 %v915, %v1114
      %v1179 = vadd.f32 %v916, %v1115
      %v1180 = vadd.f32 %v917, %v1116
      %v1181 = vadd.f32 %v918, %v1117
      %v1182 = vadd.f32 %v919, %v1118
      %v1183 = vadd.f32 %v920, %v1119
      %v1184 = vadd.f32 %v921, %v1120
      %v1185 = vadd.f32 %v922, %v1121
      %v1186 = vadd.f32 %v923, %v1122
      %v1187 = vadd.f32 %v924, %v1123
      %v1188 = vadd.f32 %v925, %v1124
      %v1189 = vadd.f32 %v926, %v1125
      %v1190 = vadd.f32 %v927, %v1126
      %v1191 = vadd.f32 %v928, %v1127
      %v1192 = vadd.f32 %v929, %v1128
      %v1193 = vadd.f32 %v930, %v1129
      %v1194 = vadd.f32 %v931, %v1130
      %v1195 = vadd.f32 %v932, %v1131
      %v1196 = vadd.f32 %v933, %v1132
      %v1197 = vadd.f32 %v934, %v1133
      %v1198 = vadd.f32 %v935, %v1134
      %v1199 = vadd.f32 %v936, %v1135
      %v1200 = vadd.f32 %v937, %v1136
      %v1201 = vadd.f32 %v938, %v1137
      %v1202 = vadd.f32 %v939, %v1138
      %v1203 = vadd.f32 %v940, %v1139
      %v1204 = vadd.f32 %v941, %v1140
      %v1205 = vadd.f32 %v942, %v1141
      %v1206 = vadd.f32 %v943, %v1142
      %v1207 = vadd.f32 %v944, %v1143
      %v1208 = vadd.f32 %v945, %v1144
      %v1209 = vadd.f32 %v946, %v1145
      %v1210 = vadd.f32 %v947, %v1146
      %v1211 = vadd.f32 %v948, %v1147
      %v1212 = vadd.f32 %v949, %v1148
      %v1213 = vadd.f32 %v950, %v1149
      %v1214 = vadd.f32 %v951, %v1150
      %v1215 = vadd.f32 %v952, %v1151
      %v1216 = vadd.f32 %v953, %v1152
      %v1217 = vadd.f32 %v954, %v1153
      %v1218 = vadd.f32 %v955, %v1154
      %v1219 = vadd.f32 %v956, %v1155
      %v1220 = vadd.f32 %v957, %v1156
      %v1221 = vadd.f32 %v958, %v1157
      %v1222 = vadd.f32 %v959, %v1158
      %v1223 = vadd.f32 %v960, %v1159
      %v1224 = vadd.f32 %v961, %v1160
      %v1225 = vadd.f32 %v962, %v1161
      %v1226 = vadd.f32 %v963, %v1162
      %v1227 = vadd.f32 %v964, %v1163
      %v1228 = vrot.slane %v502, 3
      %v1229 = vrot.slane %v503, 3
      %v1230 = vrot.slane %v504, 3
      %v1231 = vrot.slane %v505, 3
      %v1232 = vrot.slane %v506, 3
      %v1233 = vrot.slane %v507, 3
      %v1234 = vrot.slane %v508, 3
      %v1235 = vrot.slane %v509, 3
      %v1236 = vrot.slane %v510, 3
      %v1237 = vrot.slane %v511, 3
      %v1238 = vrot.slane %v512, 3
      %v1239 = vrot.slane %v513, 3
      %v1240 = vrot.slane %v514, 3
      %v1241 = vrot.slane %v515, 3
      %v1242 = vrot.slane %v516, 3
      %v1243 = vrot.slane %v517, 3
      %v1244 = vrot.slane %v518, 3
      %v1245 = vrot.slane %v519, 3
      %v1246 = vrot.slane %v520, 3
      %v1247 = vrot.slane %v521, 3
      %v1248 = vrot.slane %v522, 3
      %v1249 = vrot.slane %v523, 3
      %v1250 = vrot.slane %v524, 3
      %v1251 = vrot.slane %v525, 3
      %v1252 = vrot.slane %v526, 3
      %v1253 = vrot.slane %v527, 3
      %v1254 = vrot.slane %v528, 3
      %v1255 = vrot.slane %v529, 3
      %v1256 = vrot.slane %v530, 3
      %v1257 = vrot.slane %v531, 3
      %v1258 = vrot.slane %v532, 3
      %v1259 = vrot.slane %v533, 3
      %v1260 = vrot.slane %v534, 3
      %v1261 = vrot.slane %v535, 3
      %v1262 = vrot.slane %v536, 3
      %v1263 = vrot.slane %v537, 3
      %v1264 = vrot.slane %v538, 3
      %v1265 = vrot.slane %v539, 3
      %v1266 = vrot.slane %v540, 3
      %v1267 = vrot.slane %v541, 3
      %v1268 = vrot.slane %v542, 3
      %v1269 = vrot.slane %v543, 3
      %v1270 = vrot.slane %v544, 3
      %v1271 = vrot.slane %v545, 3
      %v1272 = vrot.slane %v546, 3
      %v1273 = vrot.slane %v547, 3
      %v1274 = vrot.slane %v548, 3
      %v1275 = vrot.slane %v549, 3
      %v1276 = vrot.slane %v550, 3
      %v1277 = vrot.slane %v551, 3
      %v1278 = vrot.slane %v552, 3
      %v1279 = vrot.slane %v553, 3
      %v1280 = vrot.slane %v554, 3
      %v1281 = vrot.slane %v555, 3
      %v1282 = vrot.slane %v556, 3
      %v1283 = vrot.slane %v557, 3
      %v1284 = vrot.slane %v558, 3
      %v1285 = vrot.slane %v559, 3
      %v1286 = vrot.slane %v560, 3
      %v1287 = vrot.slane %v561, 3
      %v1288 = vrot.slane %v562, 3
      %v1289 = vrot.slane %v563, 3
      %v1290 = vrot.slane %v564, 3
      %v1291 = vrot.slane %v565, 3
      %v1292 = vrot.slane %v566, 3
      %vm1293 = vcmp.lt.s32.totalorder %v766, 5
      %v1294 = vsel %vm1293, %v1291, %v1292
      %v1295 = vsel %vm1293, %v1290, %v1291
      %v1296 = vsel %vm1293, %v1289, %v1290
      %v1297 = vsel %vm1293, %v1288, %v1289
      %v1298 = vsel %vm1293, %v1287, %v1288
      %v1299 = vsel %vm1293, %v1286, %v1287
      %v1300 = vsel %vm1293, %v1285, %v1286
      %v1301 = vsel %vm1293, %v1284, %v1285
      %v1302 = vsel %vm1293, %v1283, %v1284
      %v1303 = vsel %vm1293, %v1282, %v1283
      %v1304 = vsel %vm1293, %v1281, %v1282
      %v1305 = vsel %vm1293, %v1280, %v1281
      %v1306 = vsel %vm1293, %v1279, %v1280
      %v1307 = vsel %vm1293, %v1278, %v1279
      %v1308 = vsel %vm1293, %v1277, %v1278
      %v1309 = vsel %vm1293, %v1276, %v1277
      %v1310 = vsel %vm1293, %v1275, %v1276
      %v1311 = vsel %vm1293, %v1274, %v1275
      %v1312 = vsel %vm1293, %v1273, %v1274
      %v1313 = vsel %vm1293, %v1272, %v1273
      %v1314 = vsel %vm1293, %v1271, %v1272
      %v1315 = vsel %vm1293, %v1270, %v1271
      %v1316 = vsel %vm1293, %v1269, %v1270
      %v1317 = vsel %vm1293, %v1268, %v1269
      %v1318 = vsel %vm1293, %v1267, %v1268
      %v1319 = vsel %vm1293, %v1266, %v1267
      %v1320 = vsel %vm1293, %v1265, %v1266
      %v1321 = vsel %vm1293, %v1264, %v1265
      %v1322 = vsel %vm1293, %v1263, %v1264
      %v1323 = vsel %vm1293, %v1262, %v1263
      %v1324 = vsel %vm1293, %v1261, %v1262
      %v1325 = vsel %vm1293, %v1260, %v1261
      %v1326 = vsel %vm1293, %v1259, %v1260
      %v1327 = vsel %vm1293, %v1258, %v1259
      %v1328 = vsel %vm1293, %v1257, %v1258
      %v1329 = vsel %vm1293, %v1256, %v1257
      %v1330 = vsel %vm1293, %v1255, %v1256
      %v1331 = vsel %vm1293, %v1254, %v1255
      %v1332 = vsel %vm1293, %v1253, %v1254
      %v1333 = vsel %vm1293, %v1252, %v1253
      %v1334 = vsel %vm1293, %v1251, %v1252
      %v1335 = vsel %vm1293, %v1250, %v1251
      %v1336 = vsel %vm1293, %v1249, %v1250
      %v1337 = vsel %vm1293, %v1248, %v1249
      %v1338 = vsel %vm1293, %v1247, %v1248
      %v1339 = vsel %vm1293, %v1246, %v1247
      %v1340 = vsel %vm1293, %v1245, %v1246
      %v1341 = vsel %vm1293, %v1244, %v1245
      %v1342 = vsel %vm1293, %v1243, %v1244
      %v1343 = vsel %vm1293, %v1242, %v1243
      %v1344 = vsel %vm1293, %v1241, %v1242
      %v1345 = vsel %vm1293, %v1240, %v1241
      %v1346 = vsel %vm1293, %v1239, %v1240
      %v1347 = vsel %vm1293, %v1238, %v1239
      %v1348 = vsel %vm1293, %v1237, %v1238
      %v1349 = vsel %vm1293, %v1236, %v1237
      %v1350 = vsel %vm1293, %v1235, %v1236
      %v1351 = vsel %vm1293, %v1234, %v1235
      %v1352 = vsel %vm1293, %v1233, %v1234
      %v1353 = vsel %vm1293, %v1232, %v1233
      %v1354 = vsel %vm1293, %v1231, %v1232
      %v1355 = vsel %vm1293, %v1230, %v1231
      %v1356 = vsel %vm1293, %v1229, %v1230
      %v1357 = vsel %vm1293, %v1228, %v1229
      %v1358 = vld [vmem:[%s2 + $0x3] sm:$0x1]
      %v1359 = vlaneseq
      %v1360 = vshrl.u32 %v1359, 7
      %v1361 = vsub.s32 0, %v1360
      %v1362 = vrot.slane %v1358, %v1361
      %v1363 = vmul.f32 %v1357, %v1362
      %v1364 = vmul.f32 %v1356, %v1362
      %v1365 = vmul.f32 %v1355, %v1362
      %v1366 = vmul.f32 %v1354, %v1362
      %v1367 = vmul.f32 %v1353, %v1362
      %v1368 = vmul.f32 %v1352, %v1362
      %v1369 = vmul.f32 %v1351, %v1362
      %v1370 = vmul.f32 %v1350, %v1362
      %v1371 = vmul.f32 %v1349, %v1362
      %v1372 = vmul.f32 %v1348, %v1362
      %v1373 = vmul.f32 %v1347, %v1362
      %v1374 = vmul.f32 %v1346, %v1362
      %v1375 = vmul.f32 %v1345, %v1362
      %v1376 = vmul.f32 %v1344, %v1362
      %v1377 = vmul.f32 %v1343, %v1362
      %v1378 = vmul.f32 %v1342, %v1362
      %v1379 = vmul.f32 %v1341, %v1362
      %v1380 = vmul.f32 %v1340, %v1362
      %v1381 = vmul.f32 %v1339, %v1362
      %v1382 = vmul.f32 %v1338, %v1362
      %v1383 = vmul.f32 %v1337, %v1362
      %v1384 = vmul.f32 %v1336, %v1362
      %v1385 = vmul.f32 %v1335, %v1362
      %v1386 = vmul.f32 %v1334, %v1362
      %v1387 = vmul.f32 %v1333, %v1362
      %v1388 = vmul.f32 %v1332, %v1362
      %v1389 = vmul.f32 %v1331, %v1362
      %v1390 = vmul.f32 %v1330, %v1362
      %v1391 = vmul.f32 %v1329, %v1362
      %v1392 = vmul.f32 %v1328, %v1362
      %v1393 = vmul.f32 %v1327, %v1362
      %v1394 = vmul.f32 %v1326, %v1362
      %v1395 = vmul.f32 %v1325, %v1362
      %v1396 = vmul.f32 %v1324, %v1362
      %v1397 = vmul.f32 %v1323, %v1362
      %v1398 = vmul.f32 %v1322, %v1362
      %v1399 = vmul.f32 %v1321, %v1362
      %v1400 = vmul.f32 %v1320, %v1362
      %v1401 = vmul.f32 %v1319, %v1362
      %v1402 = vmul.f32 %v1318, %v1362
      %v1403 = vmul.f32 %v1317, %v1362
      %v1404 = vmul.f32 %v1316, %v1362
      %v1405 = vmul.f32 %v1315, %v1362
      %v1406 = vmul.f32 %v1314, %v1362
      %v1407 = vmul.f32 %v1313, %v1362
      %v1408 = vmul.f32 %v1312, %v1362
      %v1409 = vmul.f32 %v1311, %v1362
      %v1410 = vmul.f32 %v1310, %v1362
      %v1411 = vmul.f32 %v1309, %v1362
      %v1412 = vmul.f32 %v1308, %v1362
      %v1413 = vmul.f32 %v1307, %v1362
      %v1414 = vmul.f32 %v1306, %v1362
      %v1415 = vmul.f32 %v1305, %v1362
      %v1416 = vmul.f32 %v1304, %v1362
      %v1417 = vmul.f32 %v1303, %v1362
      %v1418 = vmul.f32 %v1302, %v1362
      %v1419 = vmul.f32 %v1301, %v1362
      %v1420 = vmul.f32 %v1300, %v1362
      %v1421 = vmul.f32 %v1299, %v1362
      %v1422 = vmul.f32 %v1298, %v1362
      %v1423 = vmul.f32 %v1297, %v1362
      %v1424 = vmul.f32 %v1296, %v1362
      %v1425 = vmul.f32 %v1295, %v1362
      %v1426 = vmul.f32 %v1294, %v1362
      %v1427 = vadd.f32 %v1164, %v1363
      %v1428 = vadd.f32 %v1165, %v1364
      %v1429 = vadd.f32 %v1166, %v1365
      %v1430 = vadd.f32 %v1167, %v1366
      %v1431 = vadd.f32 %v1168, %v1367
      %v1432 = vadd.f32 %v1169, %v1368
      %v1433 = vadd.f32 %v1170, %v1369
      %v1434 = vadd.f32 %v1171, %v1370
      %v1435 = vadd.f32 %v1172, %v1371
      %v1436 = vadd.f32 %v1173, %v1372
      %v1437 = vadd.f32 %v1174, %v1373
      %v1438 = vadd.f32 %v1175, %v1374
      %v1439 = vadd.f32 %v1176, %v1375
      %v1440 = vadd.f32 %v1177, %v1376
      %v1441 = vadd.f32 %v1178, %v1377
      %v1442 = vadd.f32 %v1179, %v1378
      %v1443 = vadd.f32 %v1180, %v1379
      %v1444 = vadd.f32 %v1181, %v1380
      %v1445 = vadd.f32 %v1182, %v1381
      %v1446 = vadd.f32 %v1183, %v1382
      %v1447 = vadd.f32 %v1184, %v1383
      %v1448 = vadd.f32 %v1185, %v1384
      %v1449 = vadd.f32 %v1186, %v1385
      %v1450 = vadd.f32 %v1187, %v1386
      %v1451 = vadd.f32 %v1188, %v1387
      %v1452 = vadd.f32 %v1189, %v1388
      %v1453 = vadd.f32 %v1190, %v1389
      %v1454 = vadd.f32 %v1191, %v1390
      %v1455 = vadd.f32 %v1192, %v1391
      %v1456 = vadd.f32 %v1193, %v1392
      %v1457 = vadd.f32 %v1194, %v1393
      %v1458 = vadd.f32 %v1195, %v1394
      %v1459 = vadd.f32 %v1196, %v1395
      %v1460 = vadd.f32 %v1197, %v1396
      %v1461 = vadd.f32 %v1198, %v1397
      %v1462 = vadd.f32 %v1199, %v1398
      %v1463 = vadd.f32 %v1200, %v1399
      %v1464 = vadd.f32 %v1201, %v1400
      %v1465 = vadd.f32 %v1202, %v1401
      %v1466 = vadd.f32 %v1203, %v1402
      %v1467 = vadd.f32 %v1204, %v1403
      %v1468 = vadd.f32 %v1205, %v1404
      %v1469 = vadd.f32 %v1206, %v1405
      %v1470 = vadd.f32 %v1207, %v1406
      %v1471 = vadd.f32 %v1208, %v1407
      %v1472 = vadd.f32 %v1209, %v1408
      %v1473 = vadd.f32 %v1210, %v1409
      %v1474 = vadd.f32 %v1211, %v1410
      %v1475 = vadd.f32 %v1212, %v1411
      %v1476 = vadd.f32 %v1213, %v1412
      %v1477 = vadd.f32 %v1214, %v1413
      %v1478 = vadd.f32 %v1215, %v1414
      %v1479 = vadd.f32 %v1216, %v1415
      %v1480 = vadd.f32 %v1217, %v1416
      %v1481 = vadd.f32 %v1218, %v1417
      %v1482 = vadd.f32 %v1219, %v1418
      %v1483 = vadd.f32 %v1220, %v1419
      %v1484 = vadd.f32 %v1221, %v1420
      %v1485 = vadd.f32 %v1222, %v1421
      %v1486 = vadd.f32 %v1223, %v1422
      %v1487 = vadd.f32 %v1224, %v1423
      %v1488 = vadd.f32 %v1225, %v1424
      %v1489 = vadd.f32 %v1226, %v1425
      %v1490 = vadd.f32 %v1227, %v1426
      %v1491 = vrot.slane %v502, 4
      %v1492 = vrot.slane %v503, 4
      %v1493 = vrot.slane %v504, 4
      %v1494 = vrot.slane %v505, 4
      %v1495 = vrot.slane %v506, 4
      %v1496 = vrot.slane %v507, 4
      %v1497 = vrot.slane %v508, 4
      %v1498 = vrot.slane %v509, 4
      %v1499 = vrot.slane %v510, 4
      %v1500 = vrot.slane %v511, 4
      %v1501 = vrot.slane %v512, 4
      %v1502 = vrot.slane %v513, 4
      %v1503 = vrot.slane %v514, 4
      %v1504 = vrot.slane %v515, 4
      %v1505 = vrot.slane %v516, 4
      %v1506 = vrot.slane %v517, 4
      %v1507 = vrot.slane %v518, 4
      %v1508 = vrot.slane %v519, 4
      %v1509 = vrot.slane %v520, 4
      %v1510 = vrot.slane %v521, 4
      %v1511 = vrot.slane %v522, 4
      %v1512 = vrot.slane %v523, 4
      %v1513 = vrot.slane %v524, 4
      %v1514 = vrot.slane %v525, 4
      %v1515 = vrot.slane %v526, 4
      %v1516 = vrot.slane %v527, 4
      %v1517 = vrot.slane %v528, 4
      %v1518 = vrot.slane %v529, 4
      %v1519 = vrot.slane %v530, 4
      %v1520 = vrot.slane %v531, 4
      %v1521 = vrot.slane %v532, 4
      %v1522 = vrot.slane %v533, 4
      %v1523 = vrot.slane %v534, 4
      %v1524 = vrot.slane %v535, 4
      %v1525 = vrot.slane %v536, 4
      %v1526 = vrot.slane %v537, 4
      %v1527 = vrot.slane %v538, 4
      %v1528 = vrot.slane %v539, 4
      %v1529 = vrot.slane %v540, 4
      %v1530 = vrot.slane %v541, 4
      %v1531 = vrot.slane %v542, 4
      %v1532 = vrot.slane %v543, 4
      %v1533 = vrot.slane %v544, 4
      %v1534 = vrot.slane %v545, 4
      %v1535 = vrot.slane %v546, 4
      %v1536 = vrot.slane %v547, 4
      %v1537 = vrot.slane %v548, 4
      %v1538 = vrot.slane %v549, 4
      %v1539 = vrot.slane %v550, 4
      %v1540 = vrot.slane %v551, 4
      %v1541 = vrot.slane %v552, 4
      %v1542 = vrot.slane %v553, 4
      %v1543 = vrot.slane %v554, 4
      %v1544 = vrot.slane %v555, 4
      %v1545 = vrot.slane %v556, 4
      %v1546 = vrot.slane %v557, 4
      %v1547 = vrot.slane %v558, 4
      %v1548 = vrot.slane %v559, 4
      %v1549 = vrot.slane %v560, 4
      %v1550 = vrot.slane %v561, 4
      %v1551 = vrot.slane %v562, 4
      %v1552 = vrot.slane %v563, 4
      %v1553 = vrot.slane %v564, 4
      %v1554 = vrot.slane %v565, 4
      %v1555 = vrot.slane %v566, 4
      %vm1556 = vcmp.lt.s32.totalorder %v766, 4
      %v1557 = vsel %vm1556, %v1554, %v1555
      %v1558 = vsel %vm1556, %v1553, %v1554
      %v1559 = vsel %vm1556, %v1552, %v1553
      %v1560 = vsel %vm1556, %v1551, %v1552
      %v1561 = vsel %vm1556, %v1550, %v1551
      %v1562 = vsel %vm1556, %v1549, %v1550
      %v1563 = vsel %vm1556, %v1548, %v1549
      %v1564 = vsel %vm1556, %v1547, %v1548
      %v1565 = vsel %vm1556, %v1546, %v1547
      %v1566 = vsel %vm1556, %v1545, %v1546
      %v1567 = vsel %vm1556, %v1544, %v1545
      %v1568 = vsel %vm1556, %v1543, %v1544
      %v1569 = vsel %vm1556, %v1542, %v1543
      %v1570 = vsel %vm1556, %v1541, %v1542
      %v1571 = vsel %vm1556, %v1540, %v1541
      %v1572 = vsel %vm1556, %v1539, %v1540
      %v1573 = vsel %vm1556, %v1538, %v1539
      %v1574 = vsel %vm1556, %v1537, %v1538
      %v1575 = vsel %vm1556, %v1536, %v1537
      %v1576 = vsel %vm1556, %v1535, %v1536
      %v1577 = vsel %vm1556, %v1534, %v1535
      %v1578 = vsel %vm1556, %v1533, %v1534
      %v1579 = vsel %vm1556, %v1532, %v1533
      %v1580 = vsel %vm1556, %v1531, %v1532
      %v1581 = vsel %vm1556, %v1530, %v1531
      %v1582 = vsel %vm1556, %v1529, %v1530
      %v1583 = vsel %vm1556, %v1528, %v1529
      %v1584 = vsel %vm1556, %v1527, %v1528
      %v1585 = vsel %vm1556, %v1526, %v1527
      %v1586 = vsel %vm1556, %v1525, %v1526
      %v1587 = vsel %vm1556, %v1524, %v1525
      %v1588 = vsel %vm1556, %v1523, %v1524
      %v1589 = vsel %vm1556, %v1522, %v1523
      %v1590 = vsel %vm1556, %v1521, %v1522
      %v1591 = vsel %vm1556, %v1520, %v1521
      %v1592 = vsel %vm1556, %v1519, %v1520
      %v1593 = vsel %vm1556, %v1518, %v1519
      %v1594 = vsel %vm1556, %v1517, %v1518
      %v1595 = vsel %vm1556, %v1516, %v1517
      %v1596 = vsel %vm1556, %v1515, %v1516
      %v1597 = vsel %vm1556, %v1514, %v1515
      %v1598 = vsel %vm1556, %v1513, %v1514
      %v1599 = vsel %vm1556, %v1512, %v1513
      %v1600 = vsel %vm1556, %v1511, %v1512
      %v1601 = vsel %vm1556, %v1510, %v1511
      %v1602 = vsel %vm1556, %v1509, %v1510
      %v1603 = vsel %vm1556, %v1508, %v1509
      %v1604 = vsel %vm1556, %v1507, %v1508
      %v1605 = vsel %vm1556, %v1506, %v1507
      %v1606 = vsel %vm1556, %v1505, %v1506
      %v1607 = vsel %vm1556, %v1504, %v1505
      %v1608 = vsel %vm1556, %v1503, %v1504
      %v1609 = vsel %vm1556, %v1502, %v1503
      %v1610 = vsel %vm1556, %v1501, %v1502
      %v1611 = vsel %vm1556, %v1500, %v1501
      %v1612 = vsel %vm1556, %v1499, %v1500
      %v1613 = vsel %vm1556, %v1498, %v1499
      %v1614 = vsel %vm1556, %v1497, %v1498
      %v1615 = vsel %vm1556, %v1496, %v1497
      %v1616 = vsel %vm1556, %v1495, %v1496
      %v1617 = vsel %vm1556, %v1494, %v1495
      %v1618 = vsel %vm1556, %v1493, %v1494
      %v1619 = vsel %vm1556, %v1492, %v1493
      %v1620 = vsel %vm1556, %v1491, %v1492
      %v1621 = vld [vmem:[%s2 + $0x4] sm:$0x1]
      %v1622 = vlaneseq
      %v1623 = vshrl.u32 %v1622, 7
      %v1624 = vsub.s32 0, %v1623
      %v1625 = vrot.slane %v1621, %v1624
      %v1626 = vmul.f32 %v1620, %v1625
      %v1627 = vmul.f32 %v1619, %v1625
      %v1628 = vmul.f32 %v1618, %v1625
      %v1629 = vmul.f32 %v1617, %v1625
      %v1630 = vmul.f32 %v1616, %v1625
      %v1631 = vmul.f32 %v1615, %v1625
      %v1632 = vmul.f32 %v1614, %v1625
      %v1633 = vmul.f32 %v1613, %v1625
      %v1634 = vmul.f32 %v1612, %v1625
      %v1635 = vmul.f32 %v1611, %v1625
      %v1636 = vmul.f32 %v1610, %v1625
      %v1637 = vmul.f32 %v1609, %v1625
      %v1638 = vmul.f32 %v1608, %v1625
      %v1639 = vmul.f32 %v1607, %v1625
      %v1640 = vmul.f32 %v1606, %v1625
      %v1641 = vmul.f32 %v1605, %v1625
      %v1642 = vmul.f32 %v1604, %v1625
      %v1643 = vmul.f32 %v1603, %v1625
      %v1644 = vmul.f32 %v1602, %v1625
      %v1645 = vmul.f32 %v1601, %v1625
      %v1646 = vmul.f32 %v1600, %v1625
      %v1647 = vmul.f32 %v1599, %v1625
      %v1648 = vmul.f32 %v1598, %v1625
      %v1649 = vmul.f32 %v1597, %v1625
      %v1650 = vmul.f32 %v1596, %v1625
      %v1651 = vmul.f32 %v1595, %v1625
      %v1652 = vmul.f32 %v1594, %v1625
      %v1653 = vmul.f32 %v1593, %v1625
      %v1654 = vmul.f32 %v1592, %v1625
      %v1655 = vmul.f32 %v1591, %v1625
      %v1656 = vmul.f32 %v1590, %v1625
      %v1657 = vmul.f32 %v1589, %v1625
      %v1658 = vmul.f32 %v1588, %v1625
      %v1659 = vmul.f32 %v1587, %v1625
      %v1660 = vmul.f32 %v1586, %v1625
      %v1661 = vmul.f32 %v1585, %v1625
      %v1662 = vmul.f32 %v1584, %v1625
      %v1663 = vmul.f32 %v1583, %v1625
      %v1664 = vmul.f32 %v1582, %v1625
      %v1665 = vmul.f32 %v1581, %v1625
      %v1666 = vmul.f32 %v1580, %v1625
      %v1667 = vmul.f32 %v1579, %v1625
      %v1668 = vmul.f32 %v1578, %v1625
      %v1669 = vmul.f32 %v1577, %v1625
      %v1670 = vmul.f32 %v1576, %v1625
      %v1671 = vmul.f32 %v1575, %v1625
      %v1672 = vmul.f32 %v1574, %v1625
      %v1673 = vmul.f32 %v1573, %v1625
      %v1674 = vmul.f32 %v1572, %v1625
      %v1675 = vmul.f32 %v1571, %v1625
      %v1676 = vmul.f32 %v1570, %v1625
      %v1677 = vmul.f32 %v1569, %v1625
      %v1678 = vmul.f32 %v1568, %v1625
      %v1679 = vmul.f32 %v1567, %v1625
      %v1680 = vmul.f32 %v1566, %v1625
      %v1681 = vmul.f32 %v1565, %v1625
      %v1682 = vmul.f32 %v1564, %v1625
      %v1683 = vmul.f32 %v1563, %v1625
      %v1684 = vmul.f32 %v1562, %v1625
      %v1685 = vmul.f32 %v1561, %v1625
      %v1686 = vmul.f32 %v1560, %v1625
      %v1687 = vmul.f32 %v1559, %v1625
      %v1688 = vmul.f32 %v1558, %v1625
      %v1689 = vmul.f32 %v1557, %v1625
      %v1690 = vadd.f32 %v1427, %v1626
      %v1691 = vadd.f32 %v1428, %v1627
      %v1692 = vadd.f32 %v1429, %v1628
      %v1693 = vadd.f32 %v1430, %v1629
      %v1694 = vadd.f32 %v1431, %v1630
      %v1695 = vadd.f32 %v1432, %v1631
      %v1696 = vadd.f32 %v1433, %v1632
      %v1697 = vadd.f32 %v1434, %v1633
      %v1698 = vadd.f32 %v1435, %v1634
      %v1699 = vadd.f32 %v1436, %v1635
      %v1700 = vadd.f32 %v1437, %v1636
      %v1701 = vadd.f32 %v1438, %v1637
      %v1702 = vadd.f32 %v1439, %v1638
      %v1703 = vadd.f32 %v1440, %v1639
      %v1704 = vadd.f32 %v1441, %v1640
      %v1705 = vadd.f32 %v1442, %v1641
      %v1706 = vadd.f32 %v1443, %v1642
      %v1707 = vadd.f32 %v1444, %v1643
      %v1708 = vadd.f32 %v1445, %v1644
      %v1709 = vadd.f32 %v1446, %v1645
      %v1710 = vadd.f32 %v1447, %v1646
      %v1711 = vadd.f32 %v1448, %v1647
      %v1712 = vadd.f32 %v1449, %v1648
      %v1713 = vadd.f32 %v1450, %v1649
      %v1714 = vadd.f32 %v1451, %v1650
      %v1715 = vadd.f32 %v1452, %v1651
      %v1716 = vadd.f32 %v1453, %v1652
      %v1717 = vadd.f32 %v1454, %v1653
      %v1718 = vadd.f32 %v1455, %v1654
      %v1719 = vadd.f32 %v1456, %v1655
      %v1720 = vadd.f32 %v1457, %v1656
      %v1721 = vadd.f32 %v1458, %v1657
      %v1722 = vadd.f32 %v1459, %v1658
      %v1723 = vadd.f32 %v1460, %v1659
      %v1724 = vadd.f32 %v1461, %v1660
      %v1725 = vadd.f32 %v1462, %v1661
      %v1726 = vadd.f32 %v1463, %v1662
      %v1727 = vadd.f32 %v1464, %v1663
      %v1728 = vadd.f32 %v1465, %v1664
      %v1729 = vadd.f32 %v1466, %v1665
      %v1730 = vadd.f32 %v1467, %v1666
      %v1731 = vadd.f32 %v1468, %v1667
      %v1732 = vadd.f32 %v1469, %v1668
      %v1733 = vadd.f32 %v1470, %v1669
      %v1734 = vadd.f32 %v1471, %v1670
      %v1735 = vadd.f32 %v1472, %v1671
      %v1736 = vadd.f32 %v1473, %v1672
      %v1737 = vadd.f32 %v1474, %v1673
      %v1738 = vadd.f32 %v1475, %v1674
      %v1739 = vadd.f32 %v1476, %v1675
      %v1740 = vadd.f32 %v1477, %v1676
      %v1741 = vadd.f32 %v1478, %v1677
      %v1742 = vadd.f32 %v1479, %v1678
      %v1743 = vadd.f32 %v1480, %v1679
      %v1744 = vadd.f32 %v1481, %v1680
      %v1745 = vadd.f32 %v1482, %v1681
      %v1746 = vadd.f32 %v1483, %v1682
      %v1747 = vadd.f32 %v1484, %v1683
      %v1748 = vadd.f32 %v1485, %v1684
      %v1749 = vadd.f32 %v1486, %v1685
      %v1750 = vadd.f32 %v1487, %v1686
      %v1751 = vadd.f32 %v1488, %v1687
      %v1752 = vadd.f32 %v1489, %v1688
      %v1753 = vadd.f32 %v1490, %v1689
      %v1754 = vrot.slane %v502, 5
      %v1755 = vrot.slane %v503, 5
      %v1756 = vrot.slane %v504, 5
      %v1757 = vrot.slane %v505, 5
      %v1758 = vrot.slane %v506, 5
      %v1759 = vrot.slane %v507, 5
      %v1760 = vrot.slane %v508, 5
      %v1761 = vrot.slane %v509, 5
      %v1762 = vrot.slane %v510, 5
      %v1763 = vrot.slane %v511, 5
      %v1764 = vrot.slane %v512, 5
      %v1765 = vrot.slane %v513, 5
      %v1766 = vrot.slane %v514, 5
      %v1767 = vrot.slane %v515, 5
      %v1768 = vrot.slane %v516, 5
      %v1769 = vrot.slane %v517, 5
      %v1770 = vrot.slane %v518, 5
      %v1771 = vrot.slane %v519, 5
      %v1772 = vrot.slane %v520, 5
      %v1773 = vrot.slane %v521, 5
      %v1774 = vrot.slane %v522, 5
      %v1775 = vrot.slane %v523, 5
      %v1776 = vrot.slane %v524, 5
      %v1777 = vrot.slane %v525, 5
      %v1778 = vrot.slane %v526, 5
      %v1779 = vrot.slane %v527, 5
      %v1780 = vrot.slane %v528, 5
      %v1781 = vrot.slane %v529, 5
      %v1782 = vrot.slane %v530, 5
      %v1783 = vrot.slane %v531, 5
      %v1784 = vrot.slane %v532, 5
      %v1785 = vrot.slane %v533, 5
      %v1786 = vrot.slane %v534, 5
      %v1787 = vrot.slane %v535, 5
      %v1788 = vrot.slane %v536, 5
      %v1789 = vrot.slane %v537, 5
      %v1790 = vrot.slane %v538, 5
      %v1791 = vrot.slane %v539, 5
      %v1792 = vrot.slane %v540, 5
      %v1793 = vrot.slane %v541, 5
      %v1794 = vrot.slane %v542, 5
      %v1795 = vrot.slane %v543, 5
      %v1796 = vrot.slane %v544, 5
      %v1797 = vrot.slane %v545, 5
      %v1798 = vrot.slane %v546, 5
      %v1799 = vrot.slane %v547, 5
      %v1800 = vrot.slane %v548, 5
      %v1801 = vrot.slane %v549, 5
      %v1802 = vrot.slane %v550, 5
      %v1803 = vrot.slane %v551, 5
      %v1804 = vrot.slane %v552, 5
      %v1805 = vrot.slane %v553, 5
      %v1806 = vrot.slane %v554, 5
      %v1807 = vrot.slane %v555, 5
      %v1808 = vrot.slane %v556, 5
      %v1809 = vrot.slane %v557, 5
      %v1810 = vrot.slane %v558, 5
      %v1811 = vrot.slane %v559, 5
      %v1812 = vrot.slane %v560, 5
      %v1813 = vrot.slane %v561, 5
      %v1814 = vrot.slane %v562, 5
      %v1815 = vrot.slane %v563, 5
      %v1816 = vrot.slane %v564, 5
      %v1817 = vrot.slane %v565, 5
      %v1818 = vrot.slane %v566, 5
      %vm1819 = vcmp.lt.s32.totalorder %v766, 3
      %v1820 = vsel %vm1819, %v1817, %v1818
      %v1821 = vsel %vm1819, %v1816, %v1817
      %v1822 = vsel %vm1819, %v1815, %v1816
      %v1823 = vsel %vm1819, %v1814, %v1815
      %v1824 = vsel %vm1819, %v1813, %v1814
      %v1825 = vsel %vm1819, %v1812, %v1813
      %v1826 = vsel %vm1819, %v1811, %v1812
      %v1827 = vsel %vm1819, %v1810, %v1811
      %v1828 = vsel %vm1819, %v1809, %v1810
      %v1829 = vsel %vm1819, %v1808, %v1809
      %v1830 = vsel %vm1819, %v1807, %v1808
      %v1831 = vsel %vm1819, %v1806, %v1807
      %v1832 = vsel %vm1819, %v1805, %v1806
      %v1833 = vsel %vm1819, %v1804, %v1805
      %v1834 = vsel %vm1819, %v1803, %v1804
      %v1835 = vsel %vm1819, %v1802, %v1803
      %v1836 = vsel %vm1819, %v1801, %v1802
      %v1837 = vsel %vm1819, %v1800, %v1801
      %v1838 = vsel %vm1819, %v1799, %v1800
      %v1839 = vsel %vm1819, %v1798, %v1799
      %v1840 = vsel %vm1819, %v1797, %v1798
      %v1841 = vsel %vm1819, %v1796, %v1797
      %v1842 = vsel %vm1819, %v1795, %v1796
      %v1843 = vsel %vm1819, %v1794, %v1795
      %v1844 = vsel %vm1819, %v1793, %v1794
      %v1845 = vsel %vm1819, %v1792, %v1793
      %v1846 = vsel %vm1819, %v1791, %v1792
      %v1847 = vsel %vm1819, %v1790, %v1791
      %v1848 = vsel %vm1819, %v1789, %v1790
      %v1849 = vsel %vm1819, %v1788, %v1789
      %v1850 = vsel %vm1819, %v1787, %v1788
      %v1851 = vsel %vm1819, %v1786, %v1787
      %v1852 = vsel %vm1819, %v1785, %v1786
      %v1853 = vsel %vm1819, %v1784, %v1785
      %v1854 = vsel %vm1819, %v1783, %v1784
      %v1855 = vsel %vm1819, %v1782, %v1783
      %v1856 = vsel %vm1819, %v1781, %v1782
      %v1857 = vsel %vm1819, %v1780, %v1781
      %v1858 = vsel %vm1819, %v1779, %v1780
      %v1859 = vsel %vm1819, %v1778, %v1779
      %v1860 = vsel %vm1819, %v1777, %v1778
      %v1861 = vsel %vm1819, %v1776, %v1777
      %v1862 = vsel %vm1819, %v1775, %v1776
      %v1863 = vsel %vm1819, %v1774, %v1775
      %v1864 = vsel %vm1819, %v1773, %v1774
      %v1865 = vsel %vm1819, %v1772, %v1773
      %v1866 = vsel %vm1819, %v1771, %v1772
      %v1867 = vsel %vm1819, %v1770, %v1771
      %v1868 = vsel %vm1819, %v1769, %v1770
      %v1869 = vsel %vm1819, %v1768, %v1769
      %v1870 = vsel %vm1819, %v1767, %v1768
      %v1871 = vsel %vm1819, %v1766, %v1767
      %v1872 = vsel %vm1819, %v1765, %v1766
      %v1873 = vsel %vm1819, %v1764, %v1765
      %v1874 = vsel %vm1819, %v1763, %v1764
      %v1875 = vsel %vm1819, %v1762, %v1763
      %v1876 = vsel %vm1819, %v1761, %v1762
      %v1877 = vsel %vm1819, %v1760, %v1761
      %v1878 = vsel %vm1819, %v1759, %v1760
      %v1879 = vsel %vm1819, %v1758, %v1759
      %v1880 = vsel %vm1819, %v1757, %v1758
      %v1881 = vsel %vm1819, %v1756, %v1757
      %v1882 = vsel %vm1819, %v1755, %v1756
      %v1883 = vsel %vm1819, %v1754, %v1755
      %v1884 = vld [vmem:[%s2 + $0x5] sm:$0x1]
      %v1885 = vlaneseq
      %v1886 = vshrl.u32 %v1885, 7
      %v1887 = vsub.s32 0, %v1886
      %v1888 = vrot.slane %v1884, %v1887
      %v1889 = vmul.f32 %v1883, %v1888
      %v1890 = vmul.f32 %v1882, %v1888
      %v1891 = vmul.f32 %v1881, %v1888
      %v1892 = vmul.f32 %v1880, %v1888
      %v1893 = vmul.f32 %v1879, %v1888
      %v1894 = vmul.f32 %v1878, %v1888
      %v1895 = vmul.f32 %v1877, %v1888
      %v1896 = vmul.f32 %v1876, %v1888
      %v1897 = vmul.f32 %v1875, %v1888
      %v1898 = vmul.f32 %v1874, %v1888
      %v1899 = vmul.f32 %v1873, %v1888
      %v1900 = vmul.f32 %v1872, %v1888
      %v1901 = vmul.f32 %v1871, %v1888
      %v1902 = vmul.f32 %v1870, %v1888
      %v1903 = vmul.f32 %v1869, %v1888
      %v1904 = vmul.f32 %v1868, %v1888
      %v1905 = vmul.f32 %v1867, %v1888
      %v1906 = vmul.f32 %v1866, %v1888
      %v1907 = vmul.f32 %v1865, %v1888
      %v1908 = vmul.f32 %v1864, %v1888
      %v1909 = vmul.f32 %v1863, %v1888
      %v1910 = vmul.f32 %v1862, %v1888
      %v1911 = vmul.f32 %v1861, %v1888
      %v1912 = vmul.f32 %v1860, %v1888
      %v1913 = vmul.f32 %v1859, %v1888
      %v1914 = vmul.f32 %v1858, %v1888
      %v1915 = vmul.f32 %v1857, %v1888
      %v1916 = vmul.f32 %v1856, %v1888
      %v1917 = vmul.f32 %v1855, %v1888
      %v1918 = vmul.f32 %v1854, %v1888
      %v1919 = vmul.f32 %v1853, %v1888
      %v1920 = vmul.f32 %v1852, %v1888
      %v1921 = vmul.f32 %v1851, %v1888
      %v1922 = vmul.f32 %v1850, %v1888
      %v1923 = vmul.f32 %v1849, %v1888
      %v1924 = vmul.f32 %v1848, %v1888
      %v1925 = vmul.f32 %v1847, %v1888
      %v1926 = vmul.f32 %v1846, %v1888
      %v1927 = vmul.f32 %v1845, %v1888
      %v1928 = vmul.f32 %v1844, %v1888
      %v1929 = vmul.f32 %v1843, %v1888
      %v1930 = vmul.f32 %v1842, %v1888
      %v1931 = vmul.f32 %v1841, %v1888
      %v1932 = vmul.f32 %v1840, %v1888
      %v1933 = vmul.f32 %v1839, %v1888
      %v1934 = vmul.f32 %v1838, %v1888
      %v1935 = vmul.f32 %v1837, %v1888
      %v1936 = vmul.f32 %v1836, %v1888
      %v1937 = vmul.f32 %v1835, %v1888
      %v1938 = vmul.f32 %v1834, %v1888
      %v1939 = vmul.f32 %v1833, %v1888
      %v1940 = vmul.f32 %v1832, %v1888
      %v1941 = vmul.f32 %v1831, %v1888
      %v1942 = vmul.f32 %v1830, %v1888
      %v1943 = vmul.f32 %v1829, %v1888
      %v1944 = vmul.f32 %v1828, %v1888
      %v1945 = vmul.f32 %v1827, %v1888
      %v1946 = vmul.f32 %v1826, %v1888
      %v1947 = vmul.f32 %v1825, %v1888
      %v1948 = vmul.f32 %v1824, %v1888
      %v1949 = vmul.f32 %v1823, %v1888
      %v1950 = vmul.f32 %v1822, %v1888
      %v1951 = vmul.f32 %v1821, %v1888
      %v1952 = vmul.f32 %v1820, %v1888
      %v1953 = vadd.f32 %v1690, %v1889
      %v1954 = vadd.f32 %v1691, %v1890
      %v1955 = vadd.f32 %v1692, %v1891
      %v1956 = vadd.f32 %v1693, %v1892
      %v1957 = vadd.f32 %v1694, %v1893
      %v1958 = vadd.f32 %v1695, %v1894
      %v1959 = vadd.f32 %v1696, %v1895
      %v1960 = vadd.f32 %v1697, %v1896
      %v1961 = vadd.f32 %v1698, %v1897
      %v1962 = vadd.f32 %v1699, %v1898
      %v1963 = vadd.f32 %v1700, %v1899
      %v1964 = vadd.f32 %v1701, %v1900
      %v1965 = vadd.f32 %v1702, %v1901
      %v1966 = vadd.f32 %v1703, %v1902
      %v1967 = vadd.f32 %v1704, %v1903
      %v1968 = vadd.f32 %v1705, %v1904
      %v1969 = vadd.f32 %v1706, %v1905
      %v1970 = vadd.f32 %v1707, %v1906
      %v1971 = vadd.f32 %v1708, %v1907
      %v1972 = vadd.f32 %v1709, %v1908
      %v1973 = vadd.f32 %v1710, %v1909
      %v1974 = vadd.f32 %v1711, %v1910
      %v1975 = vadd.f32 %v1712, %v1911
      %v1976 = vadd.f32 %v1713, %v1912
      %v1977 = vadd.f32 %v1714, %v1913
      %v1978 = vadd.f32 %v1715, %v1914
      %v1979 = vadd.f32 %v1716, %v1915
      %v1980 = vadd.f32 %v1717, %v1916
      %v1981 = vadd.f32 %v1718, %v1917
      %v1982 = vadd.f32 %v1719, %v1918
      %v1983 = vadd.f32 %v1720, %v1919
      %v1984 = vadd.f32 %v1721, %v1920
      %v1985 = vadd.f32 %v1722, %v1921
      %v1986 = vadd.f32 %v1723, %v1922
      %v1987 = vadd.f32 %v1724, %v1923
      %v1988 = vadd.f32 %v1725, %v1924
      %v1989 = vadd.f32 %v1726, %v1925
      %v1990 = vadd.f32 %v1727, %v1926
      %v1991 = vadd.f32 %v1728, %v1927
      %v1992 = vadd.f32 %v1729, %v1928
      %v1993 = vadd.f32 %v1730, %v1929
      %v1994 = vadd.f32 %v1731, %v1930
      %v1995 = vadd.f32 %v1732, %v1931
      %v1996 = vadd.f32 %v1733, %v1932
      %v1997 = vadd.f32 %v1734, %v1933
      %v1998 = vadd.f32 %v1735, %v1934
      %v1999 = vadd.f32 %v1736, %v1935
      %v2000 = vadd.f32 %v1737, %v1936
      %v2001 = vadd.f32 %v1738, %v1937
      %v2002 = vadd.f32 %v1739, %v1938
      %v2003 = vadd.f32 %v1740, %v1939
      %v2004 = vadd.f32 %v1741, %v1940
      %v2005 = vadd.f32 %v1742, %v1941
      %v2006 = vadd.f32 %v1743, %v1942
      %v2007 = vadd.f32 %v1744, %v1943
      %v2008 = vadd.f32 %v1745, %v1944
      %v2009 = vadd.f32 %v1746, %v1945
      %v2010 = vadd.f32 %v1747, %v1946
      %v2011 = vadd.f32 %v1748, %v1947
      %v2012 = vadd.f32 %v1749, %v1948
      %v2013 = vadd.f32 %v1750, %v1949
      %v2014 = vadd.f32 %v1751, %v1950
      %v2015 = vadd.f32 %v1752, %v1951
      %v2016 = vadd.f32 %v1753, %v1952
      %v2017 = vrot.slane %v502, 6
      %v2018 = vrot.slane %v503, 6
      %v2019 = vrot.slane %v504, 6
      %v2020 = vrot.slane %v505, 6
      %v2021 = vrot.slane %v506, 6
      %v2022 = vrot.slane %v507, 6
      %v2023 = vrot.slane %v508, 6
      %v2024 = vrot.slane %v509, 6
      %v2025 = vrot.slane %v510, 6
      %v2026 = vrot.slane %v511, 6
      %v2027 = vrot.slane %v512, 6
      %v2028 = vrot.slane %v513, 6
      %v2029 = vrot.slane %v514, 6
      %v2030 = vrot.slane %v515, 6
      %v2031 = vrot.slane %v516, 6
      %v2032 = vrot.slane %v517, 6
      %v2033 = vrot.slane %v518, 6
      %v2034 = vrot.slane %v519, 6
      %v2035 = vrot.slane %v520, 6
      %v2036 = vrot.slane %v521, 6
      %v2037 = vrot.slane %v522, 6
      %v2038 = vrot.slane %v523, 6
      %v2039 = vrot.slane %v524, 6
      %v2040 = vrot.slane %v525, 6
      %v2041 = vrot.slane %v526, 6
      %v2042 = vrot.slane %v527, 6
      %v2043 = vrot.slane %v528, 6
      %v2044 = vrot.slane %v529, 6
      %v2045 = vrot.slane %v530, 6
      %v2046 = vrot.slane %v531, 6
      %v2047 = vrot.slane %v532, 6
      %v2048 = vrot.slane %v533, 6
      %v2049 = vrot.slane %v534, 6
      %v2050 = vrot.slane %v535, 6
      %v2051 = vrot.slane %v536, 6
      %v2052 = vrot.slane %v537, 6
      %v2053 = vrot.slane %v538, 6
      %v2054 = vrot.slane %v539, 6
      %v2055 = vrot.slane %v540, 6
      %v2056 = vrot.slane %v541, 6
      %v2057 = vrot.slane %v542, 6
      %v2058 = vrot.slane %v543, 6
      %v2059 = vrot.slane %v544, 6
      %v2060 = vrot.slane %v545, 6
      %v2061 = vrot.slane %v546, 6
      %v2062 = vrot.slane %v547, 6
      %v2063 = vrot.slane %v548, 6
      %v2064 = vrot.slane %v549, 6
      %v2065 = vrot.slane %v550, 6
      %v2066 = vrot.slane %v551, 6
      %v2067 = vrot.slane %v552, 6
      %v2068 = vrot.slane %v553, 6
      %v2069 = vrot.slane %v554, 6
      %v2070 = vrot.slane %v555, 6
      %v2071 = vrot.slane %v556, 6
      %v2072 = vrot.slane %v557, 6
      %v2073 = vrot.slane %v558, 6
      %v2074 = vrot.slane %v559, 6
      %v2075 = vrot.slane %v560, 6
      %v2076 = vrot.slane %v561, 6
      %v2077 = vrot.slane %v562, 6
      %v2078 = vrot.slane %v563, 6
      %v2079 = vrot.slane %v564, 6
      %v2080 = vrot.slane %v565, 6
      %v2081 = vrot.slane %v566, 6
      %vm2082 = vcmp.lt.s32.totalorder %v766, 2
      %v2083 = vsel %vm2082, %v2080, %v2081
      %v2084 = vsel %vm2082, %v2079, %v2080
      %v2085 = vsel %vm2082, %v2078, %v2079
      %v2086 = vsel %vm2082, %v2077, %v2078
      %v2087 = vsel %vm2082, %v2076, %v2077
      %v2088 = vsel %vm2082, %v2075, %v2076
      %v2089 = vsel %vm2082, %v2074, %v2075
      %v2090 = vsel %vm2082, %v2073, %v2074
      %v2091 = vsel %vm2082, %v2072, %v2073
      %v2092 = vsel %vm2082, %v2071, %v2072
      %v2093 = vsel %vm2082, %v2070, %v2071
      %v2094 = vsel %vm2082, %v2069, %v2070
      %v2095 = vsel %vm2082, %v2068, %v2069
      %v2096 = vsel %vm2082, %v2067, %v2068
      %v2097 = vsel %vm2082, %v2066, %v2067
      %v2098 = vsel %vm2082, %v2065, %v2066
      %v2099 = vsel %vm2082, %v2064, %v2065
      %v2100 = vsel %vm2082, %v2063, %v2064
      %v2101 = vsel %vm2082, %v2062, %v2063
      %v2102 = vsel %vm2082, %v2061, %v2062
      %v2103 = vsel %vm2082, %v2060, %v2061
      %v2104 = vsel %vm2082, %v2059, %v2060
      %v2105 = vsel %vm2082, %v2058, %v2059
      %v2106 = vsel %vm2082, %v2057, %v2058
      %v2107 = vsel %vm2082, %v2056, %v2057
      %v2108 = vsel %vm2082, %v2055, %v2056
      %v2109 = vsel %vm2082, %v2054, %v2055
      %v2110 = vsel %vm2082, %v2053, %v2054
      %v2111 = vsel %vm2082, %v2052, %v2053
      %v2112 = vsel %vm2082, %v2051, %v2052
      %v2113 = vsel %vm2082, %v2050, %v2051
      %v2114 = vsel %vm2082, %v2049, %v2050
      %v2115 = vsel %vm2082, %v2048, %v2049
      %v2116 = vsel %vm2082, %v2047, %v2048
      %v2117 = vsel %vm2082, %v2046, %v2047
      %v2118 = vsel %vm2082, %v2045, %v2046
      %v2119 = vsel %vm2082, %v2044, %v2045
      %v2120 = vsel %vm2082, %v2043, %v2044
      %v2121 = vsel %vm2082, %v2042, %v2043
      %v2122 = vsel %vm2082, %v2041, %v2042
      %v2123 = vsel %vm2082, %v2040, %v2041
      %v2124 = vsel %vm2082, %v2039, %v2040
      %v2125 = vsel %vm2082, %v2038, %v2039
      %v2126 = vsel %vm2082, %v2037, %v2038
      %v2127 = vsel %vm2082, %v2036, %v2037
      %v2128 = vsel %vm2082, %v2035, %v2036
      %v2129 = vsel %vm2082, %v2034, %v2035
      %v2130 = vsel %vm2082, %v2033, %v2034
      %v2131 = vsel %vm2082, %v2032, %v2033
      %v2132 = vsel %vm2082, %v2031, %v2032
      %v2133 = vsel %vm2082, %v2030, %v2031
      %v2134 = vsel %vm2082, %v2029, %v2030
      %v2135 = vsel %vm2082, %v2028, %v2029
      %v2136 = vsel %vm2082, %v2027, %v2028
      %v2137 = vsel %vm2082, %v2026, %v2027
      %v2138 = vsel %vm2082, %v2025, %v2026
      %v2139 = vsel %vm2082, %v2024, %v2025
      %v2140 = vsel %vm2082, %v2023, %v2024
      %v2141 = vsel %vm2082, %v2022, %v2023
      %v2142 = vsel %vm2082, %v2021, %v2022
      %v2143 = vsel %vm2082, %v2020, %v2021
      %v2144 = vsel %vm2082, %v2019, %v2020
      %v2145 = vsel %vm2082, %v2018, %v2019
      %v2146 = vsel %vm2082, %v2017, %v2018
      %v2147 = vld [vmem:[%s2 + $0x6] sm:$0x1]
      %v2148 = vlaneseq
      %v2149 = vshrl.u32 %v2148, 7
      %v2150 = vsub.s32 0, %v2149
      %v2151 = vrot.slane %v2147, %v2150
      %v2152 = vmul.f32 %v2146, %v2151
      %v2153 = vmul.f32 %v2145, %v2151
      %v2154 = vmul.f32 %v2144, %v2151
      %v2155 = vmul.f32 %v2143, %v2151
      %v2156 = vmul.f32 %v2142, %v2151
      %v2157 = vmul.f32 %v2141, %v2151
      %v2158 = vmul.f32 %v2140, %v2151
      %v2159 = vmul.f32 %v2139, %v2151
      %v2160 = vmul.f32 %v2138, %v2151
      %v2161 = vmul.f32 %v2137, %v2151
      %v2162 = vmul.f32 %v2136, %v2151
      %v2163 = vmul.f32 %v2135, %v2151
      %v2164 = vmul.f32 %v2134, %v2151
      %v2165 = vmul.f32 %v2133, %v2151
      %v2166 = vmul.f32 %v2132, %v2151
      %v2167 = vmul.f32 %v2131, %v2151
      %v2168 = vmul.f32 %v2130, %v2151
      %v2169 = vmul.f32 %v2129, %v2151
      %v2170 = vmul.f32 %v2128, %v2151
      %v2171 = vmul.f32 %v2127, %v2151
      %v2172 = vmul.f32 %v2126, %v2151
      %v2173 = vmul.f32 %v2125, %v2151
      %v2174 = vmul.f32 %v2124, %v2151
      %v2175 = vmul.f32 %v2123, %v2151
      %v2176 = vmul.f32 %v2122, %v2151
      %v2177 = vmul.f32 %v2121, %v2151
      %v2178 = vmul.f32 %v2120, %v2151
      %v2179 = vmul.f32 %v2119, %v2151
      %v2180 = vmul.f32 %v2118, %v2151
      %v2181 = vmul.f32 %v2117, %v2151
      %v2182 = vmul.f32 %v2116, %v2151
      %v2183 = vmul.f32 %v2115, %v2151
      %v2184 = vmul.f32 %v2114, %v2151
      %v2185 = vmul.f32 %v2113, %v2151
      %v2186 = vmul.f32 %v2112, %v2151
      %v2187 = vmul.f32 %v2111, %v2151
      %v2188 = vmul.f32 %v2110, %v2151
      %v2189 = vmul.f32 %v2109, %v2151
      %v2190 = vmul.f32 %v2108, %v2151
      %v2191 = vmul.f32 %v2107, %v2151
      %v2192 = vmul.f32 %v2106, %v2151
      %v2193 = vmul.f32 %v2105, %v2151
      %v2194 = vmul.f32 %v2104, %v2151
      %v2195 = vmul.f32 %v2103, %v2151
      %v2196 = vmul.f32 %v2102, %v2151
      %v2197 = vmul.f32 %v2101, %v2151
      %v2198 = vmul.f32 %v2100, %v2151
      %v2199 = vmul.f32 %v2099, %v2151
      %v2200 = vmul.f32 %v2098, %v2151
      %v2201 = vmul.f32 %v2097, %v2151
      %v2202 = vmul.f32 %v2096, %v2151
      %v2203 = vmul.f32 %v2095, %v2151
      %v2204 = vmul.f32 %v2094, %v2151
      %v2205 = vmul.f32 %v2093, %v2151
      %v2206 = vmul.f32 %v2092, %v2151
      %v2207 = vmul.f32 %v2091, %v2151
      %v2208 = vmul.f32 %v2090, %v2151
      %v2209 = vmul.f32 %v2089, %v2151
      %v2210 = vmul.f32 %v2088, %v2151
      %v2211 = vmul.f32 %v2087, %v2151
      %v2212 = vmul.f32 %v2086, %v2151
      %v2213 = vmul.f32 %v2085, %v2151
      %v2214 = vmul.f32 %v2084, %v2151
      %v2215 = vmul.f32 %v2083, %v2151
      %v2216 = vadd.f32 %v1953, %v2152
      %v2217 = vadd.f32 %v1954, %v2153
      %v2218 = vadd.f32 %v1955, %v2154
      %v2219 = vadd.f32 %v1956, %v2155
      %v2220 = vadd.f32 %v1957, %v2156
      %v2221 = vadd.f32 %v1958, %v2157
      %v2222 = vadd.f32 %v1959, %v2158
      %v2223 = vadd.f32 %v1960, %v2159
      %v2224 = vadd.f32 %v1961, %v2160
      %v2225 = vadd.f32 %v1962, %v2161
      %v2226 = vadd.f32 %v1963, %v2162
      %v2227 = vadd.f32 %v1964, %v2163
      %v2228 = vadd.f32 %v1965, %v2164
      %v2229 = vadd.f32 %v1966, %v2165
      %v2230 = vadd.f32 %v1967, %v2166
      %v2231 = vadd.f32 %v1968, %v2167
      %v2232 = vadd.f32 %v1969, %v2168
      %v2233 = vadd.f32 %v1970, %v2169
      %v2234 = vadd.f32 %v1971, %v2170
      %v2235 = vadd.f32 %v1972, %v2171
      %v2236 = vadd.f32 %v1973, %v2172
      %v2237 = vadd.f32 %v1974, %v2173
      %v2238 = vadd.f32 %v1975, %v2174
      %v2239 = vadd.f32 %v1976, %v2175
      %v2240 = vadd.f32 %v1977, %v2176
      %v2241 = vadd.f32 %v1978, %v2177
      %v2242 = vadd.f32 %v1979, %v2178
      %v2243 = vadd.f32 %v1980, %v2179
      %v2244 = vadd.f32 %v1981, %v2180
      %v2245 = vadd.f32 %v1982, %v2181
      %v2246 = vadd.f32 %v1983, %v2182
      %v2247 = vadd.f32 %v1984, %v2183
      %v2248 = vadd.f32 %v1985, %v2184
      %v2249 = vadd.f32 %v1986, %v2185
      %v2250 = vadd.f32 %v1987, %v2186
      %v2251 = vadd.f32 %v1988, %v2187
      %v2252 = vadd.f32 %v1989, %v2188
      %v2253 = vadd.f32 %v1990, %v2189
      %v2254 = vadd.f32 %v1991, %v2190
      %v2255 = vadd.f32 %v1992, %v2191
      %v2256 = vadd.f32 %v1993, %v2192
      %v2257 = vadd.f32 %v1994, %v2193
      %v2258 = vadd.f32 %v1995, %v2194
      %v2259 = vadd.f32 %v1996, %v2195
      %v2260 = vadd.f32 %v1997, %v2196
      %v2261 = vadd.f32 %v1998, %v2197
      %v2262 = vadd.f32 %v1999, %v2198
      %v2263 = vadd.f32 %v2000, %v2199
      %v2264 = vadd.f32 %v2001, %v2200
      %v2265 = vadd.f32 %v2002, %v2201
      %v2266 = vadd.f32 %v2003, %v2202
      %v2267 = vadd.f32 %v2004, %v2203
      %v2268 = vadd.f32 %v2005, %v2204
      %v2269 = vadd.f32 %v2006, %v2205
      %v2270 = vadd.f32 %v2007, %v2206
      %v2271 = vadd.f32 %v2008, %v2207
      %v2272 = vadd.f32 %v2009, %v2208
      %v2273 = vadd.f32 %v2010, %v2209
      %v2274 = vadd.f32 %v2011, %v2210
      %v2275 = vadd.f32 %v2012, %v2211
      %v2276 = vadd.f32 %v2013, %v2212
      %v2277 = vadd.f32 %v2014, %v2213
      %v2278 = vadd.f32 %v2015, %v2214
      %v2279 = vadd.f32 %v2016, %v2215
      %v2280 = vld [vmem:[%s3] sm:$0x1]
      %v2282 = vlaneseq
      %v2283 = vshrl.u32 %v2282, 7
      %v2284 = vsub.s32 0, %v2283
      %v2285 = vrot.slane %v2280, %v2284
      %v2287 = vadd.f32 %v2216, %v2285
      %v2288 = vadd.f32 %v2217, %v2285
      %v2289 = vadd.f32 %v2218, %v2285
      %v2290 = vadd.f32 %v2219, %v2285
      %v2291 = vadd.f32 %v2220, %v2285
      %v2292 = vadd.f32 %v2221, %v2285
      %v2293 = vadd.f32 %v2222, %v2285
      %v2294 = vadd.f32 %v2223, %v2285
      %v2295 = vadd.f32 %v2224, %v2285
      %v2296 = vadd.f32 %v2225, %v2285
      %v2297 = vadd.f32 %v2226, %v2285
      %v2298 = vadd.f32 %v2227, %v2285
      %v2299 = vadd.f32 %v2228, %v2285
      %v2300 = vadd.f32 %v2229, %v2285
      %v2301 = vadd.f32 %v2230, %v2285
      %v2302 = vadd.f32 %v2231, %v2285
      %v2303 = vadd.f32 %v2232, %v2285
      %v2304 = vadd.f32 %v2233, %v2285
      %v2305 = vadd.f32 %v2234, %v2285
      %v2306 = vadd.f32 %v2235, %v2285
      %v2307 = vadd.f32 %v2236, %v2285
      %v2308 = vadd.f32 %v2237, %v2285
      %v2309 = vadd.f32 %v2238, %v2285
      %v2310 = vadd.f32 %v2239, %v2285
      %v2311 = vadd.f32 %v2240, %v2285
      %v2312 = vadd.f32 %v2241, %v2285
      %v2313 = vadd.f32 %v2242, %v2285
      %v2314 = vadd.f32 %v2243, %v2285
      %v2315 = vadd.f32 %v2244, %v2285
      %v2316 = vadd.f32 %v2245, %v2285
      %v2317 = vadd.f32 %v2246, %v2285
      %v2318 = vadd.f32 %v2247, %v2285
      %v2319 = vadd.f32 %v2248, %v2285
      %v2320 = vadd.f32 %v2249, %v2285
      %v2321 = vadd.f32 %v2250, %v2285
      %v2322 = vadd.f32 %v2251, %v2285
      %v2323 = vadd.f32 %v2252, %v2285
      %v2324 = vadd.f32 %v2253, %v2285
      %v2325 = vadd.f32 %v2254, %v2285
      %v2326 = vadd.f32 %v2255, %v2285
      %v2327 = vadd.f32 %v2256, %v2285
      %v2328 = vadd.f32 %v2257, %v2285
      %v2329 = vadd.f32 %v2258, %v2285
      %v2330 = vadd.f32 %v2259, %v2285
      %v2331 = vadd.f32 %v2260, %v2285
      %v2332 = vadd.f32 %v2261, %v2285
      %v2333 = vadd.f32 %v2262, %v2285
      %v2334 = vadd.f32 %v2263, %v2285
      %v2335 = vadd.f32 %v2264, %v2285
      %v2336 = vadd.f32 %v2265, %v2285
      %v2337 = vadd.f32 %v2266, %v2285
      %v2338 = vadd.f32 %v2267, %v2285
      %v2339 = vadd.f32 %v2268, %v2285
      %v2340 = vadd.f32 %v2269, %v2285
      %v2341 = vadd.f32 %v2270, %v2285
      %v2342 = vadd.f32 %v2271, %v2285
      %v2343 = vadd.f32 %v2272, %v2285
      %v2344 = vadd.f32 %v2273, %v2285
      %v2345 = vadd.f32 %v2274, %v2285
      %v2346 = vadd.f32 %v2275, %v2285
      %v2347 = vadd.f32 %v2276, %v2285
      %v2348 = vadd.f32 %v2277, %v2285
      %v2349 = vadd.f32 %v2278, %v2285
      %v2350 = vadd.f32 %v2279, %v2285
      %2351 = vadd.xlane.f32.xlu0 %v2287
      %v2352 = vpop.xlane.xlu0 %2351
      %2353 = vadd.xlane.f32.xlu0 %v2288
      %v2354 = vpop.xlane.xlu0 %2353
      %2355 = vadd.xlane.f32.xlu0 %v2289
      %v2356 = vpop.xlane.xlu0 %2355
      %2357 = vadd.xlane.f32.xlu0 %v2290
      %v2358 = vpop.xlane.xlu0 %2357
      %2359 = vadd.xlane.f32.xlu0 %v2291
      %v2360 = vpop.xlane.xlu0 %2359
      %2361 = vadd.xlane.f32.xlu0 %v2292
      %v2362 = vpop.xlane.xlu0 %2361
      %2363 = vadd.xlane.f32.xlu0 %v2293
      %v2364 = vpop.xlane.xlu0 %2363
      %2365 = vadd.xlane.f32.xlu0 %v2294
      %v2366 = vpop.xlane.xlu0 %2365
      %2367 = vadd.xlane.f32.xlu0 %v2295
      %v2368 = vpop.xlane.xlu0 %2367
      %2369 = vadd.xlane.f32.xlu0 %v2296
      %v2370 = vpop.xlane.xlu0 %2369
      %2371 = vadd.xlane.f32.xlu0 %v2297
      %v2372 = vpop.xlane.xlu0 %2371
      %2373 = vadd.xlane.f32.xlu0 %v2298
      %v2374 = vpop.xlane.xlu0 %2373
      %2375 = vadd.xlane.f32.xlu0 %v2299
      %v2376 = vpop.xlane.xlu0 %2375
      %2377 = vadd.xlane.f32.xlu0 %v2300
      %v2378 = vpop.xlane.xlu0 %2377
      %2379 = vadd.xlane.f32.xlu0 %v2301
      %v2380 = vpop.xlane.xlu0 %2379
      %2381 = vadd.xlane.f32.xlu0 %v2302
      %v2382 = vpop.xlane.xlu0 %2381
      %2383 = vadd.xlane.f32.xlu0 %v2303
      %v2384 = vpop.xlane.xlu0 %2383
      %2385 = vadd.xlane.f32.xlu0 %v2304
      %v2386 = vpop.xlane.xlu0 %2385
      %2387 = vadd.xlane.f32.xlu0 %v2305
      %v2388 = vpop.xlane.xlu0 %2387
      %2389 = vadd.xlane.f32.xlu0 %v2306
      %v2390 = vpop.xlane.xlu0 %2389
      %2391 = vadd.xlane.f32.xlu0 %v2307
      %v2392 = vpop.xlane.xlu0 %2391
      %2393 = vadd.xlane.f32.xlu0 %v2308
      %v2394 = vpop.xlane.xlu0 %2393
      %2395 = vadd.xlane.f32.xlu0 %v2309
      %v2396 = vpop.xlane.xlu0 %2395
      %2397 = vadd.xlane.f32.xlu0 %v2310
      %v2398 = vpop.xlane.xlu0 %2397
      %2399 = vadd.xlane.f32.xlu0 %v2311
      %v2400 = vpop.xlane.xlu0 %2399
      %2401 = vadd.xlane.f32.xlu0 %v2312
      %v2402 = vpop.xlane.xlu0 %2401
      %2403 = vadd.xlane.f32.xlu0 %v2313
      %v2404 = vpop.xlane.xlu0 %2403
      %2405 = vadd.xlane.f32.xlu0 %v2314
      %v2406 = vpop.xlane.xlu0 %2405
      %2407 = vadd.xlane.f32.xlu0 %v2315
      %v2408 = vpop.xlane.xlu0 %2407
      %2409 = vadd.xlane.f32.xlu0 %v2316
      %v2410 = vpop.xlane.xlu0 %2409
      %2411 = vadd.xlane.f32.xlu0 %v2317
      %v2412 = vpop.xlane.xlu0 %2411
      %2413 = vadd.xlane.f32.xlu0 %v2318
      %v2414 = vpop.xlane.xlu0 %2413
      %2415 = vadd.xlane.f32.xlu0 %v2319
      %v2416 = vpop.xlane.xlu0 %2415
      %2417 = vadd.xlane.f32.xlu0 %v2320
      %v2418 = vpop.xlane.xlu0 %2417
      %2419 = vadd.xlane.f32.xlu0 %v2321
      %v2420 = vpop.xlane.xlu0 %2419
      %2421 = vadd.xlane.f32.xlu0 %v2322
      %v2422 = vpop.xlane.xlu0 %2421
      %2423 = vadd.xlane.f32.xlu0 %v2323
      %v2424 = vpop.xlane.xlu0 %2423
      %2425 = vadd.xlane.f32.xlu0 %v2324
      %v2426 = vpop.xlane.xlu0 %2425
      %2427 = vadd.xlane.f32.xlu0 %v2325
      %v2428 = vpop.xlane.xlu0 %2427
      %2429 = vadd.xlane.f32.xlu0 %v2326
      %v2430 = vpop.xlane.xlu0 %2429
      %2431 = vadd.xlane.f32.xlu0 %v2327
      %v2432 = vpop.xlane.xlu0 %2431
      %2433 = vadd.xlane.f32.xlu0 %v2328
      %v2434 = vpop.xlane.xlu0 %2433
      %2435 = vadd.xlane.f32.xlu0 %v2329
      %v2436 = vpop.xlane.xlu0 %2435
      %2437 = vadd.xlane.f32.xlu0 %v2330
      %v2438 = vpop.xlane.xlu0 %2437
      %2439 = vadd.xlane.f32.xlu0 %v2331
      %v2440 = vpop.xlane.xlu0 %2439
      %2441 = vadd.xlane.f32.xlu0 %v2332
      %v2442 = vpop.xlane.xlu0 %2441
      %2443 = vadd.xlane.f32.xlu0 %v2333
      %v2444 = vpop.xlane.xlu0 %2443
      %2445 = vadd.xlane.f32.xlu0 %v2334
      %v2446 = vpop.xlane.xlu0 %2445
      %2447 = vadd.xlane.f32.xlu0 %v2335
      %v2448 = vpop.xlane.xlu0 %2447
      %2449 = vadd.xlane.f32.xlu0 %v2336
      %v2450 = vpop.xlane.xlu0 %2449
      %2451 = vadd.xlane.f32.xlu0 %v2337
      %v2452 = vpop.xlane.xlu0 %2451
      %2453 = vadd.xlane.f32.xlu0 %v2338
      %v2454 = vpop.xlane.xlu0 %2453
      %2455 = vadd.xlane.f32.xlu0 %v2339
      %v2456 = vpop.xlane.xlu0 %2455
      %2457 = vadd.xlane.f32.xlu0 %v2340
      %v2458 = vpop.xlane.xlu0 %2457
      %2459 = vadd.xlane.f32.xlu0 %v2341
      %v2460 = vpop.xlane.xlu0 %2459
      %2461 = vadd.xlane.f32.xlu0 %v2342
      %v2462 = vpop.xlane.xlu0 %2461
      %2463 = vadd.xlane.f32.xlu0 %v2343
      %v2464 = vpop.xlane.xlu0 %2463
      %2465 = vadd.xlane.f32.xlu0 %v2344
      %v2466 = vpop.xlane.xlu0 %2465
      %2467 = vadd.xlane.f32.xlu0 %v2345
      %v2468 = vpop.xlane.xlu0 %2467
      %2469 = vadd.xlane.f32.xlu0 %v2346
      %v2470 = vpop.xlane.xlu0 %2469
      %2471 = vadd.xlane.f32.xlu0 %v2347
      %v2472 = vpop.xlane.xlu0 %2471
      %2473 = vadd.xlane.f32.xlu0 %v2348
      %v2474 = vpop.xlane.xlu0 %2473
      %2475 = vadd.xlane.f32.xlu0 %v2349
      %v2476 = vpop.xlane.xlu0 %2475
      %2477 = vadd.xlane.f32.xlu0 %v2350
      %v2478 = vpop.xlane.xlu0 %2477
      %v2479 = vrcp.pop 128.0
      %v2480 = vmul.f32 %v2352, %v2479
      %v2481 = vmul.f32 %v2354, %v2479
      %v2482 = vmul.f32 %v2356, %v2479
      %v2483 = vmul.f32 %v2358, %v2479
      %v2484 = vmul.f32 %v2360, %v2479
      %v2485 = vmul.f32 %v2362, %v2479
      %v2486 = vmul.f32 %v2364, %v2479
      %v2487 = vmul.f32 %v2366, %v2479
      %v2488 = vmul.f32 %v2368, %v2479
      %v2489 = vmul.f32 %v2370, %v2479
      %v2490 = vmul.f32 %v2372, %v2479
      %v2491 = vmul.f32 %v2374, %v2479
      %v2492 = vmul.f32 %v2376, %v2479
      %v2493 = vmul.f32 %v2378, %v2479
      %v2494 = vmul.f32 %v2380, %v2479
      %v2495 = vmul.f32 %v2382, %v2479
      %v2496 = vmul.f32 %v2384, %v2479
      %v2497 = vmul.f32 %v2386, %v2479
      %v2498 = vmul.f32 %v2388, %v2479
      %v2499 = vmul.f32 %v2390, %v2479
      %v2500 = vmul.f32 %v2392, %v2479
      %v2501 = vmul.f32 %v2394, %v2479
      %v2502 = vmul.f32 %v2396, %v2479
      %v2503 = vmul.f32 %v2398, %v2479
      %v2504 = vmul.f32 %v2400, %v2479
      %v2505 = vmul.f32 %v2402, %v2479
      %v2506 = vmul.f32 %v2404, %v2479
      %v2507 = vmul.f32 %v2406, %v2479
      %v2508 = vmul.f32 %v2408, %v2479
      %v2509 = vmul.f32 %v2410, %v2479
      %v2510 = vmul.f32 %v2412, %v2479
      %v2511 = vmul.f32 %v2414, %v2479
      %v2512 = vmul.f32 %v2416, %v2479
      %v2513 = vmul.f32 %v2418, %v2479
      %v2514 = vmul.f32 %v2420, %v2479
      %v2515 = vmul.f32 %v2422, %v2479
      %v2516 = vmul.f32 %v2424, %v2479
      %v2517 = vmul.f32 %v2426, %v2479
      %v2518 = vmul.f32 %v2428, %v2479
      %v2519 = vmul.f32 %v2430, %v2479
      %v2520 = vmul.f32 %v2432, %v2479
      %v2521 = vmul.f32 %v2434, %v2479
      %v2522 = vmul.f32 %v2436, %v2479
      %v2523 = vmul.f32 %v2438, %v2479
      %v2524 = vmul.f32 %v2440, %v2479
      %v2525 = vmul.f32 %v2442, %v2479
      %v2526 = vmul.f32 %v2444, %v2479
      %v2527 = vmul.f32 %v2446, %v2479
      %v2528 = vmul.f32 %v2448, %v2479
      %v2529 = vmul.f32 %v2450, %v2479
      %v2530 = vmul.f32 %v2452, %v2479
      %v2531 = vmul.f32 %v2454, %v2479
      %v2532 = vmul.f32 %v2456, %v2479
      %v2533 = vmul.f32 %v2458, %v2479
      %v2534 = vmul.f32 %v2460, %v2479
      %v2535 = vmul.f32 %v2462, %v2479
      %v2536 = vmul.f32 %v2464, %v2479
      %v2537 = vmul.f32 %v2466, %v2479
      %v2538 = vmul.f32 %v2468, %v2479
      %v2539 = vmul.f32 %v2470, %v2479
      %v2540 = vmul.f32 %v2472, %v2479
      %v2541 = vmul.f32 %v2474, %v2479
      %v2542 = vmul.f32 %v2476, %v2479
      %v2543 = vmul.f32 %v2478, %v2479
      %v2544 = vsub.f32 %v2287, %v2480
      %v2545 = vsub.f32 %v2288, %v2481
      %v2546 = vsub.f32 %v2289, %v2482
      %v2547 = vsub.f32 %v2290, %v2483
      %v2548 = vsub.f32 %v2291, %v2484
      %v2549 = vsub.f32 %v2292, %v2485
      %v2550 = vsub.f32 %v2293, %v2486
      %v2551 = vsub.f32 %v2294, %v2487
      %v2552 = vsub.f32 %v2295, %v2488
      %v2553 = vsub.f32 %v2296, %v2489
      %v2554 = vsub.f32 %v2297, %v2490
      %v2555 = vsub.f32 %v2298, %v2491
      %v2556 = vsub.f32 %v2299, %v2492
      %v2557 = vsub.f32 %v2300, %v2493
      %v2558 = vsub.f32 %v2301, %v2494
      %v2559 = vsub.f32 %v2302, %v2495
      %v2560 = vsub.f32 %v2303, %v2496
      %v2561 = vsub.f32 %v2304, %v2497
      %v2562 = vsub.f32 %v2305, %v2498
      %v2563 = vsub.f32 %v2306, %v2499
      %v2564 = vsub.f32 %v2307, %v2500
      %v2565 = vsub.f32 %v2308, %v2501
      %v2566 = vsub.f32 %v2309, %v2502
      %v2567 = vsub.f32 %v2310, %v2503
      %v2568 = vsub.f32 %v2311, %v2504
      %v2569 = vsub.f32 %v2312, %v2505
      %v2570 = vsub.f32 %v2313, %v2506
      %v2571 = vsub.f32 %v2314, %v2507
      %v2572 = vsub.f32 %v2315, %v2508
      %v2573 = vsub.f32 %v2316, %v2509
      %v2574 = vsub.f32 %v2317, %v2510
      %v2575 = vsub.f32 %v2318, %v2511
      %v2576 = vsub.f32 %v2319, %v2512
      %v2577 = vsub.f32 %v2320, %v2513
      %v2578 = vsub.f32 %v2321, %v2514
      %v2579 = vsub.f32 %v2322, %v2515
      %v2580 = vsub.f32 %v2323, %v2516
      %v2581 = vsub.f32 %v2324, %v2517
      %v2582 = vsub.f32 %v2325, %v2518
      %v2583 = vsub.f32 %v2326, %v2519
      %v2584 = vsub.f32 %v2327, %v2520
      %v2585 = vsub.f32 %v2328, %v2521
      %v2586 = vsub.f32 %v2329, %v2522
      %v2587 = vsub.f32 %v2330, %v2523
      %v2588 = vsub.f32 %v2331, %v2524
      %v2589 = vsub.f32 %v2332, %v2525
      %v2590 = vsub.f32 %v2333, %v2526
      %v2591 = vsub.f32 %v2334, %v2527
      %v2592 = vsub.f32 %v2335, %v2528
      %v2593 = vsub.f32 %v2336, %v2529
      %v2594 = vsub.f32 %v2337, %v2530
      %v2595 = vsub.f32 %v2338, %v2531
      %v2596 = vsub.f32 %v2339, %v2532
      %v2597 = vsub.f32 %v2340, %v2533
      %v2598 = vsub.f32 %v2341, %v2534
      %v2599 = vsub.f32 %v2342, %v2535
      %v2600 = vsub.f32 %v2343, %v2536
      %v2601 = vsub.f32 %v2344, %v2537
      %v2602 = vsub.f32 %v2345, %v2538
      %v2603 = vsub.f32 %v2346, %v2539
      %v2604 = vsub.f32 %v2347, %v2540
      %v2605 = vsub.f32 %v2348, %v2541
      %v2606 = vsub.f32 %v2349, %v2542
      %v2607 = vsub.f32 %v2350, %v2543
      %v2608 = vmul.f32 %v2544, %v2544
      %v2609 = vmul.f32 %v2545, %v2545
      %v2610 = vmul.f32 %v2546, %v2546
      %v2611 = vmul.f32 %v2547, %v2547
      %v2612 = vmul.f32 %v2548, %v2548
      %v2613 = vmul.f32 %v2549, %v2549
      %v2614 = vmul.f32 %v2550, %v2550
      %v2615 = vmul.f32 %v2551, %v2551
      %v2616 = vmul.f32 %v2552, %v2552
      %v2617 = vmul.f32 %v2553, %v2553
      %v2618 = vmul.f32 %v2554, %v2554
      %v2619 = vmul.f32 %v2555, %v2555
      %v2620 = vmul.f32 %v2556, %v2556
      %v2621 = vmul.f32 %v2557, %v2557
      %v2622 = vmul.f32 %v2558, %v2558
      %v2623 = vmul.f32 %v2559, %v2559
      %v2624 = vmul.f32 %v2560, %v2560
      %v2625 = vmul.f32 %v2561, %v2561
      %v2626 = vmul.f32 %v2562, %v2562
      %v2627 = vmul.f32 %v2563, %v2563
      %v2628 = vmul.f32 %v2564, %v2564
      %v2629 = vmul.f32 %v2565, %v2565
      %v2630 = vmul.f32 %v2566, %v2566
      %v2631 = vmul.f32 %v2567, %v2567
      %v2632 = vmul.f32 %v2568, %v2568
      %v2633 = vmul.f32 %v2569, %v2569
      %v2634 = vmul.f32 %v2570, %v2570
      %v2635 = vmul.f32 %v2571, %v2571
      %v2636 = vmul.f32 %v2572, %v2572
      %v2637 = vmul.f32 %v2573, %v2573
      %v2638 = vmul.f32 %v2574, %v2574
      %v2639 = vmul.f32 %v2575, %v2575
      %v2640 = vmul.f32 %v2576, %v2576
      %v2641 = vmul.f32 %v2577, %v2577
      %v2642 = vmul.f32 %v2578, %v2578
      %v2643 = vmul.f32 %v2579, %v2579
      %v2644 = vmul.f32 %v2580, %v2580
      %v2645 = vmul.f32 %v2581, %v2581
      %v2646 = vmul.f32 %v2582, %v2582
      %v2647 = vmul.f32 %v2583, %v2583
      %v2648 = vmul.f32 %v2584, %v2584
      %v2649 = vmul.f32 %v2585, %v2585
      %v2650 = vmul.f32 %v2586, %v2586
      %v2651 = vmul.f32 %v2587, %v2587
      %v2652 = vmul.f32 %v2588, %v2588
      %v2653 = vmul.f32 %v2589, %v2589
      %v2654 = vmul.f32 %v2590, %v2590
      %v2655 = vmul.f32 %v2591, %v2591
      %v2656 = vmul.f32 %v2592, %v2592
      %v2657 = vmul.f32 %v2593, %v2593
      %v2658 = vmul.f32 %v2594, %v2594
      %v2659 = vmul.f32 %v2595, %v2595
      %v2660 = vmul.f32 %v2596, %v2596
      %v2661 = vmul.f32 %v2597, %v2597
      %v2662 = vmul.f32 %v2598, %v2598
      %v2663 = vmul.f32 %v2599, %v2599
      %v2664 = vmul.f32 %v2600, %v2600
      %v2665 = vmul.f32 %v2601, %v2601
      %v2666 = vmul.f32 %v2602, %v2602
      %v2667 = vmul.f32 %v2603, %v2603
      %v2668 = vmul.f32 %v2604, %v2604
      %v2669 = vmul.f32 %v2605, %v2605
      %v2670 = vmul.f32 %v2606, %v2606
      %v2671 = vmul.f32 %v2607, %v2607
      %2672 = vadd.xlane.f32.xlu0 %v2608
      %v2673 = vpop.xlane.xlu0 %2672
      %2674 = vadd.xlane.f32.xlu0 %v2609
      %v2675 = vpop.xlane.xlu0 %2674
      %2676 = vadd.xlane.f32.xlu0 %v2610
      %v2677 = vpop.xlane.xlu0 %2676
      %2678 = vadd.xlane.f32.xlu0 %v2611
      %v2679 = vpop.xlane.xlu0 %2678
      %2680 = vadd.xlane.f32.xlu0 %v2612
      %v2681 = vpop.xlane.xlu0 %2680
      %2682 = vadd.xlane.f32.xlu0 %v2613
      %v2683 = vpop.xlane.xlu0 %2682
      %2684 = vadd.xlane.f32.xlu0 %v2614
      %v2685 = vpop.xlane.xlu0 %2684
      %2686 = vadd.xlane.f32.xlu0 %v2615
      %v2687 = vpop.xlane.xlu0 %2686
      %2688 = vadd.xlane.f32.xlu0 %v2616
      %v2689 = vpop.xlane.xlu0 %2688
      %2690 = vadd.xlane.f32.xlu0 %v2617
      %v2691 = vpop.xlane.xlu0 %2690
      %2692 = vadd.xlane.f32.xlu0 %v2618
      %v2693 = vpop.xlane.xlu0 %2692
      %2694 = vadd.xlane.f32.xlu0 %v2619
      %v2695 = vpop.xlane.xlu0 %2694
      %2696 = vadd.xlane.f32.xlu0 %v2620
      %v2697 = vpop.xlane.xlu0 %2696
      %2698 = vadd.xlane.f32.xlu0 %v2621
      %v2699 = vpop.xlane.xlu0 %2698
      %2700 = vadd.xlane.f32.xlu0 %v2622
      %v2701 = vpop.xlane.xlu0 %2700
      %2702 = vadd.xlane.f32.xlu0 %v2623
      %v2703 = vpop.xlane.xlu0 %2702
      %2704 = vadd.xlane.f32.xlu0 %v2624
      %v2705 = vpop.xlane.xlu0 %2704
      %2706 = vadd.xlane.f32.xlu0 %v2625
      %v2707 = vpop.xlane.xlu0 %2706
      %2708 = vadd.xlane.f32.xlu0 %v2626
      %v2709 = vpop.xlane.xlu0 %2708
      %2710 = vadd.xlane.f32.xlu0 %v2627
      %v2711 = vpop.xlane.xlu0 %2710
      %2712 = vadd.xlane.f32.xlu0 %v2628
      %v2713 = vpop.xlane.xlu0 %2712
      %2714 = vadd.xlane.f32.xlu0 %v2629
      %v2715 = vpop.xlane.xlu0 %2714
      %2716 = vadd.xlane.f32.xlu0 %v2630
      %v2717 = vpop.xlane.xlu0 %2716
      %2718 = vadd.xlane.f32.xlu0 %v2631
      %v2719 = vpop.xlane.xlu0 %2718
      %2720 = vadd.xlane.f32.xlu0 %v2632
      %v2721 = vpop.xlane.xlu0 %2720
      %2722 = vadd.xlane.f32.xlu0 %v2633
      %v2723 = vpop.xlane.xlu0 %2722
      %2724 = vadd.xlane.f32.xlu0 %v2634
      %v2725 = vpop.xlane.xlu0 %2724
      %2726 = vadd.xlane.f32.xlu0 %v2635
      %v2727 = vpop.xlane.xlu0 %2726
      %2728 = vadd.xlane.f32.xlu0 %v2636
      %v2729 = vpop.xlane.xlu0 %2728
      %2730 = vadd.xlane.f32.xlu0 %v2637
      %v2731 = vpop.xlane.xlu0 %2730
      %2732 = vadd.xlane.f32.xlu0 %v2638
      %v2733 = vpop.xlane.xlu0 %2732
      %2734 = vadd.xlane.f32.xlu0 %v2639
      %v2735 = vpop.xlane.xlu0 %2734
      %2736 = vadd.xlane.f32.xlu0 %v2640
      %v2737 = vpop.xlane.xlu0 %2736
      %2738 = vadd.xlane.f32.xlu0 %v2641
      %v2739 = vpop.xlane.xlu0 %2738
      %2740 = vadd.xlane.f32.xlu0 %v2642
      %v2741 = vpop.xlane.xlu0 %2740
      %2742 = vadd.xlane.f32.xlu0 %v2643
      %v2743 = vpop.xlane.xlu0 %2742
      %2744 = vadd.xlane.f32.xlu0 %v2644
      %v2745 = vpop.xlane.xlu0 %2744
      %2746 = vadd.xlane.f32.xlu0 %v2645
      %v2747 = vpop.xlane.xlu0 %2746
      %2748 = vadd.xlane.f32.xlu0 %v2646
      %v2749 = vpop.xlane.xlu0 %2748
      %2750 = vadd.xlane.f32.xlu0 %v2647
      %v2751 = vpop.xlane.xlu0 %2750
      %2752 = vadd.xlane.f32.xlu0 %v2648
      %v2753 = vpop.xlane.xlu0 %2752
      %2754 = vadd.xlane.f32.xlu0 %v2649
      %v2755 = vpop.xlane.xlu0 %2754
      %2756 = vadd.xlane.f32.xlu0 %v2650
      %v2757 = vpop.xlane.xlu0 %2756
      %2758 = vadd.xlane.f32.xlu0 %v2651
      %v2759 = vpop.xlane.xlu0 %2758
      %2760 = vadd.xlane.f32.xlu0 %v2652
      %v2761 = vpop.xlane.xlu0 %2760
      %2762 = vadd.xlane.f32.xlu0 %v2653
      %v2763 = vpop.xlane.xlu0 %2762
      %2764 = vadd.xlane.f32.xlu0 %v2654
      %v2765 = vpop.xlane.xlu0 %2764
      %2766 = vadd.xlane.f32.xlu0 %v2655
      %v2767 = vpop.xlane.xlu0 %2766
      %2768 = vadd.xlane.f32.xlu0 %v2656
      %v2769 = vpop.xlane.xlu0 %2768
      %2770 = vadd.xlane.f32.xlu0 %v2657
      %v2771 = vpop.xlane.xlu0 %2770
      %2772 = vadd.xlane.f32.xlu0 %v2658
      %v2773 = vpop.xlane.xlu0 %2772
      %2774 = vadd.xlane.f32.xlu0 %v2659
      %v2775 = vpop.xlane.xlu0 %2774
      %2776 = vadd.xlane.f32.xlu0 %v2660
      %v2777 = vpop.xlane.xlu0 %2776
      %2778 = vadd.xlane.f32.xlu0 %v2661
      %v2779 = vpop.xlane.xlu0 %2778
      %2780 = vadd.xlane.f32.xlu0 %v2662
      %v2781 = vpop.xlane.xlu0 %2780
      %2782 = vadd.xlane.f32.xlu0 %v2663
      %v2783 = vpop.xlane.xlu0 %2782
      %2784 = vadd.xlane.f32.xlu0 %v2664
      %v2785 = vpop.xlane.xlu0 %2784
      %2786 = vadd.xlane.f32.xlu0 %v2665
      %v2787 = vpop.xlane.xlu0 %2786
      %2788 = vadd.xlane.f32.xlu0 %v2666
      %v2789 = vpop.xlane.xlu0 %2788
      %2790 = vadd.xlane.f32.xlu0 %v2667
      %v2791 = vpop.xlane.xlu0 %2790
      %2792 = vadd.xlane.f32.xlu0 %v2668
      %v2793 = vpop.xlane.xlu0 %2792
      %2794 = vadd.xlane.f32.xlu0 %v2669
      %v2795 = vpop.xlane.xlu0 %2794
      %2796 = vadd.xlane.f32.xlu0 %v2670
      %v2797 = vpop.xlane.xlu0 %2796
      %2798 = vadd.xlane.f32.xlu0 %v2671
      %v2799 = vpop.xlane.xlu0 %2798
      %v2800 = vmul.f32 %v2673, 0.007874016
      %v2801 = vmul.f32 %v2675, 0.007874016
      %v2802 = vmul.f32 %v2677, 0.007874016
      %v2803 = vmul.f32 %v2679, 0.007874016
      %v2804 = vmul.f32 %v2681, 0.007874016
      %v2805 = vmul.f32 %v2683, 0.007874016
      %v2806 = vmul.f32 %v2685, 0.007874016
      %v2807 = vmul.f32 %v2687, 0.007874016
      %v2808 = vmul.f32 %v2689, 0.007874016
      %v2809 = vmul.f32 %v2691, 0.007874016
      %v2810 = vmul.f32 %v2693, 0.007874016
      %v2811 = vmul.f32 %v2695, 0.007874016
      %v2812 = vmul.f32 %v2697, 0.007874016
      %v2813 = vmul.f32 %v2699, 0.007874016
      %v2814 = vmul.f32 %v2701, 0.007874016
      %v2815 = vmul.f32 %v2703, 0.007874016
      %v2816 = vmul.f32 %v2705, 0.007874016
      %v2817 = vmul.f32 %v2707, 0.007874016
      %v2818 = vmul.f32 %v2709, 0.007874016
      %v2819 = vmul.f32 %v2711, 0.007874016
      %v2820 = vmul.f32 %v2713, 0.007874016
      %v2821 = vmul.f32 %v2715, 0.007874016
      %v2822 = vmul.f32 %v2717, 0.007874016
      %v2823 = vmul.f32 %v2719, 0.007874016
      %v2824 = vmul.f32 %v2721, 0.007874016
      %v2825 = vmul.f32 %v2723, 0.007874016
      %v2826 = vmul.f32 %v2725, 0.007874016
      %v2827 = vmul.f32 %v2727, 0.007874016
      %v2828 = vmul.f32 %v2729, 0.007874016
      %v2829 = vmul.f32 %v2731, 0.007874016
      %v2830 = vmul.f32 %v2733, 0.007874016
      %v2831 = vmul.f32 %v2735, 0.007874016
      %v2832 = vmul.f32 %v2737, 0.007874016
      %v2833 = vmul.f32 %v2739, 0.007874016
      %v2834 = vmul.f32 %v2741, 0.007874016
      %v2835 = vmul.f32 %v2743, 0.007874016
      %v2836 = vmul.f32 %v2745, 0.007874016
      %v2837 = vmul.f32 %v2747, 0.007874016
      %v2838 = vmul.f32 %v2749, 0.007874016
      %v2839 = vmul.f32 %v2751, 0.007874016
      %v2840 = vmul.f32 %v2753, 0.007874016
      %v2841 = vmul.f32 %v2755, 0.007874016
      %v2842 = vmul.f32 %v2757, 0.007874016
      %v2843 = vmul.f32 %v2759, 0.007874016
      %v2844 = vmul.f32 %v2761, 0.007874016
      %v2845 = vmul.f32 %v2763, 0.007874016
      %v2846 = vmul.f32 %v2765, 0.007874016
      %v2847 = vmul.f32 %v2767, 0.007874016
      %v2848 = vmul.f32 %v2769, 0.007874016
      %v2849 = vmul.f32 %v2771, 0.007874016
      %v2850 = vmul.f32 %v2773, 0.007874016
      %v2851 = vmul.f32 %v2775, 0.007874016
      %v2852 = vmul.f32 %v2777, 0.007874016
      %v2853 = vmul.f32 %v2779, 0.007874016
      %v2854 = vmul.f32 %v2781, 0.007874016
      %v2855 = vmul.f32 %v2783, 0.007874016
      %v2856 = vmul.f32 %v2785, 0.007874016
      %v2857 = vmul.f32 %v2787, 0.007874016
      %v2858 = vmul.f32 %v2789, 0.007874016
      %v2859 = vmul.f32 %v2791, 0.007874016
      %v2860 = vmul.f32 %v2793, 0.007874016
      %v2861 = vmul.f32 %v2795, 0.007874016
      %v2862 = vmul.f32 %v2797, 0.007874016
      %v2863 = vmul.f32 %v2799, 0.007874016
      %v2864 = vrsqrt.pop %v2800
      %v2865 = vmul.f32 %v2800, %v2864
      %vm2866 = vcmp.eq.f32.partialorder %v2800, inf
      %v2867 = vsel %vm2866, %v2800, %v2865
      %vm2868 = vcmp.eq.f32.partialorder %v2800, 0.0
      %v2869 = vand.u32 %v2800, 2147483648
      %v2870 = vsel %vm2868, %v2869, %v2867
      %v2871 = vrsqrt.pop %v2801
      %v2872 = vmul.f32 %v2801, %v2871
      %vm2873 = vcmp.eq.f32.partialorder %v2801, inf
      %v2874 = vsel %vm2873, %v2801, %v2872
      %vm2875 = vcmp.eq.f32.partialorder %v2801, 0.0
      %v2876 = vand.u32 %v2801, 2147483648
      %v2877 = vsel %vm2875, %v2876, %v2874
      %v2878 = vrsqrt.pop %v2802
      %v2879 = vmul.f32 %v2802, %v2878
      %vm2880 = vcmp.eq.f32.partialorder %v2802, inf
      %v2881 = vsel %vm2880, %v2802, %v2879
      %vm2882 = vcmp.eq.f32.partialorder %v2802, 0.0
      %v2883 = vand.u32 %v2802, 2147483648
      %v2884 = vsel %vm2882, %v2883, %v2881
      %v2885 = vrsqrt.pop %v2803
      %v2886 = vmul.f32 %v2803, %v2885
      %vm2887 = vcmp.eq.f32.partialorder %v2803, inf
      %v2888 = vsel %vm2887, %v2803, %v2886
      %vm2889 = vcmp.eq.f32.partialorder %v2803, 0.0
      %v2890 = vand.u32 %v2803, 2147483648
      %v2891 = vsel %vm2889, %v2890, %v2888
      %v2892 = vrsqrt.pop %v2804
      %v2893 = vmul.f32 %v2804, %v2892
      %vm2894 = vcmp.eq.f32.partialorder %v2804, inf
      %v2895 = vsel %vm2894, %v2804, %v2893
      %vm2896 = vcmp.eq.f32.partialorder %v2804, 0.0
      %v2897 = vand.u32 %v2804, 2147483648
      %v2898 = vsel %vm2896, %v2897, %v2895
      %v2899 = vrsqrt.pop %v2805
      %v2900 = vmul.f32 %v2805, %v2899
      %vm2901 = vcmp.eq.f32.partialorder %v2805, inf
      %v2902 = vsel %vm2901, %v2805, %v2900
      %vm2903 = vcmp.eq.f32.partialorder %v2805, 0.0
      %v2904 = vand.u32 %v2805, 2147483648
      %v2905 = vsel %vm2903, %v2904, %v2902
      %v2906 = vrsqrt.pop %v2806
      %v2907 = vmul.f32 %v2806, %v2906
      %vm2908 = vcmp.eq.f32.partialorder %v2806, inf
      %v2909 = vsel %vm2908, %v2806, %v2907
      %vm2910 = vcmp.eq.f32.partialorder %v2806, 0.0
      %v2911 = vand.u32 %v2806, 2147483648
      %v2912 = vsel %vm2910, %v2911, %v2909
      %v2913 = vrsqrt.pop %v2807
      %v2914 = vmul.f32 %v2807, %v2913
      %vm2915 = vcmp.eq.f32.partialorder %v2807, inf
      %v2916 = vsel %vm2915, %v2807, %v2914
      %vm2917 = vcmp.eq.f32.partialorder %v2807, 0.0
      %v2918 = vand.u32 %v2807, 2147483648
      %v2919 = vsel %vm2917, %v2918, %v2916
      %v2920 = vrsqrt.pop %v2808
      %v2921 = vmul.f32 %v2808, %v2920
      %vm2922 = vcmp.eq.f32.partialorder %v2808, inf
      %v2923 = vsel %vm2922, %v2808, %v2921
      %vm2924 = vcmp.eq.f32.partialorder %v2808, 0.0
      %v2925 = vand.u32 %v2808, 2147483648
      %v2926 = vsel %vm2924, %v2925, %v2923
      %v2927 = vrsqrt.pop %v2809
      %v2928 = vmul.f32 %v2809, %v2927
      %vm2929 = vcmp.eq.f32.partialorder %v2809, inf
      %v2930 = vsel %vm2929, %v2809, %v2928
      %vm2931 = vcmp.eq.f32.partialorder %v2809, 0.0
      %v2932 = vand.u32 %v2809, 2147483648
      %v2933 = vsel %vm2931, %v2932, %v2930
      %v2934 = vrsqrt.pop %v2810
      %v2935 = vmul.f32 %v2810, %v2934
      %vm2936 = vcmp.eq.f32.partialorder %v2810, inf
      %v2937 = vsel %vm2936, %v2810, %v2935
      %vm2938 = vcmp.eq.f32.partialorder %v2810, 0.0
      %v2939 = vand.u32 %v2810, 2147483648
      %v2940 = vsel %vm2938, %v2939, %v2937
      %v2941 = vrsqrt.pop %v2811
      %v2942 = vmul.f32 %v2811, %v2941
      %vm2943 = vcmp.eq.f32.partialorder %v2811, inf
      %v2944 = vsel %vm2943, %v2811, %v2942
      %vm2945 = vcmp.eq.f32.partialorder %v2811, 0.0
      %v2946 = vand.u32 %v2811, 2147483648
      %v2947 = vsel %vm2945, %v2946, %v2944
      %v2948 = vrsqrt.pop %v2812
      %v2949 = vmul.f32 %v2812, %v2948
      %vm2950 = vcmp.eq.f32.partialorder %v2812, inf
      %v2951 = vsel %vm2950, %v2812, %v2949
      %vm2952 = vcmp.eq.f32.partialorder %v2812, 0.0
      %v2953 = vand.u32 %v2812, 2147483648
      %v2954 = vsel %vm2952, %v2953, %v2951
      %v2955 = vrsqrt.pop %v2813
      %v2956 = vmul.f32 %v2813, %v2955
      %vm2957 = vcmp.eq.f32.partialorder %v2813, inf
      %v2958 = vsel %vm2957, %v2813, %v2956
      %vm2959 = vcmp.eq.f32.partialorder %v2813, 0.0
      %v2960 = vand.u32 %v2813, 2147483648
      %v2961 = vsel %vm2959, %v2960, %v2958
      %v2962 = vrsqrt.pop %v2814
      %v2963 = vmul.f32 %v2814, %v2962
      %vm2964 = vcmp.eq.f32.partialorder %v2814, inf
      %v2965 = vsel %vm2964, %v2814, %v2963
      %vm2966 = vcmp.eq.f32.partialorder %v2814, 0.0
      %v2967 = vand.u32 %v2814, 2147483648
      %v2968 = vsel %vm2966, %v2967, %v2965
      %v2969 = vrsqrt.pop %v2815
      %v2970 = vmul.f32 %v2815, %v2969
      %vm2971 = vcmp.eq.f32.partialorder %v2815, inf
      %v2972 = vsel %vm2971, %v2815, %v2970
      %vm2973 = vcmp.eq.f32.partialorder %v2815, 0.0
      %v2974 = vand.u32 %v2815, 2147483648
      %v2975 = vsel %vm2973, %v2974, %v2972
      %v2976 = vrsqrt.pop %v2816
      %v2977 = vmul.f32 %v2816, %v2976
      %vm2978 = vcmp.eq.f32.partialorder %v2816, inf
      %v2979 = vsel %vm2978, %v2816, %v2977
      %vm2980 = vcmp.eq.f32.partialorder %v2816, 0.0
      %v2981 = vand.u32 %v2816, 2147483648
      %v2982 = vsel %vm2980, %v2981, %v2979
      %v2983 = vrsqrt.pop %v2817
      %v2984 = vmul.f32 %v2817, %v2983
      %vm2985 = vcmp.eq.f32.partialorder %v2817, inf
      %v2986 = vsel %vm2985, %v2817, %v2984
      %vm2987 = vcmp.eq.f32.partialorder %v2817, 0.0
      %v2988 = vand.u32 %v2817, 2147483648
      %v2989 = vsel %vm2987, %v2988, %v2986
      %v2990 = vrsqrt.pop %v2818
      %v2991 = vmul.f32 %v2818, %v2990
      %vm2992 = vcmp.eq.f32.partialorder %v2818, inf
      %v2993 = vsel %vm2992, %v2818, %v2991
      %vm2994 = vcmp.eq.f32.partialorder %v2818, 0.0
      %v2995 = vand.u32 %v2818, 2147483648
      %v2996 = vsel %vm2994, %v2995, %v2993
      %v2997 = vrsqrt.pop %v2819
      %v2998 = vmul.f32 %v2819, %v2997
      %vm2999 = vcmp.eq.f32.partialorder %v2819, inf
      %v3000 = vsel %vm2999, %v2819, %v2998
      %vm3001 = vcmp.eq.f32.partialorder %v2819, 0.0
      %v3002 = vand.u32 %v2819, 2147483648
      %v3003 = vsel %vm3001, %v3002, %v3000
      %v3004 = vrsqrt.pop %v2820
      %v3005 = vmul.f32 %v2820, %v3004
      %vm3006 = vcmp.eq.f32.partialorder %v2820, inf
      %v3007 = vsel %vm3006, %v2820, %v3005
      %vm3008 = vcmp.eq.f32.partialorder %v2820, 0.0
      %v3009 = vand.u32 %v2820, 2147483648
      %v3010 = vsel %vm3008, %v3009, %v3007
      %v3011 = vrsqrt.pop %v2821
      %v3012 = vmul.f32 %v2821, %v3011
      %vm3013 = vcmp.eq.f32.partialorder %v2821, inf
      %v3014 = vsel %vm3013, %v2821, %v3012
      %vm3015 = vcmp.eq.f32.partialorder %v2821, 0.0
      %v3016 = vand.u32 %v2821, 2147483648
      %v3017 = vsel %vm3015, %v3016, %v3014
      %v3018 = vrsqrt.pop %v2822
      %v3019 = vmul.f32 %v2822, %v3018
      %vm3020 = vcmp.eq.f32.partialorder %v2822, inf
      %v3021 = vsel %vm3020, %v2822, %v3019
      %vm3022 = vcmp.eq.f32.partialorder %v2822, 0.0
      %v3023 = vand.u32 %v2822, 2147483648
      %v3024 = vsel %vm3022, %v3023, %v3021
      %v3025 = vrsqrt.pop %v2823
      %v3026 = vmul.f32 %v2823, %v3025
      %vm3027 = vcmp.eq.f32.partialorder %v2823, inf
      %v3028 = vsel %vm3027, %v2823, %v3026
      %vm3029 = vcmp.eq.f32.partialorder %v2823, 0.0
      %v3030 = vand.u32 %v2823, 2147483648
      %v3031 = vsel %vm3029, %v3030, %v3028
      %v3032 = vrsqrt.pop %v2824
      %v3033 = vmul.f32 %v2824, %v3032
      %vm3034 = vcmp.eq.f32.partialorder %v2824, inf
      %v3035 = vsel %vm3034, %v2824, %v3033
      %vm3036 = vcmp.eq.f32.partialorder %v2824, 0.0
      %v3037 = vand.u32 %v2824, 2147483648
      %v3038 = vsel %vm3036, %v3037, %v3035
      %v3039 = vrsqrt.pop %v2825
      %v3040 = vmul.f32 %v2825, %v3039
      %vm3041 = vcmp.eq.f32.partialorder %v2825, inf
      %v3042 = vsel %vm3041, %v2825, %v3040
      %vm3043 = vcmp.eq.f32.partialorder %v2825, 0.0
      %v3044 = vand.u32 %v2825, 2147483648
      %v3045 = vsel %vm3043, %v3044, %v3042
      %v3046 = vrsqrt.pop %v2826
      %v3047 = vmul.f32 %v2826, %v3046
      %vm3048 = vcmp.eq.f32.partialorder %v2826, inf
      %v3049 = vsel %vm3048, %v2826, %v3047
      %vm3050 = vcmp.eq.f32.partialorder %v2826, 0.0
      %v3051 = vand.u32 %v2826, 2147483648
      %v3052 = vsel %vm3050, %v3051, %v3049
      %v3053 = vrsqrt.pop %v2827
      %v3054 = vmul.f32 %v2827, %v3053
      %vm3055 = vcmp.eq.f32.partialorder %v2827, inf
      %v3056 = vsel %vm3055, %v2827, %v3054
      %vm3057 = vcmp.eq.f32.partialorder %v2827, 0.0
      %v3058 = vand.u32 %v2827, 2147483648
      %v3059 = vsel %vm3057, %v3058, %v3056
      %v3060 = vrsqrt.pop %v2828
      %v3061 = vmul.f32 %v2828, %v3060
      %vm3062 = vcmp.eq.f32.partialorder %v2828, inf
      %v3063 = vsel %vm3062, %v2828, %v3061
      %vm3064 = vcmp.eq.f32.partialorder %v2828, 0.0
      %v3065 = vand.u32 %v2828, 2147483648
      %v3066 = vsel %vm3064, %v3065, %v3063
      %v3067 = vrsqrt.pop %v2829
      %v3068 = vmul.f32 %v2829, %v3067
      %vm3069 = vcmp.eq.f32.partialorder %v2829, inf
      %v3070 = vsel %vm3069, %v2829, %v3068
      %vm3071 = vcmp.eq.f32.partialorder %v2829, 0.0
      %v3072 = vand.u32 %v2829, 2147483648
      %v3073 = vsel %vm3071, %v3072, %v3070
      %v3074 = vrsqrt.pop %v2830
      %v3075 = vmul.f32 %v2830, %v3074
      %vm3076 = vcmp.eq.f32.partialorder %v2830, inf
      %v3077 = vsel %vm3076, %v2830, %v3075
      %vm3078 = vcmp.eq.f32.partialorder %v2830, 0.0
      %v3079 = vand.u32 %v2830, 2147483648
      %v3080 = vsel %vm3078, %v3079, %v3077
      %v3081 = vrsqrt.pop %v2831
      %v3082 = vmul.f32 %v2831, %v3081
      %vm3083 = vcmp.eq.f32.partialorder %v2831, inf
      %v3084 = vsel %vm3083, %v2831, %v3082
      %vm3085 = vcmp.eq.f32.partialorder %v2831, 0.0
      %v3086 = vand.u32 %v2831, 2147483648
      %v3087 = vsel %vm3085, %v3086, %v3084
      %v3088 = vrsqrt.pop %v2832
      %v3089 = vmul.f32 %v2832, %v3088
      %vm3090 = vcmp.eq.f32.partialorder %v2832, inf
      %v3091 = vsel %vm3090, %v2832, %v3089
      %vm3092 = vcmp.eq.f32.partialorder %v2832, 0.0
      %v3093 = vand.u32 %v2832, 2147483648
      %v3094 = vsel %vm3092, %v3093, %v3091
      %v3095 = vrsqrt.pop %v2833
      %v3096 = vmul.f32 %v2833, %v3095
      %vm3097 = vcmp.eq.f32.partialorder %v2833, inf
      %v3098 = vsel %vm3097, %v2833, %v3096
      %vm3099 = vcmp.eq.f32.partialorder %v2833, 0.0
      %v3100 = vand.u32 %v2833, 2147483648
      %v3101 = vsel %vm3099, %v3100, %v3098
      %v3102 = vrsqrt.pop %v2834
      %v3103 = vmul.f32 %v2834, %v3102
      %vm3104 = vcmp.eq.f32.partialorder %v2834, inf
      %v3105 = vsel %vm3104, %v2834, %v3103
      %vm3106 = vcmp.eq.f32.partialorder %v2834, 0.0
      %v3107 = vand.u32 %v2834, 2147483648
      %v3108 = vsel %vm3106, %v3107, %v3105
      %v3109 = vrsqrt.pop %v2835
      %v3110 = vmul.f32 %v2835, %v3109
      %vm3111 = vcmp.eq.f32.partialorder %v2835, inf
      %v3112 = vsel %vm3111, %v2835, %v3110
      %vm3113 = vcmp.eq.f32.partialorder %v2835, 0.0
      %v3114 = vand.u32 %v2835, 2147483648
      %v3115 = vsel %vm3113, %v3114, %v3112
      %v3116 = vrsqrt.pop %v2836
      %v3117 = vmul.f32 %v2836, %v3116
      %vm3118 = vcmp.eq.f32.partialorder %v2836, inf
      %v3119 = vsel %vm3118, %v2836, %v3117
      %vm3120 = vcmp.eq.f32.partialorder %v2836, 0.0
      %v3121 = vand.u32 %v2836, 2147483648
      %v3122 = vsel %vm3120, %v3121, %v3119
      %v3123 = vrsqrt.pop %v2837
      %v3124 = vmul.f32 %v2837, %v3123
      %vm3125 = vcmp.eq.f32.partialorder %v2837, inf
      %v3126 = vsel %vm3125, %v2837, %v3124
      %vm3127 = vcmp.eq.f32.partialorder %v2837, 0.0
      %v3128 = vand.u32 %v2837, 2147483648
      %v3129 = vsel %vm3127, %v3128, %v3126
      %v3130 = vrsqrt.pop %v2838
      %v3131 = vmul.f32 %v2838, %v3130
      %vm3132 = vcmp.eq.f32.partialorder %v2838, inf
      %v3133 = vsel %vm3132, %v2838, %v3131
      %vm3134 = vcmp.eq.f32.partialorder %v2838, 0.0
      %v3135 = vand.u32 %v2838, 2147483648
      %v3136 = vsel %vm3134, %v3135, %v3133
      %v3137 = vrsqrt.pop %v2839
      %v3138 = vmul.f32 %v2839, %v3137
      %vm3139 = vcmp.eq.f32.partialorder %v2839, inf
      %v3140 = vsel %vm3139, %v2839, %v3138
      %vm3141 = vcmp.eq.f32.partialorder %v2839, 0.0
      %v3142 = vand.u32 %v2839, 2147483648
      %v3143 = vsel %vm3141, %v3142, %v3140
      %v3144 = vrsqrt.pop %v2840
      %v3145 = vmul.f32 %v2840, %v3144
      %vm3146 = vcmp.eq.f32.partialorder %v2840, inf
      %v3147 = vsel %vm3146, %v2840, %v3145
      %vm3148 = vcmp.eq.f32.partialorder %v2840, 0.0
      %v3149 = vand.u32 %v2840, 2147483648
      %v3150 = vsel %vm3148, %v3149, %v3147
      %v3151 = vrsqrt.pop %v2841
      %v3152 = vmul.f32 %v2841, %v3151
      %vm3153 = vcmp.eq.f32.partialorder %v2841, inf
      %v3154 = vsel %vm3153, %v2841, %v3152
      %vm3155 = vcmp.eq.f32.partialorder %v2841, 0.0
      %v3156 = vand.u32 %v2841, 2147483648
      %v3157 = vsel %vm3155, %v3156, %v3154
      %v3158 = vrsqrt.pop %v2842
      %v3159 = vmul.f32 %v2842, %v3158
      %vm3160 = vcmp.eq.f32.partialorder %v2842, inf
      %v3161 = vsel %vm3160, %v2842, %v3159
      %vm3162 = vcmp.eq.f32.partialorder %v2842, 0.0
      %v3163 = vand.u32 %v2842, 2147483648
      %v3164 = vsel %vm3162, %v3163, %v3161
      %v3165 = vrsqrt.pop %v2843
      %v3166 = vmul.f32 %v2843, %v3165
      %vm3167 = vcmp.eq.f32.partialorder %v2843, inf
      %v3168 = vsel %vm3167, %v2843, %v3166
      %vm3169 = vcmp.eq.f32.partialorder %v2843, 0.0
      %v3170 = vand.u32 %v2843, 2147483648
      %v3171 = vsel %vm3169, %v3170, %v3168
      %v3172 = vrsqrt.pop %v2844
      %v3173 = vmul.f32 %v2844, %v3172
      %vm3174 = vcmp.eq.f32.partialorder %v2844, inf
      %v3175 = vsel %vm3174, %v2844, %v3173
      %vm3176 = vcmp.eq.f32.partialorder %v2844, 0.0
      %v3177 = vand.u32 %v2844, 2147483648
      %v3178 = vsel %vm3176, %v3177, %v3175
      %v3179 = vrsqrt.pop %v2845
      %v3180 = vmul.f32 %v2845, %v3179
      %vm3181 = vcmp.eq.f32.partialorder %v2845, inf
      %v3182 = vsel %vm3181, %v2845, %v3180
      %vm3183 = vcmp.eq.f32.partialorder %v2845, 0.0
      %v3184 = vand.u32 %v2845, 2147483648
      %v3185 = vsel %vm3183, %v3184, %v3182
      %v3186 = vrsqrt.pop %v2846
      %v3187 = vmul.f32 %v2846, %v3186
      %vm3188 = vcmp.eq.f32.partialorder %v2846, inf
      %v3189 = vsel %vm3188, %v2846, %v3187
      %vm3190 = vcmp.eq.f32.partialorder %v2846, 0.0
      %v3191 = vand.u32 %v2846, 2147483648
      %v3192 = vsel %vm3190, %v3191, %v3189
      %v3193 = vrsqrt.pop %v2847
      %v3194 = vmul.f32 %v2847, %v3193
      %vm3195 = vcmp.eq.f32.partialorder %v2847, inf
      %v3196 = vsel %vm3195, %v2847, %v3194
      %vm3197 = vcmp.eq.f32.partialorder %v2847, 0.0
      %v3198 = vand.u32 %v2847, 2147483648
      %v3199 = vsel %vm3197, %v3198, %v3196
      %v3200 = vrsqrt.pop %v2848
      %v3201 = vmul.f32 %v2848, %v3200
      %vm3202 = vcmp.eq.f32.partialorder %v2848, inf
      %v3203 = vsel %vm3202, %v2848, %v3201
      %vm3204 = vcmp.eq.f32.partialorder %v2848, 0.0
      %v3205 = vand.u32 %v2848, 2147483648
      %v3206 = vsel %vm3204, %v3205, %v3203
      %v3207 = vrsqrt.pop %v2849
      %v3208 = vmul.f32 %v2849, %v3207
      %vm3209 = vcmp.eq.f32.partialorder %v2849, inf
      %v3210 = vsel %vm3209, %v2849, %v3208
      %vm3211 = vcmp.eq.f32.partialorder %v2849, 0.0
      %v3212 = vand.u32 %v2849, 2147483648
      %v3213 = vsel %vm3211, %v3212, %v3210
      %v3214 = vrsqrt.pop %v2850
      %v3215 = vmul.f32 %v2850, %v3214
      %vm3216 = vcmp.eq.f32.partialorder %v2850, inf
      %v3217 = vsel %vm3216, %v2850, %v3215
      %vm3218 = vcmp.eq.f32.partialorder %v2850, 0.0
      %v3219 = vand.u32 %v2850, 2147483648
      %v3220 = vsel %vm3218, %v3219, %v3217
      %v3221 = vrsqrt.pop %v2851
      %v3222 = vmul.f32 %v2851, %v3221
      %vm3223 = vcmp.eq.f32.partialorder %v2851, inf
      %v3224 = vsel %vm3223, %v2851, %v3222
      %vm3225 = vcmp.eq.f32.partialorder %v2851, 0.0
      %v3226 = vand.u32 %v2851, 2147483648
      %v3227 = vsel %vm3225, %v3226, %v3224
      %v3228 = vrsqrt.pop %v2852
      %v3229 = vmul.f32 %v2852, %v3228
      %vm3230 = vcmp.eq.f32.partialorder %v2852, inf
      %v3231 = vsel %vm3230, %v2852, %v3229
      %vm3232 = vcmp.eq.f32.partialorder %v2852, 0.0
      %v3233 = vand.u32 %v2852, 2147483648
      %v3234 = vsel %vm3232, %v3233, %v3231
      %v3235 = vrsqrt.pop %v2853
      %v3236 = vmul.f32 %v2853, %v3235
      %vm3237 = vcmp.eq.f32.partialorder %v2853, inf
      %v3238 = vsel %vm3237, %v2853, %v3236
      %vm3239 = vcmp.eq.f32.partialorder %v2853, 0.0
      %v3240 = vand.u32 %v2853, 2147483648
      %v3241 = vsel %vm3239, %v3240, %v3238
      %v3242 = vrsqrt.pop %v2854
      %v3243 = vmul.f32 %v2854, %v3242
      %vm3244 = vcmp.eq.f32.partialorder %v2854, inf
      %v3245 = vsel %vm3244, %v2854, %v3243
      %vm3246 = vcmp.eq.f32.partialorder %v2854, 0.0
      %v3247 = vand.u32 %v2854, 2147483648
      %v3248 = vsel %vm3246, %v3247, %v3245
      %v3249 = vrsqrt.pop %v2855
      %v3250 = vmul.f32 %v2855, %v3249
      %vm3251 = vcmp.eq.f32.partialorder %v2855, inf
      %v3252 = vsel %vm3251, %v2855, %v3250
      %vm3253 = vcmp.eq.f32.partialorder %v2855, 0.0
      %v3254 = vand.u32 %v2855, 2147483648
      %v3255 = vsel %vm3253, %v3254, %v3252
      %v3256 = vrsqrt.pop %v2856
      %v3257 = vmul.f32 %v2856, %v3256
      %vm3258 = vcmp.eq.f32.partialorder %v2856, inf
      %v3259 = vsel %vm3258, %v2856, %v3257
      %vm3260 = vcmp.eq.f32.partialorder %v2856, 0.0
      %v3261 = vand.u32 %v2856, 2147483648
      %v3262 = vsel %vm3260, %v3261, %v3259
      %v3263 = vrsqrt.pop %v2857
      %v3264 = vmul.f32 %v2857, %v3263
      %vm3265 = vcmp.eq.f32.partialorder %v2857, inf
      %v3266 = vsel %vm3265, %v2857, %v3264
      %vm3267 = vcmp.eq.f32.partialorder %v2857, 0.0
      %v3268 = vand.u32 %v2857, 2147483648
      %v3269 = vsel %vm3267, %v3268, %v3266
      %v3270 = vrsqrt.pop %v2858
      %v3271 = vmul.f32 %v2858, %v3270
      %vm3272 = vcmp.eq.f32.partialorder %v2858, inf
      %v3273 = vsel %vm3272, %v2858, %v3271
      %vm3274 = vcmp.eq.f32.partialorder %v2858, 0.0
      %v3275 = vand.u32 %v2858, 2147483648
      %v3276 = vsel %vm3274, %v3275, %v3273
      %v3277 = vrsqrt.pop %v2859
      %v3278 = vmul.f32 %v2859, %v3277
      %vm3279 = vcmp.eq.f32.partialorder %v2859, inf
      %v3280 = vsel %vm3279, %v2859, %v3278
      %vm3281 = vcmp.eq.f32.partialorder %v2859, 0.0
      %v3282 = vand.u32 %v2859, 2147483648
      %v3283 = vsel %vm3281, %v3282, %v3280
      %v3284 = vrsqrt.pop %v2860
      %v3285 = vmul.f32 %v2860, %v3284
      %vm3286 = vcmp.eq.f32.partialorder %v2860, inf
      %v3287 = vsel %vm3286, %v2860, %v3285
      %vm3288 = vcmp.eq.f32.partialorder %v2860, 0.0
      %v3289 = vand.u32 %v2860, 2147483648
      %v3290 = vsel %vm3288, %v3289, %v3287
      %v3291 = vrsqrt.pop %v2861
      %v3292 = vmul.f32 %v2861, %v3291
      %vm3293 = vcmp.eq.f32.partialorder %v2861, inf
      %v3294 = vsel %vm3293, %v2861, %v3292
      %vm3295 = vcmp.eq.f32.partialorder %v2861, 0.0
      %v3296 = vand.u32 %v2861, 2147483648
      %v3297 = vsel %vm3295, %v3296, %v3294
      %v3298 = vrsqrt.pop %v2862
      %v3299 = vmul.f32 %v2862, %v3298
      %vm3300 = vcmp.eq.f32.partialorder %v2862, inf
      %v3301 = vsel %vm3300, %v2862, %v3299
      %vm3302 = vcmp.eq.f32.partialorder %v2862, 0.0
      %v3303 = vand.u32 %v2862, 2147483648
      %v3304 = vsel %vm3302, %v3303, %v3301
      %v3305 = vrsqrt.pop %v2863
      %v3306 = vmul.f32 %v2863, %v3305
      %vm3307 = vcmp.eq.f32.partialorder %v2863, inf
      %v3308 = vsel %vm3307, %v2863, %v3306
      %vm3309 = vcmp.eq.f32.partialorder %v2863, 0.0
      %v3310 = vand.u32 %v2863, 2147483648
      %v3311 = vsel %vm3309, %v3310, %v3308
      %v3312 = vadd.f32 %v2870, 0.0001
      %v3313 = vadd.f32 %v2877, 0.0001
      %v3314 = vadd.f32 %v2884, 0.0001
      %v3315 = vadd.f32 %v2891, 0.0001
      %v3316 = vadd.f32 %v2898, 0.0001
      %v3317 = vadd.f32 %v2905, 0.0001
      %v3318 = vadd.f32 %v2912, 0.0001
      %v3319 = vadd.f32 %v2919, 0.0001
      %v3320 = vadd.f32 %v2926, 0.0001
      %v3321 = vadd.f32 %v2933, 0.0001
      %v3322 = vadd.f32 %v2940, 0.0001
      %v3323 = vadd.f32 %v2947, 0.0001
      %v3324 = vadd.f32 %v2954, 0.0001
      %v3325 = vadd.f32 %v2961, 0.0001
      %v3326 = vadd.f32 %v2968, 0.0001
      %v3327 = vadd.f32 %v2975, 0.0001
      %v3328 = vadd.f32 %v2982, 0.0001
      %v3329 = vadd.f32 %v2989, 0.0001
      %v3330 = vadd.f32 %v2996, 0.0001
      %v3331 = vadd.f32 %v3003, 0.0001
      %v3332 = vadd.f32 %v3010, 0.0001
      %v3333 = vadd.f32 %v3017, 0.0001
      %v3334 = vadd.f32 %v3024, 0.0001
      %v3335 = vadd.f32 %v3031, 0.0001
      %v3336 = vadd.f32 %v3038, 0.0001
      %v3337 = vadd.f32 %v3045, 0.0001
      %v3338 = vadd.f32 %v3052, 0.0001
      %v3339 = vadd.f32 %v3059, 0.0001
      %v3340 = vadd.f32 %v3066, 0.0001
      %v3341 = vadd.f32 %v3073, 0.0001
      %v3342 = vadd.f32 %v3080, 0.0001
      %v3343 = vadd.f32 %v3087, 0.0001
      %v3344 = vadd.f32 %v3094, 0.0001
      %v3345 = vadd.f32 %v3101, 0.0001
      %v3346 = vadd.f32 %v3108, 0.0001
      %v3347 = vadd.f32 %v3115, 0.0001
      %v3348 = vadd.f32 %v3122, 0.0001
      %v3349 = vadd.f32 %v3129, 0.0001
      %v3350 = vadd.f32 %v3136, 0.0001
      %v3351 = vadd.f32 %v3143, 0.0001
      %v3352 = vadd.f32 %v3150, 0.0001
      %v3353 = vadd.f32 %v3157, 0.0001
      %v3354 = vadd.f32 %v3164, 0.0001
      %v3355 = vadd.f32 %v3171, 0.0001
      %v3356 = vadd.f32 %v3178, 0.0001
      %v3357 = vadd.f32 %v3185, 0.0001
      %v3358 = vadd.f32 %v3192, 0.0001
      %v3359 = vadd.f32 %v3199, 0.0001
      %v3360 = vadd.f32 %v3206, 0.0001
      %v3361 = vadd.f32 %v3213, 0.0001
      %v3362 = vadd.f32 %v3220, 0.0001
      %v3363 = vadd.f32 %v3227, 0.0001
      %v3364 = vadd.f32 %v3234, 0.0001
      %v3365 = vadd.f32 %v3241, 0.0001
      %v3366 = vadd.f32 %v3248, 0.0001
      %v3367 = vadd.f32 %v3255, 0.0001
      %v3368 = vadd.f32 %v3262, 0.0001
      %v3369 = vadd.f32 %v3269, 0.0001
      %v3370 = vadd.f32 %v3276, 0.0001
      %v3371 = vadd.f32 %v3283, 0.0001
      %v3372 = vadd.f32 %v3290, 0.0001
      %v3373 = vadd.f32 %v3297, 0.0001
      %v3374 = vadd.f32 %v3304, 0.0001
      %v3375 = vadd.f32 %v3311, 0.0001
      %v3376 = vrcp.pop %v3312
      %v3377 = vrcp.pop %v3313
      %v3378 = vrcp.pop %v3314
      %v3379 = vrcp.pop %v3315
      %v3380 = vrcp.pop %v3316
      %v3381 = vrcp.pop %v3317
      %v3382 = vrcp.pop %v3318
      %v3383 = vrcp.pop %v3319
      %v3384 = vrcp.pop %v3320
      %v3385 = vrcp.pop %v3321
      %v3386 = vrcp.pop %v3322
      %v3387 = vrcp.pop %v3323
      %v3388 = vrcp.pop %v3324
      %v3389 = vrcp.pop %v3325
      %v3390 = vrcp.pop %v3326
      %v3391 = vrcp.pop %v3327
      %v3392 = vrcp.pop %v3328
      %v3393 = vrcp.pop %v3329
      %v3394 = vrcp.pop %v3330
      %v3395 = vrcp.pop %v3331
      %v3396 = vrcp.pop %v3332
      %v3397 = vrcp.pop %v3333
      %v3398 = vrcp.pop %v3334
      %v3399 = vrcp.pop %v3335
      %v3400 = vrcp.pop %v3336
      %v3401 = vrcp.pop %v3337
      %v3402 = vrcp.pop %v3338
      %v3403 = vrcp.pop %v3339
      %v3404 = vrcp.pop %v3340
      %v3405 = vrcp.pop %v3341
      %v3406 = vrcp.pop %v3342
      %v3407 = vrcp.pop %v3343
      %v3408 = vrcp.pop %v3344
      %v3409 = vrcp.pop %v3345
      %v3410 = vrcp.pop %v3346
      %v3411 = vrcp.pop %v3347
      %v3412 = vrcp.pop %v3348
      %v3413 = vrcp.pop %v3349
      %v3414 = vrcp.pop %v3350
      %v3415 = vrcp.pop %v3351
      %v3416 = vrcp.pop %v3352
      %v3417 = vrcp.pop %v3353
      %v3418 = vrcp.pop %v3354
      %v3419 = vrcp.pop %v3355
      %v3420 = vrcp.pop %v3356
      %v3421 = vrcp.pop %v3357
      %v3422 = vrcp.pop %v3358
      %v3423 = vrcp.pop %v3359
      %v3424 = vrcp.pop %v3360
      %v3425 = vrcp.pop %v3361
      %v3426 = vrcp.pop %v3362
      %v3427 = vrcp.pop %v3363
      %v3428 = vrcp.pop %v3364
      %v3429 = vrcp.pop %v3365
      %v3430 = vrcp.pop %v3366
      %v3431 = vrcp.pop %v3367
      %v3432 = vrcp.pop %v3368
      %v3433 = vrcp.pop %v3369
      %v3434 = vrcp.pop %v3370
      %v3435 = vrcp.pop %v3371
      %v3436 = vrcp.pop %v3372
      %v3437 = vrcp.pop %v3373
      %v3438 = vrcp.pop %v3374
      %v3439 = vrcp.pop %v3375
      %v3440 = vld [vmem:[%s4] sm:$0x1]
      %v3442 = vlaneseq
      %v3443 = vshrl.u32 %v3442, 7
      %v3444 = vsub.s32 0, %v3443
      %v3445 = vrot.slane %v3440, %v3444
      %v3447 = vmul.f32 %v3376, %v3445
      %v3448 = vmul.f32 %v3377, %v3445
      %v3449 = vmul.f32 %v3378, %v3445
      %v3450 = vmul.f32 %v3379, %v3445
      %v3451 = vmul.f32 %v3380, %v3445
      %v3452 = vmul.f32 %v3381, %v3445
      %v3453 = vmul.f32 %v3382, %v3445
      %v3454 = vmul.f32 %v3383, %v3445
      %v3455 = vmul.f32 %v3384, %v3445
      %v3456 = vmul.f32 %v3385, %v3445
      %v3457 = vmul.f32 %v3386, %v3445
      %v3458 = vmul.f32 %v3387, %v3445
      %v3459 = vmul.f32 %v3388, %v3445
      %v3460 = vmul.f32 %v3389, %v3445
      %v3461 = vmul.f32 %v3390, %v3445
      %v3462 = vmul.f32 %v3391, %v3445
      %v3463 = vmul.f32 %v3392, %v3445
      %v3464 = vmul.f32 %v3393, %v3445
      %v3465 = vmul.f32 %v3394, %v3445
      %v3466 = vmul.f32 %v3395, %v3445
      %v3467 = vmul.f32 %v3396, %v3445
      %v3468 = vmul.f32 %v3397, %v3445
      %v3469 = vmul.f32 %v3398, %v3445
      %v3470 = vmul.f32 %v3399, %v3445
      %v3471 = vmul.f32 %v3400, %v3445
      %v3472 = vmul.f32 %v3401, %v3445
      %v3473 = vmul.f32 %v3402, %v3445
      %v3474 = vmul.f32 %v3403, %v3445
      %v3475 = vmul.f32 %v3404, %v3445
      %v3476 = vmul.f32 %v3405, %v3445
      %v3477 = vmul.f32 %v3406, %v3445
      %v3478 = vmul.f32 %v3407, %v3445
      %v3479 = vmul.f32 %v3408, %v3445
      %v3480 = vmul.f32 %v3409, %v3445
      %v3481 = vmul.f32 %v3410, %v3445
      %v3482 = vmul.f32 %v3411, %v3445
      %v3483 = vmul.f32 %v3412, %v3445
      %v3484 = vmul.f32 %v3413, %v3445
      %v3485 = vmul.f32 %v3414, %v3445
      %v3486 = vmul.f32 %v3415, %v3445
      %v3487 = vmul.f32 %v3416, %v3445
      %v3488 = vmul.f32 %v3417, %v3445
      %v3489 = vmul.f32 %v3418, %v3445
      %v3490 = vmul.f32 %v3419, %v3445
      %v3491 = vmul.f32 %v3420, %v3445
      %v3492 = vmul.f32 %v3421, %v3445
      %v3493 = vmul.f32 %v3422, %v3445
      %v3494 = vmul.f32 %v3423, %v3445
      %v3495 = vmul.f32 %v3424, %v3445
      %v3496 = vmul.f32 %v3425, %v3445
      %v3497 = vmul.f32 %v3426, %v3445
      %v3498 = vmul.f32 %v3427, %v3445
      %v3499 = vmul.f32 %v3428, %v3445
      %v3500 = vmul.f32 %v3429, %v3445
      %v3501 = vmul.f32 %v3430, %v3445
      %v3502 = vmul.f32 %v3431, %v3445
      %v3503 = vmul.f32 %v3432, %v3445
      %v3504 = vmul.f32 %v3433, %v3445
      %v3505 = vmul.f32 %v3434, %v3445
      %v3506 = vmul.f32 %v3435, %v3445
      %v3507 = vmul.f32 %v3436, %v3445
      %v3508 = vmul.f32 %v3437, %v3445
      %v3509 = vmul.f32 %v3438, %v3445
      %v3510 = vmul.f32 %v3439, %v3445
      %v3511 = vmul.f32 %v2544, %v3447
      %v3512 = vmul.f32 %v2545, %v3448
      %v3513 = vmul.f32 %v2546, %v3449
      %v3514 = vmul.f32 %v2547, %v3450
      %v3515 = vmul.f32 %v2548, %v3451
      %v3516 = vmul.f32 %v2549, %v3452
      %v3517 = vmul.f32 %v2550, %v3453
      %v3518 = vmul.f32 %v2551, %v3454
      %v3519 = vmul.f32 %v2552, %v3455
      %v3520 = vmul.f32 %v2553, %v3456
      %v3521 = vmul.f32 %v2554, %v3457
      %v3522 = vmul.f32 %v2555, %v3458
      %v3523 = vmul.f32 %v2556, %v3459
      %v3524 = vmul.f32 %v2557, %v3460
      %v3525 = vmul.f32 %v2558, %v3461
      %v3526 = vmul.f32 %v2559, %v3462
      %v3527 = vmul.f32 %v2560, %v3463
      %v3528 = vmul.f32 %v2561, %v3464
      %v3529 = vmul.f32 %v2562, %v3465
      %v3530 = vmul.f32 %v2563, %v3466
      %v3531 = vmul.f32 %v2564, %v3467
      %v3532 = vmul.f32 %v2565, %v3468
      %v3533 = vmul.f32 %v2566, %v3469
      %v3534 = vmul.f32 %v2567, %v3470
      %v3535 = vmul.f32 %v2568, %v3471
      %v3536 = vmul.f32 %v2569, %v3472
      %v3537 = vmul.f32 %v2570, %v3473
      %v3538 = vmul.f32 %v2571, %v3474
      %v3539 = vmul.f32 %v2572, %v3475
      %v3540 = vmul.f32 %v2573, %v3476
      %v3541 = vmul.f32 %v2574, %v3477
      %v3542 = vmul.f32 %v2575, %v3478
      %v3543 = vmul.f32 %v2576, %v3479
      %v3544 = vmul.f32 %v2577, %v3480
      %v3545 = vmul.f32 %v2578, %v3481
      %v3546 = vmul.f32 %v2579, %v3482
      %v3547 = vmul.f32 %v2580, %v3483
      %v3548 = vmul.f32 %v2581, %v3484
      %v3549 = vmul.f32 %v2582, %v3485
      %v3550 = vmul.f32 %v2583, %v3486
      %v3551 = vmul.f32 %v2584, %v3487
      %v3552 = vmul.f32 %v2585, %v3488
      %v3553 = vmul.f32 %v2586, %v3489
      %v3554 = vmul.f32 %v2587, %v3490
      %v3555 = vmul.f32 %v2588, %v3491
      %v3556 = vmul.f32 %v2589, %v3492
      %v3557 = vmul.f32 %v2590, %v3493
      %v3558 = vmul.f32 %v2591, %v3494
      %v3559 = vmul.f32 %v2592, %v3495
      %v3560 = vmul.f32 %v2593, %v3496
      %v3561 = vmul.f32 %v2594, %v3497
      %v3562 = vmul.f32 %v2595, %v3498
      %v3563 = vmul.f32 %v2596, %v3499
      %v3564 = vmul.f32 %v2597, %v3500
      %v3565 = vmul.f32 %v2598, %v3501
      %v3566 = vmul.f32 %v2599, %v3502
      %v3567 = vmul.f32 %v2600, %v3503
      %v3568 = vmul.f32 %v2601, %v3504
      %v3569 = vmul.f32 %v2602, %v3505
      %v3570 = vmul.f32 %v2603, %v3506
      %v3571 = vmul.f32 %v2604, %v3507
      %v3572 = vmul.f32 %v2605, %v3508
      %v3573 = vmul.f32 %v2606, %v3509
      %v3574 = vmul.f32 %v2607, %v3510
      %v3575 = vld [vmem:[%s5] sm:$0x1]
      %v3577 = vlaneseq
      %v3578 = vshrl.u32 %v3577, 7
      %v3579 = vsub.s32 0, %v3578
      %v3580 = vrot.slane %v3575, %v3579
      %v3582 = vadd.f32 %v3511, %v3580
      %v3583 = vadd.f32 %v3512, %v3580
      %v3584 = vadd.f32 %v3513, %v3580
      %v3585 = vadd.f32 %v3514, %v3580
      %v3586 = vadd.f32 %v3515, %v3580
      %v3587 = vadd.f32 %v3516, %v3580
      %v3588 = vadd.f32 %v3517, %v3580
      %v3589 = vadd.f32 %v3518, %v3580
      %v3590 = vadd.f32 %v3519, %v3580
      %v3591 = vadd.f32 %v3520, %v3580
      %v3592 = vadd.f32 %v3521, %v3580
      %v3593 = vadd.f32 %v3522, %v3580
      %v3594 = vadd.f32 %v3523, %v3580
      %v3595 = vadd.f32 %v3524, %v3580
      %v3596 = vadd.f32 %v3525, %v3580
      %v3597 = vadd.f32 %v3526, %v3580
      %v3598 = vadd.f32 %v3527, %v3580
      %v3599 = vadd.f32 %v3528, %v3580
      %v3600 = vadd.f32 %v3529, %v3580
      %v3601 = vadd.f32 %v3530, %v3580
      %v3602 = vadd.f32 %v3531, %v3580
      %v3603 = vadd.f32 %v3532, %v3580
      %v3604 = vadd.f32 %v3533, %v3580
      %v3605 = vadd.f32 %v3534, %v3580
      %v3606 = vadd.f32 %v3535, %v3580
      %v3607 = vadd.f32 %v3536, %v3580
      %v3608 = vadd.f32 %v3537, %v3580
      %v3609 = vadd.f32 %v3538, %v3580
      %v3610 = vadd.f32 %v3539, %v3580
      %v3611 = vadd.f32 %v3540, %v3580
      %v3612 = vadd.f32 %v3541, %v3580
      %v3613 = vadd.f32 %v3542, %v3580
      %v3614 = vadd.f32 %v3543, %v3580
      %v3615 = vadd.f32 %v3544, %v3580
      %v3616 = vadd.f32 %v3545, %v3580
      %v3617 = vadd.f32 %v3546, %v3580
      %v3618 = vadd.f32 %v3547, %v3580
      %v3619 = vadd.f32 %v3548, %v3580
      %v3620 = vadd.f32 %v3549, %v3580
      %v3621 = vadd.f32 %v3550, %v3580
      %v3622 = vadd.f32 %v3551, %v3580
      %v3623 = vadd.f32 %v3552, %v3580
      %v3624 = vadd.f32 %v3553, %v3580
      %v3625 = vadd.f32 %v3554, %v3580
      %v3626 = vadd.f32 %v3555, %v3580
      %v3627 = vadd.f32 %v3556, %v3580
      %v3628 = vadd.f32 %v3557, %v3580
      %v3629 = vadd.f32 %v3558, %v3580
      %v3630 = vadd.f32 %v3559, %v3580
      %v3631 = vadd.f32 %v3560, %v3580
      %v3632 = vadd.f32 %v3561, %v3580
      %v3633 = vadd.f32 %v3562, %v3580
      %v3634 = vadd.f32 %v3563, %v3580
      %v3635 = vadd.f32 %v3564, %v3580
      %v3636 = vadd.f32 %v3565, %v3580
      %v3637 = vadd.f32 %v3566, %v3580
      %v3638 = vadd.f32 %v3567, %v3580
      %v3639 = vadd.f32 %v3568, %v3580
      %v3640 = vadd.f32 %v3569, %v3580
      %v3641 = vadd.f32 %v3570, %v3580
      %v3642 = vadd.f32 %v3571, %v3580
      %v3643 = vadd.f32 %v3572, %v3580
      %v3644 = vadd.f32 %v3573, %v3580
      %v3645 = vadd.f32 %v3574, %v3580
      %v3646 = vpack.c.bf16 %v3583, %v3582
      %v3647 = vpack.c.bf16 %v3585, %v3584
      %v3648 = vpack.c.bf16 %v3587, %v3586
      %v3649 = vpack.c.bf16 %v3589, %v3588
      %v3650 = vpack.c.bf16 %v3591, %v3590
      %v3651 = vpack.c.bf16 %v3593, %v3592
      %v3652 = vpack.c.bf16 %v3595, %v3594
      %v3653 = vpack.c.bf16 %v3597, %v3596
      %v3654 = vpack.c.bf16 %v3599, %v3598
      %v3655 = vpack.c.bf16 %v3601, %v3600
      %v3656 = vpack.c.bf16 %v3603, %v3602
      %v3657 = vpack.c.bf16 %v3605, %v3604
      %v3658 = vpack.c.bf16 %v3607, %v3606
      %v3659 = vpack.c.bf16 %v3609, %v3608
      %v3660 = vpack.c.bf16 %v3611, %v3610
      %v3661 = vpack.c.bf16 %v3613, %v3612
      %v3662 = vpack.c.bf16 %v3615, %v3614
      %v3663 = vpack.c.bf16 %v3617, %v3616
      %v3664 = vpack.c.bf16 %v3619, %v3618
      %v3665 = vpack.c.bf16 %v3621, %v3620
      %v3666 = vpack.c.bf16 %v3623, %v3622
      %v3667 = vpack.c.bf16 %v3625, %v3624
      %v3668 = vpack.c.bf16 %v3627, %v3626
      %v3669 = vpack.c.bf16 %v3629, %v3628
      %v3670 = vpack.c.bf16 %v3631, %v3630
      %v3671 = vpack.c.bf16 %v3633, %v3632
      %v3672 = vpack.c.bf16 %v3635, %v3634
      %v3673 = vpack.c.bf16 %v3637, %v3636
      %v3674 = vpack.c.bf16 %v3639, %v3638
      %v3675 = vpack.c.bf16 %v3641, %v3640
      %v3676 = vpack.c.bf16 %v3643, %v3642
      %v3677 = vpack.c.bf16 %v3645, %v3644
      %v3678 = vld [vmem:[%s6] sm:$0xff]
      %v3679 = vld [vmem:[%s6 + $0x8] sm:$0xf]
      %v3680 = vld [vmem:[%s6 + $0xc] sm:$0xff]
      %v3681 = vld [vmem:[%s6 + $0x14] sm:$0xf]
      %v3682 = vld [vmem:[%s6 + $0x18] sm:$0xff]
      %v3683 = vld [vmem:[%s6 + $0x20] sm:$0xf]
      %v3684 = vld [vmem:[%s6 + $0x24] sm:$0xff]
      %v3685 = vld [vmem:[%s6 + $0x2c] sm:$0xf]
      %v3686 = vld [vmem:[%s6 + $0x30] sm:$0xff]
      %v3687 = vld [vmem:[%s6 + $0x38] sm:$0xf]
      %v3688 = vld [vmem:[%s6 + $0x3c] sm:$0xff]
      %v3689 = vld [vmem:[%s6 + $0x44] sm:$0xf]
      %v3690 = vld [vmem:[%s6 + $0x48] sm:$0xff]
      %v3691 = vld [vmem:[%s6 + $0x50] sm:$0xf]
      %v3692 = vld [vmem:[%s6 + $0x54] sm:$0xff]
      %v3693 = vld [vmem:[%s6 + $0x5c] sm:$0xf]
      %v3694 = vld [vmem:[%s6 + $0x60] sm:$0xff]
      %v3695 = vld [vmem:[%s6 + $0x68] sm:$0xf]
      %v3696 = vld [vmem:[%s6 + $0x6c] sm:$0xff]
      %v3697 = vld [vmem:[%s6 + $0x74] sm:$0xf]
      %v3698 = vld [vmem:[%s6 + $0x78] sm:$0xff]
      %v3699 = vld [vmem:[%s6 + $0x80] sm:$0xf]
      %v3700 = vld [vmem:[%s6 + $0x84] sm:$0xff]
      %v3701 = vld [vmem:[%s6 + $0x8c] sm:$0xf]
      %v3702 = vld [vmem:[%s6 + $0x90] sm:$0xff]
      %v3703 = vld [vmem:[%s6 + $0x98] sm:$0xf]
      %v3704 = vld [vmem:[%s6 + $0x9c] sm:$0xff]
      %v3705 = vld [vmem:[%s6 + $0xa4] sm:$0xf]
      %v3706 = vld [vmem:[%s6 + $0xa8] sm:$0xff]
      %v3707 = vld [vmem:[%s6 + $0xb0] sm:$0xf]
      %v3708 = vld [vmem:[%s6 + $0xb4] sm:$0xff]
      %v3709 = vld [vmem:[%s6 + $0xbc] sm:$0xf]
      %v3710 = vld [vmem:[%s7] sm:$0x7]
      %v3712 = vlaneseq
      %v3713 = vshrl.u32 %v3712, 7
      %v3714 = vsub.s32 0, %v3713
      %v3715 = vrot.slane %v3710, %v3714
      %v3716 = vlaneseq
      %v3717 = vshrl.u32 %v3716, 7
      %v3718 = vsub.s32 1, %v3717
      %v3719 = vrot.slane %v3710, %v3718
      %v3720 = vlaneseq
      %v3721 = vshrl.u32 %v3720, 7
      %v3722 = vsub.s32 2, %v3721
      %v3723 = vrot.slane %v3710, %v3722
      %v3759 = vunpack.c.l.b16 %v3678
      %v3760 = vunpack.c.h.b16 %v3678
      %v3761 = vunpack.c.l.b16 %v3679
      %v3762 = vunpack.c.l.b16 %v3680
      %v3763 = vunpack.c.h.b16 %v3680
      %v3764 = vunpack.c.l.b16 %v3681
      %v3765 = vunpack.c.l.b16 %v3682
      %v3766 = vunpack.c.h.b16 %v3682
      %v3767 = vunpack.c.l.b16 %v3683
      %v3768 = vunpack.c.l.b16 %v3684
      %v3769 = vunpack.c.h.b16 %v3684
      %v3770 = vunpack.c.l.b16 %v3685
      %v3771 = vunpack.c.l.b16 %v3686
      %v3772 = vunpack.c.h.b16 %v3686
      %v3773 = vunpack.c.l.b16 %v3687
      %v3774 = vunpack.c.l.b16 %v3688
      %v3775 = vunpack.c.h.b16 %v3688
      %v3776 = vunpack.c.l.b16 %v3689
      %v3777 = vunpack.c.l.b16 %v3690
      %v3778 = vunpack.c.h.b16 %v3690
      %v3779 = vunpack.c.l.b16 %v3691
      %v3780 = vunpack.c.l.b16 %v3692
      %v3781 = vunpack.c.h.b16 %v3692
      %v3782 = vunpack.c.l.b16 %v3693
      %v3783 = vunpack.c.l.b16 %v3694
      %v3784 = vunpack.c.h.b16 %v3694
      %v3785 = vunpack.c.l.b16 %v3695
      %v3786 = vunpack.c.l.b16 %v3696
      %v3787 = vunpack.c.h.b16 %v3696
      %v3788 = vunpack.c.l.b16 %v3697
      %v3789 = vunpack.c.l.b16 %v3698
      %v3790 = vunpack.c.h.b16 %v3698
      %v3791 = vunpack.c.l.b16 %v3699
      %v3792 = vunpack.c.l.b16 %v3700
      %v3793 = vunpack.c.h.b16 %v3700
      %v3794 = vunpack.c.l.b16 %v3701
      %v3795 = vunpack.c.l.b16 %v3702
      %v3796 = vunpack.c.h.b16 %v3702
      %v3797 = vunpack.c.l.b16 %v3703
      %v3798 = vunpack.c.l.b16 %v3704
      %v3799 = vunpack.c.h.b16 %v3704
      %v3800 = vunpack.c.l.b16 %v3705
      %v3801 = vunpack.c.l.b16 %v3706
      %v3802 = vunpack.c.h.b16 %v3706
      %v3803 = vunpack.c.l.b16 %v3707
      %v3804 = vunpack.c.l.b16 %v3708
      %v3805 = vunpack.c.h.b16 %v3708
      %v3806 = vunpack.c.l.b16 %v3709
      %v3807 = vpack.c.b16 %v3762, %v3759
      %v3808 = vpack.c.b16 %v3763, %v3760
      %v3809 = vpack.c.b16 %v3764, %v3761
      %v3810 = vpack.c.b16 %v3768, %v3765
      %v3811 = vpack.c.b16 %v3769, %v3766
      %v3812 = vpack.c.b16 %v3770, %v3767
      %v3813 = vpack.c.b16 %v3774, %v3771
      %v3814 = vpack.c.b16 %v3775, %v3772
      %v3815 = vpack.c.b16 %v3776, %v3773
      %v3816 = vpack.c.b16 %v3780, %v3777
      %v3817 = vpack.c.b16 %v3781, %v3778
      %v3818 = vpack.c.b16 %v3782, %v3779
      %v3819 = vpack.c.b16 %v3786, %v3783
      %v3820 = vpack.c.b16 %v3787, %v3784
      %v3821 = vpack.c.b16 %v3788, %v3785
      %v3822 = vpack.c.b16 %v3792, %v3789
      %v3823 = vpack.c.b16 %v3793, %v3790
      %v3824 = vpack.c.b16 %v3794, %v3791
      %v3825 = vpack.c.b16 %v3798, %v3795
      %v3826 = vpack.c.b16 %v3799, %v3796
      %v3827 = vpack.c.b16 %v3800, %v3797
      %v3828 = vpack.c.b16 %v3804, %v3801
      %v3829 = vpack.c.b16 %v3805, %v3802
      %v3830 = vpack.c.b16 %v3806, %v3803
      %3855 = vmatprep.subr.bf16.mxu0 %v3808
      %3856 = vmatpush1.bf16.msra.mxu0 %v3807
      %3857 = vmatprep.subr.bf16.mxu0 %v3811
      %3858 = vmatpush1.bf16.msra.mxu0 %v3810
      %3859 = vmatprep.subr.bf16.mxu0 %v3814
      %3860 = vmatpush1.bf16.msra.mxu0 %v3813
      %3861 = vmatprep.subr.bf16.mxu0 %v3817
      %3862 = vmatpush1.bf16.msra.mxu0 %v3816
      %3863 = vmatprep.subr.bf16.mxu0 %v3820
      %3864 = vmatpush1.bf16.msra.mxu0 %v3819
      %3865 = vmatprep.subr.bf16.mxu0 %v3823
      %3866 = vmatpush1.bf16.msra.mxu0 %v3822
      %3867 = vmatprep.subr.bf16.mxu0 %v3826
      %3868 = vmatpush1.bf16.msra.mxu0 %v3825
      %3869 = vmatprep.subr.bf16.mxu0 %v3829
      %3870 = vmatpush1.bf16.msra.mxu0 %v3828
      %3871 = vmatprep.subr.bf16.mxu0 0
      %3872 = vmatpush1.bf16.msra.mxu0 0
      %3873 = vmatprep.subr.bf16.mxu0 0
      %3874 = vmatpush1.bf16.msra.mxu0 0
      %3875 = vmatprep.subr.bf16.mxu0 0
      %3876 = vmatpush1.bf16.msra.mxu0 0
      %3877 = vmatprep.subr.bf16.mxu0 0
      %3878 = vmatpush1.bf16.msra.mxu0 0
      %3879 = vmatprep.subr.bf16.mxu0 0
      %3880 = vmatpush1.bf16.msra.mxu0 0
      %3881 = vmatprep.subr.bf16.mxu0 0
      %3882 = vmatpush1.bf16.msra.mxu0 0
      %3883 = vmatprep.subr.bf16.mxu0 0
      %3884 = vmatpush1.bf16.msra.mxu0 0
      %3885 = vmatprep.subr.bf16.mxu0 0
      %3886 = vmatpush1.bf16.msra.mxu0 0
      %3887 = vmatprep.mubr.bf16.mxu0 0
      %3888 = vmatmul.mubr.bf16.gmra.mrb[0].mxu0 %v3646
      %v3889 = vpop.f32.mrb[0].mxu0
      %v3890 = vadd.f32 %v3715, %v3889
      %v3891 = vpop.f32.mrb[0].mxu0
      %v3892 = vadd.f32 %v3719, %v3891
      %v3893 = vpop.f32.mrb[0].mxu0
      %v3894 = vadd.f32 %v3715, %v3893
      %v3895 = vpop.f32.mrb[0].mxu0
      %v3896 = vadd.f32 %v3719, %v3895
      %3897 = vmatprep.mubr.bf16.mxu0 0
      %3898 = vmatmul.mubr.bf16.gmra.mrb[0].mxu0 %v3647
      %v3899 = vpop.f32.mrb[0].mxu0
      %v3900 = vadd.f32 %v3715, %v3899
      %v3901 = vpop.f32.mrb[0].mxu0
      %v3902 = vadd.f32 %v3719, %v3901
      %v3903 = vpop.f32.mrb[0].mxu0
      %v3904 = vadd.f32 %v3715, %v3903
      %v3905 = vpop.f32.mrb[0].mxu0
      %v3906 = vadd.f32 %v3719, %v3905
      %3907 = vmatprep.mubr.bf16.mxu0 0
      %3908 = vmatmul.mubr.bf16.gmra.mrb[0].mxu0 %v3648
      %v3909 = vpop.f32.mrb[0].mxu0
      %v3910 = vadd.f32 %v3715, %v3909
      %v3911 = vpop.f32.mrb[0].mxu0
      %v3912 = vadd.f32 %v3719, %v3911
      %v3913 = vpop.f32.mrb[0].mxu0
      %v3914 = vadd.f32 %v3715, %v3913
      %v3915 = vpop.f32.mrb[0].mxu0
      %v3916 = vadd.f32 %v3719, %v3915
      %3917 = vmatprep.mubr.bf16.mxu0 0
      %3918 = vmatmul.mubr.bf16.gmra.mrb[0].mxu0 %v3649
      %v3919 = vpop.f32.mrb[0].mxu0
      %v3920 = vadd.f32 %v3715, %v3919
      %v3921 = vpop.f32.mrb[0].mxu0
      %v3922 = vadd.f32 %v3719, %v3921
      %v3923 = vpop.f32.mrb[0].mxu0
      %v3924 = vadd.f32 %v3715, %v3923
      %v3925 = vpop.f32.mrb[0].mxu0
      %v3926 = vadd.f32 %v3719, %v3925
      %3927 = vmatprep.mubr.bf16.mxu0 0
      %3928 = vmatmul.mubr.bf16.gmra.mrb[0].mxu0 %v3650
      %v3929 = vpop.f32.mrb[0].mxu0
      %v3930 = vadd.f32 %v3715, %v3929
      %v3931 = vpop.f32.mrb[0].mxu0
      %v3932 = vadd.f32 %v3719, %v3931
      %v3933 = vpop.f32.mrb[0].mxu0
      %v3934 = vadd.f32 %v3715, %v3933
      %v3935 = vpop.f32.mrb[0].mxu0
      %v3936 = vadd.f32 %v3719, %v3935
      %3937 = vmatprep.mubr.bf16.mxu0 0
      %3938 = vmatmul.mubr.bf16.gmra.mrb[0].mxu0 %v3651
      %v3939 = vpop.f32.mrb[0].mxu0
      %v3940 = vadd.f32 %v3715, %v3939
      %v3941 = vpop.f32.mrb[0].mxu0
      %v3942 = vadd.f32 %v3719, %v3941
      %v3943 = vpop.f32.mrb[0].mxu0
      %v3944 = vadd.f32 %v3715, %v3943
      %v3945 = vpop.f32.mrb[0].mxu0
      %v3946 = vadd.f32 %v3719, %v3945
      %3947 = vmatprep.mubr.bf16.mxu0 0
      %3948 = vmatmul.mubr.bf16.gmra.mrb[0].mxu0 %v3652
      %v3949 = vpop.f32.mrb[0].mxu0
      %v3950 = vadd.f32 %v3715, %v3949
      %v3951 = vpop.f32.mrb[0].mxu0
      %v3952 = vadd.f32 %v3719, %v3951
      %v3953 = vpop.f32.mrb[0].mxu0
      %v3954 = vadd.f32 %v3715, %v3953
      %v3955 = vpop.f32.mrb[0].mxu0
      %v3956 = vadd.f32 %v3719, %v3955
      %3957 = vmatprep.mubr.bf16.mxu0 0
      %3958 = vmatmul.mubr.bf16.gmra.mrb[0].mxu0 %v3653
      %v3959 = vpop.f32.mrb[0].mxu0
      %v3960 = vadd.f32 %v3715, %v3959
      %v3961 = vpop.f32.mrb[0].mxu0
      %v3962 = vadd.f32 %v3719, %v3961
      %v3963 = vpop.f32.mrb[0].mxu0
      %v3964 = vadd.f32 %v3715, %v3963
      %v3965 = vpop.f32.mrb[0].mxu0
      %v3966 = vadd.f32 %v3719, %v3965
      %3967 = vmatprep.mubr.bf16.mxu0 0
      %3968 = vmatmul.mubr.bf16.gmra.mrb[0].mxu0 %v3654
      %v3969 = vpop.f32.mrb[0].mxu0
      %v3970 = vadd.f32 %v3715, %v3969
      %v3971 = vpop.f32.mrb[0].mxu0
      %v3972 = vadd.f32 %v3719, %v3971
      %v3973 = vpop.f32.mrb[0].mxu0
      %v3974 = vadd.f32 %v3715, %v3973
      %v3975 = vpop.f32.mrb[0].mxu0
      %v3976 = vadd.f32 %v3719, %v3975
      %3977 = vmatprep.mubr.bf16.mxu0 0
      %3978 = vmatmul.mubr.bf16.gmra.mrb[0].mxu0 %v3655
      %v3979 = vpop.f32.mrb[0].mxu0
      %v3980 = vadd.f32 %v3715, %v3979
      %v3981 = vpop.f32.mrb[0].mxu0
      %v3982 = vadd.f32 %v3719, %v3981
      %v3983 = vpop.f32.mrb[0].mxu0
      %v3984 = vadd.f32 %v3715, %v3983
      %v3985 = vpop.f32.mrb[0].mxu0
      %v3986 = vadd.f32 %v3719, %v3985
      %3987 = vmatprep.mubr.bf16.mxu0 0
      %3988 = vmatmul.mubr.bf16.gmra.mrb[0].mxu0 %v3656
      %v3989 = vpop.f32.mrb[0].mxu0
      %v3990 = vadd.f32 %v3715, %v3989
      %v3991 = vpop.f32.mrb[0].mxu0
      %v3992 = vadd.f32 %v3719, %v3991
      %v3993 = vpop.f32.mrb[0].mxu0
      %v3994 = vadd.f32 %v3715, %v3993
      %v3995 = vpop.f32.mrb[0].mxu0
      %v3996 = vadd.f32 %v3719, %v3995
      %3997 = vmatprep.mubr.bf16.mxu0 0
      %3998 = vmatmul.mubr.bf16.gmra.mrb[0].mxu0 %v3657
      %v3999 = vpop.f32.mrb[0].mxu0
      %v4000 = vadd.f32 %v3715, %v3999
      %v4001 = vpop.f32.mrb[0].mxu0
      %v4002 = vadd.f32 %v3719, %v4001
      %v4003 = vpop.f32.mrb[0].mxu0
      %v4004 = vadd.f32 %v3715, %v4003
      %v4005 = vpop.f32.mrb[0].mxu0
      %v4006 = vadd.f32 %v3719, %v4005
      %4007 = vmatprep.mubr.bf16.mxu0 0
      %4008 = vmatmul.mubr.bf16.gmra.mrb[0].mxu0 %v3658
      %v4009 = vpop.f32.mrb[0].mxu0
      %v4010 = vadd.f32 %v3715, %v4009
      %v4011 = vpop.f32.mrb[0].mxu0
      %v4012 = vadd.f32 %v3719, %v4011
      %v4013 = vpop.f32.mrb[0].mxu0
      %v4014 = vadd.f32 %v3715, %v4013
      %v4015 = vpop.f32.mrb[0].mxu0
      %v4016 = vadd.f32 %v3719, %v4015
      %4017 = vmatprep.mubr.bf16.mxu0 0
      %4018 = vmatmul.mubr.bf16.gmra.mrb[0].mxu0 %v3659
      %v4019 = vpop.f32.mrb[0].mxu0
      %v4020 = vadd.f32 %v3715, %v4019
      %v4021 = vpop.f32.mrb[0].mxu0
      %v4022 = vadd.f32 %v3719, %v4021
      %v4023 = vpop.f32.mrb[0].mxu0
      %v4024 = vadd.f32 %v3715, %v4023
      %v4025 = vpop.f32.mrb[0].mxu0
      %v4026 = vadd.f32 %v3719, %v4025
      %4027 = vmatprep.mubr.bf16.mxu0 0
      %4028 = vmatmul.mubr.bf16.gmra.mrb[0].mxu0 %v3660
      %v4029 = vpop.f32.mrb[0].mxu0
      %v4030 = vadd.f32 %v3715, %v4029
      %v4031 = vpop.f32.mrb[0].mxu0
      %v4032 = vadd.f32 %v3719, %v4031
      %v4033 = vpop.f32.mrb[0].mxu0
      %v4034 = vadd.f32 %v3715, %v4033
      %v4035 = vpop.f32.mrb[0].mxu0
      %v4036 = vadd.f32 %v3719, %v4035
      %4037 = vmatprep.mubr.bf16.mxu0 0
      %4038 = vmatmul.mubr.bf16.gmra.mrb[0].mxu0 %v3661
      %v4039 = vpop.f32.mrb[0].mxu0
      %v4040 = vadd.f32 %v3715, %v4039
      %v4041 = vpop.f32.mrb[0].mxu0
      %v4042 = vadd.f32 %v3719, %v4041
      %v4043 = vpop.f32.mrb[0].mxu0
      %v4044 = vadd.f32 %v3715, %v4043
      %v4045 = vpop.f32.mrb[0].mxu0
      %v4046 = vadd.f32 %v3719, %v4045
      %4047 = vmatprep.mubr.bf16.mxu0 0
      %4048 = vmatmul.mubr.bf16.gmra.mrb[0].mxu0 %v3662
      %v4049 = vpop.f32.mrb[0].mxu0
      %v4050 = vadd.f32 %v3715, %v4049
      %v4051 = vpop.f32.mrb[0].mxu0
      %v4052 = vadd.f32 %v3719, %v4051
      %v4053 = vpop.f32.mrb[0].mxu0
      %v4054 = vadd.f32 %v3715, %v4053
      %v4055 = vpop.f32.mrb[0].mxu0
      %v4056 = vadd.f32 %v3719, %v4055
      %4057 = vmatprep.mubr.bf16.mxu0 0
      %4058 = vmatmul.mubr.bf16.gmra.mrb[0].mxu0 %v3663
      %v4059 = vpop.f32.mrb[0].mxu0
      %v4060 = vadd.f32 %v3715, %v4059
      %v4061 = vpop.f32.mrb[0].mxu0
      %v4062 = vadd.f32 %v3719, %v4061
      %v4063 = vpop.f32.mrb[0].mxu0
      %v4064 = vadd.f32 %v3715, %v4063
      %v4065 = vpop.f32.mrb[0].mxu0
      %v4066 = vadd.f32 %v3719, %v4065
      %4067 = vmatprep.mubr.bf16.mxu0 0
      %4068 = vmatmul.mubr.bf16.gmra.mrb[0].mxu0 %v3664
      %v4069 = vpop.f32.mrb[0].mxu0
      %v4070 = vadd.f32 %v3715, %v4069
      %v4071 = vpop.f32.mrb[0].mxu0
      %v4072 = vadd.f32 %v3719, %v4071
      %v4073 = vpop.f32.mrb[0].mxu0
      %v4074 = vadd.f32 %v3715, %v4073
      %v4075 = vpop.f32.mrb[0].mxu0
      %v4076 = vadd.f32 %v3719, %v4075
      %4077 = vmatprep.mubr.bf16.mxu0 0
      %4078 = vmatmul.mubr.bf16.gmra.mrb[0].mxu0 %v3665
      %v4079 = vpop.f32.mrb[0].mxu0
      %v4080 = vadd.f32 %v3715, %v4079
      %v4081 = vpop.f32.mrb[0].mxu0
      %v4082 = vadd.f32 %v3719, %v4081
      %v4083 = vpop.f32.mrb[0].mxu0
      %v4084 = vadd.f32 %v3715, %v4083
      %v4085 = vpop.f32.mrb[0].mxu0
      %v4086 = vadd.f32 %v3719, %v4085
      %4087 = vmatprep.mubr.bf16.mxu0 0
      %4088 = vmatmul.mubr.bf16.gmra.mrb[0].mxu0 %v3666
      %v4089 = vpop.f32.mrb[0].mxu0
      %v4090 = vadd.f32 %v3715, %v4089
      %v4091 = vpop.f32.mrb[0].mxu0
      %v4092 = vadd.f32 %v3719, %v4091
      %v4093 = vpop.f32.mrb[0].mxu0
      %v4094 = vadd.f32 %v3715, %v4093
      %v4095 = vpop.f32.mrb[0].mxu0
      %v4096 = vadd.f32 %v3719, %v4095
      %4097 = vmatprep.mubr.bf16.mxu0 0
      %4098 = vmatmul.mubr.bf16.gmra.mrb[0].mxu0 %v3667
      %v4099 = vpop.f32.mrb[0].mxu0
      %v4100 = vadd.f32 %v3715, %v4099
      %v4101 = vpop.f32.mrb[0].mxu0
      %v4102 = vadd.f32 %v3719, %v4101
      %v4103 = vpop.f32.mrb[0].mxu0
      %v4104 = vadd.f32 %v3715, %v4103
      %v4105 = vpop.f32.mrb[0].mxu0
      %v4106 = vadd.f32 %v3719, %v4105
      %4107 = vmatprep.mubr.bf16.mxu0 0
      %4108 = vmatmul.mubr.bf16.gmra.mrb[0].mxu0 %v3668
      %v4109 = vpop.f32.mrb[0].mxu0
      %v4110 = vadd.f32 %v3715, %v4109
      %v4111 = vpop.f32.mrb[0].mxu0
      %v4112 = vadd.f32 %v3719, %v4111
      %v4113 = vpop.f32.mrb[0].mxu0
      %v4114 = vadd.f32 %v3715, %v4113
      %v4115 = vpop.f32.mrb[0].mxu0
      %v4116 = vadd.f32 %v3719, %v4115
      %4117 = vmatprep.mubr.bf16.mxu0 0
      %4118 = vmatmul.mubr.bf16.gmra.mrb[0].mxu0 %v3669
      %v4119 = vpop.f32.mrb[0].mxu0
      %v4120 = vadd.f32 %v3715, %v4119
      %v4121 = vpop.f32.mrb[0].mxu0
      %v4122 = vadd.f32 %v3719, %v4121
      %v4123 = vpop.f32.mrb[0].mxu0
      %v4124 = vadd.f32 %v3715, %v4123
      %v4125 = vpop.f32.mrb[0].mxu0
      %v4126 = vadd.f32 %v3719, %v4125
      %4127 = vmatprep.mubr.bf16.mxu0 0
      %4128 = vmatmul.mubr.bf16.gmra.mrb[0].mxu0 %v3670
      %v4129 = vpop.f32.mrb[0].mxu0
      %v4130 = vadd.f32 %v3715, %v4129
      %v4131 = vpop.f32.mrb[0].mxu0
      %v4132 = vadd.f32 %v3719, %v4131
      %v4133 = vpop.f32.mrb[0].mxu0
      %v4134 = vadd.f32 %v3715, %v4133
      %v4135 = vpop.f32.mrb[0].mxu0
      %v4136 = vadd.f32 %v3719, %v4135
      %4137 = vmatprep.mubr.bf16.mxu0 0
      %4138 = vmatmul.mubr.bf16.gmra.mrb[0].mxu0 %v3671
      %v4139 = vpop.f32.mrb[0].mxu0
      %v4140 = vadd.f32 %v3715, %v4139
      %v4141 = vpop.f32.mrb[0].mxu0
      %v4142 = vadd.f32 %v3719, %v4141
      %v4143 = vpop.f32.mrb[0].mxu0
      %v4144 = vadd.f32 %v3715, %v4143
      %v4145 = vpop.f32.mrb[0].mxu0
      %v4146 = vadd.f32 %v3719, %v4145
      %4147 = vmatprep.mubr.bf16.mxu0 0
      %4148 = vmatmul.mubr.bf16.gmra.mrb[0].mxu0 %v3672
      %v4149 = vpop.f32.mrb[0].mxu0
      %v4150 = vadd.f32 %v3715, %v4149
      %v4151 = vpop.f32.mrb[0].mxu0
      %v4152 = vadd.f32 %v3719, %v4151
      %v4153 = vpop.f32.mrb[0].mxu0
      %v4154 = vadd.f32 %v3715, %v4153
      %v4155 = vpop.f32.mrb[0].mxu0
      %v4156 = vadd.f32 %v3719, %v4155
      %4157 = vmatprep.mubr.bf16.mxu0 0
      %4158 = vmatmul.mubr.bf16.gmra.mrb[0].mxu0 %v3673
      %v4159 = vpop.f32.mrb[0].mxu0
      %v4160 = vadd.f32 %v3715, %v4159
      %v4161 = vpop.f32.mrb[0].mxu0
      %v4162 = vadd.f32 %v3719, %v4161
      %v4163 = vpop.f32.mrb[0].mxu0
      %v4164 = vadd.f32 %v3715, %v4163
      %v4165 = vpop.f32.mrb[0].mxu0
      %v4166 = vadd.f32 %v3719, %v4165
      %4167 = vmatprep.mubr.bf16.mxu0 0
      %4168 = vmatmul.mubr.bf16.gmra.mrb[0].mxu0 %v3674
      %v4169 = vpop.f32.mrb[0].mxu0
      %v4170 = vadd.f32 %v3715, %v4169
      %v4171 = vpop.f32.mrb[0].mxu0
      %v4172 = vadd.f32 %v3719, %v4171
      %v4173 = vpop.f32.mrb[0].mxu0
      %v4174 = vadd.f32 %v3715, %v4173
      %v4175 = vpop.f32.mrb[0].mxu0
      %v4176 = vadd.f32 %v3719, %v4175
      %4177 = vmatprep.mubr.bf16.mxu0 0
      %4178 = vmatmul.mubr.bf16.gmra.mrb[0].mxu0 %v3675
      %v4179 = vpop.f32.mrb[0].mxu0
      %v4180 = vadd.f32 %v3715, %v4179
      %v4181 = vpop.f32.mrb[0].mxu0
      %v4182 = vadd.f32 %v3719, %v4181
      %v4183 = vpop.f32.mrb[0].mxu0
      %v4184 = vadd.f32 %v3715, %v4183
      %v4185 = vpop.f32.mrb[0].mxu0
      %v4186 = vadd.f32 %v3719, %v4185
      %4187 = vmatprep.mubr.bf16.mxu0 0
      %4188 = vmatmul.mubr.bf16.gmra.mrb[0].mxu0 %v3676
      %v4189 = vpop.f32.mrb[0].mxu0
      %v4190 = vadd.f32 %v3715, %v4189
      %v4191 = vpop.f32.mrb[0].mxu0
      %v4192 = vadd.f32 %v3719, %v4191
      %v4193 = vpop.f32.mrb[0].mxu0
      %v4194 = vadd.f32 %v3715, %v4193
      %v4195 = vpop.f32.mrb[0].mxu0
      %v4196 = vadd.f32 %v3719, %v4195
      %4197 = vmatprep.mubr.bf16.mxu0 0
      %4198 = vmatmul.mubr.bf16.gmra.mrb[0].mxu0 %v3677
      %v4199 = vpop.f32.mrb[0].mxu0
      %v4200 = vadd.f32 %v3715, %v4199
      %v4201 = vpop.f32.mrb[0].mxu0
      %v4202 = vadd.f32 %v3719, %v4201
      %v4203 = vpop.f32.mrb[0].mxu0
      %v4204 = vadd.f32 %v3715, %v4203
      %v4205 = vpop.f32.mrb[0].mxu0
      %v4206 = vadd.f32 %v3719, %v4205
      %4207 = vdwg.mxu0
      %4208 = vmatprep.subr.bf16.mxu0 0
      %4209 = vmatpush1.bf16.msra.mxu0 %v3809
      %4210 = vmatprep.subr.bf16.mxu0 0
      %4211 = vmatpush1.bf16.msra.mxu0 %v3812
      %4212 = vmatprep.subr.bf16.mxu0 0
      %4213 = vmatpush1.bf16.msra.mxu0 %v3815
      %4214 = vmatprep.subr.bf16.mxu0 0
      %4215 = vmatpush1.bf16.msra.mxu0 %v3818
      %4216 = vmatprep.subr.bf16.mxu0 0
      %4217 = vmatpush1.bf16.msra.mxu0 %v3821
      %4218 = vmatprep.subr.bf16.mxu0 0
      %4219 = vmatpush1.bf16.msra.mxu0 %v3824
      %4220 = vmatprep.subr.bf16.mxu0 0
      %4221 = vmatpush1.bf16.msra.mxu0 %v3827
      %4222 = vmatprep.subr.bf16.mxu0 0
      %4223 = vmatpush1.bf16.msra.mxu0 %v3830
      %4224 = vmatprep.subr.bf16.mxu0 0
      %4225 = vmatpush1.bf16.msra.mxu0 0
      %4226 = vmatprep.subr.bf16.mxu0 0
      %4227 = vmatpush1.bf16.msra.mxu0 0
      %4228 = vmatprep.subr.bf16.mxu0 0
      %4229 = vmatpush1.bf16.msra.mxu0 0
      %4230 = vmatprep.subr.bf16.mxu0 0
      %4231 = vmatpush1.bf16.msra.mxu0 0
      %4232 = vmatprep.subr.bf16.mxu0 0
      %4233 = vmatpush1.bf16.msra.mxu0 0
      %4234 = vmatprep.subr.bf16.mxu0 0
      %4235 = vmatpush1.bf16.msra.mxu0 0
      %4236 = vmatprep.subr.bf16.mxu0 0
      %4237 = vmatpush1.bf16.msra.mxu0 0
      %4238 = vmatprep.subr.bf16.mxu0 0
      %4239 = vmatpush1.bf16.msra.mxu0 0
      %4240 = vmatprep.mubr.bf16.mxu0 0
      %4241 = vmatmul.mubr.bf16.gmra.mrb[0].mxu0 %v3646
      %v4242 = vpop.f32.mrb[0].mxu0
      %v4243 = vadd.f32 %v3723, %v4242
      %v4244 = vpop.f32.mrb[0].mxu0
      %v4245 = vpop.f32.mrb[0].mxu0
      %v4246 = vadd.f32 %v3723, %v4245
      %v4247 = vpop.f32.mrb[0].mxu0
      %4248 = vmatprep.mubr.bf16.mxu0 0
      %4249 = vmatmul.mubr.bf16.gmra.mrb[0].mxu0 %v3647
      %v4250 = vpop.f32.mrb[0].mxu0
      %v4251 = vadd.f32 %v3723, %v4250
      %v4252 = vpop.f32.mrb[0].mxu0
      %v4253 = vpop.f32.mrb[0].mxu0
      %v4254 = vadd.f32 %v3723, %v4253
      %v4255 = vpop.f32.mrb[0].mxu0
      %4256 = vmatprep.mubr.bf16.mxu0 0
      %4257 = vmatmul.mubr.bf16.gmra.mrb[0].mxu0 %v3648
      %v4258 = vpop.f32.mrb[0].mxu0
      %v4259 = vadd.f32 %v3723, %v4258
      %v4260 = vpop.f32.mrb[0].mxu0
      %v4261 = vpop.f32.mrb[0].mxu0
      %v4262 = vadd.f32 %v3723, %v4261
      %v4263 = vpop.f32.mrb[0].mxu0
      %4264 = vmatprep.mubr.bf16.mxu0 0
      %4265 = vmatmul.mubr.bf16.gmra.mrb[0].mxu0 %v3649
      %v4266 = vpop.f32.mrb[0].mxu0
      %v4267 = vadd.f32 %v3723, %v4266
      %v4268 = vpop.f32.mrb[0].mxu0
      %v4269 = vpop.f32.mrb[0].mxu0
      %v4270 = vadd.f32 %v3723, %v4269
      %v4271 = vpop.f32.mrb[0].mxu0
      %4272 = vmatprep.mubr.bf16.mxu0 0
      %4273 = vmatmul.mubr.bf16.gmra.mrb[0].mxu0 %v3650
      %v4274 = vpop.f32.mrb[0].mxu0
      %v4275 = vadd.f32 %v3723, %v4274
      %v4276 = vpop.f32.mrb[0].mxu0
      %v4277 = vpop.f32.mrb[0].mxu0
      %v4278 = vadd.f32 %v3723, %v4277
      %v4279 = vpop.f32.mrb[0].mxu0
      %4280 = vmatprep.mubr.bf16.mxu0 0
      %4281 = vmatmul.mubr.bf16.gmra.mrb[0].mxu0 %v3651
      %v4282 = vpop.f32.mrb[0].mxu0
      %v4283 = vadd.f32 %v3723, %v4282
      %v4284 = vpop.f32.mrb[0].mxu0
      %v4285 = vpop.f32.mrb[0].mxu0
      %v4286 = vadd.f32 %v3723, %v4285
      %v4287 = vpop.f32.mrb[0].mxu0
      %4288 = vmatprep.mubr.bf16.mxu0 0
      %4289 = vmatmul.mubr.bf16.gmra.mrb[0].mxu0 %v3652
      %v4290 = vpop.f32.mrb[0].mxu0
      %v4291 = vadd.f32 %v3723, %v4290
      %v4292 = vpop.f32.mrb[0].mxu0
      %v4293 = vpop.f32.mrb[0].mxu0
      %v4294 = vadd.f32 %v3723, %v4293
      %v4295 = vpop.f32.mrb[0].mxu0
      %4296 = vmatprep.mubr.bf16.mxu0 0
      %4297 = vmatmul.mubr.bf16.gmra.mrb[0].mxu0 %v3653
      %v4298 = vpop.f32.mrb[0].mxu0
      %v4299 = vadd.f32 %v3723, %v4298
      %v4300 = vpop.f32.mrb[0].mxu0
      %v4301 = vpop.f32.mrb[0].mxu0
      %v4302 = vadd.f32 %v3723, %v4301
      %v4303 = vpop.f32.mrb[0].mxu0
      %4304 = vmatprep.mubr.bf16.mxu0 0
      %4305 = vmatmul.mubr.bf16.gmra.mrb[0].mxu0 %v3654
      %v4306 = vpop.f32.mrb[0].mxu0
      %v4307 = vadd.f32 %v3723, %v4306
      %v4308 = vpop.f32.mrb[0].mxu0
      %v4309 = vpop.f32.mrb[0].mxu0
      %v4310 = vadd.f32 %v3723, %v4309
      %v4311 = vpop.f32.mrb[0].mxu0
      %4312 = vmatprep.mubr.bf16.mxu0 0
      %4313 = vmatmul.mubr.bf16.gmra.mrb[0].mxu0 %v3655
      %v4314 = vpop.f32.mrb[0].mxu0
      %v4315 = vadd.f32 %v3723, %v4314
      %v4316 = vpop.f32.mrb[0].mxu0
      %v4317 = vpop.f32.mrb[0].mxu0
      %v4318 = vadd.f32 %v3723, %v4317
      %v4319 = vpop.f32.mrb[0].mxu0
      %4320 = vmatprep.mubr.bf16.mxu0 0
      %4321 = vmatmul.mubr.bf16.gmra.mrb[0].mxu0 %v3656
      %v4322 = vpop.f32.mrb[0].mxu0
      %v4323 = vadd.f32 %v3723, %v4322
      %v4324 = vpop.f32.mrb[0].mxu0
      %v4325 = vpop.f32.mrb[0].mxu0
      %v4326 = vadd.f32 %v3723, %v4325
      %v4327 = vpop.f32.mrb[0].mxu0
      %4328 = vmatprep.mubr.bf16.mxu0 0
      %4329 = vmatmul.mubr.bf16.gmra.mrb[0].mxu0 %v3657
      %v4330 = vpop.f32.mrb[0].mxu0
      %v4331 = vadd.f32 %v3723, %v4330
      %v4332 = vpop.f32.mrb[0].mxu0
      %v4333 = vpop.f32.mrb[0].mxu0
      %v4334 = vadd.f32 %v3723, %v4333
      %v4335 = vpop.f32.mrb[0].mxu0
      %4336 = vmatprep.mubr.bf16.mxu0 0
      %4337 = vmatmul.mubr.bf16.gmra.mrb[0].mxu0 %v3658
      %v4338 = vpop.f32.mrb[0].mxu0
      %v4339 = vadd.f32 %v3723, %v4338
      %v4340 = vpop.f32.mrb[0].mxu0
      %v4341 = vpop.f32.mrb[0].mxu0
      %v4342 = vadd.f32 %v3723, %v4341
      %v4343 = vpop.f32.mrb[0].mxu0
      %4344 = vmatprep.mubr.bf16.mxu0 0
      %4345 = vmatmul.mubr.bf16.gmra.mrb[0].mxu0 %v3659
      %v4346 = vpop.f32.mrb[0].mxu0
      %v4347 = vadd.f32 %v3723, %v4346
      %v4348 = vpop.f32.mrb[0].mxu0
      %v4349 = vpop.f32.mrb[0].mxu0
      %v4350 = vadd.f32 %v3723, %v4349
      %v4351 = vpop.f32.mrb[0].mxu0
      %4352 = vmatprep.mubr.bf16.mxu0 0
      %4353 = vmatmul.mubr.bf16.gmra.mrb[0].mxu0 %v3660
      %v4354 = vpop.f32.mrb[0].mxu0
      %v4355 = vadd.f32 %v3723, %v4354
      %v4356 = vpop.f32.mrb[0].mxu0
      %v4357 = vpop.f32.mrb[0].mxu0
      %v4358 = vadd.f32 %v3723, %v4357
      %v4359 = vpop.f32.mrb[0].mxu0
      %4360 = vmatprep.mubr.bf16.mxu0 0
      %4361 = vmatmul.mubr.bf16.gmra.mrb[0].mxu0 %v3661
      %v4362 = vpop.f32.mrb[0].mxu0
      %v4363 = vadd.f32 %v3723, %v4362
      %v4364 = vpop.f32.mrb[0].mxu0
      %v4365 = vpop.f32.mrb[0].mxu0
      %v4366 = vadd.f32 %v3723, %v4365
      %v4367 = vpop.f32.mrb[0].mxu0
      %4368 = vmatprep.mubr.bf16.mxu0 0
      %4369 = vmatmul.mubr.bf16.gmra.mrb[0].mxu0 %v3662
      %v4370 = vpop.f32.mrb[0].mxu0
      %v4371 = vadd.f32 %v3723, %v4370
      %v4372 = vpop.f32.mrb[0].mxu0
      %v4373 = vpop.f32.mrb[0].mxu0
      %v4374 = vadd.f32 %v3723, %v4373
      %v4375 = vpop.f32.mrb[0].mxu0
      %4376 = vmatprep.mubr.bf16.mxu0 0
      %4377 = vmatmul.mubr.bf16.gmra.mrb[0].mxu0 %v3663
      %v4378 = vpop.f32.mrb[0].mxu0
      %v4379 = vadd.f32 %v3723, %v4378
      %v4380 = vpop.f32.mrb[0].mxu0
      %v4381 = vpop.f32.mrb[0].mxu0
      %v4382 = vadd.f32 %v3723, %v4381
      %v4383 = vpop.f32.mrb[0].mxu0
      %4384 = vmatprep.mubr.bf16.mxu0 0
      %4385 = vmatmul.mubr.bf16.gmra.mrb[0].mxu0 %v3664
      %v4386 = vpop.f32.mrb[0].mxu0
      %v4387 = vadd.f32 %v3723, %v4386
      %v4388 = vpop.f32.mrb[0].mxu0
      %v4389 = vpop.f32.mrb[0].mxu0
      %v4390 = vadd.f32 %v3723, %v4389
      %v4391 = vpop.f32.mrb[0].mxu0
      %4392 = vmatprep.mubr.bf16.mxu0 0
      %4393 = vmatmul.mubr.bf16.gmra.mrb[0].mxu0 %v3665
      %v4394 = vpop.f32.mrb[0].mxu0
      %v4395 = vadd.f32 %v3723, %v4394
      %v4396 = vpop.f32.mrb[0].mxu0
      %v4397 = vpop.f32.mrb[0].mxu0
      %v4398 = vadd.f32 %v3723, %v4397
      %v4399 = vpop.f32.mrb[0].mxu0
      %4400 = vmatprep.mubr.bf16.mxu0 0
      %4401 = vmatmul.mubr.bf16.gmra.mrb[0].mxu0 %v3666
      %v4402 = vpop.f32.mrb[0].mxu0
      %v4403 = vadd.f32 %v3723, %v4402
      %v4404 = vpop.f32.mrb[0].mxu0
      %v4405 = vpop.f32.mrb[0].mxu0
      %v4406 = vadd.f32 %v3723, %v4405
      %v4407 = vpop.f32.mrb[0].mxu0
      %4408 = vmatprep.mubr.bf16.mxu0 0
      %4409 = vmatmul.mubr.bf16.gmra.mrb[0].mxu0 %v3667
      %v4410 = vpop.f32.mrb[0].mxu0
      %v4411 = vadd.f32 %v3723, %v4410
      %v4412 = vpop.f32.mrb[0].mxu0
      %v4413 = vpop.f32.mrb[0].mxu0
      %v4414 = vadd.f32 %v3723, %v4413
      %v4415 = vpop.f32.mrb[0].mxu0
      %4416 = vmatprep.mubr.bf16.mxu0 0
      %4417 = vmatmul.mubr.bf16.gmra.mrb[0].mxu0 %v3668
      %v4418 = vpop.f32.mrb[0].mxu0
      %v4419 = vadd.f32 %v3723, %v4418
      %v4420 = vpop.f32.mrb[0].mxu0
      %v4421 = vpop.f32.mrb[0].mxu0
      %v4422 = vadd.f32 %v3723, %v4421
      %v4423 = vpop.f32.mrb[0].mxu0
      %4424 = vmatprep.mubr.bf16.mxu0 0
      %4425 = vmatmul.mubr.bf16.gmra.mrb[0].mxu0 %v3669
      %v4426 = vpop.f32.mrb[0].mxu0
      %v4427 = vadd.f32 %v3723, %v4426
      %v4428 = vpop.f32.mrb[0].mxu0
      %v4429 = vpop.f32.mrb[0].mxu0
      %v4430 = vadd.f32 %v3723, %v4429
      %v4431 = vpop.f32.mrb[0].mxu0
      %4432 = vmatprep.mubr.bf16.mxu0 0
      %4433 = vmatmul.mubr.bf16.gmra.mrb[0].mxu0 %v3670
      %v4434 = vpop.f32.mrb[0].mxu0
      %v4435 = vadd.f32 %v3723, %v4434
      %v4436 = vpop.f32.mrb[0].mxu0
      %v4437 = vpop.f32.mrb[0].mxu0
      %v4438 = vadd.f32 %v3723, %v4437
      %v4439 = vpop.f32.mrb[0].mxu0
      %4440 = vmatprep.mubr.bf16.mxu0 0
      %4441 = vmatmul.mubr.bf16.gmra.mrb[0].mxu0 %v3671
      %v4442 = vpop.f32.mrb[0].mxu0
      %v4443 = vadd.f32 %v3723, %v4442
      %v4444 = vpop.f32.mrb[0].mxu0
      %v4445 = vpop.f32.mrb[0].mxu0
      %v4446 = vadd.f32 %v3723, %v4445
      %v4447 = vpop.f32.mrb[0].mxu0
      %4448 = vmatprep.mubr.bf16.mxu0 0
      %4449 = vmatmul.mubr.bf16.gmra.mrb[0].mxu0 %v3672
      %v4450 = vpop.f32.mrb[0].mxu0
      %v4451 = vadd.f32 %v3723, %v4450
      %v4452 = vpop.f32.mrb[0].mxu0
      %v4453 = vpop.f32.mrb[0].mxu0
      %v4454 = vadd.f32 %v3723, %v4453
      %v4455 = vpop.f32.mrb[0].mxu0
      %4456 = vmatprep.mubr.bf16.mxu0 0
      %4457 = vmatmul.mubr.bf16.gmra.mrb[0].mxu0 %v3673
      %v4458 = vpop.f32.mrb[0].mxu0
      %v4459 = vadd.f32 %v3723, %v4458
      %v4460 = vpop.f32.mrb[0].mxu0
      %v4461 = vpop.f32.mrb[0].mxu0
      %v4462 = vadd.f32 %v3723, %v4461
      %v4463 = vpop.f32.mrb[0].mxu0
      %4464 = vmatprep.mubr.bf16.mxu0 0
      %4465 = vmatmul.mubr.bf16.gmra.mrb[0].mxu0 %v3674
      %v4466 = vpop.f32.mrb[0].mxu0
      %v4467 = vadd.f32 %v3723, %v4466
      %v4468 = vpop.f32.mrb[0].mxu0
      %v4469 = vpop.f32.mrb[0].mxu0
      %v4470 = vadd.f32 %v3723, %v4469
      %v4471 = vpop.f32.mrb[0].mxu0
      %4472 = vmatprep.mubr.bf16.mxu0 0
      %4473 = vmatmul.mubr.bf16.gmra.mrb[0].mxu0 %v3675
      %v4474 = vpop.f32.mrb[0].mxu0
      %v4475 = vadd.f32 %v3723, %v4474
      %v4476 = vpop.f32.mrb[0].mxu0
      %v4477 = vpop.f32.mrb[0].mxu0
      %v4478 = vadd.f32 %v3723, %v4477
      %v4479 = vpop.f32.mrb[0].mxu0
      %4480 = vmatprep.mubr.bf16.mxu0 0
      %4481 = vmatmul.mubr.bf16.gmra.mrb[0].mxu0 %v3676
      %v4482 = vpop.f32.mrb[0].mxu0
      %v4483 = vadd.f32 %v3723, %v4482
      %v4484 = vpop.f32.mrb[0].mxu0
      %v4485 = vpop.f32.mrb[0].mxu0
      %v4486 = vadd.f32 %v3723, %v4485
      %v4487 = vpop.f32.mrb[0].mxu0
      %4488 = vmatprep.mubr.bf16.mxu0 0
      %4489 = vmatmul.mubr.bf16.gmra.mrb[0].mxu0 %v3677
      %v4490 = vpop.f32.mrb[0].mxu0
      %v4491 = vadd.f32 %v3723, %v4490
      %v4492 = vpop.f32.mrb[0].mxu0
      %v4493 = vpop.f32.mrb[0].mxu0
      %v4494 = vadd.f32 %v3723, %v4493
      %v4495 = vpop.f32.mrb[0].mxu0
      %4496 = vdwg.mxu0
      %v4497 = vpack.c.bf16 %v3894, %v3890
      %v4498 = vpack.c.bf16 %v3896, %v3892
      %v4499 = vpack.c.bf16 %v4246, %v4243
      %v4500 = vpack.c.bf16 %v3904, %v3900
      %v4501 = vpack.c.bf16 %v3906, %v3902
      %v4502 = vpack.c.bf16 %v4254, %v4251
      %v4503 = vpack.c.bf16 %v3914, %v3910
      %v4504 = vpack.c.bf16 %v3916, %v3912
      %v4505 = vpack.c.bf16 %v4262, %v4259
      %v4506 = vpack.c.bf16 %v3924, %v3920
      %v4507 = vpack.c.bf16 %v3926, %v3922
      %v4508 = vpack.c.bf16 %v4270, %v4267
      %v4509 = vpack.c.bf16 %v3934, %v3930
      %v4510 = vpack.c.bf16 %v3936, %v3932
      %v4511 = vpack.c.bf16 %v4278, %v4275
      %v4512 = vpack.c.bf16 %v3944, %v3940
      %v4513 = vpack.c.bf16 %v3946, %v3942
      %v4514 = vpack.c.bf16 %v4286, %v4283
      %v4515 = vpack.c.bf16 %v3954, %v3950
      %v4516 = vpack.c.bf16 %v3956, %v3952
      %v4517 = vpack.c.bf16 %v4294, %v4291
      %v4518 = vpack.c.bf16 %v3964, %v3960
      %v4519 = vpack.c.bf16 %v3966, %v3962
      %v4520 = vpack.c.bf16 %v4302, %v4299
      %v4521 = vpack.c.bf16 %v3974, %v3970
      %v4522 = vpack.c.bf16 %v3976, %v3972
      %v4523 = vpack.c.bf16 %v4310, %v4307
      %v4524 = vpack.c.bf16 %v3984, %v3980
      %v4525 = vpack.c.bf16 %v3986, %v3982
      %v4526 = vpack.c.bf16 %v4318, %v4315
      %v4527 = vpack.c.bf16 %v3994, %v3990
      %v4528 = vpack.c.bf16 %v3996, %v3992
      %v4529 = vpack.c.bf16 %v4326, %v4323
      %v4530 = vpack.c.bf16 %v4004, %v4000
      %v4531 = vpack.c.bf16 %v4006, %v4002
      %v4532 = vpack.c.bf16 %v4334, %v4331
      %v4533 = vpack.c.bf16 %v4014, %v4010
      %v4534 = vpack.c.bf16 %v4016, %v4012
      %v4535 = vpack.c.bf16 %v4342, %v4339
      %v4536 = vpack.c.bf16 %v4024, %v4020
      %v4537 = vpack.c.bf16 %v4026, %v4022
      %v4538 = vpack.c.bf16 %v4350, %v4347
      %v4539 = vpack.c.bf16 %v4034, %v4030
      %v4540 = vpack.c.bf16 %v4036, %v4032
      %v4541 = vpack.c.bf16 %v4358, %v4355
      %v4542 = vpack.c.bf16 %v4044, %v4040
      %v4543 = vpack.c.bf16 %v4046, %v4042
      %v4544 = vpack.c.bf16 %v4366, %v4363
      %v4545 = vpack.c.bf16 %v4054, %v4050
      %v4546 = vpack.c.bf16 %v4056, %v4052
      %v4547 = vpack.c.bf16 %v4374, %v4371
      %v4548 = vpack.c.bf16 %v4064, %v4060
      %v4549 = vpack.c.bf16 %v4066, %v4062
      %v4550 = vpack.c.bf16 %v4382, %v4379
      %v4551 = vpack.c.bf16 %v4074, %v4070
      %v4552 = vpack.c.bf16 %v4076, %v4072
      %v4553 = vpack.c.bf16 %v4390, %v4387
      %v4554 = vpack.c.bf16 %v4084, %v4080
      %v4555 = vpack.c.bf16 %v4086, %v4082
      %v4556 = vpack.c.bf16 %v4398, %v4395
      %v4557 = vpack.c.bf16 %v4094, %v4090
      %v4558 = vpack.c.bf16 %v4096, %v4092
      %v4559 = vpack.c.bf16 %v4406, %v4403
      %v4560 = vpack.c.bf16 %v4104, %v4100
      %v4561 = vpack.c.bf16 %v4106, %v4102
      %v4562 = vpack.c.bf16 %v4414, %v4411
      %v4563 = vpack.c.bf16 %v4114, %v4110
      %v4564 = vpack.c.bf16 %v4116, %v4112
      %v4565 = vpack.c.bf16 %v4422, %v4419
      %v4566 = vpack.c.bf16 %v4124, %v4120
      %v4567 = vpack.c.bf16 %v4126, %v4122
      %v4568 = vpack.c.bf16 %v4430, %v4427
      %v4569 = vpack.c.bf16 %v4134, %v4130
      %v4570 = vpack.c.bf16 %v4136, %v4132
      %v4571 = vpack.c.bf16 %v4438, %v4435
      %v4572 = vpack.c.bf16 %v4144, %v4140
      %v4573 = vpack.c.bf16 %v4146, %v4142
      %v4574 = vpack.c.bf16 %v4446, %v4443
      %v4575 = vpack.c.bf16 %v4154, %v4150
      %v4576 = vpack.c.bf16 %v4156, %v4152
      %v4577 = vpack.c.bf16 %v4454, %v4451
      %v4578 = vpack.c.bf16 %v4164, %v4160
      %v4579 = vpack.c.bf16 %v4166, %v4162
      %v4580 = vpack.c.bf16 %v4462, %v4459
      %v4581 = vpack.c.bf16 %v4174, %v4170
      %v4582 = vpack.c.bf16 %v4176, %v4172
      %v4583 = vpack.c.bf16 %v4470, %v4467
      %v4584 = vpack.c.bf16 %v4184, %v4180
      %v4585 = vpack.c.bf16 %v4186, %v4182
      %v4586 = vpack.c.bf16 %v4478, %v4475
      %v4587 = vpack.c.bf16 %v4194, %v4190
      %v4588 = vpack.c.bf16 %v4196, %v4192
      %v4589 = vpack.c.bf16 %v4486, %v4483
      %v4590 = vpack.c.bf16 %v4204, %v4200
      %v4591 = vpack.c.bf16 %v4206, %v4202
      %v4592 = vpack.c.bf16 %v4494, %v4491
      %v4593 = vmul.bf16 %v4497, 1056980736
      %v4594 = vmul.bf16 %v4498, 1056980736
      %v4595 = vmul.bf16 %v4499, 1056980736
      %v4596 = vmul.bf16 %v4500, 1056980736
      %v4597 = vmul.bf16 %v4501, 1056980736
      %v4598 = vmul.bf16 %v4502, 1056980736
      %v4599 = vmul.bf16 %v4503, 1056980736
      %v4600 = vmul.bf16 %v4504, 1056980736
      %v4601 = vmul.bf16 %v4505, 1056980736
      %v4602 = vmul.bf16 %v4506, 1056980736
      %v4603 = vmul.bf16 %v4507, 1056980736
      %v4604 = vmul.bf16 %v4508, 1056980736
      %v4605 = vmul.bf16 %v4509, 1056980736
      %v4606 = vmul.bf16 %v4510, 1056980736
      %v4607 = vmul.bf16 %v4511, 1056980736
      %v4608 = vmul.bf16 %v4512, 1056980736
      %v4609 = vmul.bf16 %v4513, 1056980736
      %v4610 = vmul.bf16 %v4514, 1056980736
      %v4611 = vmul.bf16 %v4515, 1056980736
      %v4612 = vmul.bf16 %v4516, 1056980736
      %v4613 = vmul.bf16 %v4517, 1056980736
      %v4614 = vmul.bf16 %v4518, 1056980736
      %v4615 = vmul.bf16 %v4519, 1056980736
      %v4616 = vmul.bf16 %v4520, 1056980736
      %v4617 = vmul.bf16 %v4521, 1056980736
      %v4618 = vmul.bf16 %v4522, 1056980736
      %v4619 = vmul.bf16 %v4523, 1056980736
      %v4620 = vmul.bf16 %v4524, 1056980736
      %v4621 = vmul.bf16 %v4525, 1056980736
      %v4622 = vmul.bf16 %v4526, 1056980736
      %v4623 = vmul.bf16 %v4527, 1056980736
      %v4624 = vmul.bf16 %v4528, 1056980736
      %v4625 = vmul.bf16 %v4529, 1056980736
      %v4626 = vmul.bf16 %v4530, 1056980736
      %v4627 = vmul.bf16 %v4531, 1056980736
      %v4628 = vmul.bf16 %v4532, 1056980736
      %v4629 = vmul.bf16 %v4533, 1056980736
      %v4630 = vmul.bf16 %v4534, 1056980736
      %v4631 = vmul.bf16 %v4535, 1056980736
      %v4632 = vmul.bf16 %v4536, 1056980736
      %v4633 = vmul.bf16 %v4537, 1056980736
      %v4634 = vmul.bf16 %v4538, 1056980736
      %v4635 = vmul.bf16 %v4539, 1056980736
      %v4636 = vmul.bf16 %v4540, 1056980736
      %v4637 = vmul.bf16 %v4541, 1056980736
      %v4638 = vmul.bf16 %v4542, 1056980736
      %v4639 = vmul.bf16 %v4543, 1056980736
      %v4640 = vmul.bf16 %v4544, 1056980736
      %v4641 = vmul.bf16 %v4545, 1056980736
      %v4642 = vmul.bf16 %v4546, 1056980736
      %v4643 = vmul.bf16 %v4547, 1056980736
      %v4644 = vmul.bf16 %v4548, 1056980736
      %v4645 = vmul.bf16 %v4549, 1056980736
      %v4646 = vmul.bf16 %v4550, 1056980736
      %v4647 = vmul.bf16 %v4551, 1056980736
      %v4648 = vmul.bf16 %v4552, 1056980736
      %v4649 = vmul.bf16 %v4553, 1056980736
      %v4650 = vmul.bf16 %v4554, 1056980736
      %v4651 = vmul.bf16 %v4555, 1056980736
      %v4652 = vmul.bf16 %v4556, 1056980736
      %v4653 = vmul.bf16 %v4557, 1056980736
      %v4654 = vmul.bf16 %v4558, 1056980736
      %v4655 = vmul.bf16 %v4559, 1056980736
      %v4656 = vmul.bf16 %v4560, 1056980736
      %v4657 = vmul.bf16 %v4561, 1056980736
      %v4658 = vmul.bf16 %v4562, 1056980736
      %v4659 = vmul.bf16 %v4563, 1056980736
      %v4660 = vmul.bf16 %v4564, 1056980736
      %v4661 = vmul.bf16 %v4565, 1056980736
      %v4662 = vmul.bf16 %v4566, 1056980736
      %v4663 = vmul.bf16 %v4567, 1056980736
      %v4664 = vmul.bf16 %v4568, 1056980736
      %v4665 = vmul.bf16 %v4569, 1056980736
      %v4666 = vmul.bf16 %v4570, 1056980736
      %v4667 = vmul.bf16 %v4571, 1056980736
      %v4668 = vmul.bf16 %v4572, 1056980736
      %v4669 = vmul.bf16 %v4573, 1056980736
      %v4670 = vmul.bf16 %v4574, 1056980736
      %v4671 = vmul.bf16 %v4575, 1056980736
      %v4672 = vmul.bf16 %v4576, 1056980736
      %v4673 = vmul.bf16 %v4577, 1056980736
      %v4674 = vmul.bf16 %v4578, 1056980736
      %v4675 = vmul.bf16 %v4579, 1056980736
      %v4676 = vmul.bf16 %v4580, 1056980736
      %v4677 = vmul.bf16 %v4581, 1056980736
      %v4678 = vmul.bf16 %v4582, 1056980736
      %v4679 = vmul.bf16 %v4583, 1056980736
      %v4680 = vmul.bf16 %v4584, 1056980736
      %v4681 = vmul.bf16 %v4585, 1056980736
      %v4682 = vmul.bf16 %v4586, 1056980736
      %v4683 = vmul.bf16 %v4587, 1056980736
      %v4684 = vmul.bf16 %v4588, 1056980736
      %v4685 = vmul.bf16 %v4589, 1056980736
      %v4686 = vmul.bf16 %v4590, 1056980736
      %v4687 = vmul.bf16 %v4591, 1056980736
      %v4688 = vmul.bf16 %v4592, 1056980736
      %v4689 = vmul.bf16 %v4497, 1060454197
      %v4690 = vmul.bf16 %v4498, 1060454197
      %v4691 = vmul.bf16 %v4499, 1060454197
      %v4692 = vmul.bf16 %v4500, 1060454197
      %v4693 = vmul.bf16 %v4501, 1060454197
      %v4694 = vmul.bf16 %v4502, 1060454197
      %v4695 = vmul.bf16 %v4503, 1060454197
      %v4696 = vmul.bf16 %v4504, 1060454197
      %v4697 = vmul.bf16 %v4505, 1060454197
      %v4698 = vmul.bf16 %v4506, 1060454197
      %v4699 = vmul.bf16 %v4507, 1060454197
      %v4700 = vmul.bf16 %v4508, 1060454197
      %v4701 = vmul.bf16 %v4509, 1060454197
      %v4702 = vmul.bf16 %v4510, 1060454197
      %v4703 = vmul.bf16 %v4511, 1060454197
      %v4704 = vmul.bf16 %v4512, 1060454197
      %v4705 = vmul.bf16 %v4513, 1060454197
      %v4706 = vmul.bf16 %v4514, 1060454197
      %v4707 = vmul.bf16 %v4515, 1060454197
      %v4708 = vmul.bf16 %v4516, 1060454197
      %v4709 = vmul.bf16 %v4517, 1060454197
      %v4710 = vmul.bf16 %v4518, 1060454197
      %v4711 = vmul.bf16 %v4519, 1060454197
      %v4712 = vmul.bf16 %v4520, 1060454197
      %v4713 = vmul.bf16 %v4521, 1060454197
      %v4714 = vmul.bf16 %v4522, 1060454197
      %v4715 = vmul.bf16 %v4523, 1060454197
      %v4716 = vmul.bf16 %v4524, 1060454197
      %v4717 = vmul.bf16 %v4525, 1060454197
      %v4718 = vmul.bf16 %v4526, 1060454197
      %v4719 = vmul.bf16 %v4527, 1060454197
      %v4720 = vmul.bf16 %v4528, 1060454197
      %v4721 = vmul.bf16 %v4529, 1060454197
      %v4722 = vmul.bf16 %v4530, 1060454197
      %v4723 = vmul.bf16 %v4531, 1060454197
      %v4724 = vmul.bf16 %v4532, 1060454197
      %v4725 = vmul.bf16 %v4533, 1060454197
      %v4726 = vmul.bf16 %v4534, 1060454197
      %v4727 = vmul.bf16 %v4535, 1060454197
      %v4728 = vmul.bf16 %v4536, 1060454197
      %v4729 = vmul.bf16 %v4537, 1060454197
      %v4730 = vmul.bf16 %v4538, 1060454197
      %v4731 = vmul.bf16 %v4539, 1060454197
      %v4732 = vmul.bf16 %v4540, 1060454197
      %v4733 = vmul.bf16 %v4541, 1060454197
      %v4734 = vmul.bf16 %v4542, 1060454197
      %v4735 = vmul.bf16 %v4543, 1060454197
      %v4736 = vmul.bf16 %v4544, 1060454197
      %v4737 = vmul.bf16 %v4545, 1060454197
      %v4738 = vmul.bf16 %v4546, 1060454197
      %v4739 = vmul.bf16 %v4547, 1060454197
      %v4740 = vmul.bf16 %v4548, 1060454197
      %v4741 = vmul.bf16 %v4549, 1060454197
      %v4742 = vmul.bf16 %v4550, 1060454197
      %v4743 = vmul.bf16 %v4551, 1060454197
      %v4744 = vmul.bf16 %v4552, 1060454197
      %v4745 = vmul.bf16 %v4553, 1060454197
      %v4746 = vmul.bf16 %v4554, 1060454197
      %v4747 = vmul.bf16 %v4555, 1060454197
      %v4748 = vmul.bf16 %v4556, 1060454197
      %v4749 = vmul.bf16 %v4557, 1060454197
      %v4750 = vmul.bf16 %v4558, 1060454197
      %v4751 = vmul.bf16 %v4559, 1060454197
      %v4752 = vmul.bf16 %v4560, 1060454197
      %v4753 = vmul.bf16 %v4561, 1060454197
      %v4754 = vmul.bf16 %v4562, 1060454197
      %v4755 = vmul.bf16 %v4563, 1060454197
      %v4756 = vmul.bf16 %v4564, 1060454197
      %v4757 = vmul.bf16 %v4565, 1060454197
      %v4758 = vmul.bf16 %v4566, 1060454197
      %v4759 = vmul.bf16 %v4567, 1060454197
      %v4760 = vmul.bf16 %v4568, 1060454197
      %v4761 = vmul.bf16 %v4569, 1060454197
      %v4762 = vmul.bf16 %v4570, 1060454197
      %v4763 = vmul.bf16 %v4571, 1060454197
      %v4764 = vmul.bf16 %v4572, 1060454197
      %v4765 = vmul.bf16 %v4573, 1060454197
      %v4766 = vmul.bf16 %v4574, 1060454197
      %v4767 = vmul.bf16 %v4575, 1060454197
      %v4768 = vmul.bf16 %v4576, 1060454197
      %v4769 = vmul.bf16 %v4577, 1060454197
      %v4770 = vmul.bf16 %v4578, 1060454197
      %v4771 = vmul.bf16 %v4579, 1060454197
      %v4772 = vmul.bf16 %v4580, 1060454197
      %v4773 = vmul.bf16 %v4581, 1060454197
      %v4774 = vmul.bf16 %v4582, 1060454197
      %v4775 = vmul.bf16 %v4583, 1060454197
      %v4776 = vmul.bf16 %v4584, 1060454197
      %v4777 = vmul.bf16 %v4585, 1060454197
      %v4778 = vmul.bf16 %v4586, 1060454197
      %v4779 = vmul.bf16 %v4587, 1060454197
      %v4780 = vmul.bf16 %v4588, 1060454197
      %v4781 = vmul.bf16 %v4589, 1060454197
      %v4782 = vmul.bf16 %v4590, 1060454197
      %v4783 = vmul.bf16 %v4591, 1060454197
      %v4784 = vmul.bf16 %v4592, 1060454197
      %vm4785 = vcmp.ge.bf16.partialorder %v4689, 0
      %vm4786 = vcmp.ge.bf16.partialorder %v4690, 0
      %vm4787 = vcmp.ge.bf16.partialorder %v4691, 0
      %vm4788 = vcmp.ge.bf16.partialorder %v4692, 0
      %vm4789 = vcmp.ge.bf16.partialorder %v4693, 0
      %vm4790 = vcmp.ge.bf16.partialorder %v4694, 0
      %vm4791 = vcmp.ge.bf16.partialorder %v4695, 0
      %vm4792 = vcmp.ge.bf16.partialorder %v4696, 0
      %vm4793 = vcmp.ge.bf16.partialorder %v4697, 0
      %vm4794 = vcmp.ge.bf16.partialorder %v4698, 0
      %vm4795 = vcmp.ge.bf16.partialorder %v4699, 0
      %vm4796 = vcmp.ge.bf16.partialorder %v4700, 0
      %vm4797 = vcmp.ge.bf16.partialorder %v4701, 0
      %vm4798 = vcmp.ge.bf16.partialorder %v4702, 0
      %vm4799 = vcmp.ge.bf16.partialorder %v4703, 0
      %vm4800 = vcmp.ge.bf16.partialorder %v4704, 0
      %vm4801 = vcmp.ge.bf16.partialorder %v4705, 0
      %vm4802 = vcmp.ge.bf16.partialorder %v4706, 0
      %vm4803 = vcmp.ge.bf16.partialorder %v4707, 0
      %vm4804 = vcmp.ge.bf16.partialorder %v4708, 0
      %vm4805 = vcmp.ge.bf16.partialorder %v4709, 0
      %vm4806 = vcmp.ge.bf16.partialorder %v4710, 0
      %vm4807 = vcmp.ge.bf16.partialorder %v4711, 0
      %vm4808 = vcmp.ge.bf16.partialorder %v4712, 0
      %vm4809 = vcmp.ge.bf16.partialorder %v4713, 0
      %vm4810 = vcmp.ge.bf16.partialorder %v4714, 0
      %vm4811 = vcmp.ge.bf16.partialorder %v4715, 0
      %vm4812 = vcmp.ge.bf16.partialorder %v4716, 0
      %vm4813 = vcmp.ge.bf16.partialorder %v4717, 0
      %vm4814 = vcmp.ge.bf16.partialorder %v4718, 0
      %vm4815 = vcmp.ge.bf16.partialorder %v4719, 0
      %vm4816 = vcmp.ge.bf16.partialorder %v4720, 0
      %vm4817 = vcmp.ge.bf16.partialorder %v4721, 0
      %vm4818 = vcmp.ge.bf16.partialorder %v4722, 0
      %vm4819 = vcmp.ge.bf16.partialorder %v4723, 0
      %vm4820 = vcmp.ge.bf16.partialorder %v4724, 0
      %vm4821 = vcmp.ge.bf16.partialorder %v4725, 0
      %vm4822 = vcmp.ge.bf16.partialorder %v4726, 0
      %vm4823 = vcmp.ge.bf16.partialorder %v4727, 0
      %vm4824 = vcmp.ge.bf16.partialorder %v4728, 0
      %vm4825 = vcmp.ge.bf16.partialorder %v4729, 0
      %vm4826 = vcmp.ge.bf16.partialorder %v4730, 0
      %vm4827 = vcmp.ge.bf16.partialorder %v4731, 0
      %vm4828 = vcmp.ge.bf16.partialorder %v4732, 0
      %vm4829 = vcmp.ge.bf16.partialorder %v4733, 0
      %vm4830 = vcmp.ge.bf16.partialorder %v4734, 0
      %vm4831 = vcmp.ge.bf16.partialorder %v4735, 0
      %vm4832 = vcmp.ge.bf16.partialorder %v4736, 0
      %vm4833 = vcmp.ge.bf16.partialorder %v4737, 0
      %vm4834 = vcmp.ge.bf16.partialorder %v4738, 0
      %vm4835 = vcmp.ge.bf16.partialorder %v4739, 0
      %vm4836 = vcmp.ge.bf16.partialorder %v4740, 0
      %vm4837 = vcmp.ge.bf16.partialorder %v4741, 0
      %vm4838 = vcmp.ge.bf16.partialorder %v4742, 0
      %vm4839 = vcmp.ge.bf16.partialorder %v4743, 0
      %vm4840 = vcmp.ge.bf16.partialorder %v4744, 0
      %vm4841 = vcmp.ge.bf16.partialorder %v4745, 0
      %vm4842 = vcmp.ge.bf16.partialorder %v4746, 0
      %vm4843 = vcmp.ge.bf16.partialorder %v4747, 0
      %vm4844 = vcmp.ge.bf16.partialorder %v4748, 0
      %vm4845 = vcmp.ge.bf16.partialorder %v4749, 0
      %vm4846 = vcmp.ge.bf16.partialorder %v4750, 0
      %vm4847 = vcmp.ge.bf16.partialorder %v4751, 0
      %vm4848 = vcmp.ge.bf16.partialorder %v4752, 0
      %vm4849 = vcmp.ge.bf16.partialorder %v4753, 0
      %vm4850 = vcmp.ge.bf16.partialorder %v4754, 0
      %vm4851 = vcmp.ge.bf16.partialorder %v4755, 0
      %vm4852 = vcmp.ge.bf16.partialorder %v4756, 0
      %vm4853 = vcmp.ge.bf16.partialorder %v4757, 0
      %vm4854 = vcmp.ge.bf16.partialorder %v4758, 0
      %vm4855 = vcmp.ge.bf16.partialorder %v4759, 0
      %vm4856 = vcmp.ge.bf16.partialorder %v4760, 0
      %vm4857 = vcmp.ge.bf16.partialorder %v4761, 0
      %vm4858 = vcmp.ge.bf16.partialorder %v4762, 0
      %vm4859 = vcmp.ge.bf16.partialorder %v4763, 0
      %vm4860 = vcmp.ge.bf16.partialorder %v4764, 0
      %vm4861 = vcmp.ge.bf16.partialorder %v4765, 0
      %vm4862 = vcmp.ge.bf16.partialorder %v4766, 0
      %vm4863 = vcmp.ge.bf16.partialorder %v4767, 0
      %vm4864 = vcmp.ge.bf16.partialorder %v4768, 0
      %vm4865 = vcmp.ge.bf16.partialorder %v4769, 0
      %vm4866 = vcmp.ge.bf16.partialorder %v4770, 0
      %vm4867 = vcmp.ge.bf16.partialorder %v4771, 0
      %vm4868 = vcmp.ge.bf16.partialorder %v4772, 0
      %vm4869 = vcmp.ge.bf16.partialorder %v4773, 0
      %vm4870 = vcmp.ge.bf16.partialorder %v4774, 0
      %vm4871 = vcmp.ge.bf16.partialorder %v4775, 0
      %vm4872 = vcmp.ge.bf16.partialorder %v4776, 0
      %vm4873 = vcmp.ge.bf16.partialorder %v4777, 0
      %vm4874 = vcmp.ge.bf16.partialorder %v4778, 0
      %vm4875 = vcmp.ge.bf16.partialorder %v4779, 0
      %vm4876 = vcmp.ge.bf16.partialorder %v4780, 0
      %vm4877 = vcmp.ge.bf16.partialorder %v4781, 0
      %vm4878 = vcmp.ge.bf16.partialorder %v4782, 0
      %vm4879 = vcmp.ge.bf16.partialorder %v4783, 0
      %vm4880 = vcmp.ge.bf16.partialorder %v4784, 0
      %v4881 = vsel %vm4785, 1065369472, 3212885888
      %v4882 = vsel %vm4786, 1065369472, 3212885888
      %v4883 = vsel %vm4787, 1065369472, 3212885888
      %v4884 = vsel %vm4788, 1065369472, 3212885888
      %v4885 = vsel %vm4789, 1065369472, 3212885888
      %v4886 = vsel %vm4790, 1065369472, 3212885888
      %v4887 = vsel %vm4791, 1065369472, 3212885888
      %v4888 = vsel %vm4792, 1065369472, 3212885888
      %v4889 = vsel %vm4793, 1065369472, 3212885888
      %v4890 = vsel %vm4794, 1065369472, 3212885888
      %v4891 = vsel %vm4795, 1065369472, 3212885888
      %v4892 = vsel %vm4796, 1065369472, 3212885888
      %v4893 = vsel %vm4797, 1065369472, 3212885888
      %v4894 = vsel %vm4798, 1065369472, 3212885888
      %v4895 = vsel %vm4799, 1065369472, 3212885888
      %v4896 = vsel %vm4800, 1065369472, 3212885888
      %v4897 = vsel %vm4801, 1065369472, 3212885888
      %v4898 = vsel %vm4802, 1065369472, 3212885888
      %v4899 = vsel %vm4803, 1065369472, 3212885888
      %v4900 = vsel %vm4804, 1065369472, 3212885888
      %v4901 = vsel %vm4805, 1065369472, 3212885888
      %v4902 = vsel %vm4806, 1065369472, 3212885888
      %v4903 = vsel %vm4807, 1065369472, 3212885888
      %v4904 = vsel %vm4808, 1065369472, 3212885888
      %v4905 = vsel %vm4809, 1065369472, 3212885888
      %v4906 = vsel %vm4810, 1065369472, 3212885888
      %v4907 = vsel %vm4811, 1065369472, 3212885888
      %v4908 = vsel %vm4812, 1065369472, 3212885888
      %v4909 = vsel %vm4813, 1065369472, 3212885888
      %v4910 = vsel %vm4814, 1065369472, 3212885888
      %v4911 = vsel %vm4815, 1065369472, 3212885888
      %v4912 = vsel %vm4816, 1065369472, 3212885888
      %v4913 = vsel %vm4817, 1065369472, 3212885888
      %v4914 = vsel %vm4818, 1065369472, 3212885888
      %v4915 = vsel %vm4819, 1065369472, 3212885888
      %v4916 = vsel %vm4820, 1065369472, 3212885888
      %v4917 = vsel %vm4821, 1065369472, 3212885888
      %v4918 = vsel %vm4822, 1065369472, 3212885888
      %v4919 = vsel %vm4823, 1065369472, 3212885888
      %v4920 = vsel %vm4824, 1065369472, 3212885888
      %v4921 = vsel %vm4825, 1065369472, 3212885888
      %v4922 = vsel %vm4826, 1065369472, 3212885888
      %v4923 = vsel %vm4827, 1065369472, 3212885888
      %v4924 = vsel %vm4828, 1065369472, 3212885888
      %v4925 = vsel %vm4829, 1065369472, 3212885888
      %v4926 = vsel %vm4830, 1065369472, 3212885888
      %v4927 = vsel %vm4831, 1065369472, 3212885888
      %v4928 = vsel %vm4832, 1065369472, 3212885888
      %v4929 = vsel %vm4833, 1065369472, 3212885888
      %v4930 = vsel %vm4834, 1065369472, 3212885888
      %v4931 = vsel %vm4835, 1065369472, 3212885888
      %v4932 = vsel %vm4836, 1065369472, 3212885888
      %v4933 = vsel %vm4837, 1065369472, 3212885888
      %v4934 = vsel %vm4838, 1065369472, 3212885888
      %v4935 = vsel %vm4839, 1065369472, 3212885888
      %v4936 = vsel %vm4840, 1065369472, 3212885888
      %v4937 = vsel %vm4841, 1065369472, 3212885888
      %v4938 = vsel %vm4842, 1065369472, 3212885888
      %v4939 = vsel %vm4843, 1065369472, 3212885888
      %v4940 = vsel %vm4844, 1065369472, 3212885888
      %v4941 = vsel %vm4845, 1065369472, 3212885888
      %v4942 = vsel %vm4846, 1065369472, 3212885888
      %v4943 = vsel %vm4847, 1065369472, 3212885888
      %v4944 = vsel %vm4848, 1065369472, 3212885888
      %v4945 = vsel %vm4849, 1065369472, 3212885888
      %v4946 = vsel %vm4850, 1065369472, 3212885888
      %v4947 = vsel %vm4851, 1065369472, 3212885888
      %v4948 = vsel %vm4852, 1065369472, 3212885888
      %v4949 = vsel %vm4853, 1065369472, 3212885888
      %v4950 = vsel %vm4854, 1065369472, 3212885888
      %v4951 = vsel %vm4855, 1065369472, 3212885888
      %v4952 = vsel %vm4856, 1065369472, 3212885888
      %v4953 = vsel %vm4857, 1065369472, 3212885888
      %v4954 = vsel %vm4858, 1065369472, 3212885888
      %v4955 = vsel %vm4859, 1065369472, 3212885888
      %v4956 = vsel %vm4860, 1065369472, 3212885888
      %v4957 = vsel %vm4861, 1065369472, 3212885888
      %v4958 = vsel %vm4862, 1065369472, 3212885888
      %v4959 = vsel %vm4863, 1065369472, 3212885888
      %v4960 = vsel %vm4864, 1065369472, 3212885888
      %v4961 = vsel %vm4865, 1065369472, 3212885888
      %v4962 = vsel %vm4866, 1065369472, 3212885888
      %v4963 = vsel %vm4867, 1065369472, 3212885888
      %v4964 = vsel %vm4868, 1065369472, 3212885888
      %v4965 = vsel %vm4869, 1065369472, 3212885888
      %v4966 = vsel %vm4870, 1065369472, 3212885888
      %v4967 = vsel %vm4871, 1065369472, 3212885888
      %v4968 = vsel %vm4872, 1065369472, 3212885888
      %v4969 = vsel %vm4873, 1065369472, 3212885888
      %v4970 = vsel %vm4874, 1065369472, 3212885888
      %v4971 = vsel %vm4875, 1065369472, 3212885888
      %v4972 = vsel %vm4876, 1065369472, 3212885888
      %v4973 = vsel %vm4877, 1065369472, 3212885888
      %v4974 = vsel %vm4878, 1065369472, 3212885888
      %v4975 = vsel %vm4879, 1065369472, 3212885888
      %v4976 = vsel %vm4880, 1065369472, 3212885888
      %v4977 = vand.u32 2147450879, %v4689
      %v4978 = vand.u32 2147450879, %v4690
      %v4979 = vand.u32 2147450879, %v4691
      %v4980 = vand.u32 2147450879, %v4692
      %v4981 = vand.u32 2147450879, %v4693
      %v4982 = vand.u32 2147450879, %v4694
      %v4983 = vand.u32 2147450879, %v4695
      %v4984 = vand.u32 2147450879, %v4696
      %v4985 = vand.u32 2147450879, %v4697
      %v4986 = vand.u32 2147450879, %v4698
      %v4987 = vand.u32 2147450879, %v4699
      %v4988 = vand.u32 2147450879, %v4700
      %v4989 = vand.u32 2147450879, %v4701
      %v4990 = vand.u32 2147450879, %v4702
      %v4991 = vand.u32 2147450879, %v4703
      %v4992 = vand.u32 2147450879, %v4704
      %v4993 = vand.u32 2147450879, %v4705
      %v4994 = vand.u32 2147450879, %v4706
      %v4995 = vand.u32 2147450879, %v4707
      %v4996 = vand.u32 2147450879, %v4708
      %v4997 = vand.u32 2147450879, %v4709
      %v4998 = vand.u32 2147450879, %v4710
      %v4999 = vand.u32 2147450879, %v4711
      %v5000 = vand.u32 2147450879, %v4712
      %v5001 = vand.u32 2147450879, %v4713
      %v5002 = vand.u32 2147450879, %v4714
      %v5003 = vand.u32 2147450879, %v4715
      %v5004 = vand.u32 2147450879, %v4716
      %v5005 = vand.u32 2147450879, %v4717
      %v5006 = vand.u32 2147450879, %v4718
      %v5007 = vand.u32 2147450879, %v4719
      %v5008 = vand.u32 2147450879, %v4720
      %v5009 = vand.u32 2147450879, %v4721
      %v5010 = vand.u32 2147450879, %v4722
      %v5011 = vand.u32 2147450879, %v4723
      %v5012 = vand.u32 2147450879, %v4724
      %v5013 = vand.u32 2147450879, %v4725
      %v5014 = vand.u32 2147450879, %v4726
      %v5015 = vand.u32 2147450879, %v4727
      %v5016 = vand.u32 2147450879, %v4728
      %v5017 = vand.u32 2147450879, %v4729
      %v5018 = vand.u32 2147450879, %v4730
      %v5019 = vand.u32 2147450879, %v4731
      %v5020 = vand.u32 2147450879, %v4732
      %v5021 = vand.u32 2147450879, %v4733
      %v5022 = vand.u32 2147450879, %v4734
      %v5023 = vand.u32 2147450879, %v4735
      %v5024 = vand.u32 2147450879, %v4736
      %v5025 = vand.u32 2147450879, %v4737
      %v5026 = vand.u32 2147450879, %v4738
      %v5027 = vand.u32 2147450879, %v4739
      %v5028 = vand.u32 2147450879, %v4740
      %v5029 = vand.u32 2147450879, %v4741
      %v5030 = vand.u32 2147450879, %v4742
      %v5031 = vand.u32 2147450879, %v4743
      %v5032 = vand.u32 2147450879, %v4744
      %v5033 = vand.u32 2147450879, %v4745
      %v5034 = vand.u32 2147450879, %v4746
      %v5035 = vand.u32 2147450879, %v4747
      %v5036 = vand.u32 2147450879, %v4748
      %v5037 = vand.u32 2147450879, %v4749
      %v5038 = vand.u32 2147450879, %v4750
      %v5039 = vand.u32 2147450879, %v4751
      %v5040 = vand.u32 2147450879, %v4752
      %v5041 = vand.u32 2147450879, %v4753
      %v5042 = vand.u32 2147450879, %v4754
      %v5043 = vand.u32 2147450879, %v4755
      %v5044 = vand.u32 2147450879, %v4756
      %v5045 = vand.u32 2147450879, %v4757
      %v5046 = vand.u32 2147450879, %v4758
      %v5047 = vand.u32 2147450879, %v4759
      %v5048 = vand.u32 2147450879, %v4760
      %v5049 = vand.u32 2147450879, %v4761
      %v5050 = vand.u32 2147450879, %v4762
      %v5051 = vand.u32 2147450879, %v4763
      %v5052 = vand.u32 2147450879, %v4764
      %v5053 = vand.u32 2147450879, %v4765
      %v5054 = vand.u32 2147450879, %v4766
      %v5055 = vand.u32 2147450879, %v4767
      %v5056 = vand.u32 2147450879, %v4768
      %v5057 = vand.u32 2147450879, %v4769
      %v5058 = vand.u32 2147450879, %v4770
      %v5059 = vand.u32 2147450879, %v4771
      %v5060 = vand.u32 2147450879, %v4772
      %v5061 = vand.u32 2147450879, %v4773
      %v5062 = vand.u32 2147450879, %v4774
      %v5063 = vand.u32 2147450879, %v4775
      %v5064 = vand.u32 2147450879, %v4776
      %v5065 = vand.u32 2147450879, %v4777
      %v5066 = vand.u32 2147450879, %v4778
      %v5067 = vand.u32 2147450879, %v4779
      %v5068 = vand.u32 2147450879, %v4780
      %v5069 = vand.u32 2147450879, %v4781
      %v5070 = vand.u32 2147450879, %v4782
      %v5071 = vand.u32 2147450879, %v4783
      %v5072 = vand.u32 2147450879, %v4784
      %v5073 = vmul.bf16 %v4977, 1051213480
      %v5074 = vmul.bf16 %v4978, 1051213480
      %v5075 = vmul.bf16 %v4979, 1051213480
      %v5076 = vmul.bf16 %v4980, 1051213480
      %v5077 = vmul.bf16 %v4981, 1051213480
      %v5078 = vmul.bf16 %v4982, 1051213480
      %v5079 = vmul.bf16 %v4983, 1051213480
      %v5080 = vmul.bf16 %v4984, 1051213480
      %v5081 = vmul.bf16 %v4985, 1051213480
      %v5082 = vmul.bf16 %v4986, 1051213480
      %v5083 = vmul.bf16 %v4987, 1051213480
      %v5084 = vmul.bf16 %v4988, 1051213480
      %v5085 = vmul.bf16 %v4989, 1051213480
      %v5086 = vmul.bf16 %v4990, 1051213480
      %v5087 = vmul.bf16 %v4991, 1051213480
      %v5088 = vmul.bf16 %v4992, 1051213480
      %v5089 = vmul.bf16 %v4993, 1051213480
      %v5090 = vmul.bf16 %v4994, 1051213480
      %v5091 = vmul.bf16 %v4995, 1051213480
      %v5092 = vmul.bf16 %v4996, 1051213480
      %v5093 = vmul.bf16 %v4997, 1051213480
      %v5094 = vmul.bf16 %v4998, 1051213480
      %v5095 = vmul.bf16 %v4999, 1051213480
      %v5096 = vmul.bf16 %v5000, 1051213480
      %v5097 = vmul.bf16 %v5001, 1051213480
      %v5098 = vmul.bf16 %v5002, 1051213480
      %v5099 = vmul.bf16 %v5003, 1051213480
      %v5100 = vmul.bf16 %v5004, 1051213480
      %v5101 = vmul.bf16 %v5005, 1051213480
      %v5102 = vmul.bf16 %v5006, 1051213480
      %v5103 = vmul.bf16 %v5007, 1051213480
      %v5104 = vmul.bf16 %v5008, 1051213480
      %v5105 = vmul.bf16 %v5009, 1051213480
      %v5106 = vmul.bf16 %v5010, 1051213480
      %v5107 = vmul.bf16 %v5011, 1051213480
      %v5108 = vmul.bf16 %v5012, 1051213480
      %v5109 = vmul.bf16 %v5013, 1051213480
      %v5110 = vmul.bf16 %v5014, 1051213480
      %v5111 = vmul.bf16 %v5015, 1051213480
      %v5112 = vmul.bf16 %v5016, 1051213480
      %v5113 = vmul.bf16 %v5017, 1051213480
      %v5114 = vmul.bf16 %v5018, 1051213480
      %v5115 = vmul.bf16 %v5019, 1051213480
      %v5116 = vmul.bf16 %v5020, 1051213480
      %v5117 = vmul.bf16 %v5021, 1051213480
      %v5118 = vmul.bf16 %v5022, 1051213480
      %v5119 = vmul.bf16 %v5023, 1051213480
      %v5120 = vmul.bf16 %v5024, 1051213480
      %v5121 = vmul.bf16 %v5025, 1051213480
      %v5122 = vmul.bf16 %v5026, 1051213480
      %v5123 = vmul.bf16 %v5027, 1051213480
      %v5124 = vmul.bf16 %v5028, 1051213480
      %v5125 = vmul.bf16 %v5029, 1051213480
      %v5126 = vmul.bf16 %v5030, 1051213480
      %v5127 = vmul.bf16 %v5031, 1051213480
      %v5128 = vmul.bf16 %v5032, 1051213480
      %v5129 = vmul.bf16 %v5033, 1051213480
      %v5130 = vmul.bf16 %v5034, 1051213480
      %v5131 = vmul.bf16 %v5035, 1051213480
      %v5132 = vmul.bf16 %v5036, 1051213480
      %v5133 = vmul.bf16 %v5037, 1051213480
      %v5134 = vmul.bf16 %v5038, 1051213480
      %v5135 = vmul.bf16 %v5039, 1051213480
      %v5136 = vmul.bf16 %v5040, 1051213480
      %v5137 = vmul.bf16 %v5041, 1051213480
      %v5138 = vmul.bf16 %v5042, 1051213480
      %v5139 = vmul.bf16 %v5043, 1051213480
      %v5140 = vmul.bf16 %v5044, 1051213480
      %v5141 = vmul.bf16 %v5045, 1051213480
      %v5142 = vmul.bf16 %v5046, 1051213480
      %v5143 = vmul.bf16 %v5047, 1051213480
      %v5144 = vmul.bf16 %v5048, 1051213480
      %v5145 = vmul.bf16 %v5049, 1051213480
      %v5146 = vmul.bf16 %v5050, 1051213480
      %v5147 = vmul.bf16 %v5051, 1051213480
      %v5148 = vmul.bf16 %v5052, 1051213480
      %v5149 = vmul.bf16 %v5053, 1051213480
      %v5150 = vmul.bf16 %v5054, 1051213480
      %v5151 = vmul.bf16 %v5055, 1051213480
      %v5152 = vmul.bf16 %v5056, 1051213480
      %v5153 = vmul.bf16 %v5057, 1051213480
      %v5154 = vmul.bf16 %v5058, 1051213480
      %v5155 = vmul.bf16 %v5059, 1051213480
      %v5156 = vmul.bf16 %v5060, 1051213480
      %v5157 = vmul.bf16 %v5061, 1051213480
      %v5158 = vmul.bf16 %v5062, 1051213480
      %v5159 = vmul.bf16 %v5063, 1051213480
      %v5160 = vmul.bf16 %v5064, 1051213480
      %v5161 = vmul.bf16 %v5065, 1051213480
      %v5162 = vmul.bf16 %v5066, 1051213480
      %v5163 = vmul.bf16 %v5067, 1051213480
      %v5164 = vmul.bf16 %v5068, 1051213480
      %v5165 = vmul.bf16 %v5069, 1051213480
      %v5166 = vmul.bf16 %v5070, 1051213480
      %v5167 = vmul.bf16 %v5071, 1051213480
      %v5168 = vmul.bf16 %v5072, 1051213480
      %v5169 = vadd.bf16 %v5073, 1065369472
      %v5170 = vadd.bf16 %v5074, 1065369472
      %v5171 = vadd.bf16 %v5075, 1065369472
      %v5172 = vadd.bf16 %v5076, 1065369472
      %v5173 = vadd.bf16 %v5077, 1065369472
      %v5174 = vadd.bf16 %v5078, 1065369472
      %v5175 = vadd.bf16 %v5079, 1065369472
      %v5176 = vadd.bf16 %v5080, 1065369472
      %v5177 = vadd.bf16 %v5081, 1065369472
      %v5178 = vadd.bf16 %v5082, 1065369472
      %v5179 = vadd.bf16 %v5083, 1065369472
      %v5180 = vadd.bf16 %v5084, 1065369472
      %v5181 = vadd.bf16 %v5085, 1065369472
      %v5182 = vadd.bf16 %v5086, 1065369472
      %v5183 = vadd.bf16 %v5087, 1065369472
      %v5184 = vadd.bf16 %v5088, 1065369472
      %v5185 = vadd.bf16 %v5089, 1065369472
      %v5186 = vadd.bf16 %v5090, 1065369472
      %v5187 = vadd.bf16 %v5091, 1065369472
      %v5188 = vadd.bf16 %v5092, 1065369472
      %v5189 = vadd.bf16 %v5093, 1065369472
      %v5190 = vadd.bf16 %v5094, 1065369472
      %v5191 = vadd.bf16 %v5095, 1065369472
      %v5192 = vadd.bf16 %v5096, 1065369472
      %v5193 = vadd.bf16 %v5097, 1065369472
      %v5194 = vadd.bf16 %v5098, 1065369472
      %v5195 = vadd.bf16 %v5099, 1065369472
      %v5196 = vadd.bf16 %v5100, 1065369472
      %v5197 = vadd.bf16 %v5101, 1065369472
      %v5198 = vadd.bf16 %v5102, 1065369472
      %v5199 = vadd.bf16 %v5103, 1065369472
      %v5200 = vadd.bf16 %v5104, 1065369472
      %v5201 = vadd.bf16 %v5105, 1065369472
      %v5202 = vadd.bf16 %v5106, 1065369472
      %v5203 = vadd.bf16 %v5107, 1065369472
      %v5204 = vadd.bf16 %v5108, 1065369472
      %v5205 = vadd.bf16 %v5109, 1065369472
      %v5206 = vadd.bf16 %v5110, 1065369472
      %v5207 = vadd.bf16 %v5111, 1065369472
      %v5208 = vadd.bf16 %v5112, 1065369472
      %v5209 = vadd.bf16 %v5113, 1065369472
      %v5210 = vadd.bf16 %v5114, 1065369472
      %v5211 = vadd.bf16 %v5115, 1065369472
      %v5212 = vadd.bf16 %v5116, 1065369472
      %v5213 = vadd.bf16 %v5117, 1065369472
      %v5214 = vadd.bf16 %v5118, 1065369472
      %v5215 = vadd.bf16 %v5119, 1065369472
      %v5216 = vadd.bf16 %v5120, 1065369472
      %v5217 = vadd.bf16 %v5121, 1065369472
      %v5218 = vadd.bf16 %v5122, 1065369472
      %v5219 = vadd.bf16 %v5123, 1065369472
      %v5220 = vadd.bf16 %v5124, 1065369472
      %v5221 = vadd.bf16 %v5125, 1065369472
      %v5222 = vadd.bf16 %v5126, 1065369472
      %v5223 = vadd.bf16 %v5127, 1065369472
      %v5224 = vadd.bf16 %v5128, 1065369472
      %v5225 = vadd.bf16 %v5129, 1065369472
      %v5226 = vadd.bf16 %v5130, 1065369472
      %v5227 = vadd.bf16 %v5131, 1065369472
      %v5228 = vadd.bf16 %v5132, 1065369472
      %v5229 = vadd.bf16 %v5133, 1065369472
      %v5230 = vadd.bf16 %v5134, 1065369472
      %v5231 = vadd.bf16 %v5135, 1065369472
      %v5232 = vadd.bf16 %v5136, 1065369472
      %v5233 = vadd.bf16 %v5137, 1065369472
      %v5234 = vadd.bf16 %v5138, 1065369472
      %v5235 = vadd.bf16 %v5139, 1065369472
      %v5236 = vadd.bf16 %v5140, 1065369472
      %v5237 = vadd.bf16 %v5141, 1065369472
      %v5238 = vadd.bf16 %v5142, 1065369472
      %v5239 = vadd.bf16 %v5143, 1065369472
      %v5240 = vadd.bf16 %v5144, 1065369472
      %v5241 = vadd.bf16 %v5145, 1065369472
      %v5242 = vadd.bf16 %v5146, 1065369472
      %v5243 = vadd.bf16 %v5147, 1065369472
      %v5244 = vadd.bf16 %v5148, 1065369472
      %v5245 = vadd.bf16 %v5149, 1065369472
      %v5246 = vadd.bf16 %v5150, 1065369472
      %v5247 = vadd.bf16 %v5151, 1065369472
      %v5248 = vadd.bf16 %v5152, 1065369472
      %v5249 = vadd.bf16 %v5153, 1065369472
      %v5250 = vadd.bf16 %v5154, 1065369472
      %v5251 = vadd.bf16 %v5155, 1065369472
      %v5252 = vadd.bf16 %v5156, 1065369472
      %v5253 = vadd.bf16 %v5157, 1065369472
      %v5254 = vadd.bf16 %v5158, 1065369472
      %v5255 = vadd.bf16 %v5159, 1065369472
      %v5256 = vadd.bf16 %v5160, 1065369472
      %v5257 = vadd.bf16 %v5161, 1065369472
      %v5258 = vadd.bf16 %v5162, 1065369472
      %v5259 = vadd.bf16 %v5163, 1065369472
      %v5260 = vadd.bf16 %v5164, 1065369472
      %v5261 = vadd.bf16 %v5165, 1065369472
      %v5262 = vadd.bf16 %v5166, 1065369472
      %v5263 = vadd.bf16 %v5167, 1065369472
      %v5264 = vadd.bf16 %v5168, 1065369472
      %v5265 = vrcp.bf16.pop %v5169
      %v5266 = vmul.bf16 1065369472, %v5265
      %v5267 = vrcp.bf16.pop %v5170
      %v5268 = vmul.bf16 1065369472, %v5267
      %v5269 = vrcp.bf16.pop %v5171
      %v5270 = vmul.bf16 1065369472, %v5269
      %v5271 = vrcp.bf16.pop %v5172
      %v5272 = vmul.bf16 1065369472, %v5271
      %v5273 = vrcp.bf16.pop %v5173
      %v5274 = vmul.bf16 1065369472, %v5273
      %v5275 = vrcp.bf16.pop %v5174
      %v5276 = vmul.bf16 1065369472, %v5275
      %v5277 = vrcp.bf16.pop %v5175
      %v5278 = vmul.bf16 1065369472, %v5277
      %v5279 = vrcp.bf16.pop %v5176
      %v5280 = vmul.bf16 1065369472, %v5279
      %v5281 = vrcp.bf16.pop %v5177
      %v5282 = vmul.bf16 1065369472, %v5281
      %v5283 = vrcp.bf16.pop %v5178
      %v5284 = vmul.bf16 1065369472, %v5283
      %v5285 = vrcp.bf16.pop %v5179
      %v5286 = vmul.bf16 1065369472, %v5285
      %v5287 = vrcp.bf16.pop %v5180
      %v5288 = vmul.bf16 1065369472, %v5287
      %v5289 = vrcp.bf16.pop %v5181
      %v5290 = vmul.bf16 1065369472, %v5289
      %v5291 = vrcp.bf16.pop %v5182
      %v5292 = vmul.bf16 1065369472, %v5291
      %v5293 = vrcp.bf16.pop %v5183
      %v5294 = vmul.bf16 1065369472, %v5293
      %v5295 = vrcp.bf16.pop %v5184
      %v5296 = vmul.bf16 1065369472, %v5295
      %v5297 = vrcp.bf16.pop %v5185
      %v5298 = vmul.bf16 1065369472, %v5297
      %v5299 = vrcp.bf16.pop %v5186
      %v5300 = vmul.bf16 1065369472, %v5299
      %v5301 = vrcp.bf16.pop %v5187
      %v5302 = vmul.bf16 1065369472, %v5301
      %v5303 = vrcp.bf16.pop %v5188
      %v5304 = vmul.bf16 1065369472, %v5303
      %v5305 = vrcp.bf16.pop %v5189
      %v5306 = vmul.bf16 1065369472, %v5305
      %v5307 = vrcp.bf16.pop %v5190
      %v5308 = vmul.bf16 1065369472, %v5307
      %v5309 = vrcp.bf16.pop %v5191
      %v5310 = vmul.bf16 1065369472, %v5309
      %v5311 = vrcp.bf16.pop %v5192
      %v5312 = vmul.bf16 1065369472, %v5311
      %v5313 = vrcp.bf16.pop %v5193
      %v5314 = vmul.bf16 1065369472, %v5313
      %v5315 = vrcp.bf16.pop %v5194
      %v5316 = vmul.bf16 1065369472, %v5315
      %v5317 = vrcp.bf16.pop %v5195
      %v5318 = vmul.bf16 1065369472, %v5317
      %v5319 = vrcp.bf16.pop %v5196
      %v5320 = vmul.bf16 1065369472, %v5319
      %v5321 = vrcp.bf16.pop %v5197
      %v5322 = vmul.bf16 1065369472, %v5321
      %v5323 = vrcp.bf16.pop %v5198
      %v5324 = vmul.bf16 1065369472, %v5323
      %v5325 = vrcp.bf16.pop %v5199
      %v5326 = vmul.bf16 1065369472, %v5325
      %v5327 = vrcp.bf16.pop %v5200
      %v5328 = vmul.bf16 1065369472, %v5327
      %v5329 = vrcp.bf16.pop %v5201
      %v5330 = vmul.bf16 1065369472, %v5329
      %v5331 = vrcp.bf16.pop %v5202
      %v5332 = vmul.bf16 1065369472, %v5331
      %v5333 = vrcp.bf16.pop %v5203
      %v5334 = vmul.bf16 1065369472, %v5333
      %v5335 = vrcp.bf16.pop %v5204
      %v5336 = vmul.bf16 1065369472, %v5335
      %v5337 = vrcp.bf16.pop %v5205
      %v5338 = vmul.bf16 1065369472, %v5337
      %v5339 = vrcp.bf16.pop %v5206
      %v5340 = vmul.bf16 1065369472, %v5339
      %v5341 = vrcp.bf16.pop %v5207
      %v5342 = vmul.bf16 1065369472, %v5341
      %v5343 = vrcp.bf16.pop %v5208
      %v5344 = vmul.bf16 1065369472, %v5343
      %v5345 = vrcp.bf16.pop %v5209
      %v5346 = vmul.bf16 1065369472, %v5345
      %v5347 = vrcp.bf16.pop %v5210
      %v5348 = vmul.bf16 1065369472, %v5347
      %v5349 = vrcp.bf16.pop %v5211
      %v5350 = vmul.bf16 1065369472, %v5349
      %v5351 = vrcp.bf16.pop %v5212
      %v5352 = vmul.bf16 1065369472, %v5351
      %v5353 = vrcp.bf16.pop %v5213
      %v5354 = vmul.bf16 1065369472, %v5353
      %v5355 = vrcp.bf16.pop %v5214
      %v5356 = vmul.bf16 1065369472, %v5355
      %v5357 = vrcp.bf16.pop %v5215
      %v5358 = vmul.bf16 1065369472, %v5357
      %v5359 = vrcp.bf16.pop %v5216
      %v5360 = vmul.bf16 1065369472, %v5359
      %v5361 = vrcp.bf16.pop %v5217
      %v5362 = vmul.bf16 1065369472, %v5361
      %v5363 = vrcp.bf16.pop %v5218
      %v5364 = vmul.bf16 1065369472, %v5363
      %v5365 = vrcp.bf16.pop %v5219
      %v5366 = vmul.bf16 1065369472, %v5365
      %v5367 = vrcp.bf16.pop %v5220
      %v5368 = vmul.bf16 1065369472, %v5367
      %v5369 = vrcp.bf16.pop %v5221
      %v5370 = vmul.bf16 1065369472, %v5369
      %v5371 = vrcp.bf16.pop %v5222
      %v5372 = vmul.bf16 1065369472, %v5371
      %v5373 = vrcp.bf16.pop %v5223
      %v5374 = vmul.bf16 1065369472, %v5373
      %v5375 = vrcp.bf16.pop %v5224
      %v5376 = vmul.bf16 1065369472, %v5375
      %v5377 = vrcp.bf16.pop %v5225
      %v5378 = vmul.bf16 1065369472, %v5377
      %v5379 = vrcp.bf16.pop %v5226
      %v5380 = vmul.bf16 1065369472, %v5379
      %v5381 = vrcp.bf16.pop %v5227
      %v5382 = vmul.bf16 1065369472, %v5381
      %v5383 = vrcp.bf16.pop %v5228
      %v5384 = vmul.bf16 1065369472, %v5383
      %v5385 = vrcp.bf16.pop %v5229
      %v5386 = vmul.bf16 1065369472, %v5385
      %v5387 = vrcp.bf16.pop %v5230
      %v5388 = vmul.bf16 1065369472, %v5387
      %v5389 = vrcp.bf16.pop %v5231
      %v5390 = vmul.bf16 1065369472, %v5389
      %v5391 = vrcp.bf16.pop %v5232
      %v5392 = vmul.bf16 1065369472, %v5391
      %v5393 = vrcp.bf16.pop %v5233
      %v5394 = vmul.bf16 1065369472, %v5393
      %v5395 = vrcp.bf16.pop %v5234
      %v5396 = vmul.bf16 1065369472, %v5395
      %v5397 = vrcp.bf16.pop %v5235
      %v5398 = vmul.bf16 1065369472, %v5397
      %v5399 = vrcp.bf16.pop %v5236
      %v5400 = vmul.bf16 1065369472, %v5399
      %v5401 = vrcp.bf16.pop %v5237
      %v5402 = vmul.bf16 1065369472, %v5401
      %v5403 = vrcp.bf16.pop %v5238
      %v5404 = vmul.bf16 1065369472, %v5403
      %v5405 = vrcp.bf16.pop %v5239
      %v5406 = vmul.bf16 1065369472, %v5405
      %v5407 = vrcp.bf16.pop %v5240
      %v5408 = vmul.bf16 1065369472, %v5407
      %v5409 = vrcp.bf16.pop %v5241
      %v5410 = vmul.bf16 1065369472, %v5409
      %v5411 = vrcp.bf16.pop %v5242
      %v5412 = vmul.bf16 1065369472, %v5411
      %v5413 = vrcp.bf16.pop %v5243
      %v5414 = vmul.bf16 1065369472, %v5413
      %v5415 = vrcp.bf16.pop %v5244
      %v5416 = vmul.bf16 1065369472, %v5415
      %v5417 = vrcp.bf16.pop %v5245
      %v5418 = vmul.bf16 1065369472, %v5417
      %v5419 = vrcp.bf16.pop %v5246
      %v5420 = vmul.bf16 1065369472, %v5419
      %v5421 = vrcp.bf16.pop %v5247
      %v5422 = vmul.bf16 1065369472, %v5421
      %v5423 = vrcp.bf16.pop %v5248
      %v5424 = vmul.bf16 1065369472, %v5423
      %v5425 = vrcp.bf16.pop %v5249
      %v5426 = vmul.bf16 1065369472, %v5425
      %v5427 = vrcp.bf16.pop %v5250
      %v5428 = vmul.bf16 1065369472, %v5427
      %v5429 = vrcp.bf16.pop %v5251
      %v5430 = vmul.bf16 1065369472, %v5429
      %v5431 = vrcp.bf16.pop %v5252
      %v5432 = vmul.bf16 1065369472, %v5431
      %v5433 = vrcp.bf16.pop %v5253
      %v5434 = vmul.bf16 1065369472, %v5433
      %v5435 = vrcp.bf16.pop %v5254
      %v5436 = vmul.bf16 1065369472, %v5435
      %v5437 = vrcp.bf16.pop %v5255
      %v5438 = vmul.bf16 1065369472, %v5437
      %v5439 = vrcp.bf16.pop %v5256
      %v5440 = vmul.bf16 1065369472, %v5439
      %v5441 = vrcp.bf16.pop %v5257
      %v5442 = vmul.bf16 1065369472, %v5441
      %v5443 = vrcp.bf16.pop %v5258
      %v5444 = vmul.bf16 1065369472, %v5443
      %v5445 = vrcp.bf16.pop %v5259
      %v5446 = vmul.bf16 1065369472, %v5445
      %v5447 = vrcp.bf16.pop %v5260
      %v5448 = vmul.bf16 1065369472, %v5447
      %v5449 = vrcp.bf16.pop %v5261
      %v5450 = vmul.bf16 1065369472, %v5449
      %v5451 = vrcp.bf16.pop %v5262
      %v5452 = vmul.bf16 1065369472, %v5451
      %v5453 = vrcp.bf16.pop %v5263
      %v5454 = vmul.bf16 1065369472, %v5453
      %v5455 = vrcp.bf16.pop %v5264
      %v5456 = vmul.bf16 1065369472, %v5455
      %v5457 = vmul.bf16 %v5266, 1065893768
      %v5458 = vmul.bf16 %v5268, 1065893768
      %v5459 = vmul.bf16 %v5270, 1065893768
      %v5460 = vmul.bf16 %v5272, 1065893768
      %v5461 = vmul.bf16 %v5274, 1065893768
      %v5462 = vmul.bf16 %v5276, 1065893768
      %v5463 = vmul.bf16 %v5278, 1065893768
      %v5464 = vmul.bf16 %v5280, 1065893768
      %v5465 = vmul.bf16 %v5282, 1065893768
      %v5466 = vmul.bf16 %v5284, 1065893768
      %v5467 = vmul.bf16 %v5286, 1065893768
      %v5468 = vmul.bf16 %v5288, 1065893768
      %v5469 = vmul.bf16 %v5290, 1065893768
      %v5470 = vmul.bf16 %v5292, 1065893768
      %v5471 = vmul.bf16 %v5294, 1065893768
      %v5472 = vmul.bf16 %v5296, 1065893768
      %v5473 = vmul.bf16 %v5298, 1065893768
      %v5474 = vmul.bf16 %v5300, 1065893768
      %v5475 = vmul.bf16 %v5302, 1065893768
      %v5476 = vmul.bf16 %v5304, 1065893768
      %v5477 = vmul.bf16 %v5306, 1065893768
      %v5478 = vmul.bf16 %v5308, 1065893768
      %v5479 = vmul.bf16 %v5310, 1065893768
      %v5480 = vmul.bf16 %v5312, 1065893768
      %v5481 = vmul.bf16 %v5314, 1065893768
      %v5482 = vmul.bf16 %v5316, 1065893768
      %v5483 = vmul.bf16 %v5318, 1065893768
      %v5484 = vmul.bf16 %v5320, 1065893768
      %v5485 = vmul.bf16 %v5322, 1065893768
      %v5486 = vmul.bf16 %v5324, 1065893768
      %v5487 = vmul.bf16 %v5326, 1065893768
      %v5488 = vmul.bf16 %v5328, 1065893768
      %v5489 = vmul.bf16 %v5330, 1065893768
      %v5490 = vmul.bf16 %v5332, 1065893768
      %v5491 = vmul.bf16 %v5334, 1065893768
      %v5492 = vmul.bf16 %v5336, 1065893768
      %v5493 = vmul.bf16 %v5338, 1065893768
      %v5494 = vmul.bf16 %v5340, 1065893768
      %v5495 = vmul.bf16 %v5342, 1065893768
      %v5496 = vmul.bf16 %v5344, 1065893768
      %v5497 = vmul.bf16 %v5346, 1065893768
      %v5498 = vmul.bf16 %v5348, 1065893768
      %v5499 = vmul.bf16 %v5350, 1065893768
      %v5500 = vmul.bf16 %v5352, 1065893768
      %v5501 = vmul.bf16 %v5354, 1065893768
      %v5502 = vmul.bf16 %v5356, 1065893768
      %v5503 = vmul.bf16 %v5358, 1065893768
      %v5504 = vmul.bf16 %v5360, 1065893768
      %v5505 = vmul.bf16 %v5362, 1065893768
      %v5506 = vmul.bf16 %v5364, 1065893768
      %v5507 = vmul.bf16 %v5366, 1065893768
      %v5508 = vmul.bf16 %v5368, 1065893768
      %v5509 = vmul.bf16 %v5370, 1065893768
      %v5510 = vmul.bf16 %v5372, 1065893768
      %v5511 = vmul.bf16 %v5374, 1065893768
      %v5512 = vmul.bf16 %v5376, 1065893768
      %v5513 = vmul.bf16 %v5378, 1065893768
      %v5514 = vmul.bf16 %v5380, 1065893768
      %v5515 = vmul.bf16 %v5382, 1065893768
      %v5516 = vmul.bf16 %v5384, 1065893768
      %v5517 = vmul.bf16 %v5386, 1065893768
      %v5518 = vmul.bf16 %v5388, 1065893768
      %v5519 = vmul.bf16 %v5390, 1065893768
      %v5520 = vmul.bf16 %v5392, 1065893768
      %v5521 = vmul.bf16 %v5394, 1065893768
      %v5522 = vmul.bf16 %v5396, 1065893768
      %v5523 = vmul.bf16 %v5398, 1065893768
      %v5524 = vmul.bf16 %v5400, 1065893768
      %v5525 = vmul.bf16 %v5402, 1065893768
      %v5526 = vmul.bf16 %v5404, 1065893768
      %v5527 = vmul.bf16 %v5406, 1065893768
      %v5528 = vmul.bf16 %v5408, 1065893768
      %v5529 = vmul.bf16 %v5410, 1065893768
      %v5530 = vmul.bf16 %v5412, 1065893768
      %v5531 = vmul.bf16 %v5414, 1065893768
      %v5532 = vmul.bf16 %v5416, 1065893768
      %v5533 = vmul.bf16 %v5418, 1065893768
      %v5534 = vmul.bf16 %v5420, 1065893768
      %v5535 = vmul.bf16 %v5422, 1065893768
      %v5536 = vmul.bf16 %v5424, 1065893768
      %v5537 = vmul.bf16 %v5426, 1065893768
      %v5538 = vmul.bf16 %v5428, 1065893768
      %v5539 = vmul.bf16 %v5430, 1065893768
      %v5540 = vmul.bf16 %v5432, 1065893768
      %v5541 = vmul.bf16 %v5434, 1065893768
      %v5542 = vmul.bf16 %v5436, 1065893768
      %v5543 = vmul.bf16 %v5438, 1065893768
      %v5544 = vmul.bf16 %v5440, 1065893768
      %v5545 = vmul.bf16 %v5442, 1065893768
      %v5546 = vmul.bf16 %v5444, 1065893768
      %v5547 = vmul.bf16 %v5446, 1065893768
      %v5548 = vmul.bf16 %v5448, 1065893768
      %v5549 = vmul.bf16 %v5450, 1065893768
      %v5550 = vmul.bf16 %v5452, 1065893768
      %v5551 = vmul.bf16 %v5454, 1065893768
      %v5552 = vmul.bf16 %v5456, 1065893768
      %v5553 = vadd.bf16 %v5457, 3216687034
      %v5554 = vadd.bf16 %v5458, 3216687034
      %v5555 = vadd.bf16 %v5459, 3216687034
      %v5556 = vadd.bf16 %v5460, 3216687034
      %v5557 = vadd.bf16 %v5461, 3216687034
      %v5558 = vadd.bf16 %v5462, 3216687034
      %v5559 = vadd.bf16 %v5463, 3216687034
      %v5560 = vadd.bf16 %v5464, 3216687034
      %v5561 = vadd.bf16 %v5465, 3216687034
      %v5562 = vadd.bf16 %v5466, 3216687034
      %v5563 = vadd.bf16 %v5467, 3216687034
      %v5564 = vadd.bf16 %v5468, 3216687034
      %v5565 = vadd.bf16 %v5469, 3216687034
      %v5566 = vadd.bf16 %v5470, 3216687034
      %v5567 = vadd.bf16 %v5471, 3216687034
      %v5568 = vadd.bf16 %v5472, 3216687034
      %v5569 = vadd.bf16 %v5473, 3216687034
      %v5570 = vadd.bf16 %v5474, 3216687034
      %v5571 = vadd.bf16 %v5475, 3216687034
      %v5572 = vadd.bf16 %v5476, 3216687034
      %v5573 = vadd.bf16 %v5477, 3216687034
      %v5574 = vadd.bf16 %v5478, 3216687034
      %v5575 = vadd.bf16 %v5479, 3216687034
      %v5576 = vadd.bf16 %v5480, 3216687034
      %v5577 = vadd.bf16 %v5481, 3216687034
      %v5578 = vadd.bf16 %v5482, 3216687034
      %v5579 = vadd.bf16 %v5483, 3216687034
      %v5580 = vadd.bf16 %v5484, 3216687034
      %v5581 = vadd.bf16 %v5485, 3216687034
      %v5582 = vadd.bf16 %v5486, 3216687034
      %v5583 = vadd.bf16 %v5487, 3216687034
      %v5584 = vadd.bf16 %v5488, 3216687034
      %v5585 = vadd.bf16 %v5489, 3216687034
      %v5586 = vadd.bf16 %v5490, 3216687034
      %v5587 = vadd.bf16 %v5491, 3216687034
      %v5588 = vadd.bf16 %v5492, 3216687034
      %v5589 = vadd.bf16 %v5493, 3216687034
      %v5590 = vadd.bf16 %v5494, 3216687034
      %v5591 = vadd.bf16 %v5495, 3216687034
      %v5592 = vadd.bf16 %v5496, 3216687034
      %v5593 = vadd.bf16 %v5497, 3216687034
      %v5594 = vadd.bf16 %v5498, 3216687034
      %v5595 = vadd.bf16 %v5499, 3216687034
      %v5596 = vadd.bf16 %v5500, 3216687034
      %v5597 = vadd.bf16 %v5501, 3216687034
      %v5598 = vadd.bf16 %v5502, 3216687034
      %v5599 = vadd.bf16 %v5503, 3216687034
      %v5600 = vadd.bf16 %v5504, 3216687034
      %v5601 = vadd.bf16 %v5505, 3216687034
      %v5602 = vadd.bf16 %v5506, 3216687034
      %v5603 = vadd.bf16 %v5507, 3216687034
      %v5604 = vadd.bf16 %v5508, 3216687034
      %v5605 = vadd.bf16 %v5509, 3216687034
      %v5606 = vadd.bf16 %v5510, 3216687034
      %v5607 = vadd.bf16 %v5511, 3216687034
      %v5608 = vadd.bf16 %v5512, 3216687034
      %v5609 = vadd.bf16 %v5513, 3216687034
      %v5610 = vadd.bf16 %v5514, 3216687034
      %v5611 = vadd.bf16 %v5515, 3216687034
      %v5612 = vadd.bf16 %v5516, 3216687034
      %v5613 = vadd.bf16 %v5517, 3216687034
      %v5614 = vadd.bf16 %v5518, 3216687034
      %v5615 = vadd.bf16 %v5519, 3216687034
      %v5616 = vadd.bf16 %v5520, 3216687034
      %v5617 = vadd.bf16 %v5521, 3216687034
      %v5618 = vadd.bf16 %v5522, 3216687034
      %v5619 = vadd.bf16 %v5523, 3216687034
      %v5620 = vadd.bf16 %v5524, 3216687034
      %v5621 = vadd.bf16 %v5525, 3216687034
      %v5622 = vadd.bf16 %v5526, 3216687034
      %v5623 = vadd.bf16 %v5527, 3216687034
      %v5624 = vadd.bf16 %v5528, 3216687034
      %v5625 = vadd.bf16 %v5529, 3216687034
      %v5626 = vadd.bf16 %v5530, 3216687034
      %v5627 = vadd.bf16 %v5531, 3216687034
      %v5628 = vadd.bf16 %v5532, 3216687034
      %v5629 = vadd.bf16 %v5533, 3216687034
      %v5630 = vadd.bf16 %v5534, 3216687034
      %v5631 = vadd.bf16 %v5535, 3216687034
      %v5632 = vadd.bf16 %v5536, 3216687034
      %v5633 = vadd.bf16 %v5537, 3216687034
      %v5634 = vadd.bf16 %v5538, 3216687034
      %v5635 = vadd.bf16 %v5539, 3216687034
      %v5636 = vadd.bf16 %v5540, 3216687034
      %v5637 = vadd.bf16 %v5541, 3216687034
      %v5638 = vadd.bf16 %v5542, 3216687034
      %v5639 = vadd.bf16 %v5543, 3216687034
      %v5640 = vadd.bf16 %v5544, 3216687034
      %v5641 = vadd.bf16 %v5545, 3216687034
      %v5642 = vadd.bf16 %v5546, 3216687034
      %v5643 = vadd.bf16 %v5547, 3216687034
      %v5644 = vadd.bf16 %v5548, 3216687034
      %v5645 = vadd.bf16 %v5549, 3216687034
      %v5646 = vadd.bf16 %v5550, 3216687034
      %v5647 = vadd.bf16 %v5551, 3216687034
      %v5648 = vadd.bf16 %v5552, 3216687034
      %v5649 = vmul.bf16 %v5266, %v5553
      %v5650 = vmul.bf16 %v5268, %v5554
      %v5651 = vmul.bf16 %v5270, %v5555
      %v5652 = vmul.bf16 %v5272, %v5556
      %v5653 = vmul.bf16 %v5274, %v5557
      %v5654 = vmul.bf16 %v5276, %v5558
      %v5655 = vmul.bf16 %v5278, %v5559
      %v5656 = vmul.bf16 %v5280, %v5560
      %v5657 = vmul.bf16 %v5282, %v5561
      %v5658 = vmul.bf16 %v5284, %v5562
      %v5659 = vmul.bf16 %v5286, %v5563
      %v5660 = vmul.bf16 %v5288, %v5564
      %v5661 = vmul.bf16 %v5290, %v5565
      %v5662 = vmul.bf16 %v5292, %v5566
      %v5663 = vmul.bf16 %v5294, %v5567
      %v5664 = vmul.bf16 %v5296, %v5568
      %v5665 = vmul.bf16 %v5298, %v5569
      %v5666 = vmul.bf16 %v5300, %v5570
      %v5667 = vmul.bf16 %v5302, %v5571
      %v5668 = vmul.bf16 %v5304, %v5572
      %v5669 = vmul.bf16 %v5306, %v5573
      %v5670 = vmul.bf16 %v5308, %v5574
      %v5671 = vmul.bf16 %v5310, %v5575
      %v5672 = vmul.bf16 %v5312, %v5576
      %v5673 = vmul.bf16 %v5314, %v5577
      %v5674 = vmul.bf16 %v5316, %v5578
      %v5675 = vmul.bf16 %v5318, %v5579
      %v5676 = vmul.bf16 %v5320, %v5580
      %v5677 = vmul.bf16 %v5322, %v5581
      %v5678 = vmul.bf16 %v5324, %v5582
      %v5679 = vmul.bf16 %v5326, %v5583
      %v5680 = vmul.bf16 %v5328, %v5584
      %v5681 = vmul.bf16 %v5330, %v5585
      %v5682 = vmul.bf16 %v5332, %v5586
      %v5683 = vmul.bf16 %v5334, %v5587
      %v5684 = vmul.bf16 %v5336, %v5588
      %v5685 = vmul.bf16 %v5338, %v5589
      %v5686 = vmul.bf16 %v5340, %v5590
      %v5687 = vmul.bf16 %v5342, %v5591
      %v5688 = vmul.bf16 %v5344, %v5592
      %v5689 = vmul.bf16 %v5346, %v5593
      %v5690 = vmul.bf16 %v5348, %v5594
      %v5691 = vmul.bf16 %v5350, %v5595
      %v5692 = vmul.bf16 %v5352, %v5596
      %v5693 = vmul.bf16 %v5354, %v5597
      %v5694 = vmul.bf16 %v5356, %v5598
      %v5695 = vmul.bf16 %v5358, %v5599
      %v5696 = vmul.bf16 %v5360, %v5600
      %v5697 = vmul.bf16 %v5362, %v5601
      %v5698 = vmul.bf16 %v5364, %v5602
      %v5699 = vmul.bf16 %v5366, %v5603
      %v5700 = vmul.bf16 %v5368, %v5604
      %v5701 = vmul.bf16 %v5370, %v5605
      %v5702 = vmul.bf16 %v5372, %v5606
      %v5703 = vmul.bf16 %v5374, %v5607
      %v5704 = vmul.bf16 %v5376, %v5608
      %v5705 = vmul.bf16 %v5378, %v5609
      %v5706 = vmul.bf16 %v5380, %v5610
      %v5707 = vmul.bf16 %v5382, %v5611
      %v5708 = vmul.bf16 %v5384, %v5612
      %v5709 = vmul.bf16 %v5386, %v5613
      %v5710 = vmul.bf16 %v5388, %v5614
      %v5711 = vmul.bf16 %v5390, %v5615
      %v5712 = vmul.bf16 %v5392, %v5616
      %v5713 = vmul.bf16 %v5394, %v5617
      %v5714 = vmul.bf16 %v5396, %v5618
      %v5715 = vmul.bf16 %v5398, %v5619
      %v5716 = vmul.bf16 %v5400, %v5620
      %v5717 = vmul.bf16 %v5402, %v5621
      %v5718 = vmul.bf16 %v5404, %v5622
      %v5719 = vmul.bf16 %v5406, %v5623
      %v5720 = vmul.bf16 %v5408, %v5624
      %v5721 = vmul.bf16 %v5410, %v5625
      %v5722 = vmul.bf16 %v5412, %v5626
      %v5723 = vmul.bf16 %v5414, %v5627
      %v5724 = vmul.bf16 %v5416, %v5628
      %v5725 = vmul.bf16 %v5418, %v5629
      %v5726 = vmul.bf16 %v5420, %v5630
      %v5727 = vmul.bf16 %v5422, %v5631
      %v5728 = vmul.bf16 %v5424, %v5632
      %v5729 = vmul.bf16 %v5426, %v5633
      %v5730 = vmul.bf16 %v5428, %v5634
      %v5731 = vmul.bf16 %v5430, %v5635
      %v5732 = vmul.bf16 %v5432, %v5636
      %v5733 = vmul.bf16 %v5434, %v5637
      %v5734 = vmul.bf16 %v5436, %v5638
      %v5735 = vmul.bf16 %v5438, %v5639
      %v5736 = vmul.bf16 %v5440, %v5640
      %v5737 = vmul.bf16 %v5442, %v5641
      %v5738 = vmul.bf16 %v5444, %v5642
      %v5739 = vmul.bf16 %v5446, %v5643
      %v5740 = vmul.bf16 %v5448, %v5644
      %v5741 = vmul.bf16 %v5450, %v5645
      %v5742 = vmul.bf16 %v5452, %v5646
      %v5743 = vmul.bf16 %v5454, %v5647
      %v5744 = vmul.bf16 %v5456, %v5648
      %v5745 = vadd.bf16 %v5649, 1068908470
      %v5746 = vadd.bf16 %v5650, 1068908470
      %v5747 = vadd.bf16 %v5651, 1068908470
      %v5748 = vadd.bf16 %v5652, 1068908470
      %v5749 = vadd.bf16 %v5653, 1068908470
      %v5750 = vadd.bf16 %v5654, 1068908470
      %v5751 = vadd.bf16 %v5655, 1068908470
      %v5752 = vadd.bf16 %v5656, 1068908470
      %v5753 = vadd.bf16 %v5657, 1068908470
      %v5754 = vadd.bf16 %v5658, 1068908470
      %v5755 = vadd.bf16 %v5659, 1068908470
      %v5756 = vadd.bf16 %v5660, 1068908470
      %v5757 = vadd.bf16 %v5661, 1068908470
      %v5758 = vadd.bf16 %v5662, 1068908470
      %v5759 = vadd.bf16 %v5663, 1068908470
      %v5760 = vadd.bf16 %v5664, 1068908470
      %v5761 = vadd.bf16 %v5665, 1068908470
      %v5762 = vadd.bf16 %v5666, 1068908470
      %v5763 = vadd.bf16 %v5667, 1068908470
      %v5764 = vadd.bf16 %v5668, 1068908470
      %v5765 = vadd.bf16 %v5669, 1068908470
      %v5766 = vadd.bf16 %v5670, 1068908470
      %v5767 = vadd.bf16 %v5671, 1068908470
      %v5768 = vadd.bf16 %v5672, 1068908470
      %v5769 = vadd.bf16 %v5673, 1068908470
      %v5770 = vadd.bf16 %v5674, 1068908470
      %v5771 = vadd.bf16 %v5675, 1068908470
      %v5772 = vadd.bf16 %v5676, 1068908470
      %v5773 = vadd.bf16 %v5677, 1068908470
      %v5774 = vadd.bf16 %v5678, 1068908470
      %v5775 = vadd.bf16 %v5679, 1068908470
      %v5776 = vadd.bf16 %v5680, 1068908470
      %v5777 = vadd.bf16 %v5681, 1068908470
      %v5778 = vadd.bf16 %v5682, 1068908470
      %v5779 = vadd.bf16 %v5683, 1068908470
      %v5780 = vadd.bf16 %v5684, 1068908470
      %v5781 = vadd.bf16 %v5685, 1068908470
      %v5782 = vadd.bf16 %v5686, 1068908470
      %v5783 = vadd.bf16 %v5687, 1068908470
      %v5784 = vadd.bf16 %v5688, 1068908470
      %v5785 = vadd.bf16 %v5689, 1068908470
      %v5786 = vadd.bf16 %v5690, 1068908470
      %v5787 = vadd.bf16 %v5691, 1068908470
      %v5788 = vadd.bf16 %v5692, 1068908470
      %v5789 = vadd.bf16 %v5693, 1068908470
      %v5790 = vadd.bf16 %v5694, 1068908470
      %v5791 = vadd.bf16 %v5695, 1068908470
      %v5792 = vadd.bf16 %v5696, 1068908470
      %v5793 = vadd.bf16 %v5697, 1068908470
      %v5794 = vadd.bf16 %v5698, 1068908470
      %v5795 = vadd.bf16 %v5699, 1068908470
      %v5796 = vadd.bf16 %v5700, 1068908470
      %v5797 = vadd.bf16 %v5701, 1068908470
      %v5798 = vadd.bf16 %v5702, 1068908470
      %v5799 = vadd.bf16 %v5703, 1068908470
      %v5800 = vadd.bf16 %v5704, 1068908470
      %v5801 = vadd.bf16 %v5705, 1068908470
      %v5802 = vadd.bf16 %v5706, 1068908470
      %v5803 = vadd.bf16 %v5707, 1068908470
      %v5804 = vadd.bf16 %v5708, 1068908470
      %v5805 = vadd.bf16 %v5709, 1068908470
      %v5806 = vadd.bf16 %v5710, 1068908470
      %v5807 = vadd.bf16 %v5711, 1068908470
      %v5808 = vadd.bf16 %v5712, 1068908470
      %v5809 = vadd.bf16 %v5713, 1068908470
      %v5810 = vadd.bf16 %v5714, 1068908470
      %v5811 = vadd.bf16 %v5715, 1068908470
      %v5812 = vadd.bf16 %v5716, 1068908470
      %v5813 = vadd.bf16 %v5717, 1068908470
      %v5814 = vadd.bf16 %v5718, 1068908470
      %v5815 = vadd.bf16 %v5719, 1068908470
      %v5816 = vadd.bf16 %v5720, 1068908470
      %v5817 = vadd.bf16 %v5721, 1068908470
      %v5818 = vadd.bf16 %v5722, 1068908470
      %v5819 = vadd.bf16 %v5723, 1068908470
      %v5820 = vadd.bf16 %v5724, 1068908470
      %v5821 = vadd.bf16 %v5725, 1068908470
      %v5822 = vadd.bf16 %v5726, 1068908470
      %v5823 = vadd.bf16 %v5727, 1068908470
      %v5824 = vadd.bf16 %v5728, 1068908470
      %v5825 = vadd.bf16 %v5729, 1068908470
      %v5826 = vadd.bf16 %v5730, 1068908470
      %v5827 = vadd.bf16 %v5731, 1068908470
      %v5828 = vadd.bf16 %v5732, 1068908470
      %v5829 = vadd.bf16 %v5733, 1068908470
      %v5830 = vadd.bf16 %v5734, 1068908470
      %v5831 = vadd.bf16 %v5735, 1068908470
      %v5832 = vadd.bf16 %v5736, 1068908470
      %v5833 = vadd.bf16 %v5737, 1068908470
      %v5834 = vadd.bf16 %v5738, 1068908470
      %v5835 = vadd.bf16 %v5739, 1068908470
      %v5836 = vadd.bf16 %v5740, 1068908470
      %v5837 = vadd.bf16 %v5741, 1068908470
      %v5838 = vadd.bf16 %v5742, 1068908470
      %v5839 = vadd.bf16 %v5743, 1068908470
      %v5840 = vadd.bf16 %v5744, 1068908470
      %v5841 = vmul.bf16 %v5266, %v5745
      %v5842 = vmul.bf16 %v5268, %v5746
      %v5843 = vmul.bf16 %v5270, %v5747
      %v5844 = vmul.bf16 %v5272, %v5748
      %v5845 = vmul.bf16 %v5274, %v5749
      %v5846 = vmul.bf16 %v5276, %v5750
      %v5847 = vmul.bf16 %v5278, %v5751
      %v5848 = vmul.bf16 %v5280, %v5752
      %v5849 = vmul.bf16 %v5282, %v5753
      %v5850 = vmul.bf16 %v5284, %v5754
      %v5851 = vmul.bf16 %v5286, %v5755
      %v5852 = vmul.bf16 %v5288, %v5756
      %v5853 = vmul.bf16 %v5290, %v5757
      %v5854 = vmul.bf16 %v5292, %v5758
      %v5855 = vmul.bf16 %v5294, %v5759
      %v5856 = vmul.bf16 %v5296, %v5760
      %v5857 = vmul.bf16 %v5298, %v5761
      %v5858 = vmul.bf16 %v5300, %v5762
      %v5859 = vmul.bf16 %v5302, %v5763
      %v5860 = vmul.bf16 %v5304, %v5764
      %v5861 = vmul.bf16 %v5306, %v5765
      %v5862 = vmul.bf16 %v5308, %v5766
      %v5863 = vmul.bf16 %v5310, %v5767
      %v5864 = vmul.bf16 %v5312, %v5768
      %v5865 = vmul.bf16 %v5314, %v5769
      %v5866 = vmul.bf16 %v5316, %v5770
      %v5867 = vmul.bf16 %v5318, %v5771
      %v5868 = vmul.bf16 %v5320, %v5772
      %v5869 = vmul.bf16 %v5322, %v5773
      %v5870 = vmul.bf16 %v5324, %v5774
      %v5871 = vmul.bf16 %v5326, %v5775
      %v5872 = vmul.bf16 %v5328, %v5776
      %v5873 = vmul.bf16 %v5330, %v5777
      %v5874 = vmul.bf16 %v5332, %v5778
      %v5875 = vmul.bf16 %v5334, %v5779
      %v5876 = vmul.bf16 %v5336, %v5780
      %v5877 = vmul.bf16 %v5338, %v5781
      %v5878 = vmul.bf16 %v5340, %v5782
      %v5879 = vmul.bf16 %v5342, %v5783
      %v5880 = vmul.bf16 %v5344, %v5784
      %v5881 = vmul.bf16 %v5346, %v5785
      %v5882 = vmul.bf16 %v5348, %v5786
      %v5883 = vmul.bf16 %v5350, %v5787
      %v5884 = vmul.bf16 %v5352, %v5788
      %v5885 = vmul.bf16 %v5354, %v5789
      %v5886 = vmul.bf16 %v5356, %v5790
      %v5887 = vmul.bf16 %v5358, %v5791
      %v5888 = vmul.bf16 %v5360, %v5792
      %v5889 = vmul.bf16 %v5362, %v5793
      %v5890 = vmul.bf16 %v5364, %v5794
      %v5891 = vmul.bf16 %v5366, %v5795
      %v5892 = vmul.bf16 %v5368, %v5796
      %v5893 = vmul.bf16 %v5370, %v5797
      %v5894 = vmul.bf16 %v5372, %v5798
      %v5895 = vmul.bf16 %v5374, %v5799
      %v5896 = vmul.bf16 %v5376, %v5800
      %v5897 = vmul.bf16 %v5378, %v5801
      %v5898 = vmul.bf16 %v5380, %v5802
      %v5899 = vmul.bf16 %v5382, %v5803
      %v5900 = vmul.bf16 %v5384, %v5804
      %v5901 = vmul.bf16 %v5386, %v5805
      %v5902 = vmul.bf16 %v5388, %v5806
      %v5903 = vmul.bf16 %v5390, %v5807
      %v5904 = vmul.bf16 %v5392, %v5808
      %v5905 = vmul.bf16 %v5394, %v5809
      %v5906 = vmul.bf16 %v5396, %v5810
      %v5907 = vmul.bf16 %v5398, %v5811
      %v5908 = vmul.bf16 %v5400, %v5812
      %v5909 = vmul.bf16 %v5402, %v5813
      %v5910 = vmul.bf16 %v5404, %v5814
      %v5911 = vmul.bf16 %v5406, %v5815
      %v5912 = vmul.bf16 %v5408, %v5816
      %v5913 = vmul.bf16 %v5410, %v5817
      %v5914 = vmul.bf16 %v5412, %v5818
      %v5915 = vmul.bf16 %v5414, %v5819
      %v5916 = vmul.bf16 %v5416, %v5820
      %v5917 = vmul.bf16 %v5418, %v5821
      %v5918 = vmul.bf16 %v5420, %v5822
      %v5919 = vmul.bf16 %v5422, %v5823
      %v5920 = vmul.bf16 %v5424, %v5824
      %v5921 = vmul.bf16 %v5426, %v5825
      %v5922 = vmul.bf16 %v5428, %v5826
      %v5923 = vmul.bf16 %v5430, %v5827
      %v5924 = vmul.bf16 %v5432, %v5828
      %v5925 = vmul.bf16 %v5434, %v5829
      %v5926 = vmul.bf16 %v5436, %v5830
      %v5927 = vmul.bf16 %v5438, %v5831
      %v5928 = vmul.bf16 %v5440, %v5832
      %v5929 = vmul.bf16 %v5442, %v5833
      %v5930 = vmul.bf16 %v5444, %v5834
      %v5931 = vmul.bf16 %v5446, %v5835
      %v5932 = vmul.bf16 %v5448, %v5836
      %v5933 = vmul.bf16 %v5450, %v5837
      %v5934 = vmul.bf16 %v5452, %v5838
      %v5935 = vmul.bf16 %v5454, %v5839
      %v5936 = vmul.bf16 %v5456, %v5840
      %v5937 = vadd.bf16 %v5841, 3197288082
      %v5938 = vadd.bf16 %v5842, 3197288082
      %v5939 = vadd.bf16 %v5843, 3197288082
      %v5940 = vadd.bf16 %v5844, 3197288082
      %v5941 = vadd.bf16 %v5845, 3197288082
      %v5942 = vadd.bf16 %v5846, 3197288082
      %v5943 = vadd.bf16 %v5847, 3197288082
      %v5944 = vadd.bf16 %v5848, 3197288082
      %v5945 = vadd.bf16 %v5849, 3197288082
      %v5946 = vadd.bf16 %v5850, 3197288082
      %v5947 = vadd.bf16 %v5851, 3197288082
      %v5948 = vadd.bf16 %v5852, 3197288082
      %v5949 = vadd.bf16 %v5853, 3197288082
      %v5950 = vadd.bf16 %v5854, 3197288082
      %v5951 = vadd.bf16 %v5855, 3197288082
      %v5952 = vadd.bf16 %v5856, 3197288082
      %v5953 = vadd.bf16 %v5857, 3197288082
      %v5954 = vadd.bf16 %v5858, 3197288082
      %v5955 = vadd.bf16 %v5859, 3197288082
      %v5956 = vadd.bf16 %v5860, 3197288082
      %v5957 = vadd.bf16 %v5861, 3197288082
      %v5958 = vadd.bf16 %v5862, 3197288082
      %v5959 = vadd.bf16 %v5863, 3197288082
      %v5960 = vadd.bf16 %v5864, 3197288082
      %v5961 = vadd.bf16 %v5865, 3197288082
      %v5962 = vadd.bf16 %v5866, 3197288082
      %v5963 = vadd.bf16 %v5867, 3197288082
      %v5964 = vadd.bf16 %v5868, 3197288082
      %v5965 = vadd.bf16 %v5869, 3197288082
      %v5966 = vadd.bf16 %v5870, 3197288082
      %v5967 = vadd.bf16 %v5871, 3197288082
      %v5968 = vadd.bf16 %v5872, 3197288082
      %v5969 = vadd.bf16 %v5873, 3197288082
      %v5970 = vadd.bf16 %v5874, 3197288082
      %v5971 = vadd.bf16 %v5875, 3197288082
      %v5972 = vadd.bf16 %v5876, 3197288082
      %v5973 = vadd.bf16 %v5877, 3197288082
      %v5974 = vadd.bf16 %v5878, 3197288082
      %v5975 = vadd.bf16 %v5879, 3197288082
      %v5976 = vadd.bf16 %v5880, 3197288082
      %v5977 = vadd.bf16 %v5881, 3197288082
      %v5978 = vadd.bf16 %v5882, 3197288082
      %v5979 = vadd.bf16 %v5883, 3197288082
      %v5980 = vadd.bf16 %v5884, 3197288082
      %v5981 = vadd.bf16 %v5885, 3197288082
      %v5982 = vadd.bf16 %v5886, 3197288082
      %v5983 = vadd.bf16 %v5887, 3197288082
      %v5984 = vadd.bf16 %v5888, 3197288082
      %v5985 = vadd.bf16 %v5889, 3197288082
      %v5986 = vadd.bf16 %v5890, 3197288082
      %v5987 = vadd.bf16 %v5891, 3197288082
      %v5988 = vadd.bf16 %v5892, 3197288082
      %v5989 = vadd.bf16 %v5893, 3197288082
      %v5990 = vadd.bf16 %v5894, 3197288082
      %v5991 = vadd.bf16 %v5895, 3197288082
      %v5992 = vadd.bf16 %v5896, 3197288082
      %v5993 = vadd.bf16 %v5897, 3197288082
      %v5994 = vadd.bf16 %v5898, 3197288082
      %v5995 = vadd.bf16 %v5899, 3197288082
      %v5996 = vadd.bf16 %v5900, 3197288082
      %v5997 = vadd.bf16 %v5901, 3197288082
      %v5998 = vadd.bf16 %v5902, 3197288082
      %v5999 = vadd.bf16 %v5903, 3197288082
      %v6000 = vadd.bf16 %v5904, 3197288082
      %v6001 = vadd.bf16 %v5905, 3197288082
      %v6002 = vadd.bf16 %v5906, 3197288082
      %v6003 = vadd.bf16 %v5907, 3197288082
      %v6004 = vadd.bf16 %v5908, 3197288082
      %v6005 = vadd.bf16 %v5909, 3197288082
      %v6006 = vadd.bf16 %v5910, 3197288082
      %v6007 = vadd.bf16 %v5911, 3197288082
      %v6008 = vadd.bf16 %v5912, 3197288082
      %v6009 = vadd.bf16 %v5913, 3197288082
      %v6010 = vadd.bf16 %v5914, 3197288082
      %v6011 = vadd.bf16 %v5915, 3197288082
      %v6012 = vadd.bf16 %v5916, 3197288082
      %v6013 = vadd.bf16 %v5917, 3197288082
      %v6014 = vadd.bf16 %v5918, 3197288082
      %v6015 = vadd.bf16 %v5919, 3197288082
      %v6016 = vadd.bf16 %v5920, 3197288082
      %v6017 = vadd.bf16 %v5921, 3197288082
      %v6018 = vadd.bf16 %v5922, 3197288082
      %v6019 = vadd.bf16 %v5923, 3197288082
      %v6020 = vadd.bf16 %v5924, 3197288082
      %v6021 = vadd.bf16 %v5925, 3197288082
      %v6022 = vadd.bf16 %v5926, 3197288082
      %v6023 = vadd.bf16 %v5927, 3197288082
      %v6024 = vadd.bf16 %v5928, 3197288082
      %v6025 = vadd.bf16 %v5929, 3197288082
      %v6026 = vadd.bf16 %v5930, 3197288082
      %v6027 = vadd.bf16 %v5931, 3197288082
      %v6028 = vadd.bf16 %v5932, 3197288082
      %v6029 = vadd.bf16 %v5933, 3197288082
      %v6030 = vadd.bf16 %v5934, 3197288082
      %v6031 = vadd.bf16 %v5935, 3197288082
      %v6032 = vadd.bf16 %v5936, 3197288082
      %v6033 = vmul.bf16 %v5266, %v5937
      %v6034 = vmul.bf16 %v5268, %v5938
      %v6035 = vmul.bf16 %v5270, %v5939
      %v6036 = vmul.bf16 %v5272, %v5940
      %v6037 = vmul.bf16 %v5274, %v5941
      %v6038 = vmul.bf16 %v5276, %v5942
      %v6039 = vmul.bf16 %v5278, %v5943
      %v6040 = vmul.bf16 %v5280, %v5944
      %v6041 = vmul.bf16 %v5282, %v5945
      %v6042 = vmul.bf16 %v5284, %v5946
      %v6043 = vmul.bf16 %v5286, %v5947
      %v6044 = vmul.bf16 %v5288, %v5948
      %v6045 = vmul.bf16 %v5290, %v5949
      %v6046 = vmul.bf16 %v5292, %v5950
      %v6047 = vmul.bf16 %v5294, %v5951
      %v6048 = vmul.bf16 %v5296, %v5952
      %v6049 = vmul.bf16 %v5298, %v5953
      %v6050 = vmul.bf16 %v5300, %v5954
      %v6051 = vmul.bf16 %v5302, %v5955
      %v6052 = vmul.bf16 %v5304, %v5956
      %v6053 = vmul.bf16 %v5306, %v5957
      %v6054 = vmul.bf16 %v5308, %v5958
      %v6055 = vmul.bf16 %v5310, %v5959
      %v6056 = vmul.bf16 %v5312, %v5960
      %v6057 = vmul.bf16 %v5314, %v5961
      %v6058 = vmul.bf16 %v5316, %v5962
      %v6059 = vmul.bf16 %v5318, %v5963
      %v6060 = vmul.bf16 %v5320, %v5964
      %v6061 = vmul.bf16 %v5322, %v5965
      %v6062 = vmul.bf16 %v5324, %v5966
      %v6063 = vmul.bf16 %v5326, %v5967
      %v6064 = vmul.bf16 %v5328, %v5968
      %v6065 = vmul.bf16 %v5330, %v5969
      %v6066 = vmul.bf16 %v5332, %v5970
      %v6067 = vmul.bf16 %v5334, %v5971
      %v6068 = vmul.bf16 %v5336, %v5972
      %v6069 = vmul.bf16 %v5338, %v5973
      %v6070 = vmul.bf16 %v5340, %v5974
      %v6071 = vmul.bf16 %v5342, %v5975
      %v6072 = vmul.bf16 %v5344, %v5976
      %v6073 = vmul.bf16 %v5346, %v5977
      %v6074 = vmul.bf16 %v5348, %v5978
      %v6075 = vmul.bf16 %v5350, %v5979
      %v6076 = vmul.bf16 %v5352, %v5980
      %v6077 = vmul.bf16 %v5354, %v5981
      %v6078 = vmul.bf16 %v5356, %v5982
      %v6079 = vmul.bf16 %v5358, %v5983
      %v6080 = vmul.bf16 %v5360, %v5984
      %v6081 = vmul.bf16 %v5362, %v5985
      %v6082 = vmul.bf16 %v5364, %v5986
      %v6083 = vmul.bf16 %v5366, %v5987
      %v6084 = vmul.bf16 %v5368, %v5988
      %v6085 = vmul.bf16 %v5370, %v5989
      %v6086 = vmul.bf16 %v5372, %v5990
      %v6087 = vmul.bf16 %v5374, %v5991
      %v6088 = vmul.bf16 %v5376, %v5992
      %v6089 = vmul.bf16 %v5378, %v5993
      %v6090 = vmul.bf16 %v5380, %v5994
      %v6091 = vmul.bf16 %v5382, %v5995
      %v6092 = vmul.bf16 %v5384, %v5996
      %v6093 = vmul.bf16 %v5386, %v5997
      %v6094 = vmul.bf16 %v5388, %v5998
      %v6095 = vmul.bf16 %v5390, %v5999
      %v6096 = vmul.bf16 %v5392, %v6000
      %v6097 = vmul.bf16 %v5394, %v6001
      %v6098 = vmul.bf16 %v5396, %v6002
      %v6099 = vmul.bf16 %v5398, %v6003
      %v6100 = vmul.bf16 %v5400, %v6004
      %v6101 = vmul.bf16 %v5402, %v6005
      %v6102 = vmul.bf16 %v5404, %v6006
      %v6103 = vmul.bf16 %v5406, %v6007
      %v6104 = vmul.bf16 %v5408, %v6008
      %v6105 = vmul.bf16 %v5410, %v6009
      %v6106 = vmul.bf16 %v5412, %v6010
      %v6107 = vmul.bf16 %v5414, %v6011
      %v6108 = vmul.bf16 %v5416, %v6012
      %v6109 = vmul.bf16 %v5418, %v6013
      %v6110 = vmul.bf16 %v5420, %v6014
      %v6111 = vmul.bf16 %v5422, %v6015
      %v6112 = vmul.bf16 %v5424, %v6016
      %v6113 = vmul.bf16 %v5426, %v6017
      %v6114 = vmul.bf16 %v5428, %v6018
      %v6115 = vmul.bf16 %v5430, %v6019
      %v6116 = vmul.bf16 %v5432, %v6020
      %v6117 = vmul.bf16 %v5434, %v6021
      %v6118 = vmul.bf16 %v5436, %v6022
      %v6119 = vmul.bf16 %v5438, %v6023
      %v6120 = vmul.bf16 %v5440, %v6024
      %v6121 = vmul.bf16 %v5442, %v6025
      %v6122 = vmul.bf16 %v5444, %v6026
      %v6123 = vmul.bf16 %v5446, %v6027
      %v6124 = vmul.bf16 %v5448, %v6028
      %v6125 = vmul.bf16 %v5450, %v6029
      %v6126 = vmul.bf16 %v5452, %v6030
      %v6127 = vmul.bf16 %v5454, %v6031
      %v6128 = vmul.bf16 %v5456, %v6032
      %v6129 = vadd.bf16 %v6033, 1048723074
      %v6130 = vadd.bf16 %v6034, 1048723074
      %v6131 = vadd.bf16 %v6035, 1048723074
      %v6132 = vadd.bf16 %v6036, 1048723074
      %v6133 = vadd.bf16 %v6037, 1048723074
      %v6134 = vadd.bf16 %v6038, 1048723074
      %v6135 = vadd.bf16 %v6039, 1048723074
      %v6136 = vadd.bf16 %v6040, 1048723074
      %v6137 = vadd.bf16 %v6041, 1048723074
      %v6138 = vadd.bf16 %v6042, 1048723074
      %v6139 = vadd.bf16 %v6043, 1048723074
      %v6140 = vadd.bf16 %v6044, 1048723074
      %v6141 = vadd.bf16 %v6045, 1048723074
      %v6142 = vadd.bf16 %v6046, 1048723074
      %v6143 = vadd.bf16 %v6047, 1048723074
      %v6144 = vadd.bf16 %v6048, 1048723074
      %v6145 = vadd.bf16 %v6049, 1048723074
      %v6146 = vadd.bf16 %v6050, 1048723074
      %v6147 = vadd.bf16 %v6051, 1048723074
      %v6148 = vadd.bf16 %v6052, 1048723074
      %v6149 = vadd.bf16 %v6053, 1048723074
      %v6150 = vadd.bf16 %v6054, 1048723074
      %v6151 = vadd.bf16 %v6055, 1048723074
      %v6152 = vadd.bf16 %v6056, 1048723074
      %v6153 = vadd.bf16 %v6057, 1048723074
      %v6154 = vadd.bf16 %v6058, 1048723074
      %v6155 = vadd.bf16 %v6059, 1048723074
      %v6156 = vadd.bf16 %v6060, 1048723074
      %v6157 = vadd.bf16 %v6061, 1048723074
      %v6158 = vadd.bf16 %v6062, 1048723074
      %v6159 = vadd.bf16 %v6063, 1048723074
      %v6160 = vadd.bf16 %v6064, 1048723074
      %v6161 = vadd.bf16 %v6065, 1048723074
      %v6162 = vadd.bf16 %v6066, 1048723074
      %v6163 = vadd.bf16 %v6067, 1048723074
      %v6164 = vadd.bf16 %v6068, 1048723074
      %v6165 = vadd.bf16 %v6069, 1048723074
      %v6166 = vadd.bf16 %v6070, 1048723074
      %v6167 = vadd.bf16 %v6071, 1048723074
      %v6168 = vadd.bf16 %v6072, 1048723074
      %v6169 = vadd.bf16 %v6073, 1048723074
      %v6170 = vadd.bf16 %v6074, 1048723074
      %v6171 = vadd.bf16 %v6075, 1048723074
      %v6172 = vadd.bf16 %v6076, 1048723074
      %v6173 = vadd.bf16 %v6077, 1048723074
      %v6174 = vadd.bf16 %v6078, 1048723074
      %v6175 = vadd.bf16 %v6079, 1048723074
      %v6176 = vadd.bf16 %v6080, 1048723074
      %v6177 = vadd.bf16 %v6081, 1048723074
      %v6178 = vadd.bf16 %v6082, 1048723074
      %v6179 = vadd.bf16 %v6083, 1048723074
      %v6180 = vadd.bf16 %v6084, 1048723074
      %v6181 = vadd.bf16 %v6085, 1048723074
      %v6182 = vadd.bf16 %v6086, 1048723074
      %v6183 = vadd.bf16 %v6087, 1048723074
      %v6184 = vadd.bf16 %v6088, 1048723074
      %v6185 = vadd.bf16 %v6089, 1048723074
      %v6186 = vadd.bf16 %v6090, 1048723074
      %v6187 = vadd.bf16 %v6091, 1048723074
      %v6188 = vadd.bf16 %v6092, 1048723074
      %v6189 = vadd.bf16 %v6093, 1048723074
      %v6190 = vadd.bf16 %v6094, 1048723074
      %v6191 = vadd.bf16 %v6095, 1048723074
      %v6192 = vadd.bf16 %v6096, 1048723074
      %v6193 = vadd.bf16 %v6097, 1048723074
      %v6194 = vadd.bf16 %v6098, 1048723074
      %v6195 = vadd.bf16 %v6099, 1048723074
      %v6196 = vadd.bf16 %v6100, 1048723074
      %v6197 = vadd.bf16 %v6101, 1048723074
      %v6198 = vadd.bf16 %v6102, 1048723074
      %v6199 = vadd.bf16 %v6103, 1048723074
      %v6200 = vadd.bf16 %v6104, 1048723074
      %v6201 = vadd.bf16 %v6105, 1048723074
      %v6202 = vadd.bf16 %v6106, 1048723074
      %v6203 = vadd.bf16 %v6107, 1048723074
      %v6204 = vadd.bf16 %v6108, 1048723074
      %v6205 = vadd.bf16 %v6109, 1048723074
      %v6206 = vadd.bf16 %v6110, 1048723074
      %v6207 = vadd.bf16 %v6111, 1048723074
      %v6208 = vadd.bf16 %v6112, 1048723074
      %v6209 = vadd.bf16 %v6113, 1048723074
      %v6210 = vadd.bf16 %v6114, 1048723074
      %v6211 = vadd.bf16 %v6115, 1048723074
      %v6212 = vadd.bf16 %v6116, 1048723074
      %v6213 = vadd.bf16 %v6117, 1048723074
      %v6214 = vadd.bf16 %v6118, 1048723074
      %v6215 = vadd.bf16 %v6119, 1048723074
      %v6216 = vadd.bf16 %v6120, 1048723074
      %v6217 = vadd.bf16 %v6121, 1048723074
      %v6218 = vadd.bf16 %v6122, 1048723074
      %v6219 = vadd.bf16 %v6123, 1048723074
      %v6220 = vadd.bf16 %v6124, 1048723074
      %v6221 = vadd.bf16 %v6125, 1048723074
      %v6222 = vadd.bf16 %v6126, 1048723074
      %v6223 = vadd.bf16 %v6127, 1048723074
      %v6224 = vadd.bf16 %v6128, 1048723074
      %v6225 = vmul.bf16 %v5266, %v6129
      %v6226 = vmul.bf16 %v5268, %v6130
      %v6227 = vmul.bf16 %v5270, %v6131
      %v6228 = vmul.bf16 %v5272, %v6132
      %v6229 = vmul.bf16 %v5274, %v6133
      %v6230 = vmul.bf16 %v5276, %v6134
      %v6231 = vmul.bf16 %v5278, %v6135
      %v6232 = vmul.bf16 %v5280, %v6136
      %v6233 = vmul.bf16 %v5282, %v6137
      %v6234 = vmul.bf16 %v5284, %v6138
      %v6235 = vmul.bf16 %v5286, %v6139
      %v6236 = vmul.bf16 %v5288, %v6140
      %v6237 = vmul.bf16 %v5290, %v6141
      %v6238 = vmul.bf16 %v5292, %v6142
      %v6239 = vmul.bf16 %v5294, %v6143
      %v6240 = vmul.bf16 %v5296, %v6144
      %v6241 = vmul.bf16 %v5298, %v6145
      %v6242 = vmul.bf16 %v5300, %v6146
      %v6243 = vmul.bf16 %v5302, %v6147
      %v6244 = vmul.bf16 %v5304, %v6148
      %v6245 = vmul.bf16 %v5306, %v6149
      %v6246 = vmul.bf16 %v5308, %v6150
      %v6247 = vmul.bf16 %v5310, %v6151
      %v6248 = vmul.bf16 %v5312, %v6152
      %v6249 = vmul.bf16 %v5314, %v6153
      %v6250 = vmul.bf16 %v5316, %v6154
      %v6251 = vmul.bf16 %v5318, %v6155
      %v6252 = vmul.bf16 %v5320, %v6156
      %v6253 = vmul.bf16 %v5322, %v6157
      %v6254 = vmul.bf16 %v5324, %v6158
      %v6255 = vmul.bf16 %v5326, %v6159
      %v6256 = vmul.bf16 %v5328, %v6160
      %v6257 = vmul.bf16 %v5330, %v6161
      %v6258 = vmul.bf16 %v5332, %v6162
      %v6259 = vmul.bf16 %v5334, %v6163
      %v6260 = vmul.bf16 %v5336, %v6164
      %v6261 = vmul.bf16 %v5338, %v6165
      %v6262 = vmul.bf16 %v5340, %v6166
      %v6263 = vmul.bf16 %v5342, %v6167
      %v6264 = vmul.bf16 %v5344, %v6168
      %v6265 = vmul.bf16 %v5346, %v6169
      %v6266 = vmul.bf16 %v5348, %v6170
      %v6267 = vmul.bf16 %v5350, %v6171
      %v6268 = vmul.bf16 %v5352, %v6172
      %v6269 = vmul.bf16 %v5354, %v6173
      %v6270 = vmul.bf16 %v5356, %v6174
      %v6271 = vmul.bf16 %v5358, %v6175
      %v6272 = vmul.bf16 %v5360, %v6176
      %v6273 = vmul.bf16 %v5362, %v6177
      %v6274 = vmul.bf16 %v5364, %v6178
      %v6275 = vmul.bf16 %v5366, %v6179
      %v6276 = vmul.bf16 %v5368, %v6180
      %v6277 = vmul.bf16 %v5370, %v6181
      %v6278 = vmul.bf16 %v5372, %v6182
      %v6279 = vmul.bf16 %v5374, %v6183
      %v6280 = vmul.bf16 %v5376, %v6184
      %v6281 = vmul.bf16 %v5378, %v6185
      %v6282 = vmul.bf16 %v5380, %v6186
      %v6283 = vmul.bf16 %v5382, %v6187
      %v6284 = vmul.bf16 %v5384, %v6188
      %v6285 = vmul.bf16 %v5386, %v6189
      %v6286 = vmul.bf16 %v5388, %v6190
      %v6287 = vmul.bf16 %v5390, %v6191
      %v6288 = vmul.bf16 %v5392, %v6192
      %v6289 = vmul.bf16 %v5394, %v6193
      %v6290 = vmul.bf16 %v5396, %v6194
      %v6291 = vmul.bf16 %v5398, %v6195
      %v6292 = vmul.bf16 %v5400, %v6196
      %v6293 = vmul.bf16 %v5402, %v6197
      %v6294 = vmul.bf16 %v5404, %v6198
      %v6295 = vmul.bf16 %v5406, %v6199
      %v6296 = vmul.bf16 %v5408, %v6200
      %v6297 = vmul.bf16 %v5410, %v6201
      %v6298 = vmul.bf16 %v5412, %v6202
      %v6299 = vmul.bf16 %v5414, %v6203
      %v6300 = vmul.bf16 %v5416, %v6204
      %v6301 = vmul.bf16 %v5418, %v6205
      %v6302 = vmul.bf16 %v5420, %v6206
      %v6303 = vmul.bf16 %v5422, %v6207
      %v6304 = vmul.bf16 %v5424, %v6208
      %v6305 = vmul.bf16 %v5426, %v6209
      %v6306 = vmul.bf16 %v5428, %v6210
      %v6307 = vmul.bf16 %v5430, %v6211
      %v6308 = vmul.bf16 %v5432, %v6212
      %v6309 = vmul.bf16 %v5434, %v6213
      %v6310 = vmul.bf16 %v5436, %v6214
      %v6311 = vmul.bf16 %v5438, %v6215
      %v6312 = vmul.bf16 %v5440, %v6216
      %v6313 = vmul.bf16 %v5442, %v6217
      %v6314 = vmul.bf16 %v5444, %v6218
      %v6315 = vmul.bf16 %v5446, %v6219
      %v6316 = vmul.bf16 %v5448, %v6220
      %v6317 = vmul.bf16 %v5450, %v6221
      %v6318 = vmul.bf16 %v5452, %v6222
      %v6319 = vmul.bf16 %v5454, %v6223
      %v6320 = vmul.bf16 %v5456, %v6224
      %v6321 = vsub.bf16 0, %v4977
      %v6322 = vsub.bf16 0, %v4978
      %v6323 = vsub.bf16 0, %v4979
      %v6324 = vsub.bf16 0, %v4980
      %v6325 = vsub.bf16 0, %v4981
      %v6326 = vsub.bf16 0, %v4982
      %v6327 = vsub.bf16 0, %v4983
      %v6328 = vsub.bf16 0, %v4984
      %v6329 = vsub.bf16 0, %v4985
      %v6330 = vsub.bf16 0, %v4986
      %v6331 = vsub.bf16 0, %v4987
      %v6332 = vsub.bf16 0, %v4988
      %v6333 = vsub.bf16 0, %v4989
      %v6334 = vsub.bf16 0, %v4990
      %v6335 = vsub.bf16 0, %v4991
      %v6336 = vsub.bf16 0, %v4992
      %v6337 = vsub.bf16 0, %v4993
      %v6338 = vsub.bf16 0, %v4994
      %v6339 = vsub.bf16 0, %v4995
      %v6340 = vsub.bf16 0, %v4996
      %v6341 = vsub.bf16 0, %v4997
      %v6342 = vsub.bf16 0, %v4998
      %v6343 = vsub.bf16 0, %v4999
      %v6344 = vsub.bf16 0, %v5000
      %v6345 = vsub.bf16 0, %v5001
      %v6346 = vsub.bf16 0, %v5002
      %v6347 = vsub.bf16 0, %v5003
      %v6348 = vsub.bf16 0, %v5004
      %v6349 = vsub.bf16 0, %v5005
      %v6350 = vsub.bf16 0, %v5006
      %v6351 = vsub.bf16 0, %v5007
      %v6352 = vsub.bf16 0, %v5008
      %v6353 = vsub.bf16 0, %v5009
      %v6354 = vsub.bf16 0, %v5010
      %v6355 = vsub.bf16 0, %v5011
      %v6356 = vsub.bf16 0, %v5012
      %v6357 = vsub.bf16 0, %v5013
      %v6358 = vsub.bf16 0, %v5014
      %v6359 = vsub.bf16 0, %v5015
      %v6360 = vsub.bf16 0, %v5016
      %v6361 = vsub.bf16 0, %v5017
      %v6362 = vsub.bf16 0, %v5018
      %v6363 = vsub.bf16 0, %v5019
      %v6364 = vsub.bf16 0, %v5020
      %v6365 = vsub.bf16 0, %v5021
      %v6366 = vsub.bf16 0, %v5022
      %v6367 = vsub.bf16 0, %v5023
      %v6368 = vsub.bf16 0, %v5024
      %v6369 = vsub.bf16 0, %v5025
      %v6370 = vsub.bf16 0, %v5026
      %v6371 = vsub.bf16 0, %v5027
      %v6372 = vsub.bf16 0, %v5028
      %v6373 = vsub.bf16 0, %v5029
      %v6374 = vsub.bf16 0, %v5030
      %v6375 = vsub.bf16 0, %v5031
      %v6376 = vsub.bf16 0, %v5032
      %v6377 = vsub.bf16 0, %v5033
      %v6378 = vsub.bf16 0, %v5034
      %v6379 = vsub.bf16 0, %v5035
      %v6380 = vsub.bf16 0, %v5036
      %v6381 = vsub.bf16 0, %v5037
      %v6382 = vsub.bf16 0, %v5038
      %v6383 = vsub.bf16 0, %v5039
      %v6384 = vsub.bf16 0, %v5040
      %v6385 = vsub.bf16 0, %v5041
      %v6386 = vsub.bf16 0, %v5042
      %v6387 = vsub.bf16 0, %v5043
      %v6388 = vsub.bf16 0, %v5044
      %v6389 = vsub.bf16 0, %v5045
      %v6390 = vsub.bf16 0, %v5046
      %v6391 = vsub.bf16 0, %v5047
      %v6392 = vsub.bf16 0, %v5048
      %v6393 = vsub.bf16 0, %v5049
      %v6394 = vsub.bf16 0, %v5050
      %v6395 = vsub.bf16 0, %v5051
      %v6396 = vsub.bf16 0, %v5052
      %v6397 = vsub.bf16 0, %v5053
      %v6398 = vsub.bf16 0, %v5054
      %v6399 = vsub.bf16 0, %v5055
      %v6400 = vsub.bf16 0, %v5056
      %v6401 = vsub.bf16 0, %v5057
      %v6402 = vsub.bf16 0, %v5058
      %v6403 = vsub.bf16 0, %v5059
      %v6404 = vsub.bf16 0, %v5060
      %v6405 = vsub.bf16 0, %v5061
      %v6406 = vsub.bf16 0, %v5062
      %v6407 = vsub.bf16 0, %v5063
      %v6408 = vsub.bf16 0, %v5064
      %v6409 = vsub.bf16 0, %v5065
      %v6410 = vsub.bf16 0, %v5066
      %v6411 = vsub.bf16 0, %v5067
      %v6412 = vsub.bf16 0, %v5068
      %v6413 = vsub.bf16 0, %v5069
      %v6414 = vsub.bf16 0, %v5070
      %v6415 = vsub.bf16 0, %v5071
      %v6416 = vsub.bf16 0, %v5072
      %v6417 = vmul.bf16 %v6321, %v4977
      %v6418 = vmul.bf16 %v6322, %v4978
      %v6419 = vmul.bf16 %v6323, %v4979
      %v6420 = vmul.bf16 %v6324, %v4980
      %v6421 = vmul.bf16 %v6325, %v4981
      %v6422 = vmul.bf16 %v6326, %v4982
      %v6423 = vmul.bf16 %v6327, %v4983
      %v6424 = vmul.bf16 %v6328, %v4984
      %v6425 = vmul.bf16 %v6329, %v4985
      %v6426 = vmul.bf16 %v6330, %v4986
      %v6427 = vmul.bf16 %v6331, %v4987
      %v6428 = vmul.bf16 %v6332, %v4988
      %v6429 = vmul.bf16 %v6333, %v4989
      %v6430 = vmul.bf16 %v6334, %v4990
      %v6431 = vmul.bf16 %v6335, %v4991
      %v6432 = vmul.bf16 %v6336, %v4992
      %v6433 = vmul.bf16 %v6337, %v4993
      %v6434 = vmul.bf16 %v6338, %v4994
      %v6435 = vmul.bf16 %v6339, %v4995
      %v6436 = vmul.bf16 %v6340, %v4996
      %v6437 = vmul.bf16 %v6341, %v4997
      %v6438 = vmul.bf16 %v6342, %v4998
      %v6439 = vmul.bf16 %v6343, %v4999
      %v6440 = vmul.bf16 %v6344, %v5000
      %v6441 = vmul.bf16 %v6345, %v5001
      %v6442 = vmul.bf16 %v6346, %v5002
      %v6443 = vmul.bf16 %v6347, %v5003
      %v6444 = vmul.bf16 %v6348, %v5004
      %v6445 = vmul.bf16 %v6349, %v5005
      %v6446 = vmul.bf16 %v6350, %v5006
      %v6447 = vmul.bf16 %v6351, %v5007
      %v6448 = vmul.bf16 %v6352, %v5008
      %v6449 = vmul.bf16 %v6353, %v5009
      %v6450 = vmul.bf16 %v6354, %v5010
      %v6451 = vmul.bf16 %v6355, %v5011
      %v6452 = vmul.bf16 %v6356, %v5012
      %v6453 = vmul.bf16 %v6357, %v5013
      %v6454 = vmul.bf16 %v6358, %v5014
      %v6455 = vmul.bf16 %v6359, %v5015
      %v6456 = vmul.bf16 %v6360, %v5016
      %v6457 = vmul.bf16 %v6361, %v5017
      %v6458 = vmul.bf16 %v6362, %v5018
      %v6459 = vmul.bf16 %v6363, %v5019
      %v6460 = vmul.bf16 %v6364, %v5020
      %v6461 = vmul.bf16 %v6365, %v5021
      %v6462 = vmul.bf16 %v6366, %v5022
      %v6463 = vmul.bf16 %v6367, %v5023
      %v6464 = vmul.bf16 %v6368, %v5024
      %v6465 = vmul.bf16 %v6369, %v5025
      %v6466 = vmul.bf16 %v6370, %v5026
      %v6467 = vmul.bf16 %v6371, %v5027
      %v6468 = vmul.bf16 %v6372, %v5028
      %v6469 = vmul.bf16 %v6373, %v5029
      %v6470 = vmul.bf16 %v6374, %v5030
      %v6471 = vmul.bf16 %v6375, %v5031
      %v6472 = vmul.bf16 %v6376, %v5032
      %v6473 = vmul.bf16 %v6377, %v5033
      %v6474 = vmul.bf16 %v6378, %v5034
      %v6475 = vmul.bf16 %v6379, %v5035
      %v6476 = vmul.bf16 %v6380, %v5036
      %v6477 = vmul.bf16 %v6381, %v5037
      %v6478 = vmul.bf16 %v6382, %v5038
      %v6479 = vmul.bf16 %v6383, %v5039
      %v6480 = vmul.bf16 %v6384, %v5040
      %v6481 = vmul.bf16 %v6385, %v5041
      %v6482 = vmul.bf16 %v6386, %v5042
      %v6483 = vmul.bf16 %v6387, %v5043
      %v6484 = vmul.bf16 %v6388, %v5044
      %v6485 = vmul.bf16 %v6389, %v5045
      %v6486 = vmul.bf16 %v6390, %v5046
      %v6487 = vmul.bf16 %v6391, %v5047
      %v6488 = vmul.bf16 %v6392, %v5048
      %v6489 = vmul.bf16 %v6393, %v5049
      %v6490 = vmul.bf16 %v6394, %v5050
      %v6491 = vmul.bf16 %v6395, %v5051
      %v6492 = vmul.bf16 %v6396, %v5052
      %v6493 = vmul.bf16 %v6397, %v5053
      %v6494 = vmul.bf16 %v6398, %v5054
      %v6495 = vmul.bf16 %v6399, %v5055
      %v6496 = vmul.bf16 %v6400, %v5056
      %v6497 = vmul.bf16 %v6401, %v5057
      %v6498 = vmul.bf16 %v6402, %v5058
      %v6499 = vmul.bf16 %v6403, %v5059
      %v6500 = vmul.bf16 %v6404, %v5060
      %v6501 = vmul.bf16 %v6405, %v5061
      %v6502 = vmul.bf16 %v6406, %v5062
      %v6503 = vmul.bf16 %v6407, %v5063
      %v6504 = vmul.bf16 %v6408, %v5064
      %v6505 = vmul.bf16 %v6409, %v5065
      %v6506 = vmul.bf16 %v6410, %v5066
      %v6507 = vmul.bf16 %v6411, %v5067
      %v6508 = vmul.bf16 %v6412, %v5068
      %v6509 = vmul.bf16 %v6413, %v5069
      %v6510 = vmul.bf16 %v6414, %v5070
      %v6511 = vmul.bf16 %v6415, %v5071
      %v6512 = vmul.bf16 %v6416, %v5072
      %v6514 = vmul.bf16 %v6417, 1069105081
      %v6515 = vpow.bf16.pop %v6514
      %v6517 = vmul.bf16 %v6418, 1069105081
      %v6518 = vpow.bf16.pop %v6517
      %v6520 = vmul.bf16 %v6419, 1069105081
      %v6521 = vpow.bf16.pop %v6520
      %v6523 = vmul.bf16 %v6420, 1069105081
      %v6524 = vpow.bf16.pop %v6523
      %v6526 = vmul.bf16 %v6421, 1069105081
      %v6527 = vpow.bf16.pop %v6526
      %v6529 = vmul.bf16 %v6422, 1069105081
      %v6530 = vpow.bf16.pop %v6529
      %v6532 = vmul.bf16 %v6423, 1069105081
      %v6533 = vpow.bf16.pop %v6532
      %v6535 = vmul.bf16 %v6424, 1069105081
      %v6536 = vpow.bf16.pop %v6535
      %v6538 = vmul.bf16 %v6425, 1069105081
      %v6539 = vpow.bf16.pop %v6538
      %v6541 = vmul.bf16 %v6426, 1069105081
      %v6542 = vpow.bf16.pop %v6541
      %v6544 = vmul.bf16 %v6427, 1069105081
      %v6545 = vpow.bf16.pop %v6544
      %v6547 = vmul.bf16 %v6428, 1069105081
      %v6548 = vpow.bf16.pop %v6547
      %v6550 = vmul.bf16 %v6429, 1069105081
      %v6551 = vpow.bf16.pop %v6550
      %v6553 = vmul.bf16 %v6430, 1069105081
      %v6554 = vpow.bf16.pop %v6553
      %v6556 = vmul.bf16 %v6431, 1069105081
      %v6557 = vpow.bf16.pop %v6556
      %v6559 = vmul.bf16 %v6432, 1069105081
      %v6560 = vpow.bf16.pop %v6559
      %v6562 = vmul.bf16 %v6433, 1069105081
      %v6563 = vpow.bf16.pop %v6562
      %v6565 = vmul.bf16 %v6434, 1069105081
      %v6566 = vpow.bf16.pop %v6565
      %v6568 = vmul.bf16 %v6435, 1069105081
      %v6569 = vpow.bf16.pop %v6568
      %v6571 = vmul.bf16 %v6436, 1069105081
      %v6572 = vpow.bf16.pop %v6571
      %v6574 = vmul.bf16 %v6437, 1069105081
      %v6575 = vpow.bf16.pop %v6574
      %v6577 = vmul.bf16 %v6438, 1069105081
      %v6578 = vpow.bf16.pop %v6577
      %v6580 = vmul.bf16 %v6439, 1069105081
      %v6581 = vpow.bf16.pop %v6580
      %v6583 = vmul.bf16 %v6440, 1069105081
      %v6584 = vpow.bf16.pop %v6583
      %v6586 = vmul.bf16 %v6441, 1069105081
      %v6587 = vpow.bf16.pop %v6586
      %v6589 = vmul.bf16 %v6442, 1069105081
      %v6590 = vpow.bf16.pop %v6589
      %v6592 = vmul.bf16 %v6443, 1069105081
      %v6593 = vpow.bf16.pop %v6592
      %v6595 = vmul.bf16 %v6444, 1069105081
      %v6596 = vpow.bf16.pop %v6595
      %v6598 = vmul.bf16 %v6445, 1069105081
      %v6599 = vpow.bf16.pop %v6598
      %v6601 = vmul.bf16 %v6446, 1069105081
      %v6602 = vpow.bf16.pop %v6601
      %v6604 = vmul.bf16 %v6447, 1069105081
      %v6605 = vpow.bf16.pop %v6604
      %v6607 = vmul.bf16 %v6448, 1069105081
      %v6608 = vpow.bf16.pop %v6607
      %v6610 = vmul.bf16 %v6449, 1069105081
      %v6611 = vpow.bf16.pop %v6610
      %v6613 = vmul.bf16 %v6450, 1069105081
      %v6614 = vpow.bf16.pop %v6613
      %v6616 = vmul.bf16 %v6451, 1069105081
      %v6617 = vpow.bf16.pop %v6616
      %v6619 = vmul.bf16 %v6452, 1069105081
      %v6620 = vpow.bf16.pop %v6619
      %v6622 = vmul.bf16 %v6453, 1069105081
      %v6623 = vpow.bf16.pop %v6622
      %v6625 = vmul.bf16 %v6454, 1069105081
      %v6626 = vpow.bf16.pop %v6625
      %v6628 = vmul.bf16 %v6455, 1069105081
      %v6629 = vpow.bf16.pop %v6628
      %v6631 = vmul.bf16 %v6456, 1069105081
      %v6632 = vpow.bf16.pop %v6631
      %v6634 = vmul.bf16 %v6457, 1069105081
      %v6635 = vpow.bf16.pop %v6634
      %v6637 = vmul.bf16 %v6458, 1069105081
      %v6638 = vpow.bf16.pop %v6637
      %v6640 = vmul.bf16 %v6459, 1069105081
      %v6641 = vpow.bf16.pop %v6640
      %v6643 = vmul.bf16 %v6460, 1069105081
      %v6644 = vpow.bf16.pop %v6643
      %v6646 = vmul.bf16 %v6461, 1069105081
      %v6647 = vpow.bf16.pop %v6646
      %v6649 = vmul.bf16 %v6462, 1069105081
      %v6650 = vpow.bf16.pop %v6649
      %v6652 = vmul.bf16 %v6463, 1069105081
      %v6653 = vpow.bf16.pop %v6652
      %v6655 = vmul.bf16 %v6464, 1069105081
      %v6656 = vpow.bf16.pop %v6655
      %v6658 = vmul.bf16 %v6465, 1069105081
      %v6659 = vpow.bf16.pop %v6658
      %v6661 = vmul.bf16 %v6466, 1069105081
      %v6662 = vpow.bf16.pop %v6661
      %v6664 = vmul.bf16 %v6467, 1069105081
      %v6665 = vpow.bf16.pop %v6664
      %v6667 = vmul.bf16 %v6468, 1069105081
      %v6668 = vpow.bf16.pop %v6667
      %v6670 = vmul.bf16 %v6469, 1069105081
      %v6671 = vpow.bf16.pop %v6670
      %v6673 = vmul.bf16 %v6470, 1069105081
      %v6674 = vpow.bf16.pop %v6673
      %v6676 = vmul.bf16 %v6471, 1069105081
      %v6677 = vpow.bf16.pop %v6676
      %v6679 = vmul.bf16 %v6472, 1069105081
      %v6680 = vpow.bf16.pop %v6679
      %v6682 = vmul.bf16 %v6473, 1069105081
      %v6683 = vpow.bf16.pop %v6682
      %v6685 = vmul.bf16 %v6474, 1069105081
      %v6686 = vpow.bf16.pop %v6685
      %v6688 = vmul.bf16 %v6475, 1069105081
      %v6689 = vpow.bf16.pop %v6688
      %v6691 = vmul.bf16 %v6476, 1069105081
      %v6692 = vpow.bf16.pop %v6691
      %v6694 = vmul.bf16 %v6477, 1069105081
      %v6695 = vpow.bf16.pop %v6694
      %v6697 = vmul.bf16 %v6478, 1069105081
      %v6698 = vpow.bf16.pop %v6697
      %v6700 = vmul.bf16 %v6479, 1069105081
      %v6701 = vpow.bf16.pop %v6700
      %v6703 = vmul.bf16 %v6480, 1069105081
      %v6704 = vpow.bf16.pop %v6703
      %v6706 = vmul.bf16 %v6481, 1069105081
      %v6707 = vpow.bf16.pop %v6706
      %v6709 = vmul.bf16 %v6482, 1069105081
      %v6710 = vpow.bf16.pop %v6709
      %v6712 = vmul.bf16 %v6483, 1069105081
      %v6713 = vpow.bf16.pop %v6712
      %v6715 = vmul.bf16 %v6484, 1069105081
      %v6716 = vpow.bf16.pop %v6715
      %v6718 = vmul.bf16 %v6485, 1069105081
      %v6719 = vpow.bf16.pop %v6718
      %v6721 = vmul.bf16 %v6486, 1069105081
      %v6722 = vpow.bf16.pop %v6721
      %v6724 = vmul.bf16 %v6487, 1069105081
      %v6725 = vpow.bf16.pop %v6724
      %v6727 = vmul.bf16 %v6488, 1069105081
      %v6728 = vpow.bf16.pop %v6727
      %v6730 = vmul.bf16 %v6489, 1069105081
      %v6731 = vpow.bf16.pop %v6730
      %v6733 = vmul.bf16 %v6490, 1069105081
      %v6734 = vpow.bf16.pop %v6733
      %v6736 = vmul.bf16 %v6491, 1069105081
      %v6737 = vpow.bf16.pop %v6736
      %v6739 = vmul.bf16 %v6492, 1069105081
      %v6740 = vpow.bf16.pop %v6739
      %v6742 = vmul.bf16 %v6493, 1069105081
      %v6743 = vpow.bf16.pop %v6742
      %v6745 = vmul.bf16 %v6494, 1069105081
      %v6746 = vpow.bf16.pop %v6745
      %v6748 = vmul.bf16 %v6495, 1069105081
      %v6749 = vpow.bf16.pop %v6748
      %v6751 = vmul.bf16 %v6496, 1069105081
      %v6752 = vpow.bf16.pop %v6751
      %v6754 = vmul.bf16 %v6497, 1069105081
      %v6755 = vpow.bf16.pop %v6754
      %v6757 = vmul.bf16 %v6498, 1069105081
      %v6758 = vpow.bf16.pop %v6757
      %v6760 = vmul.bf16 %v6499, 1069105081
      %v6761 = vpow.bf16.pop %v6760
      %v6763 = vmul.bf16 %v6500, 1069105081
      %v6764 = vpow.bf16.pop %v6763
      %v6766 = vmul.bf16 %v6501, 1069105081
      %v6767 = vpow.bf16.pop %v6766
      %v6769 = vmul.bf16 %v6502, 1069105081
      %v6770 = vpow.bf16.pop %v6769
      %v6772 = vmul.bf16 %v6503, 1069105081
      %v6773 = vpow.bf16.pop %v6772
      %v6775 = vmul.bf16 %v6504, 1069105081
      %v6776 = vpow.bf16.pop %v6775
      %v6778 = vmul.bf16 %v6505, 1069105081
      %v6779 = vpow.bf16.pop %v6778
      %v6781 = vmul.bf16 %v6506, 1069105081
      %v6782 = vpow.bf16.pop %v6781
      %v6784 = vmul.bf16 %v6507, 1069105081
      %v6785 = vpow.bf16.pop %v6784
      %v6787 = vmul.bf16 %v6508, 1069105081
      %v6788 = vpow.bf16.pop %v6787
      %v6790 = vmul.bf16 %v6509, 1069105081
      %v6791 = vpow.bf16.pop %v6790
      %v6793 = vmul.bf16 %v6510, 1069105081
      %v6794 = vpow.bf16.pop %v6793
      %v6796 = vmul.bf16 %v6511, 1069105081
      %v6797 = vpow.bf16.pop %v6796
      %v6799 = vmul.bf16 %v6512, 1069105081
      %v6800 = vpow.bf16.pop %v6799
      %v6801 = vmul.bf16 %v6225, %v6515
      %v6802 = vmul.bf16 %v6226, %v6518
      %v6803 = vmul.bf16 %v6227, %v6521
      %v6804 = vmul.bf16 %v6228, %v6524
      %v6805 = vmul.bf16 %v6229, %v6527
      %v6806 = vmul.bf16 %v6230, %v6530
      %v6807 = vmul.bf16 %v6231, %v6533
      %v6808 = vmul.bf16 %v6232, %v6536
      %v6809 = vmul.bf16 %v6233, %v6539
      %v6810 = vmul.bf16 %v6234, %v6542
      %v6811 = vmul.bf16 %v6235, %v6545
      %v6812 = vmul.bf16 %v6236, %v6548
      %v6813 = vmul.bf16 %v6237, %v6551
      %v6814 = vmul.bf16 %v6238, %v6554
      %v6815 = vmul.bf16 %v6239, %v6557
      %v6816 = vmul.bf16 %v6240, %v6560
      %v6817 = vmul.bf16 %v6241, %v6563
      %v6818 = vmul.bf16 %v6242, %v6566
      %v6819 = vmul.bf16 %v6243, %v6569
      %v6820 = vmul.bf16 %v6244, %v6572
      %v6821 = vmul.bf16 %v6245, %v6575
      %v6822 = vmul.bf16 %v6246, %v6578
      %v6823 = vmul.bf16 %v6247, %v6581
      %v6824 = vmul.bf16 %v6248, %v6584
      %v6825 = vmul.bf16 %v6249, %v6587
      %v6826 = vmul.bf16 %v6250, %v6590
      %v6827 = vmul.bf16 %v6251, %v6593
      %v6828 = vmul.bf16 %v6252, %v6596
      %v6829 = vmul.bf16 %v6253, %v6599
      %v6830 = vmul.bf16 %v6254, %v6602
      %v6831 = vmul.bf16 %v6255, %v6605
      %v6832 = vmul.bf16 %v6256, %v6608
      %v6833 = vmul.bf16 %v6257, %v6611
      %v6834 = vmul.bf16 %v6258, %v6614
      %v6835 = vmul.bf16 %v6259, %v6617
      %v6836 = vmul.bf16 %v6260, %v6620
      %v6837 = vmul.bf16 %v6261, %v6623
      %v6838 = vmul.bf16 %v6262, %v6626
      %v6839 = vmul.bf16 %v6263, %v6629
      %v6840 = vmul.bf16 %v6264, %v6632
      %v6841 = vmul.bf16 %v6265, %v6635
      %v6842 = vmul.bf16 %v6266, %v6638
      %v6843 = vmul.bf16 %v6267, %v6641
      %v6844 = vmul.bf16 %v6268, %v6644
      %v6845 = vmul.bf16 %v6269, %v6647
      %v6846 = vmul.bf16 %v6270, %v6650
      %v6847 = vmul.bf16 %v6271, %v6653
      %v6848 = vmul.bf16 %v6272, %v6656
      %v6849 = vmul.bf16 %v6273, %v6659
      %v6850 = vmul.bf16 %v6274, %v6662
      %v6851 = vmul.bf16 %v6275, %v6665
      %v6852 = vmul.bf16 %v6276, %v6668
      %v6853 = vmul.bf16 %v6277, %v6671
      %v6854 = vmul.bf16 %v6278, %v6674
      %v6855 = vmul.bf16 %v6279, %v6677
      %v6856 = vmul.bf16 %v6280, %v6680
      %v6857 = vmul.bf16 %v6281, %v6683
      %v6858 = vmul.bf16 %v6282, %v6686
      %v6859 = vmul.bf16 %v6283, %v6689
      %v6860 = vmul.bf16 %v6284, %v6692
      %v6861 = vmul.bf16 %v6285, %v6695
      %v6862 = vmul.bf16 %v6286, %v6698
      %v6863 = vmul.bf16 %v6287, %v6701
      %v6864 = vmul.bf16 %v6288, %v6704
      %v6865 = vmul.bf16 %v6289, %v6707
      %v6866 = vmul.bf16 %v6290, %v6710
      %v6867 = vmul.bf16 %v6291, %v6713
      %v6868 = vmul.bf16 %v6292, %v6716
      %v6869 = vmul.bf16 %v6293, %v6719
      %v6870 = vmul.bf16 %v6294, %v6722
      %v6871 = vmul.bf16 %v6295, %v6725
      %v6872 = vmul.bf16 %v6296, %v6728
      %v6873 = vmul.bf16 %v6297, %v6731
      %v6874 = vmul.bf16 %v6298, %v6734
      %v6875 = vmul.bf16 %v6299, %v6737
      %v6876 = vmul.bf16 %v6300, %v6740
      %v6877 = vmul.bf16 %v6301, %v6743
      %v6878 = vmul.bf16 %v6302, %v6746
      %v6879 = vmul.bf16 %v6303, %v6749
      %v6880 = vmul.bf16 %v6304, %v6752
      %v6881 = vmul.bf16 %v6305, %v6755
      %v6882 = vmul.bf16 %v6306, %v6758
      %v6883 = vmul.bf16 %v6307, %v6761
      %v6884 = vmul.bf16 %v6308, %v6764
      %v6885 = vmul.bf16 %v6309, %v6767
      %v6886 = vmul.bf16 %v6310, %v6770
      %v6887 = vmul.bf16 %v6311, %v6773
      %v6888 = vmul.bf16 %v6312, %v6776
      %v6889 = vmul.bf16 %v6313, %v6779
      %v6890 = vmul.bf16 %v6314, %v6782
      %v6891 = vmul.bf16 %v6315, %v6785
      %v6892 = vmul.bf16 %v6316, %v6788
      %v6893 = vmul.bf16 %v6317, %v6791
      %v6894 = vmul.bf16 %v6318, %v6794
      %v6895 = vmul.bf16 %v6319, %v6797
      %v6896 = vmul.bf16 %v6320, %v6800
      %v6897 = vsub.bf16 1065369472, %v6801
      %v6898 = vsub.bf16 1065369472, %v6802
      %v6899 = vsub.bf16 1065369472, %v6803
      %v6900 = vsub.bf16 1065369472, %v6804
      %v6901 = vsub.bf16 1065369472, %v6805
      %v6902 = vsub.bf16 1065369472, %v6806
      %v6903 = vsub.bf16 1065369472, %v6807
      %v6904 = vsub.bf16 1065369472, %v6808
      %v6905 = vsub.bf16 1065369472, %v6809
      %v6906 = vsub.bf16 1065369472, %v6810
      %v6907 = vsub.bf16 1065369472, %v6811
      %v6908 = vsub.bf16 1065369472, %v6812
      %v6909 = vsub.bf16 1065369472, %v6813
      %v6910 = vsub.bf16 1065369472, %v6814
      %v6911 = vsub.bf16 1065369472, %v6815
      %v6912 = vsub.bf16 1065369472, %v6816
      %v6913 = vsub.bf16 1065369472, %v6817
      %v6914 = vsub.bf16 1065369472, %v6818
      %v6915 = vsub.bf16 1065369472, %v6819
      %v6916 = vsub.bf16 1065369472, %v6820
      %v6917 = vsub.bf16 1065369472, %v6821
      %v6918 = vsub.bf16 1065369472, %v6822
      %v6919 = vsub.bf16 1065369472, %v6823
      %v6920 = vsub.bf16 1065369472, %v6824
      %v6921 = vsub.bf16 1065369472, %v6825
      %v6922 = vsub.bf16 1065369472, %v6826
      %v6923 = vsub.bf16 1065369472, %v6827
      %v6924 = vsub.bf16 1065369472, %v6828
      %v6925 = vsub.bf16 1065369472, %v6829
      %v6926 = vsub.bf16 1065369472, %v6830
      %v6927 = vsub.bf16 1065369472, %v6831
      %v6928 = vsub.bf16 1065369472, %v6832
      %v6929 = vsub.bf16 1065369472, %v6833
      %v6930 = vsub.bf16 1065369472, %v6834
      %v6931 = vsub.bf16 1065369472, %v6835
      %v6932 = vsub.bf16 1065369472, %v6836
      %v6933 = vsub.bf16 1065369472, %v6837
      %v6934 = vsub.bf16 1065369472, %v6838
      %v6935 = vsub.bf16 1065369472, %v6839
      %v6936 = vsub.bf16 1065369472, %v6840
      %v6937 = vsub.bf16 1065369472, %v6841
      %v6938 = vsub.bf16 1065369472, %v6842
      %v6939 = vsub.bf16 1065369472, %v6843
      %v6940 = vsub.bf16 1065369472, %v6844
      %v6941 = vsub.bf16 1065369472, %v6845
      %v6942 = vsub.bf16 1065369472, %v6846
      %v6943 = vsub.bf16 1065369472, %v6847
      %v6944 = vsub.bf16 1065369472, %v6848
      %v6945 = vsub.bf16 1065369472, %v6849
      %v6946 = vsub.bf16 1065369472, %v6850
      %v6947 = vsub.bf16 1065369472, %v6851
      %v6948 = vsub.bf16 1065369472, %v6852
      %v6949 = vsub.bf16 1065369472, %v6853
      %v6950 = vsub.bf16 1065369472, %v6854
      %v6951 = vsub.bf16 1065369472, %v6855
      %v6952 = vsub.bf16 1065369472, %v6856
      %v6953 = vsub.bf16 1065369472, %v6857
      %v6954 = vsub.bf16 1065369472, %v6858
      %v6955 = vsub.bf16 1065369472, %v6859
      %v6956 = vsub.bf16 1065369472, %v6860
      %v6957 = vsub.bf16 1065369472, %v6861
      %v6958 = vsub.bf16 1065369472, %v6862
      %v6959 = vsub.bf16 1065369472, %v6863
      %v6960 = vsub.bf16 1065369472, %v6864
      %v6961 = vsub.bf16 1065369472, %v6865
      %v6962 = vsub.bf16 1065369472, %v6866
      %v6963 = vsub.bf16 1065369472, %v6867
      %v6964 = vsub.bf16 1065369472, %v6868
      %v6965 = vsub.bf16 1065369472, %v6869
      %v6966 = vsub.bf16 1065369472, %v6870
      %v6967 = vsub.bf16 1065369472, %v6871
      %v6968 = vsub.bf16 1065369472, %v6872
      %v6969 = vsub.bf16 1065369472, %v6873
      %v6970 = vsub.bf16 1065369472, %v6874
      %v6971 = vsub.bf16 1065369472, %v6875
      %v6972 = vsub.bf16 1065369472, %v6876
      %v6973 = vsub.bf16 1065369472, %v6877
      %v6974 = vsub.bf16 1065369472, %v6878
      %v6975 = vsub.bf16 1065369472, %v6879
      %v6976 = vsub.bf16 1065369472, %v6880
      %v6977 = vsub.bf16 1065369472, %v6881
      %v6978 = vsub.bf16 1065369472, %v6882
      %v6979 = vsub.bf16 1065369472, %v6883
      %v6980 = vsub.bf16 1065369472, %v6884
      %v6981 = vsub.bf16 1065369472, %v6885
      %v6982 = vsub.bf16 1065369472, %v6886
      %v6983 = vsub.bf16 1065369472, %v6887
      %v6984 = vsub.bf16 1065369472, %v6888
      %v6985 = vsub.bf16 1065369472, %v6889
      %v6986 = vsub.bf16 1065369472, %v6890
      %v6987 = vsub.bf16 1065369472, %v6891
      %v6988 = vsub.bf16 1065369472, %v6892
      %v6989 = vsub.bf16 1065369472, %v6893
      %v6990 = vsub.bf16 1065369472, %v6894
      %v6991 = vsub.bf16 1065369472, %v6895
      %v6992 = vsub.bf16 1065369472, %v6896
      %v6993 = vmul.bf16 %v4881, %v6897
      %v6994 = vmul.bf16 %v4882, %v6898
      %v6995 = vmul.bf16 %v4883, %v6899
      %v6996 = vmul.bf16 %v4884, %v6900
      %v6997 = vmul.bf16 %v4885, %v6901
      %v6998 = vmul.bf16 %v4886, %v6902
      %v6999 = vmul.bf16 %v4887, %v6903
      %v7000 = vmul.bf16 %v4888, %v6904
      %v7001 = vmul.bf16 %v4889, %v6905
      %v7002 = vmul.bf16 %v4890, %v6906
      %v7003 = vmul.bf16 %v4891, %v6907
      %v7004 = vmul.bf16 %v4892, %v6908
      %v7005 = vmul.bf16 %v4893, %v6909
      %v7006 = vmul.bf16 %v4894, %v6910
      %v7007 = vmul.bf16 %v4895, %v6911
      %v7008 = vmul.bf16 %v4896, %v6912
      %v7009 = vmul.bf16 %v4897, %v6913
      %v7010 = vmul.bf16 %v4898, %v6914
      %v7011 = vmul.bf16 %v4899, %v6915
      %v7012 = vmul.bf16 %v4900, %v6916
      %v7013 = vmul.bf16 %v4901, %v6917
      %v7014 = vmul.bf16 %v4902, %v6918
      %v7015 = vmul.bf16 %v4903, %v6919
      %v7016 = vmul.bf16 %v4904, %v6920
      %v7017 = vmul.bf16 %v4905, %v6921
      %v7018 = vmul.bf16 %v4906, %v6922
      %v7019 = vmul.bf16 %v4907, %v6923
      %v7020 = vmul.bf16 %v4908, %v6924
      %v7021 = vmul.bf16 %v4909, %v6925
      %v7022 = vmul.bf16 %v4910, %v6926
      %v7023 = vmul.bf16 %v4911, %v6927
      %v7024 = vmul.bf16 %v4912, %v6928
      %v7025 = vmul.bf16 %v4913, %v6929
      %v7026 = vmul.bf16 %v4914, %v6930
      %v7027 = vmul.bf16 %v4915, %v6931
      %v7028 = vmul.bf16 %v4916, %v6932
      %v7029 = vmul.bf16 %v4917, %v6933
      %v7030 = vmul.bf16 %v4918, %v6934
      %v7031 = vmul.bf16 %v4919, %v6935
      %v7032 = vmul.bf16 %v4920, %v6936
      %v7033 = vmul.bf16 %v4921, %v6937
      %v7034 = vmul.bf16 %v4922, %v6938
      %v7035 = vmul.bf16 %v4923, %v6939
      %v7036 = vmul.bf16 %v4924, %v6940
      %v7037 = vmul.bf16 %v4925, %v6941
      %v7038 = vmul.bf16 %v4926, %v6942
      %v7039 = vmul.bf16 %v4927, %v6943
      %v7040 = vmul.bf16 %v4928, %v6944
      %v7041 = vmul.bf16 %v4929, %v6945
      %v7042 = vmul.bf16 %v4930, %v6946
      %v7043 = vmul.bf16 %v4931, %v6947
      %v7044 = vmul.bf16 %v4932, %v6948
      %v7045 = vmul.bf16 %v4933, %v6949
      %v7046 = vmul.bf16 %v4934, %v6950
      %v7047 = vmul.bf16 %v4935, %v6951
      %v7048 = vmul.bf16 %v4936, %v6952
      %v7049 = vmul.bf16 %v4937, %v6953
      %v7050 = vmul.bf16 %v4938, %v6954
      %v7051 = vmul.bf16 %v4939, %v6955
      %v7052 = vmul.bf16 %v4940, %v6956
      %v7053 = vmul.bf16 %v4941, %v6957
      %v7054 = vmul.bf16 %v4942, %v6958
      %v7055 = vmul.bf16 %v4943, %v6959
      %v7056 = vmul.bf16 %v4944, %v6960
      %v7057 = vmul.bf16 %v4945, %v6961
      %v7058 = vmul.bf16 %v4946, %v6962
      %v7059 = vmul.bf16 %v4947, %v6963
      %v7060 = vmul.bf16 %v4948, %v6964
      %v7061 = vmul.bf16 %v4949, %v6965
      %v7062 = vmul.bf16 %v4950, %v6966
      %v7063 = vmul.bf16 %v4951, %v6967
      %v7064 = vmul.bf16 %v4952, %v6968
      %v7065 = vmul.bf16 %v4953, %v6969
      %v7066 = vmul.bf16 %v4954, %v6970
      %v7067 = vmul.bf16 %v4955, %v6971
      %v7068 = vmul.bf16 %v4956, %v6972
      %v7069 = vmul.bf16 %v4957, %v6973
      %v7070 = vmul.bf16 %v4958, %v6974
      %v7071 = vmul.bf16 %v4959, %v6975
      %v7072 = vmul.bf16 %v4960, %v6976
      %v7073 = vmul.bf16 %v4961, %v6977
      %v7074 = vmul.bf16 %v4962, %v6978
      %v7075 = vmul.bf16 %v4963, %v6979
      %v7076 = vmul.bf16 %v4964, %v6980
      %v7077 = vmul.bf16 %v4965, %v6981
      %v7078 = vmul.bf16 %v4966, %v6982
      %v7079 = vmul.bf16 %v4967, %v6983
      %v7080 = vmul.bf16 %v4968, %v6984
      %v7081 = vmul.bf16 %v4969, %v6985
      %v7082 = vmul.bf16 %v4970, %v6986
      %v7083 = vmul.bf16 %v4971, %v6987
      %v7084 = vmul.bf16 %v4972, %v6988
      %v7085 = vmul.bf16 %v4973, %v6989
      %v7086 = vmul.bf16 %v4974, %v6990
      %v7087 = vmul.bf16 %v4975, %v6991
      %v7088 = vmul.bf16 %v4976, %v6992
      %v7089 = vadd.bf16 %v6993, 1065369472
      %v7090 = vadd.bf16 %v6994, 1065369472
      %v7091 = vadd.bf16 %v6995, 1065369472
      %v7092 = vadd.bf16 %v6996, 1065369472
      %v7093 = vadd.bf16 %v6997, 1065369472
      %v7094 = vadd.bf16 %v6998, 1065369472
      %v7095 = vadd.bf16 %v6999, 1065369472
      %v7096 = vadd.bf16 %v7000, 1065369472
      %v7097 = vadd.bf16 %v7001, 1065369472
      %v7098 = vadd.bf16 %v7002, 1065369472
      %v7099 = vadd.bf16 %v7003, 1065369472
      %v7100 = vadd.bf16 %v7004, 1065369472
      %v7101 = vadd.bf16 %v7005, 1065369472
      %v7102 = vadd.bf16 %v7006, 1065369472
      %v7103 = vadd.bf16 %v7007, 1065369472
      %v7104 = vadd.bf16 %v7008, 1065369472
      %v7105 = vadd.bf16 %v7009, 1065369472
      %v7106 = vadd.bf16 %v7010, 1065369472
      %v7107 = vadd.bf16 %v7011, 1065369472
      %v7108 = vadd.bf16 %v7012, 1065369472
      %v7109 = vadd.bf16 %v7013, 1065369472
      %v7110 = vadd.bf16 %v7014, 1065369472
      %v7111 = vadd.bf16 %v7015, 1065369472
      %v7112 = vadd.bf16 %v7016, 1065369472
      %v7113 = vadd.bf16 %v7017, 1065369472
      %v7114 = vadd.bf16 %v7018, 1065369472
      %v7115 = vadd.bf16 %v7019, 1065369472
      %v7116 = vadd.bf16 %v7020, 1065369472
      %v7117 = vadd.bf16 %v7021, 1065369472
      %v7118 = vadd.bf16 %v7022, 1065369472
      %v7119 = vadd.bf16 %v7023, 1065369472
      %v7120 = vadd.bf16 %v7024, 1065369472
      %v7121 = vadd.bf16 %v7025, 1065369472
      %v7122 = vadd.bf16 %v7026, 1065369472
      %v7123 = vadd.bf16 %v7027, 1065369472
      %v7124 = vadd.bf16 %v7028, 1065369472
      %v7125 = vadd.bf16 %v7029, 1065369472
      %v7126 = vadd.bf16 %v7030, 1065369472
      %v7127 = vadd.bf16 %v7031, 1065369472
      %v7128 = vadd.bf16 %v7032, 1065369472
      %v7129 = vadd.bf16 %v7033, 1065369472
      %v7130 = vadd.bf16 %v7034, 1065369472
      %v7131 = vadd.bf16 %v7035, 1065369472
      %v7132 = vadd.bf16 %v7036, 1065369472
      %v7133 = vadd.bf16 %v7037, 1065369472
      %v7134 = vadd.bf16 %v7038, 1065369472
      %v7135 = vadd.bf16 %v7039, 1065369472
      %v7136 = vadd.bf16 %v7040, 1065369472
      %v7137 = vadd.bf16 %v7041, 1065369472
      %v7138 = vadd.bf16 %v7042, 1065369472
      %v7139 = vadd.bf16 %v7043, 1065369472
      %v7140 = vadd.bf16 %v7044, 1065369472
      %v7141 = vadd.bf16 %v7045, 1065369472
      %v7142 = vadd.bf16 %v7046, 1065369472
      %v7143 = vadd.bf16 %v7047, 1065369472
      %v7144 = vadd.bf16 %v7048, 1065369472
      %v7145 = vadd.bf16 %v7049, 1065369472
      %v7146 = vadd.bf16 %v7050, 1065369472
      %v7147 = vadd.bf16 %v7051, 1065369472
      %v7148 = vadd.bf16 %v7052, 1065369472
      %v7149 = vadd.bf16 %v7053, 1065369472
      %v7150 = vadd.bf16 %v7054, 1065369472
      %v7151 = vadd.bf16 %v7055, 1065369472
      %v7152 = vadd.bf16 %v7056, 1065369472
      %v7153 = vadd.bf16 %v7057, 1065369472
      %v7154 = vadd.bf16 %v7058, 1065369472
      %v7155 = vadd.bf16 %v7059, 1065369472
      %v7156 = vadd.bf16 %v7060, 1065369472
      %v7157 = vadd.bf16 %v7061, 1065369472
      %v7158 = vadd.bf16 %v7062, 1065369472
      %v7159 = vadd.bf16 %v7063, 1065369472
      %v7160 = vadd.bf16 %v7064, 1065369472
      %v7161 = vadd.bf16 %v7065, 1065369472
      %v7162 = vadd.bf16 %v7066, 1065369472
      %v7163 = vadd.bf16 %v7067, 1065369472
      %v7164 = vadd.bf16 %v7068, 1065369472
      %v7165 = vadd.bf16 %v7069, 1065369472
      %v7166 = vadd.bf16 %v7070, 1065369472
      %v7167 = vadd.bf16 %v7071, 1065369472
      %v7168 = vadd.bf16 %v7072, 1065369472
      %v7169 = vadd.bf16 %v7073, 1065369472
      %v7170 = vadd.bf16 %v7074, 1065369472
      %v7171 = vadd.bf16 %v7075, 1065369472
      %v7172 = vadd.bf16 %v7076, 1065369472
      %v7173 = vadd.bf16 %v7077, 1065369472
      %v7174 = vadd.bf16 %v7078, 1065369472
      %v7175 = vadd.bf16 %v7079, 1065369472
      %v7176 = vadd.bf16 %v7080, 1065369472
      %v7177 = vadd.bf16 %v7081, 1065369472
      %v7178 = vadd.bf16 %v7082, 1065369472
      %v7179 = vadd.bf16 %v7083, 1065369472
      %v7180 = vadd.bf16 %v7084, 1065369472
      %v7181 = vadd.bf16 %v7085, 1065369472
      %v7182 = vadd.bf16 %v7086, 1065369472
      %v7183 = vadd.bf16 %v7087, 1065369472
      %v7184 = vadd.bf16 %v7088, 1065369472
      %v7185 = vmul.bf16 %v4593, %v7089
      %v7186 = vmul.bf16 %v4594, %v7090
      %v7187 = vmul.bf16 %v4595, %v7091
      %v7188 = vmul.bf16 %v4596, %v7092
      %v7189 = vmul.bf16 %v4597, %v7093
      %v7190 = vmul.bf16 %v4598, %v7094
      %v7191 = vmul.bf16 %v4599, %v7095
      %v7192 = vmul.bf16 %v4600, %v7096
      %v7193 = vmul.bf16 %v4601, %v7097
      %v7194 = vmul.bf16 %v4602, %v7098
      %v7195 = vmul.bf16 %v4603, %v7099
      %v7196 = vmul.bf16 %v4604, %v7100
      %v7197 = vmul.bf16 %v4605, %v7101
      %v7198 = vmul.bf16 %v4606, %v7102
      %v7199 = vmul.bf16 %v4607, %v7103
      %v7200 = vmul.bf16 %v4608, %v7104
      %v7201 = vmul.bf16 %v4609, %v7105
      %v7202 = vmul.bf16 %v4610, %v7106
      %v7203 = vmul.bf16 %v4611, %v7107
      %v7204 = vmul.bf16 %v4612, %v7108
      %v7205 = vmul.bf16 %v4613, %v7109
      %v7206 = vmul.bf16 %v4614, %v7110
      %v7207 = vmul.bf16 %v4615, %v7111
      %v7208 = vmul.bf16 %v4616, %v7112
      %v7209 = vmul.bf16 %v4617, %v7113
      %v7210 = vmul.bf16 %v4618, %v7114
      %v7211 = vmul.bf16 %v4619, %v7115
      %v7212 = vmul.bf16 %v4620, %v7116
      %v7213 = vmul.bf16 %v4621, %v7117
      %v7214 = vmul.bf16 %v4622, %v7118
      %v7215 = vmul.bf16 %v4623, %v7119
      %v7216 = vmul.bf16 %v4624, %v7120
      %v7217 = vmul.bf16 %v4625, %v7121
      %v7218 = vmul.bf16 %v4626, %v7122
      %v7219 = vmul.bf16 %v4627, %v7123
      %v7220 = vmul.bf16 %v4628, %v7124
      %v7221 = vmul.bf16 %v4629, %v7125
      %v7222 = vmul.bf16 %v4630, %v7126
      %v7223 = vmul.bf16 %v4631, %v7127
      %v7224 = vmul.bf16 %v4632, %v7128
      %v7225 = vmul.bf16 %v4633, %v7129
      %v7226 = vmul.bf16 %v4634, %v7130
      %v7227 = vmul.bf16 %v4635, %v7131
      %v7228 = vmul.bf16 %v4636, %v7132
      %v7229 = vmul.bf16 %v4637, %v7133
      %v7230 = vmul.bf16 %v4638, %v7134
      %v7231 = vmul.bf16 %v4639, %v7135
      %v7232 = vmul.bf16 %v4640, %v7136
      %v7233 = vmul.bf16 %v4641, %v7137
      %v7234 = vmul.bf16 %v4642, %v7138
      %v7235 = vmul.bf16 %v4643, %v7139
      %v7236 = vmul.bf16 %v4644, %v7140
      %v7237 = vmul.bf16 %v4645, %v7141
      %v7238 = vmul.bf16 %v4646, %v7142
      %v7239 = vmul.bf16 %v4647, %v7143
      %v7240 = vmul.bf16 %v4648, %v7144
      %v7241 = vmul.bf16 %v4649, %v7145
      %v7242 = vmul.bf16 %v4650, %v7146
      %v7243 = vmul.bf16 %v4651, %v7147
      %v7244 = vmul.bf16 %v4652, %v7148
      %v7245 = vmul.bf16 %v4653, %v7149
      %v7246 = vmul.bf16 %v4654, %v7150
      %v7247 = vmul.bf16 %v4655, %v7151
      %v7248 = vmul.bf16 %v4656, %v7152
      %v7249 = vmul.bf16 %v4657, %v7153
      %v7250 = vmul.bf16 %v4658, %v7154
      %v7251 = vmul.bf16 %v4659, %v7155
      %v7252 = vmul.bf16 %v4660, %v7156
      %v7253 = vmul.bf16 %v4661, %v7157
      %v7254 = vmul.bf16 %v4662, %v7158
      %v7255 = vmul.bf16 %v4663, %v7159
      %v7256 = vmul.bf16 %v4664, %v7160
      %v7257 = vmul.bf16 %v4665, %v7161
      %v7258 = vmul.bf16 %v4666, %v7162
      %v7259 = vmul.bf16 %v4667, %v7163
      %v7260 = vmul.bf16 %v4668, %v7164
      %v7261 = vmul.bf16 %v4669, %v7165
      %v7262 = vmul.bf16 %v4670, %v7166
      %v7263 = vmul.bf16 %v4671, %v7167
      %v7264 = vmul.bf16 %v4672, %v7168
      %v7265 = vmul.bf16 %v4673, %v7169
      %v7266 = vmul.bf16 %v4674, %v7170
      %v7267 = vmul.bf16 %v4675, %v7171
      %v7268 = vmul.bf16 %v4676, %v7172
      %v7269 = vmul.bf16 %v4677, %v7173
      %v7270 = vmul.bf16 %v4678, %v7174
      %v7271 = vmul.bf16 %v4679, %v7175
      %v7272 = vmul.bf16 %v4680, %v7176
      %v7273 = vmul.bf16 %v4681, %v7177
      %v7274 = vmul.bf16 %v4682, %v7178
      %v7275 = vmul.bf16 %v4683, %v7179
      %v7276 = vmul.bf16 %v4684, %v7180
      %v7277 = vmul.bf16 %v4685, %v7181
      %v7278 = vmul.bf16 %v4686, %v7182
      %v7279 = vmul.bf16 %v4687, %v7183
      %v7280 = vmul.bf16 %v4688, %v7184
      %v7281 = vld [vmem:[%s8] sm:$0xf]
      %v7282 = vld [vmem:[%s8 + $0x4] sm:$0xf]
      %v7283 = vld [vmem:[%s8 + $0x8] sm:$0xf]
      %v7284 = vld [vmem:[%s8 + $0xc] sm:$0xf]
      %v7285 = vld [vmem:[%s8 + $0x10] sm:$0xf]
      %v7286 = vld [vmem:[%s8 + $0x14] sm:$0xf]
      %v7287 = vld [vmem:[%s8 + $0x18] sm:$0xf]
      %v7288 = vld [vmem:[%s8 + $0x1c] sm:$0xf]
      %v7289 = vld [vmem:[%s8 + $0x20] sm:$0xf]
      %v7290 = vld [vmem:[%s8 + $0x24] sm:$0xf]
      %v7291 = vld [vmem:[%s8 + $0x28] sm:$0xf]
      %v7292 = vld [vmem:[%s8 + $0x2c] sm:$0xf]
      %v7293 = vld [vmem:[%s8 + $0x30] sm:$0xf]
      %v7294 = vld [vmem:[%s8 + $0x34] sm:$0xf]
      %v7295 = vld [vmem:[%s8 + $0x38] sm:$0xf]
      %v7296 = vld [vmem:[%s8 + $0x3c] sm:$0xf]
      %v7297 = vld [vmem:[%s8 + $0x40] sm:$0xf]
      %v7298 = vld [vmem:[%s8 + $0x44] sm:$0xf]
      %v7299 = vld [vmem:[%s8 + $0x48] sm:$0xf]
      %v7300 = vld [vmem:[%s8 + $0x4c] sm:$0xf]
      %v7301 = vld [vmem:[%s8 + $0x50] sm:$0xf]
      %v7302 = vld [vmem:[%s8 + $0x54] sm:$0xf]
      %v7303 = vld [vmem:[%s8 + $0x58] sm:$0xf]
      %v7304 = vld [vmem:[%s8 + $0x5c] sm:$0xf]
      %v7305 = vld [vmem:[%s8 + $0x60] sm:$0xf]
      %v7306 = vld [vmem:[%s8 + $0x64] sm:$0xf]
      %v7307 = vld [vmem:[%s8 + $0x68] sm:$0xf]
      %v7308 = vld [vmem:[%s8 + $0x6c] sm:$0xf]
      %v7309 = vld [vmem:[%s8 + $0x70] sm:$0xf]
      %v7310 = vld [vmem:[%s8 + $0x74] sm:$0xf]
      %v7311 = vld [vmem:[%s8 + $0x78] sm:$0xf]
      %v7312 = vld [vmem:[%s8 + $0x7c] sm:$0xf]
      %v7313 = vld [vmem:[%s8 + $0x80] sm:$0xf]
      %v7314 = vld [vmem:[%s8 + $0x84] sm:$0xf]
      %v7315 = vld [vmem:[%s8 + $0x88] sm:$0xf]
      %v7316 = vld [vmem:[%s8 + $0x8c] sm:$0xf]
      %v7317 = vld [vmem:[%s8 + $0x90] sm:$0xf]
      %v7318 = vld [vmem:[%s8 + $0x94] sm:$0xf]
      %v7319 = vld [vmem:[%s8 + $0x98] sm:$0xf]
      %v7320 = vld [vmem:[%s8 + $0x9c] sm:$0xf]
      %v7321 = vld [vmem:[%s8 + $0xa0] sm:$0xf]
      %v7322 = vld [vmem:[%s8 + $0xa4] sm:$0xf]
      %v7323 = vld [vmem:[%s8 + $0xa8] sm:$0xf]
      %v7324 = vld [vmem:[%s8 + $0xac] sm:$0xf]
      %v7325 = vld [vmem:[%s8 + $0xb0] sm:$0xf]
      %v7326 = vld [vmem:[%s8 + $0xb4] sm:$0xf]
      %v7327 = vld [vmem:[%s8 + $0xb8] sm:$0xf]
      %v7328 = vld [vmem:[%s8 + $0xbc] sm:$0xf]
      %v7329 = vld [vmem:[%s9] sm:$0x1]
      %v7331 = vlaneseq
      %v7332 = vshrl.u32 %v7331, 7
      %v7333 = vsub.s32 0, %v7332
      %v7334 = vrot.slane %v7329, %v7333
      %v7384 = vunpack.c.l.b16 %v7281
      %v7385 = vunpack.c.l.b16 %v7282
      %v7386 = vunpack.c.l.b16 %v7283
      %v7387 = vunpack.c.l.b16 %v7284
      %v7388 = vunpack.c.l.b16 %v7285
      %v7389 = vunpack.c.l.b16 %v7286
      %v7390 = vunpack.c.l.b16 %v7287
      %v7391 = vunpack.c.l.b16 %v7288
      %v7392 = vunpack.c.l.b16 %v7289
      %v7393 = vunpack.c.l.b16 %v7290
      %v7394 = vunpack.c.l.b16 %v7291
      %v7395 = vunpack.c.l.b16 %v7292
      %v7396 = vunpack.c.l.b16 %v7293
      %v7397 = vunpack.c.l.b16 %v7294
      %v7398 = vunpack.c.l.b16 %v7295
      %v7399 = vunpack.c.l.b16 %v7296
      %v7400 = vunpack.c.l.b16 %v7297
      %v7401 = vunpack.c.l.b16 %v7298
      %v7402 = vunpack.c.l.b16 %v7299
      %v7403 = vunpack.c.l.b16 %v7300
      %v7404 = vunpack.c.l.b16 %v7301
      %v7405 = vunpack.c.l.b16 %v7302
      %v7406 = vunpack.c.l.b16 %v7303
      %v7407 = vunpack.c.l.b16 %v7304
      %v7408 = vunpack.c.l.b16 %v7305
      %v7409 = vunpack.c.l.b16 %v7306
      %v7410 = vunpack.c.l.b16 %v7307
      %v7411 = vunpack.c.l.b16 %v7308
      %v7412 = vunpack.c.l.b16 %v7309
      %v7413 = vunpack.c.l.b16 %v7310
      %v7414 = vunpack.c.l.b16 %v7311
      %v7415 = vunpack.c.l.b16 %v7312
      %v7416 = vunpack.c.l.b16 %v7313
      %v7417 = vunpack.c.l.b16 %v7314
      %v7418 = vunpack.c.l.b16 %v7315
      %v7419 = vunpack.c.l.b16 %v7316
      %v7420 = vunpack.c.l.b16 %v7317
      %v7421 = vunpack.c.l.b16 %v7318
      %v7422 = vunpack.c.l.b16 %v7319
      %v7423 = vunpack.c.l.b16 %v7320
      %v7424 = vunpack.c.l.b16 %v7321
      %v7425 = vunpack.c.l.b16 %v7322
      %v7426 = vunpack.c.l.b16 %v7323
      %v7427 = vunpack.c.l.b16 %v7324
      %v7428 = vunpack.c.l.b16 %v7325
      %v7429 = vunpack.c.l.b16 %v7326
      %v7430 = vunpack.c.l.b16 %v7327
      %v7431 = vunpack.c.l.b16 %v7328
      %v7432 = vpack.c.b16 %v7385, %v7384
      %v7433 = vpack.c.b16 %v7387, %v7386
      %v7434 = vpack.c.b16 %v7389, %v7388
      %v7435 = vpack.c.b16 %v7391, %v7390
      %v7436 = vpack.c.b16 %v7393, %v7392
      %v7437 = vpack.c.b16 %v7395, %v7394
      %v7438 = vpack.c.b16 %v7397, %v7396
      %v7439 = vpack.c.b16 %v7399, %v7398
      %v7440 = vpack.c.b16 %v7401, %v7400
      %v7441 = vpack.c.b16 %v7403, %v7402
      %v7442 = vpack.c.b16 %v7405, %v7404
      %v7443 = vpack.c.b16 %v7407, %v7406
      %v7444 = vpack.c.b16 %v7409, %v7408
      %v7445 = vpack.c.b16 %v7411, %v7410
      %v7446 = vpack.c.b16 %v7413, %v7412
      %v7447 = vpack.c.b16 %v7415, %v7414
      %v7448 = vpack.c.b16 %v7417, %v7416
      %v7449 = vpack.c.b16 %v7419, %v7418
      %v7450 = vpack.c.b16 %v7421, %v7420
      %v7451 = vpack.c.b16 %v7423, %v7422
      %v7452 = vpack.c.b16 %v7425, %v7424
      %v7453 = vpack.c.b16 %v7427, %v7426
      %v7454 = vpack.c.b16 %v7429, %v7428
      %v7455 = vpack.c.b16 %v7431, %v7430
      %7480 = vmatprep.subr.bf16.mxu0 0
      %7481 = vmatpush1.bf16.msra.mxu0 %v7432
      %7482 = vmatprep.subr.bf16.mxu0 0
      %7483 = vmatpush1.bf16.msra.mxu0 %v7433
      %7484 = vmatprep.subr.bf16.mxu0 0
      %7485 = vmatpush1.bf16.msra.mxu0 %v7434
      %7486 = vmatprep.subr.bf16.mxu0 0
      %7487 = vmatpush1.bf16.msra.mxu0 %v7435
      %7488 = vmatprep.subr.bf16.mxu0 0
      %7489 = vmatpush1.bf16.msra.mxu0 %v7436
      %7490 = vmatprep.subr.bf16.mxu0 0
      %7491 = vmatpush1.bf16.msra.mxu0 %v7437
      %7492 = vmatprep.subr.bf16.mxu0 0
      %7493 = vmatpush1.bf16.msra.mxu0 %v7438
      %7494 = vmatprep.subr.bf16.mxu0 0
      %7495 = vmatpush1.bf16.msra.mxu0 %v7439
      %7496 = vmatprep.subr.bf16.mxu0 0
      %7497 = vmatpush1.bf16.msra.mxu0 %v7440
      %7498 = vmatprep.subr.bf16.mxu0 0
      %7499 = vmatpush1.bf16.msra.mxu0 %v7441
      %7500 = vmatprep.subr.bf16.mxu0 0
      %7501 = vmatpush1.bf16.msra.mxu0 %v7442
      %7502 = vmatprep.subr.bf16.mxu0 0
      %7503 = vmatpush1.bf16.msra.mxu0 %v7443
      %7504 = vmatprep.subr.bf16.mxu0 0
      %7505 = vmatpush1.bf16.msra.mxu0 %v7444
      %7506 = vmatprep.subr.bf16.mxu0 0
      %7507 = vmatpush1.bf16.msra.mxu0 %v7445
      %7508 = vmatprep.subr.bf16.mxu0 0
      %7509 = vmatpush1.bf16.msra.mxu0 %v7446
      %7510 = vmatprep.subr.bf16.mxu0 0
      %7511 = vmatpush1.bf16.msra.mxu0 %v7447
      %7512 = vmatprep.mubr.bf16.mxu0 %v7186
      %7513 = vmatmul.mubr.bf16.gmra.mrb[0].mxu0 %v7185
      %v7514 = vpop.f32.mrb[0].mxu0
      %v7515 = vadd.f32 %v7334, %v7514
      %v7516 = vpop.f32.mrb[0].mxu0
      %v7517 = vpop.f32.mrb[0].mxu0
      %v7518 = vadd.f32 %v7334, %v7517
      %v7519 = vpop.f32.mrb[0].mxu0
      %7520 = vmatprep.mubr.bf16.mxu0 %v7189
      %7521 = vmatmul.mubr.bf16.gmra.mrb[0].mxu0 %v7188
      %v7522 = vpop.f32.mrb[0].mxu0
      %v7523 = vadd.f32 %v7334, %v7522
      %v7524 = vpop.f32.mrb[0].mxu0
      %v7525 = vpop.f32.mrb[0].mxu0
      %v7526 = vadd.f32 %v7334, %v7525
      %v7527 = vpop.f32.mrb[0].mxu0
      %7528 = vmatprep.mubr.bf16.mxu0 %v7192
      %7529 = vmatmul.mubr.bf16.gmra.mrb[0].mxu0 %v7191
      %v7530 = vpop.f32.mrb[0].mxu0
      %v7531 = vadd.f32 %v7334, %v7530
      %v7532 = vpop.f32.mrb[0].mxu0
      %v7533 = vpop.f32.mrb[0].mxu0
      %v7534 = vadd.f32 %v7334, %v7533
      %v7535 = vpop.f32.mrb[0].mxu0
      %7536 = vmatprep.mubr.bf16.mxu0 %v7195
      %7537 = vmatmul.mubr.bf16.gmra.mrb[0].mxu0 %v7194
      %v7538 = vpop.f32.mrb[0].mxu0
      %v7539 = vadd.f32 %v7334, %v7538
      %v7540 = vpop.f32.mrb[0].mxu0
      %v7541 = vpop.f32.mrb[0].mxu0
      %v7542 = vadd.f32 %v7334, %v7541
      %v7543 = vpop.f32.mrb[0].mxu0
      %7544 = vmatprep.mubr.bf16.mxu0 %v7198
      %7545 = vmatmul.mubr.bf16.gmra.mrb[0].mxu0 %v7197
      %v7546 = vpop.f32.mrb[0].mxu0
      %v7547 = vadd.f32 %v7334, %v7546
      %v7548 = vpop.f32.mrb[0].mxu0
      %v7549 = vpop.f32.mrb[0].mxu0
      %v7550 = vadd.f32 %v7334, %v7549
      %v7551 = vpop.f32.mrb[0].mxu0
      %7552 = vmatprep.mubr.bf16.mxu0 %v7201
      %7553 = vmatmul.mubr.bf16.gmra.mrb[0].mxu0 %v7200
      %v7554 = vpop.f32.mrb[0].mxu0
      %v7555 = vadd.f32 %v7334, %v7554
      %v7556 = vpop.f32.mrb[0].mxu0
      %v7557 = vpop.f32.mrb[0].mxu0
      %v7558 = vadd.f32 %v7334, %v7557
      %v7559 = vpop.f32.mrb[0].mxu0
      %7560 = vmatprep.mubr.bf16.mxu0 %v7204
      %7561 = vmatmul.mubr.bf16.gmra.mrb[0].mxu0 %v7203
      %v7562 = vpop.f32.mrb[0].mxu0
      %v7563 = vadd.f32 %v7334, %v7562
      %v7564 = vpop.f32.mrb[0].mxu0
      %v7565 = vpop.f32.mrb[0].mxu0
      %v7566 = vadd.f32 %v7334, %v7565
      %v7567 = vpop.f32.mrb[0].mxu0
      %7568 = vmatprep.mubr.bf16.mxu0 %v7207
      %7569 = vmatmul.mubr.bf16.gmra.mrb[0].mxu0 %v7206
      %v7570 = vpop.f32.mrb[0].mxu0
      %v7571 = vadd.f32 %v7334, %v7570
      %v7572 = vpop.f32.mrb[0].mxu0
      %v7573 = vpop.f32.mrb[0].mxu0
      %v7574 = vadd.f32 %v7334, %v7573
      %v7575 = vpop.f32.mrb[0].mxu0
      %7576 = vmatprep.mubr.bf16.mxu0 %v7210
      %7577 = vmatmul.mubr.bf16.gmra.mrb[0].mxu0 %v7209
      %v7578 = vpop.f32.mrb[0].mxu0
      %v7579 = vadd.f32 %v7334, %v7578
      %v7580 = vpop.f32.mrb[0].mxu0
      %v7581 = vpop.f32.mrb[0].mxu0
      %v7582 = vadd.f32 %v7334, %v7581
      %v7583 = vpop.f32.mrb[0].mxu0
      %7584 = vmatprep.mubr.bf16.mxu0 %v7213
      %7585 = vmatmul.mubr.bf16.gmra.mrb[0].mxu0 %v7212
      %v7586 = vpop.f32.mrb[0].mxu0
      %v7587 = vadd.f32 %v7334, %v7586
      %v7588 = vpop.f32.mrb[0].mxu0
      %v7589 = vpop.f32.mrb[0].mxu0
      %v7590 = vadd.f32 %v7334, %v7589
      %v7591 = vpop.f32.mrb[0].mxu0
      %7592 = vmatprep.mubr.bf16.mxu0 %v7216
      %7593 = vmatmul.mubr.bf16.gmra.mrb[0].mxu0 %v7215
      %v7594 = vpop.f32.mrb[0].mxu0
      %v7595 = vadd.f32 %v7334, %v7594
      %v7596 = vpop.f32.mrb[0].mxu0
      %v7597 = vpop.f32.mrb[0].mxu0
      %v7598 = vadd.f32 %v7334, %v7597
      %v7599 = vpop.f32.mrb[0].mxu0
      %7600 = vmatprep.mubr.bf16.mxu0 %v7219
      %7601 = vmatmul.mubr.bf16.gmra.mrb[0].mxu0 %v7218
      %v7602 = vpop.f32.mrb[0].mxu0
      %v7603 = vadd.f32 %v7334, %v7602
      %v7604 = vpop.f32.mrb[0].mxu0
      %v7605 = vpop.f32.mrb[0].mxu0
      %v7606 = vadd.f32 %v7334, %v7605
      %v7607 = vpop.f32.mrb[0].mxu0
      %7608 = vmatprep.mubr.bf16.mxu0 %v7222
      %7609 = vmatmul.mubr.bf16.gmra.mrb[0].mxu0 %v7221
      %v7610 = vpop.f32.mrb[0].mxu0
      %v7611 = vadd.f32 %v7334, %v7610
      %v7612 = vpop.f32.mrb[0].mxu0
      %v7613 = vpop.f32.mrb[0].mxu0
      %v7614 = vadd.f32 %v7334, %v7613
      %v7615 = vpop.f32.mrb[0].mxu0
      %7616 = vmatprep.mubr.bf16.mxu0 %v7225
      %7617 = vmatmul.mubr.bf16.gmra.mrb[0].mxu0 %v7224
      %v7618 = vpop.f32.mrb[0].mxu0
      %v7619 = vadd.f32 %v7334, %v7618
      %v7620 = vpop.f32.mrb[0].mxu0
      %v7621 = vpop.f32.mrb[0].mxu0
      %v7622 = vadd.f32 %v7334, %v7621
      %v7623 = vpop.f32.mrb[0].mxu0
      %7624 = vmatprep.mubr.bf16.mxu0 %v7228
      %7625 = vmatmul.mubr.bf16.gmra.mrb[0].mxu0 %v7227
      %v7626 = vpop.f32.mrb[0].mxu0
      %v7627 = vadd.f32 %v7334, %v7626
      %v7628 = vpop.f32.mrb[0].mxu0
      %v7629 = vpop.f32.mrb[0].mxu0
      %v7630 = vadd.f32 %v7334, %v7629
      %v7631 = vpop.f32.mrb[0].mxu0
      %7632 = vmatprep.mubr.bf16.mxu0 %v7231
      %7633 = vmatmul.mubr.bf16.gmra.mrb[0].mxu0 %v7230
      %v7634 = vpop.f32.mrb[0].mxu0
      %v7635 = vadd.f32 %v7334, %v7634
      %v7636 = vpop.f32.mrb[0].mxu0
      %v7637 = vpop.f32.mrb[0].mxu0
      %v7638 = vadd.f32 %v7334, %v7637
      %v7639 = vpop.f32.mrb[0].mxu0
      %7640 = vmatprep.mubr.bf16.mxu0 %v7234
      %7641 = vmatmul.mubr.bf16.gmra.mrb[0].mxu0 %v7233
      %v7642 = vpop.f32.mrb[0].mxu0
      %v7643 = vadd.f32 %v7334, %v7642
      %v7644 = vpop.f32.mrb[0].mxu0
      %v7645 = vpop.f32.mrb[0].mxu0
      %v7646 = vadd.f32 %v7334, %v7645
      %v7647 = vpop.f32.mrb[0].mxu0
      %7648 = vmatprep.mubr.bf16.mxu0 %v7237
      %7649 = vmatmul.mubr.bf16.gmra.mrb[0].mxu0 %v7236
      %v7650 = vpop.f32.mrb[0].mxu0
      %v7651 = vadd.f32 %v7334, %v7650
      %v7652 = vpop.f32.mrb[0].mxu0
      %v7653 = vpop.f32.mrb[0].mxu0
      %v7654 = vadd.f32 %v7334, %v7653
      %v7655 = vpop.f32.mrb[0].mxu0
      %7656 = vmatprep.mubr.bf16.mxu0 %v7240
      %7657 = vmatmul.mubr.bf16.gmra.mrb[0].mxu0 %v7239
      %v7658 = vpop.f32.mrb[0].mxu0
      %v7659 = vadd.f32 %v7334, %v7658
      %v7660 = vpop.f32.mrb[0].mxu0
      %v7661 = vpop.f32.mrb[0].mxu0
      %v7662 = vadd.f32 %v7334, %v7661
      %v7663 = vpop.f32.mrb[0].mxu0
      %7664 = vmatprep.mubr.bf16.mxu0 %v7243
      %7665 = vmatmul.mubr.bf16.gmra.mrb[0].mxu0 %v7242
      %v7666 = vpop.f32.mrb[0].mxu0
      %v7667 = vadd.f32 %v7334, %v7666
      %v7668 = vpop.f32.mrb[0].mxu0
      %v7669 = vpop.f32.mrb[0].mxu0
      %v7670 = vadd.f32 %v7334, %v7669
      %v7671 = vpop.f32.mrb[0].mxu0
      %7672 = vmatprep.mubr.bf16.mxu0 %v7246
      %7673 = vmatmul.mubr.bf16.gmra.mrb[0].mxu0 %v7245
      %v7674 = vpop.f32.mrb[0].mxu0
      %v7675 = vadd.f32 %v7334, %v7674
      %v7676 = vpop.f32.mrb[0].mxu0
      %v7677 = vpop.f32.mrb[0].mxu0
      %v7678 = vadd.f32 %v7334, %v7677
      %v7679 = vpop.f32.mrb[0].mxu0
      %7680 = vmatprep.mubr.bf16.mxu0 %v7249
      %7681 = vmatmul.mubr.bf16.gmra.mrb[0].mxu0 %v7248
      %v7682 = vpop.f32.mrb[0].mxu0
      %v7683 = vadd.f32 %v7334, %v7682
      %v7684 = vpop.f32.mrb[0].mxu0
      %v7685 = vpop.f32.mrb[0].mxu0
      %v7686 = vadd.f32 %v7334, %v7685
      %v7687 = vpop.f32.mrb[0].mxu0
      %7688 = vmatprep.mubr.bf16.mxu0 %v7252
      %7689 = vmatmul.mubr.bf16.gmra.mrb[0].mxu0 %v7251
      %v7690 = vpop.f32.mrb[0].mxu0
      %v7691 = vadd.f32 %v7334, %v7690
      %v7692 = vpop.f32.mrb[0].mxu0
      %v7693 = vpop.f32.mrb[0].mxu0
      %v7694 = vadd.f32 %v7334, %v7693
      %v7695 = vpop.f32.mrb[0].mxu0
      %7696 = vmatprep.mubr.bf16.mxu0 %v7255
      %7697 = vmatmul.mubr.bf16.gmra.mrb[0].mxu0 %v7254
      %v7698 = vpop.f32.mrb[0].mxu0
      %v7699 = vadd.f32 %v7334, %v7698
      %v7700 = vpop.f32.mrb[0].mxu0
      %v7701 = vpop.f32.mrb[0].mxu0
      %v7702 = vadd.f32 %v7334, %v7701
      %v7703 = vpop.f32.mrb[0].mxu0
      %7704 = vmatprep.mubr.bf16.mxu0 %v7258
      %7705 = vmatmul.mubr.bf16.gmra.mrb[0].mxu0 %v7257
      %v7706 = vpop.f32.mrb[0].mxu0
      %v7707 = vadd.f32 %v7334, %v7706
      %v7708 = vpop.f32.mrb[0].mxu0
      %v7709 = vpop.f32.mrb[0].mxu0
      %v7710 = vadd.f32 %v7334, %v7709
      %v7711 = vpop.f32.mrb[0].mxu0
      %7712 = vmatprep.mubr.bf16.mxu0 %v7261
      %7713 = vmatmul.mubr.bf16.gmra.mrb[0].mxu0 %v7260
      %v7714 = vpop.f32.mrb[0].mxu0
      %v7715 = vadd.f32 %v7334, %v7714
      %v7716 = vpop.f32.mrb[0].mxu0
      %v7717 = vpop.f32.mrb[0].mxu0
      %v7718 = vadd.f32 %v7334, %v7717
      %v7719 = vpop.f32.mrb[0].mxu0
      %7720 = vmatprep.mubr.bf16.mxu0 %v7264
      %7721 = vmatmul.mubr.bf16.gmra.mrb[0].mxu0 %v7263
      %v7722 = vpop.f32.mrb[0].mxu0
      %v7723 = vadd.f32 %v7334, %v7722
      %v7724 = vpop.f32.mrb[0].mxu0
      %v7725 = vpop.f32.mrb[0].mxu0
      %v7726 = vadd.f32 %v7334, %v7725
      %v7727 = vpop.f32.mrb[0].mxu0
      %7728 = vmatprep.mubr.bf16.mxu0 %v7267
      %7729 = vmatmul.mubr.bf16.gmra.mrb[0].mxu0 %v7266
      %v7730 = vpop.f32.mrb[0].mxu0
      %v7731 = vadd.f32 %v7334, %v7730
      %v7732 = vpop.f32.mrb[0].mxu0
      %v7733 = vpop.f32.mrb[0].mxu0
      %v7734 = vadd.f32 %v7334, %v7733
      %v7735 = vpop.f32.mrb[0].mxu0
      %7736 = vmatprep.mubr.bf16.mxu0 %v7270
      %7737 = vmatmul.mubr.bf16.gmra.mrb[0].mxu0 %v7269
      %v7738 = vpop.f32.mrb[0].mxu0
      %v7739 = vadd.f32 %v7334, %v7738
      %v7740 = vpop.f32.mrb[0].mxu0
      %v7741 = vpop.f32.mrb[0].mxu0
      %v7742 = vadd.f32 %v7334, %v7741
      %v7743 = vpop.f32.mrb[0].mxu0
      %7744 = vmatprep.mubr.bf16.mxu0 %v7273
      %7745 = vmatmul.mubr.bf16.gmra.mrb[0].mxu0 %v7272
      %v7746 = vpop.f32.mrb[0].mxu0
      %v7747 = vadd.f32 %v7334, %v7746
      %v7748 = vpop.f32.mrb[0].mxu0
      %v7749 = vpop.f32.mrb[0].mxu0
      %v7750 = vadd.f32 %v7334, %v7749
      %v7751 = vpop.f32.mrb[0].mxu0
      %7752 = vmatprep.mubr.bf16.mxu0 %v7276
      %7753 = vmatmul.mubr.bf16.gmra.mrb[0].mxu0 %v7275
      %v7754 = vpop.f32.mrb[0].mxu0
      %v7755 = vadd.f32 %v7334, %v7754
      %v7756 = vpop.f32.mrb[0].mxu0
      %v7757 = vpop.f32.mrb[0].mxu0
      %v7758 = vadd.f32 %v7334, %v7757
      %v7759 = vpop.f32.mrb[0].mxu0
      %7760 = vmatprep.mubr.bf16.mxu0 %v7279
      %7761 = vmatmul.mubr.bf16.gmra.mrb[0].mxu0 %v7278
      %v7762 = vpop.f32.mrb[0].mxu0
      %v7763 = vadd.f32 %v7334, %v7762
      %v7764 = vpop.f32.mrb[0].mxu0
      %v7765 = vpop.f32.mrb[0].mxu0
      %v7766 = vadd.f32 %v7334, %v7765
      %v7767 = vpop.f32.mrb[0].mxu0
      %7768 = vdwg.mxu0
      %7769 = vmatprep.subr.bf16.mxu0 0
      %7770 = vmatpush1.bf16.msra.mxu0 %v7448
      %7771 = vmatprep.subr.bf16.mxu0 0
      %7772 = vmatpush1.bf16.msra.mxu0 %v7449
      %7773 = vmatprep.subr.bf16.mxu0 0
      %7774 = vmatpush1.bf16.msra.mxu0 %v7450
      %7775 = vmatprep.subr.bf16.mxu0 0
      %7776 = vmatpush1.bf16.msra.mxu0 %v7451
      %7777 = vmatprep.subr.bf16.mxu0 0
      %7778 = vmatpush1.bf16.msra.mxu0 %v7452
      %7779 = vmatprep.subr.bf16.mxu0 0
      %7780 = vmatpush1.bf16.msra.mxu0 %v7453
      %7781 = vmatprep.subr.bf16.mxu0 0
      %7782 = vmatpush1.bf16.msra.mxu0 %v7454
      %7783 = vmatprep.subr.bf16.mxu0 0
      %7784 = vmatpush1.bf16.msra.mxu0 %v7455
      %7785 = vmatprep.subr.bf16.mxu0 0
      %7786 = vmatpush1.bf16.msra.mxu0 0
      %7787 = vmatprep.subr.bf16.mxu0 0
      %7788 = vmatpush1.bf16.msra.mxu0 0
      %7789 = vmatprep.subr.bf16.mxu0 0
      %7790 = vmatpush1.bf16.msra.mxu0 0
      %7791 = vmatprep.subr.bf16.mxu0 0
      %7792 = vmatpush1.bf16.msra.mxu0 0
      %7793 = vmatprep.subr.bf16.mxu0 0
      %7794 = vmatpush1.bf16.msra.mxu0 0
      %7795 = vmatprep.subr.bf16.mxu0 0
      %7796 = vmatpush1.bf16.msra.mxu0 0
      %7797 = vmatprep.subr.bf16.mxu0 0
      %7798 = vmatpush1.bf16.msra.mxu0 0
      %7799 = vmatprep.subr.bf16.mxu0 0
      %7800 = vmatpush1.bf16.msra.mxu0 0
      %7801 = vmatprep.mubr.bf16.mxu0 0
      %7802 = vmatmul.mubr.bf16.gmra.mrb[0].mxu0 %v7187
      %v7803 = vpop.f32.mrb[0].mxu0
      %v7804 = vadd.f32 %v7515, %v7803
      %v7805 = vpop.f32.mrb[0].mxu0
      %v7806 = vpop.f32.mrb[0].mxu0
      %v7807 = vadd.f32 %v7518, %v7806
      %v7808 = vpop.f32.mrb[0].mxu0
      %7809 = vmatprep.mubr.bf16.mxu0 0
      %7810 = vmatmul.mubr.bf16.gmra.mrb[0].mxu0 %v7190
      %v7811 = vpop.f32.mrb[0].mxu0
      %v7812 = vadd.f32 %v7523, %v7811
      %v7813 = vpop.f32.mrb[0].mxu0
      %v7814 = vpop.f32.mrb[0].mxu0
      %v7815 = vadd.f32 %v7526, %v7814
      %v7816 = vpop.f32.mrb[0].mxu0
      %7817 = vmatprep.mubr.bf16.mxu0 0
      %7818 = vmatmul.mubr.bf16.gmra.mrb[0].mxu0 %v7193
      %v7819 = vpop.f32.mrb[0].mxu0
      %v7820 = vadd.f32 %v7531, %v7819
      %v7821 = vpop.f32.mrb[0].mxu0
      %v7822 = vpop.f32.mrb[0].mxu0
      %v7823 = vadd.f32 %v7534, %v7822
      %v7824 = vpop.f32.mrb[0].mxu0
      %7825 = vmatprep.mubr.bf16.mxu0 0
      %7826 = vmatmul.mubr.bf16.gmra.mrb[0].mxu0 %v7196
      %v7827 = vpop.f32.mrb[0].mxu0
      %v7828 = vadd.f32 %v7539, %v7827
      %v7829 = vpop.f32.mrb[0].mxu0
      %v7830 = vpop.f32.mrb[0].mxu0
      %v7831 = vadd.f32 %v7542, %v7830
      %v7832 = vpop.f32.mrb[0].mxu0
      %7833 = vmatprep.mubr.bf16.mxu0 0
      %7834 = vmatmul.mubr.bf16.gmra.mrb[0].mxu0 %v7199
      %v7835 = vpop.f32.mrb[0].mxu0
      %v7836 = vadd.f32 %v7547, %v7835
      %v7837 = vpop.f32.mrb[0].mxu0
      %v7838 = vpop.f32.mrb[0].mxu0
      %v7839 = vadd.f32 %v7550, %v7838
      %v7840 = vpop.f32.mrb[0].mxu0
      %7841 = vmatprep.mubr.bf16.mxu0 0
      %7842 = vmatmul.mubr.bf16.gmra.mrb[0].mxu0 %v7202
      %v7843 = vpop.f32.mrb[0].mxu0
      %v7844 = vadd.f32 %v7555, %v7843
      %v7845 = vpop.f32.mrb[0].mxu0
      %v7846 = vpop.f32.mrb[0].mxu0
      %v7847 = vadd.f32 %v7558, %v7846
      %v7848 = vpop.f32.mrb[0].mxu0
      %7849 = vmatprep.mubr.bf16.mxu0 0
      %7850 = vmatmul.mubr.bf16.gmra.mrb[0].mxu0 %v7205
      %v7851 = vpop.f32.mrb[0].mxu0
      %v7852 = vadd.f32 %v7563, %v7851
      %v7853 = vpop.f32.mrb[0].mxu0
      %v7854 = vpop.f32.mrb[0].mxu0
      %v7855 = vadd.f32 %v7566, %v7854
      %v7856 = vpop.f32.mrb[0].mxu0
      %7857 = vmatprep.mubr.bf16.mxu0 0
      %7858 = vmatmul.mubr.bf16.gmra.mrb[0].mxu0 %v7208
      %v7859 = vpop.f32.mrb[0].mxu0
      %v7860 = vadd.f32 %v7571, %v7859
      %v7861 = vpop.f32.mrb[0].mxu0
      %v7862 = vpop.f32.mrb[0].mxu0
      %v7863 = vadd.f32 %v7574, %v7862
      %v7864 = vpop.f32.mrb[0].mxu0
      %7865 = vmatprep.mubr.bf16.mxu0 0
      %7866 = vmatmul.mubr.bf16.gmra.mrb[0].mxu0 %v7211
      %v7867 = vpop.f32.mrb[0].mxu0
      %v7868 = vadd.f32 %v7579, %v7867
      %v7869 = vpop.f32.mrb[0].mxu0
      %v7870 = vpop.f32.mrb[0].mxu0
      %v7871 = vadd.f32 %v7582, %v7870
      %v7872 = vpop.f32.mrb[0].mxu0
      %7873 = vmatprep.mubr.bf16.mxu0 0
      %7874 = vmatmul.mubr.bf16.gmra.mrb[0].mxu0 %v7214
      %v7875 = vpop.f32.mrb[0].mxu0
      %v7876 = vadd.f32 %v7587, %v7875
      %v7877 = vpop.f32.mrb[0].mxu0
      %v7878 = vpop.f32.mrb[0].mxu0
      %v7879 = vadd.f32 %v7590, %v7878
      %v7880 = vpop.f32.mrb[0].mxu0
      %7881 = vmatprep.mubr.bf16.mxu0 0
      %7882 = vmatmul.mubr.bf16.gmra.mrb[0].mxu0 %v7217
      %v7883 = vpop.f32.mrb[0].mxu0
      %v7884 = vadd.f32 %v7595, %v7883
      %v7885 = vpop.f32.mrb[0].mxu0
      %v7886 = vpop.f32.mrb[0].mxu0
      %v7887 = vadd.f32 %v7598, %v7886
      %v7888 = vpop.f32.mrb[0].mxu0
      %7889 = vmatprep.mubr.bf16.mxu0 0
      %7890 = vmatmul.mubr.bf16.gmra.mrb[0].mxu0 %v7220
      %v7891 = vpop.f32.mrb[0].mxu0
      %v7892 = vadd.f32 %v7603, %v7891
      %v7893 = vpop.f32.mrb[0].mxu0
      %v7894 = vpop.f32.mrb[0].mxu0
      %v7895 = vadd.f32 %v7606, %v7894
      %v7896 = vpop.f32.mrb[0].mxu0
      %7897 = vmatprep.mubr.bf16.mxu0 0
      %7898 = vmatmul.mubr.bf16.gmra.mrb[0].mxu0 %v7223
      %v7899 = vpop.f32.mrb[0].mxu0
      %v7900 = vadd.f32 %v7611, %v7899
      %v7901 = vpop.f32.mrb[0].mxu0
      %v7902 = vpop.f32.mrb[0].mxu0
      %v7903 = vadd.f32 %v7614, %v7902
      %v7904 = vpop.f32.mrb[0].mxu0
      %7905 = vmatprep.mubr.bf16.mxu0 0
      %7906 = vmatmul.mubr.bf16.gmra.mrb[0].mxu0 %v7226
      %v7907 = vpop.f32.mrb[0].mxu0
      %v7908 = vadd.f32 %v7619, %v7907
      %v7909 = vpop.f32.mrb[0].mxu0
      %v7910 = vpop.f32.mrb[0].mxu0
      %v7911 = vadd.f32 %v7622, %v7910
      %v7912 = vpop.f32.mrb[0].mxu0
      %7913 = vmatprep.mubr.bf16.mxu0 0
      %7914 = vmatmul.mubr.bf16.gmra.mrb[0].mxu0 %v7229
      %v7915 = vpop.f32.mrb[0].mxu0
      %v7916 = vadd.f32 %v7627, %v7915
      %v7917 = vpop.f32.mrb[0].mxu0
      %v7918 = vpop.f32.mrb[0].mxu0
      %v7919 = vadd.f32 %v7630, %v7918
      %v7920 = vpop.f32.mrb[0].mxu0
      %7921 = vmatprep.mubr.bf16.mxu0 0
      %7922 = vmatmul.mubr.bf16.gmra.mrb[0].mxu0 %v7232
      %v7923 = vpop.f32.mrb[0].mxu0
      %v7924 = vadd.f32 %v7635, %v7923
      %v7925 = vpop.f32.mrb[0].mxu0
      %v7926 = vpop.f32.mrb[0].mxu0
      %v7927 = vadd.f32 %v7638, %v7926
      %v7928 = vpop.f32.mrb[0].mxu0
      %7929 = vmatprep.mubr.bf16.mxu0 0
      %7930 = vmatmul.mubr.bf16.gmra.mrb[0].mxu0 %v7235
      %v7931 = vpop.f32.mrb[0].mxu0
      %v7932 = vadd.f32 %v7643, %v7931
      %v7933 = vpop.f32.mrb[0].mxu0
      %v7934 = vpop.f32.mrb[0].mxu0
      %v7935 = vadd.f32 %v7646, %v7934
      %v7936 = vpop.f32.mrb[0].mxu0
      %7937 = vmatprep.mubr.bf16.mxu0 0
      %7938 = vmatmul.mubr.bf16.gmra.mrb[0].mxu0 %v7238
      %v7939 = vpop.f32.mrb[0].mxu0
      %v7940 = vadd.f32 %v7651, %v7939
      %v7941 = vpop.f32.mrb[0].mxu0
      %v7942 = vpop.f32.mrb[0].mxu0
      %v7943 = vadd.f32 %v7654, %v7942
      %v7944 = vpop.f32.mrb[0].mxu0
      %7945 = vmatprep.mubr.bf16.mxu0 0
      %7946 = vmatmul.mubr.bf16.gmra.mrb[0].mxu0 %v7241
      %v7947 = vpop.f32.mrb[0].mxu0
      %v7948 = vadd.f32 %v7659, %v7947
      %v7949 = vpop.f32.mrb[0].mxu0
      %v7950 = vpop.f32.mrb[0].mxu0
      %v7951 = vadd.f32 %v7662, %v7950
      %v7952 = vpop.f32.mrb[0].mxu0
      %7953 = vmatprep.mubr.bf16.mxu0 0
      %7954 = vmatmul.mubr.bf16.gmra.mrb[0].mxu0 %v7244
      %v7955 = vpop.f32.mrb[0].mxu0
      %v7956 = vadd.f32 %v7667, %v7955
      %v7957 = vpop.f32.mrb[0].mxu0
      %v7958 = vpop.f32.mrb[0].mxu0
      %v7959 = vadd.f32 %v7670, %v7958
      %v7960 = vpop.f32.mrb[0].mxu0
      %7961 = vmatprep.mubr.bf16.mxu0 0
      %7962 = vmatmul.mubr.bf16.gmra.mrb[0].mxu0 %v7247
      %v7963 = vpop.f32.mrb[0].mxu0
      %v7964 = vadd.f32 %v7675, %v7963
      %v7965 = vpop.f32.mrb[0].mxu0
      %v7966 = vpop.f32.mrb[0].mxu0
      %v7967 = vadd.f32 %v7678, %v7966
      %v7968 = vpop.f32.mrb[0].mxu0
      %7969 = vmatprep.mubr.bf16.mxu0 0
      %7970 = vmatmul.mubr.bf16.gmra.mrb[0].mxu0 %v7250
      %v7971 = vpop.f32.mrb[0].mxu0
      %v7972 = vadd.f32 %v7683, %v7971
      %v7973 = vpop.f32.mrb[0].mxu0
      %v7974 = vpop.f32.mrb[0].mxu0
      %v7975 = vadd.f32 %v7686, %v7974
      %v7976 = vpop.f32.mrb[0].mxu0
      %7977 = vmatprep.mubr.bf16.mxu0 0
      %7978 = vmatmul.mubr.bf16.gmra.mrb[0].mxu0 %v7253
      %v7979 = vpop.f32.mrb[0].mxu0
      %v7980 = vadd.f32 %v7691, %v7979
      %v7981 = vpop.f32.mrb[0].mxu0
      %v7982 = vpop.f32.mrb[0].mxu0
      %v7983 = vadd.f32 %v7694, %v7982
      %v7984 = vpop.f32.mrb[0].mxu0
      %7985 = vmatprep.mubr.bf16.mxu0 0
      %7986 = vmatmul.mubr.bf16.gmra.mrb[0].mxu0 %v7256
      %v7987 = vpop.f32.mrb[0].mxu0
      %v7988 = vadd.f32 %v7699, %v7987
      %v7989 = vpop.f32.mrb[0].mxu0
      %v7990 = vpop.f32.mrb[0].mxu0
      %v7991 = vadd.f32 %v7702, %v7990
      %v7992 = vpop.f32.mrb[0].mxu0
      %7993 = vmatprep.mubr.bf16.mxu0 0
      %7994 = vmatmul.mubr.bf16.gmra.mrb[0].mxu0 %v7259
      %v7995 = vpop.f32.mrb[0].mxu0
      %v7996 = vadd.f32 %v7707, %v7995
      %v7997 = vpop.f32.mrb[0].mxu0
      %v7998 = vpop.f32.mrb[0].mxu0
      %v7999 = vadd.f32 %v7710, %v7998
      %v8000 = vpop.f32.mrb[0].mxu0
      %8001 = vmatprep.mubr.bf16.mxu0 0
      %8002 = vmatmul.mubr.bf16.gmra.mrb[0].mxu0 %v7262
      %v8003 = vpop.f32.mrb[0].mxu0
      %v8004 = vadd.f32 %v7715, %v8003
      %v8005 = vpop.f32.mrb[0].mxu0
      %v8006 = vpop.f32.mrb[0].mxu0
      %v8007 = vadd.f32 %v7718, %v8006
      %v8008 = vpop.f32.mrb[0].mxu0
      %8009 = vmatprep.mubr.bf16.mxu0 0
      %8010 = vmatmul.mubr.bf16.gmra.mrb[0].mxu0 %v7265
      %v8011 = vpop.f32.mrb[0].mxu0
      %v8012 = vadd.f32 %v7723, %v8011
      %v8013 = vpop.f32.mrb[0].mxu0
      %v8014 = vpop.f32.mrb[0].mxu0
      %v8015 = vadd.f32 %v7726, %v8014
      %v8016 = vpop.f32.mrb[0].mxu0
      %8017 = vmatprep.mubr.bf16.mxu0 0
      %8018 = vmatmul.mubr.bf16.gmra.mrb[0].mxu0 %v7268
      %v8019 = vpop.f32.mrb[0].mxu0
      %v8020 = vadd.f32 %v7731, %v8019
      %v8021 = vpop.f32.mrb[0].mxu0
      %v8022 = vpop.f32.mrb[0].mxu0
      %v8023 = vadd.f32 %v7734, %v8022
      %v8024 = vpop.f32.mrb[0].mxu0
      %8025 = vmatprep.mubr.bf16.mxu0 0
      %8026 = vmatmul.mubr.bf16.gmra.mrb[0].mxu0 %v7271
      %v8027 = vpop.f32.mrb[0].mxu0
      %v8028 = vadd.f32 %v7739, %v8027
      %v8029 = vpop.f32.mrb[0].mxu0
      %v8030 = vpop.f32.mrb[0].mxu0
      %v8031 = vadd.f32 %v7742, %v8030
      %v8032 = vpop.f32.mrb[0].mxu0
      %8033 = vmatprep.mubr.bf16.mxu0 0
      %8034 = vmatmul.mubr.bf16.gmra.mrb[0].mxu0 %v7274
      %v8035 = vpop.f32.mrb[0].mxu0
      %v8036 = vadd.f32 %v7747, %v8035
      %v8037 = vpop.f32.mrb[0].mxu0
      %v8038 = vpop.f32.mrb[0].mxu0
      %v8039 = vadd.f32 %v7750, %v8038
      %v8040 = vpop.f32.mrb[0].mxu0
      %8041 = vmatprep.mubr.bf16.mxu0 0
      %8042 = vmatmul.mubr.bf16.gmra.mrb[0].mxu0 %v7277
      %v8043 = vpop.f32.mrb[0].mxu0
      %v8044 = vadd.f32 %v7755, %v8043
      %v8045 = vpop.f32.mrb[0].mxu0
      %v8046 = vpop.f32.mrb[0].mxu0
      %v8047 = vadd.f32 %v7758, %v8046
      %v8048 = vpop.f32.mrb[0].mxu0
      %8049 = vmatprep.mubr.bf16.mxu0 0
      %8050 = vmatmul.mubr.bf16.gmra.mrb[0].mxu0 %v7280
      %v8051 = vpop.f32.mrb[0].mxu0
      %v8052 = vadd.f32 %v7763, %v8051
      %v8053 = vpop.f32.mrb[0].mxu0
      %v8054 = vpop.f32.mrb[0].mxu0
      %v8055 = vadd.f32 %v7766, %v8054
      %v8056 = vpop.f32.mrb[0].mxu0
      %8057 = vdwg.mxu0
      %v8058 = vld [vmem:[%s10] sm:$0x1]
      %v8060 = vlaneseq
      %v8061 = vshrl.u32 %v8060, 7
      %v8062 = vsub.s32 0, %v8061
      %v8063 = vrot.slane %v8058, %v8062
      %v8065 = vmul.f32 %v7804, %v8063
      %v8066 = vmul.f32 %v7807, %v8063
      %v8067 = vmul.f32 %v7812, %v8063
      %v8068 = vmul.f32 %v7815, %v8063
      %v8069 = vmul.f32 %v7820, %v8063
      %v8070 = vmul.f32 %v7823, %v8063
      %v8071 = vmul.f32 %v7828, %v8063
      %v8072 = vmul.f32 %v7831, %v8063
      %v8073 = vmul.f32 %v7836, %v8063
      %v8074 = vmul.f32 %v7839, %v8063
      %v8075 = vmul.f32 %v7844, %v8063
      %v8076 = vmul.f32 %v7847, %v8063
      %v8077 = vmul.f32 %v7852, %v8063
      %v8078 = vmul.f32 %v7855, %v8063
      %v8079 = vmul.f32 %v7860, %v8063
      %v8080 = vmul.f32 %v7863, %v8063
      %v8081 = vmul.f32 %v7868, %v8063
      %v8082 = vmul.f32 %v7871, %v8063
      %v8083 = vmul.f32 %v7876, %v8063
      %v8084 = vmul.f32 %v7879, %v8063
      %v8085 = vmul.f32 %v7884, %v8063
      %v8086 = vmul.f32 %v7887, %v8063
      %v8087 = vmul.f32 %v7892, %v8063
      %v8088 = vmul.f32 %v7895, %v8063
      %v8089 = vmul.f32 %v7900, %v8063
      %v8090 = vmul.f32 %v7903, %v8063
      %v8091 = vmul.f32 %v7908, %v8063
      %v8092 = vmul.f32 %v7911, %v8063
      %v8093 = vmul.f32 %v7916, %v8063
      %v8094 = vmul.f32 %v7919, %v8063
      %v8095 = vmul.f32 %v7924, %v8063
      %v8096 = vmul.f32 %v7927, %v8063
      %v8097 = vmul.f32 %v7932, %v8063
      %v8098 = vmul.f32 %v7935, %v8063
      %v8099 = vmul.f32 %v7940, %v8063
      %v8100 = vmul.f32 %v7943, %v8063
      %v8101 = vmul.f32 %v7948, %v8063
      %v8102 = vmul.f32 %v7951, %v8063
      %v8103 = vmul.f32 %v7956, %v8063
      %v8104 = vmul.f32 %v7959, %v8063
      %v8105 = vmul.f32 %v7964, %v8063
      %v8106 = vmul.f32 %v7967, %v8063
      %v8107 = vmul.f32 %v7972, %v8063
      %v8108 = vmul.f32 %v7975, %v8063
      %v8109 = vmul.f32 %v7980, %v8063
      %v8110 = vmul.f32 %v7983, %v8063
      %v8111 = vmul.f32 %v7988, %v8063
      %v8112 = vmul.f32 %v7991, %v8063
      %v8113 = vmul.f32 %v7996, %v8063
      %v8114 = vmul.f32 %v7999, %v8063
      %v8115 = vmul.f32 %v8004, %v8063
      %v8116 = vmul.f32 %v8007, %v8063
      %v8117 = vmul.f32 %v8012, %v8063
      %v8118 = vmul.f32 %v8015, %v8063
      %v8119 = vmul.f32 %v8020, %v8063
      %v8120 = vmul.f32 %v8023, %v8063
      %v8121 = vmul.f32 %v8028, %v8063
      %v8122 = vmul.f32 %v8031, %v8063
      %v8123 = vmul.f32 %v8036, %v8063
      %v8124 = vmul.f32 %v8039, %v8063
      %v8125 = vmul.f32 %v8044, %v8063
      %v8126 = vmul.f32 %v8047, %v8063
      %v8127 = vmul.f32 %v8052, %v8063
      %v8128 = vmul.f32 %v8055, %v8063
      %v8129 = vadd.f32 %v8065, %v1357
      %v8130 = vadd.f32 %v8066, %v1356
      %v8131 = vadd.f32 %v8067, %v1355
      %v8132 = vadd.f32 %v8068, %v1354
      %v8133 = vadd.f32 %v8069, %v1353
      %v8134 = vadd.f32 %v8070, %v1352
      %v8135 = vadd.f32 %v8071, %v1351
      %v8136 = vadd.f32 %v8072, %v1350
      %v8137 = vadd.f32 %v8073, %v1349
      %v8138 = vadd.f32 %v8074, %v1348
      %v8139 = vadd.f32 %v8075, %v1347
      %v8140 = vadd.f32 %v8076, %v1346
      %v8141 = vadd.f32 %v8077, %v1345
      %v8142 = vadd.f32 %v8078, %v1344
      %v8143 = vadd.f32 %v8079, %v1343
      %v8144 = vadd.f32 %v8080, %v1342
      %v8145 = vadd.f32 %v8081, %v1341
      %v8146 = vadd.f32 %v8082, %v1340
      %v8147 = vadd.f32 %v8083, %v1339
      %v8148 = vadd.f32 %v8084, %v1338
      %v8149 = vadd.f32 %v8085, %v1337
      %v8150 = vadd.f32 %v8086, %v1336
      %v8151 = vadd.f32 %v8087, %v1335
      %v8152 = vadd.f32 %v8088, %v1334
      %v8153 = vadd.f32 %v8089, %v1333
      %v8154 = vadd.f32 %v8090, %v1332
      %v8155 = vadd.f32 %v8091, %v1331
      %v8156 = vadd.f32 %v8092, %v1330
      %v8157 = vadd.f32 %v8093, %v1329
      %v8158 = vadd.f32 %v8094, %v1328
      %v8159 = vadd.f32 %v8095, %v1327
      %v8160 = vadd.f32 %v8096, %v1326
      %v8161 = vadd.f32 %v8097, %v1325
      %v8162 = vadd.f32 %v8098, %v1324
      %v8163 = vadd.f32 %v8099, %v1323
      %v8164 = vadd.f32 %v8100, %v1322
      %v8165 = vadd.f32 %v8101, %v1321
      %v8166 = vadd.f32 %v8102, %v1320
      %v8167 = vadd.f32 %v8103, %v1319
      %v8168 = vadd.f32 %v8104, %v1318
      %v8169 = vadd.f32 %v8105, %v1317
      %v8170 = vadd.f32 %v8106, %v1316
      %v8171 = vadd.f32 %v8107, %v1315
      %v8172 = vadd.f32 %v8108, %v1314
      %v8173 = vadd.f32 %v8109, %v1313
      %v8174 = vadd.f32 %v8110, %v1312
      %v8175 = vadd.f32 %v8111, %v1311
      %v8176 = vadd.f32 %v8112, %v1310
      %v8177 = vadd.f32 %v8113, %v1309
      %v8178 = vadd.f32 %v8114, %v1308
      %v8179 = vadd.f32 %v8115, %v1307
      %v8180 = vadd.f32 %v8116, %v1306
      %v8181 = vadd.f32 %v8117, %v1305
      %v8182 = vadd.f32 %v8118, %v1304
      %v8183 = vadd.f32 %v8119, %v1303
      %v8184 = vadd.f32 %v8120, %v1302
      %v8185 = vadd.f32 %v8121, %v1301
      %v8186 = vadd.f32 %v8122, %v1300
      %v8187 = vadd.f32 %v8123, %v1299
      %v8188 = vadd.f32 %v8124, %v1298
      %v8189 = vadd.f32 %v8125, %v1297
      %v8190 = vadd.f32 %v8126, %v1296
      %v8191 = vadd.f32 %v8127, %v1295
      %v8192 = vadd.f32 %v8128, %v1294
      %8193 = vst [vmem:[%s489] sm:$0xff] %v8129
      %8194 = vst [vmem:[%s489 + $0x8] sm:$0xff] %v8130
      %8195 = vst [vmem:[%s489 + $0x10] sm:$0xff] %v8131
      %8196 = vst [vmem:[%s489 + $0x18] sm:$0xff] %v8132
      %8197 = vst [vmem:[%s489 + $0x20] sm:$0xff] %v8133
      %8198 = vst [vmem:[%s489 + $0x28] sm:$0xff] %v8134
      %8199 = vst [vmem:[%s489 + $0x30] sm:$0xff] %v8135
      %8200 = vst [vmem:[%s489 + $0x38] sm:$0xff] %v8136
      %8201 = vst [vmem:[%s489 + $0x40] sm:$0xff] %v8137
      %8202 = vst [vmem:[%s489 + $0x48] sm:$0xff] %v8138
      %8203 = vst [vmem:[%s489 + $0x50] sm:$0xff] %v8139
      %8204 = vst [vmem:[%s489 + $0x58] sm:$0xff] %v8140
      %8205 = vst [vmem:[%s489 + $0x60] sm:$0xff] %v8141
      %8206 = vst [vmem:[%s489 + $0x68] sm:$0xff] %v8142
      %8207 = vst [vmem:[%s489 + $0x70] sm:$0xff] %v8143
      %8208 = vst [vmem:[%s489 + $0x78] sm:$0xff] %v8144
      %8209 = vst [vmem:[%s489 + $0x80] sm:$0xff] %v8145
      %8210 = vst [vmem:[%s489 + $0x88] sm:$0xff] %v8146
      %8211 = vst [vmem:[%s489 + $0x90] sm:$0xff] %v8147
      %8212 = vst [vmem:[%s489 + $0x98] sm:$0xff] %v8148
      %8213 = vst [vmem:[%s489 + $0xa0] sm:$0xff] %v8149
      %8214 = vst [vmem:[%s489 + $0xa8] sm:$0xff] %v8150
      %8215 = vst [vmem:[%s489 + $0xb0] sm:$0xff] %v8151
      %8216 = vst [vmem:[%s489 + $0xb8] sm:$0xff] %v8152
      %8217 = vst [vmem:[%s489 + $0xc0] sm:$0xff] %v8153
      %8218 = vst [vmem:[%s489 + $0xc8] sm:$0xff] %v8154
      %8219 = vst [vmem:[%s489 + $0xd0] sm:$0xff] %v8155
      %8220 = vst [vmem:[%s489 + $0xd8] sm:$0xff] %v8156
      %8221 = vst [vmem:[%s489 + $0xe0] sm:$0xff] %v8157
      %8222 = vst [vmem:[%s489 + $0xe8] sm:$0xff] %v8158
      %8223 = vst [vmem:[%s489 + $0xf0] sm:$0xff] %v8159
      %8224 = vst [vmem:[%s489 + $0xf8] sm:$0xff] %v8160
      %8225 = vst [vmem:[%s489 + $0x100] sm:$0xff] %v8161
      %8226 = vst [vmem:[%s489 + $0x108] sm:$0xff] %v8162
      %8227 = vst [vmem:[%s489 + $0x110] sm:$0xff] %v8163
      %8228 = vst [vmem:[%s489 + $0x118] sm:$0xff] %v8164
      %8229 = vst [vmem:[%s489 + $0x120] sm:$0xff] %v8165
      %8230 = vst [vmem:[%s489 + $0x128] sm:$0xff] %v8166
      %8231 = vst [vmem:[%s489 + $0x130] sm:$0xff] %v8167
      %8232 = vst [vmem:[%s489 + $0x138] sm:$0xff] %v8168
      %8233 = vst [vmem:[%s489 + $0x140] sm:$0xff] %v8169
      %8234 = vst [vmem:[%s489 + $0x148] sm:$0xff] %v8170
      %8235 = vst [vmem:[%s489 + $0x150] sm:$0xff] %v8171
      %8236 = vst [vmem:[%s489 + $0x158] sm:$0xff] %v8172
      %8237 = vst [vmem:[%s489 + $0x160] sm:$0xff] %v8173
      %8238 = vst [vmem:[%s489 + $0x168] sm:$0xff] %v8174
      %8239 = vst [vmem:[%s489 + $0x170] sm:$0xff] %v8175
      %8240 = vst [vmem:[%s489 + $0x178] sm:$0xff] %v8176
      %8241 = vst [vmem:[%s489 + $0x180] sm:$0xff] %v8177
      %8242 = vst [vmem:[%s489 + $0x188] sm:$0xff] %v8178
      %8243 = vst [vmem:[%s489 + $0x190] sm:$0xff] %v8179
      %8244 = vst [vmem:[%s489 + $0x198] sm:$0xff] %v8180
      %8245 = vst [vmem:[%s489 + $0x1a0] sm:$0xff] %v8181
      %8246 = vst [vmem:[%s489 + $0x1a8] sm:$0xff] %v8182
      %8247 = vst [vmem:[%s489 + $0x1b0] sm:$0xff] %v8183
      %8248 = vst [vmem:[%s489 + $0x1b8] sm:$0xff] %v8184
      %8249 = vst [vmem:[%s489 + $0x1c0] sm:$0xff] %v8185
      %8250 = vst [vmem:[%s489 + $0x1c8] sm:$0xff] %v8186
      %8251 = vst [vmem:[%s489 + $0x1d0] sm:$0xff] %v8187
      %8252 = vst [vmem:[%s489 + $0x1d8] sm:$0xff] %v8188
      %8253 = vst [vmem:[%s489 + $0x1e0] sm:$0xff] %v8189
      %8254 = vst [vmem:[%s489 + $0x1e8] sm:$0xff] %v8190
      %8255 = vst [vmem:[%s489 + $0x1f0] sm:$0xff] %v8191
      %8256 = vst [vmem:[%s489 + $0x1f8] sm:$0xff] %v8192
      %s8257 = smul.u32 64, %s27
      %p8258 = scmp.lt.s32.totalorder %s26, 1
      %s8259 = scalar_select %p8258, %s26, 1
      %p8260 = scmp.lt.s32.totalorder %s8257, 127
      %s8261 = scalar_select %p8260, %s8257, 127
      %s8262 = smul.addr %s8259, 128
      %s8263 = sadd.s32 %s8261, %s8262
      %s8264 = smul.addr %s8263, 8
      %s8265 = scalar_lea.vmem %s11, %s8264
      // Predicated region
      $region65: #{convnext1d.1} parent=63 // pred_check
        %p8266 = pneg %p303
      $region66: #{convnext1d.1} parent=63 // pred_check_branch
        %8268 = sbr.rel (%p8266) target = $region68
      $region67: #{convnext1d.1} parent=63 // pred_region
        %s8269 = smul.u32 64, %s27
      $region68: #{convnext1d.1} parent=63 // pred_fallthru
        _
    $region64: #{convnext1d.1} parent=5 // pred_fallthru
      _
    %p8270 = scmp.le.s32.totalorder 2, %s17
    // Predicated region
    $region69: #{convnext1d.1} parent=5 // pred_check
      %p8271 = pneg %p8270
    $region70: #{convnext1d.1} parent=5 // pred_check_branch
      %8273 = sbr.rel (%p8271) target = $region72
    $region71: #{convnext1d.1} parent=5 // pred_region
      %s8274 = ssub.s32 %s17, 2
      // Predicated region
      $region73: #{convnext1d.1} parent=71 // pred_check
        %p8275 = pneg %p309
      $region74: #{convnext1d.1} parent=71 // pred_check_branch
        %8277 = sbr.rel (%p8275) target = $region76
      $region75: #{convnext1d.1} parent=71 // pred_region
        %s8278 = smul.u32 64, %s29
        %p8279 = scmp.lt.s32.totalorder %s28, 1
        %s8280 = scalar_select %p8279, %s28, 1
        %p8281 = scmp.lt.s32.totalorder %s8278, 127
        %s8282 = scalar_select %p8281, %s8278, 127
        %s8283 = smul.addr %s8280, 128
        %s8284 = sadd.s32 %s8282, %s8283
        %s8285 = smul.addr %s8284, 8
        %s8286 = scalar_lea.vmem %s11, %s8285
      $region76: #{convnext1d.1} parent=71 // pred_fallthru
        _
    $region72: #{convnext1d.1} parent=5 // pred_fallthru
      _
  $region6: #{convnext1d.1} parent=0 // loop_footer
    %s21 = sadd.s32 1, %s17
  $region7: #{convnext1d.1} parent=0 // loop_footer_branch
    %16 = sbr.rel target = $region3
  $region8: #{convnext1d.1} parent=0 // loop_exit
    _

</llo_original>
